<compile_context>
chip_gen: v7x
topology: tpu7x:2x2x1
jax: 0.10.0
libtpu: 0.0.40
codegen_flags: <defaults>
</compile_context>

<pallas_src>
import functools

import jax
import jax.numpy as jnp
import numpy as np
from jax.experimental import pallas as pl
from jax.experimental.pallas import tpu as pltpu


# --------------------------------------------------------------------------- #
# Fast kernel: fused q/e/w1 projection + batched attention dot_generals.
# x_ref / o_ref: (M, E) with M = tb * L (tb (b,t) pairs, L contiguous rows each).
# Weight refs carry a leading num_layers axis; MXU-operand weights are already in
# `matmul_dtype` (bf16 by default), biases stay f32.
# --------------------------------------------------------------------------- #
def _encoder_kernel_fast(x_ref,
                         qew1_w_ref, qew1_b_ref,   # (nl, E, 3H), (nl, 1, 3H)
                         w2_w_ref, w2_b_ref,       # (nl, H, H),  (nl, 1, H)
                         fo_w_ref, fo_b_ref,       # (nl, H, E),  (nl, 1, E)
                         o_ref,
                         *, num_layers, seq_len, hid_dim, matmul_dtype):
    M, E = x_ref.shape
    L = seq_len
    H = hid_dim
    tb = M // L
    md = matmul_dtype
    approx = np.dtype(md) != np.dtype(np.float32)

    x = x_ref[...].astype(jnp.float32)                                     # (M, E)

    for layer in range(num_layers):
        # Fused q_mid / e_mid / w_mid-layer1: ONE (M,E)@(E,3H) MXU GEMM, f32 accumulate,
        # bias + ReLU applied once on the 96-wide result, then lane-sliced.
        fused = jnp.dot(x.astype(md), qew1_w_ref[layer],
                        preferred_element_type=jnp.float32)
        fused = jnp.maximum(fused + qew1_b_ref[layer], 0.0)                # (M, 3H) f32
        q_mid = fused[:, :H]                                               # (M, H)
        e_mid = fused[:, H:2 * H]                                          # (M, H)
        h1 = fused[:, 2 * H:]                                              # (M, H)

        # w_mid layer 2 (MLPLinear_res num_layers=2): Linear -> ReLU (+ residual).
        h2 = jnp.maximum(
            jnp.dot(h1.astype(md), w2_w_ref[layer],
                    preferred_element_type=jnp.float32) + w2_b_ref[layer],
            0.0) + h1                                                      # (M, H) f32

        # Attention, batched over the (b,t) axis (no Python-unrolled loop, no concat).
        qb = q_mid.reshape(tb, L, H)
        eb = e_mid.reshape(tb, L, H)
        hb = h2.reshape(tb, L, H)

        # weight[b,m,n] = sum_l q[b,l,m] * e[b,l,n]    ('btlm,btln->btmn')
        weight = jnp.einsum("blm,bln->bmn", qb.astype(md), eb.astype(md),
                            preferred_element_type=jnp.float32)            # (tb, H, H)

        # Softmax over last dim, f32 epilogue; reciprocal on the EUP slot.
        weight = weight - jnp.max(weight, axis=-1, keepdims=True)
        p = jnp.exp(weight)
        s = jnp.sum(p, axis=-1, keepdims=True)
        attn = p * pl.reciprocal(s, approx=approx)                         # (tb, H, H) f32

        # w[b,p,s] = sum_m h[b,p,m] * attn[b,m,s]      ('btpm,btms->btps')
        w = jnp.einsum("bpm,bms->bps", hb.astype(md), attn.astype(md),
                       preferred_element_type=jnp.float32)                 # (tb, L, H)

        # fc_out as one (M,H)@(H,E) GEMM; result stays VMEM-resident for the next layer.
        x = jnp.dot(w.reshape(M, H).astype(md), fo_w_ref[layer],
                    preferred_element_type=jnp.float32) + fo_b_ref[layer]  # (M, E) f32

    o_ref[...] = x.astype(o_ref.dtype)


# --------------------------------------------------------------------------- #
# Conservative kernel (previously validated structure): separate projections and a
# statically-unrolled per-(b,t) attention loop.  Used only as a fallback.
# --------------------------------------------------------------------------- #
def _encoder_kernel_safe(x_ref,
                         q_w_ref, q_b_ref, e_w_ref, e_b_ref,
                         w1_w_ref, w1_b_ref, w2_w_ref, w2_b_ref,
                         fo_w_ref, fo_b_ref,
                         o_ref,
                         *, num_layers, seq_len, hid_dim, matmul_dtype):
    del hid_dim
    M, E = x_ref.shape
    L = seq_len
    n_bt = M // L
    md = matmul_dtype
    approx = np.dtype(md) != np.dtype(np.float32)

    def proj(v, w_ref, b_ref, layer):
        return jnp.dot(v.astype(md), w_ref[layer],
                       preferred_element_type=jnp.float32) + b_ref[layer]

    x = x_ref[...].astype(jnp.float32)
    for layer in range(num_layers):
        q_mid = jnp.maximum(proj(x, q_w_ref, q_b_ref, layer), 0.0)
        e_mid = jnp.maximum(proj(x, e_w_ref, e_b_ref, layer), 0.0)
        h1 = jnp.maximum(proj(x, w1_w_ref, w1_b_ref, layer), 0.0)
        h2 = jnp.maximum(proj(h1, w2_w_ref, w2_b_ref, layer), 0.0) + h1

        w_tiles = []
        for j in range(n_bt):
            lo, hi = j * L, (j + 1) * L
            qj, ej, hj = q_mid[lo:hi], e_mid[lo:hi], h2[lo:hi]             # (L, H)
            weight = jax.lax.dot_general(
                qj.astype(md), ej.astype(md), (((0,), (0,)), ((), ())),
                preferred_element_type=jnp.float32)                       # (H, H)
            weight = weight - jnp.max(weight, axis=-1, keepdims=True)
            p = jnp.exp(weight)
            s = jnp.sum(p, axis=-1, keepdims=True)
            attn = p * pl.reciprocal(s, approx=approx)
            w_tiles.append(jnp.dot(hj.astype(md), attn.astype(md),
                                   preferred_element_type=jnp.float32))   # (L, H)
        w = jnp.concatenate(w_tiles, axis=0) if n_bt > 1 else w_tiles[0]   # (M, H)

        x = jnp.dot(w.astype(md), fo_w_ref[layer],
                    preferred_element_type=jnp.float32) + fo_b_ref[layer]  # (M, E)

    o_ref[...] = x.astype(o_ref.dtype)


# --------------------------------------------------------------------------- #
# Wrapper: one pallas_call for the whole encoder.
# --------------------------------------------------------------------------- #
def _num_tensorcores_per_chip():
    """2 on v7x (the 'parallel' grid axis shards across TCs), 1 on v5e/v6e."""
    try:
        kind = jax.devices()[0].device_kind.lower()
    except Exception:
        return 1
    return 2 if "v7" in kind else 1


def transformer_encoder(x, layer_params, *, matmul_dtype=jnp.bfloat16, fast=True,
                        bt_chunks=None, vmem_budget_bytes=48 * 1024 * 1024):
    """x: (B, T, L, E) -> (B, T, L, E).  Whole encoder fused into one pallas_call."""
    B, T, L, E = x.shape
    BT = B * T
    num_layers = len(layer_params)
    H = layer_params[0]["q_w"].shape[1]
    md = matmul_dtype

    # NOTE: the module's permute(1,0,2)/permute-back pair only swaps independent batch
    # axes -> numerical no-op; flatten (B,T,L) -> rows directly (saves two HBM transposes).
    xf = x.reshape(BT * L, E)

    def stack(key, cast):
        a = jnp.stack([p[key] for p in layer_params])
        return a.astype(md) if cast else a

    if fast:
        # Fuse q/e/w1 along the output dim (3H <= 128 lanes); pre-cast MXU weights to md.
        qew1_w = jnp.stack([jnp.concatenate([p["q_w"], p["e_w"], p["w1_w"]], axis=1)
                            for p in layer_params]).astype(md)              # (nl, E, 3H)
        qew1_b = jnp.stack([jnp.concatenate([p["q_b"], p["e_b"], p["w1_b"]], axis=1)
                            for p in layer_params])                          # (nl, 1, 3H)
        weights = [qew1_w, qew1_b, stack("w2_w", True), stack("w2_b", False),
                   stack("fo_w", True), stack("fo_b", False)]
        kernel_fn = _encoder_kernel_fast
    else:
        weights = [stack("q_w", True), stack("q_b", False),
                   stack("e_w", True), stack("e_b", False),
                   stack("w1_w", True), stack("w1_b", False),
                   stack("w2_w", True), stack("w2_b", False),
                   stack("fo_w", True), stack("fo_b", False)]
        kernel_fn = _encoder_kernel_safe

    # ---- grid selection: generation-aware + explicit VMEM budget ---------------- #
    weight_bytes = 2 * sum(int(np.prod(a.shape)) * a.dtype.itemsize for a in weights)

    def step_bytes(g):  # rough per-grid-step VMEM footprint
        m = (BT // g) * L
        live = 8 * m * max(E, 3 * H) * 4                 # f32 intermediates (x, fused, h2, w, ...)
        io = 2 * 2 * m * E * x.dtype.itemsize            # double-buffered in/out blocks
        return live + io + weight_bytes

    # valid chunk counts: divide BT and keep the (M, E) block 8-sublane aligned
    candidates = [g for g in range(1, BT + 1)
                  if BT % g == 0 and (g == 1 or ((BT // g) * L) % 8 == 0)]
    preferred = bt_chunks if bt_chunks is not None else _num_tensorcores_per_chip()
    grid_n = preferred if preferred in candidates else 1
    if step_bytes(grid_n) > vmem_budget_bytes:            # chunk more instead of spilling
        fitting = [g for g in candidates
                   if g >= grid_n and step_bytes(g) <= vmem_budget_bytes]
        grid_n = fitting[0] if fitting else candidates[-1]
    tb = BT // grid_n
    M = tb * L
    vmem_limit = int(min(max(2 * step_bytes(grid_n), 32 << 20), 48 << 20))

    def const_spec(a):
        # Whole-array block, same block at every grid step (loaded once, stays in VMEM).
        # (Single-buffering via pl.Buffered(1) would halve weight VMEM; kept default here.)
        return pl.BlockSpec(a.shape, lambda i, _nd=a.ndim: (0,) * _nd)

    kernel = functools.partial(kernel_fn, num_layers=num_layers, seq_len=L,
                               hid_dim=H, matmul_dtype=md)

    out = pl.pallas_call(
        kernel,
        out_shape=jax.ShapeDtypeStruct((BT * L, E), x.dtype),
        grid_spec=pltpu.PrefetchScalarGridSpec(
            num_scalar_prefetch=0,
            grid=(grid_n,),
            in_specs=[pl.BlockSpec((M, E), lambda i: (i, 0))]
                     + [const_spec(a) for a in weights],
            out_specs=pl.BlockSpec((M, E), lambda i: (i, 0)),
        ),
        compiler_params=pltpu.CompilerParams(
            dimension_semantics=("parallel",),
            vmem_limit_bytes=vmem_limit),
    )(xf, *weights)
    return out.reshape(B, T, L, E)


# --------------------------------------------------------------------------- #
# Pure-JAX reference (mirrors the PyTorch module, including the permutes)
# --------------------------------------------------------------------------- #
def block_ref(x, p):
    def lin(v, w, b):
        return jnp.einsum("...i,ij->...j", v, w,
                          precision=jax.lax.Precision.HIGHEST) + b[0]
    q_mid = jnp.maximum(lin(x, p["q_w"], p["q_b"]), 0.0)
    e_mid = jnp.maximum(lin(x, p["e_w"], p["e_b"]), 0.0)
    h1 = jnp.maximum(lin(x, p["w1_w"], p["w1_b"]), 0.0)
    h2 = jnp.maximum(lin(h1, p["w2_w"], p["w2_b"]), 0.0) + h1
    weight = jnp.einsum("btlm,btln->btmn", q_mid, e_mid,
                        precision=jax.lax.Precision.HIGHEST)
    attn = jax.nn.softmax(weight, axis=-1)
    w = jnp.einsum("btpm,btms->btps", h2, attn,
                   precision=jax.lax.Precision.HIGHEST)
    return lin(w, p["fo_w"], p["fo_b"])


def encoder_ref(x, layer_params):
    x = jnp.swapaxes(x, 0, 1)
    for p in layer_params:
        x = block_ref(x, p)
    return jnp.swapaxes(x, 0, 1)


# --------------------------------------------------------------------------- #
# Deterministic parameter init
# --------------------------------------------------------------------------- #
def init_block_params(key, embed_dim, hid_dim):
    ks = jax.random.split(key, 5)

    def lin(k, fin, fout):
        kw, kb = jax.random.split(k)
        w = jax.random.normal(kw, (fin, fout), jnp.float32) / jnp.sqrt(float(fin))
        b = 0.01 * jax.random.normal(kb, (1, fout), jnp.float32)
        return w, b

    q_w, q_b = lin(ks[0], embed_dim, hid_dim)
    e_w, e_b = lin(ks[1], embed_dim, hid_dim)
    w1_w, w1_b = lin(ks[2], embed_dim, hid_dim)
    w2_w, w2_b = lin(ks[3], hid_dim, hid_dim)
    fo_w, fo_b = lin(ks[4], hid_dim, embed_dim)
    return dict(q_w=q_w, q_b=q_b, e_w=e_w, e_b=e_b,
                w1_w=w1_w, w1_b=w1_b, w2_w=w2_w, w2_b=w2_b,
                fo_w=fo_w, fo_b=fo_b)


if __name__ == "__main__":
    B, T, L = 2, 3, 8
    EMBED_DIM = 16       # embed_dim
    HID_DIM = 32         # "num_heads" positional arg -> hid_dim in TransformerBlock
    NUM_LAYERS = 2

    key = jax.random.PRNGKey(0)
    kx, *kl = jax.random.split(key, NUM_LAYERS + 1)
    x = jax.random.normal(kx, (B, T, L, EMBED_DIM), jnp.float32)
    layer_params = [init_block_params(k, EMBED_DIM, HID_DIM) for k in kl]

    ref = jax.block_until_ready(encoder_ref(x, layer_params))

    def run(**kw):
        try:
            return jax.block_until_ready(transformer_encoder(x, layer_params, **kw))
        except Exception:
            # Fallback for Pallas lowerings lacking batched dot_general / unaligned
            # lane slicing: same math, previously validated per-(b,t) structure.
            return jax.block_until_ready(
                transformer_encoder(x, layer_params, fast=False, **kw))

    # Default fast path: bf16 MXU operands (pre-cast weights), f32 accumulation/epilogue.
    out = run()
    assert out.shape == (B, T, L, EMBED_DIM)
    np.testing.assert_allclose(np.asarray(out), np.asarray(ref), rtol=1e-1, atol=1e-1)

    # Exact-ish f32 path (tight check).
    out_f32 = run(matmul_dtype=jnp.float32)
    np.testing.assert_allclose(np.asarray(out_f32), np.asarray(ref),
                               rtol=2e-2, atol=2e-2)

    print("KERNEL_OK")
</pallas_src>

<mosaic_0001>
module attributes {stable_mosaic.version = 11 : i64} {
  func.func @_encoder_kernel_fast(%arg0: i32, %arg1: memref<48x16xf32, #tpu.memory_space<vmem>>, %arg2: memref<2x16x96xbf16, #tpu.memory_space<vmem>>, %arg3: memref<2x1x96xf32, #tpu.memory_space<vmem>>, %arg4: memref<2x32x32xbf16, #tpu.memory_space<vmem>>, %arg5: memref<2x1x32xf32, #tpu.memory_space<vmem>>, %arg6: memref<2x32x16xbf16, #tpu.memory_space<vmem>>, %arg7: memref<2x1x16xf32, #tpu.memory_space<vmem>>, %arg8: memref<48x16xf32, #tpu.memory_space<vmem>>) attributes {dimension_semantics = [#tpu.dimension_semantics<parallel>], iteration_bounds = array<i64: 1>, scalar_prefetch = 0 : i64, scratch_operands = 0 : i64, tpu.core_type = #tpu.core_type<tc>, window_params = [{transform_indices = @transform_0, window_bounds = array<i64: 48, 16>}, {pipeline_mode = #tpu.pipeline_mode<synchronous>, transform_indices = @transform_1, window_bounds = array<i64: 2, 16, 96>}, {pipeline_mode = #tpu.pipeline_mode<synchronous>, transform_indices = @transform_2, window_bounds = array<i64: 2, 1, 96>}, {pipeline_mode = #tpu.pipeline_mode<synchronous>, transform_indices = @transform_3, window_bounds = array<i64: 2, 32, 32>}, {pipeline_mode = #tpu.pipeline_mode<synchronous>, transform_indices = @transform_4, window_bounds = array<i64: 2, 1, 32>}, {pipeline_mode = #tpu.pipeline_mode<synchronous>, transform_indices = @transform_5, window_bounds = array<i64: 2, 32, 16>}, {pipeline_mode = #tpu.pipeline_mode<synchronous>, transform_indices = @transform_6, window_bounds = array<i64: 2, 1, 16>}, {transform_indices = @transform_7, window_bounds = array<i64: 48, 16>}]} {
    %c0 = arith.constant 0 : index
    %c0_0 = arith.constant 0 : index
    %0 = vector.load %arg1[%c0, %c0_0] : memref<48x16xf32, #tpu.memory_space<vmem>>, vector<48x16xf32>
    %1 = arith.truncf %0 : vector<48x16xf32> to vector<48x16xbf16>
    %c0_1 = arith.constant 0 : index
    %c0_2 = arith.constant 0 : index
    %c0_3 = arith.constant 0 : index
    %2 = vector.load %arg2[%c0_1, %c0_2, %c0_3] : memref<2x16x96xbf16, #tpu.memory_space<vmem>>, vector<1x16x96xbf16>
    %3 = vector.shape_cast %2 : vector<1x16x96xbf16> to vector<16x96xbf16>
    %cst = arith.constant dense<0.000000e+00> : vector<48x96xf32>
    %4 = tpu.matmul %1, %3, %cst {dimension_numbers = #tpu.dot_dimension_numbers<[1], [0], [0], [1], [0, 0, 1, 1], [], []>} : vector<48x16xbf16>, vector<16x96xbf16>, vector<48x96xf32> -> vector<48x96xf32>
    %c0_4 = arith.constant 0 : index
    %c0_5 = arith.constant 0 : index
    %c0_6 = arith.constant 0 : index
    %5 = vector.load %arg3[%c0_4, %c0_5, %c0_6] : memref<2x1x96xf32, #tpu.memory_space<vmem>>, vector<1x1x96xf32>
    %6 = vector.shape_cast %5 : vector<1x1x96xf32> to vector<1x96xf32>
    %7 = vector.broadcast %6 : vector<1x96xf32> to vector<48x96xf32>
    %8 = arith.addf %4, %7 : vector<48x96xf32>
    %cst_7 = arith.constant 0.000000e+00 : f32
    %9 = vector.broadcast %cst_7 : f32 to vector<48x96xf32>
    %10 = arith.maximumf %8, %9 : vector<48x96xf32>
    %11 = vector.extract_strided_slice %10 {offsets = [0, 0], sizes = [48, 32], strides = [1, 1]} : vector<48x96xf32> to vector<48x32xf32>
    %12 = vector.extract_strided_slice %10 {offsets = [0, 32], sizes = [48, 32], strides = [1, 1]} : vector<48x96xf32> to vector<48x32xf32>
    %13 = vector.extract_strided_slice %10 {offsets = [0, 64], sizes = [48, 32], strides = [1, 1]} : vector<48x96xf32> to vector<48x32xf32>
    %14 = arith.truncf %13 : vector<48x32xf32> to vector<48x32xbf16>
    %c0_8 = arith.constant 0 : index
    %c0_9 = arith.constant 0 : index
    %c0_10 = arith.constant 0 : index
    %15 = vector.load %arg4[%c0_8, %c0_9, %c0_10] : memref<2x32x32xbf16, #tpu.memory_space<vmem>>, vector<1x32x32xbf16>
    %16 = vector.shape_cast %15 : vector<1x32x32xbf16> to vector<32x32xbf16>
    %cst_11 = arith.constant dense<0.000000e+00> : vector<48x32xf32>
    %17 = tpu.matmul %14, %16, %cst_11 {dimension_numbers = #tpu.dot_dimension_numbers<[1], [0], [0], [1], [0, 0, 1, 1], [], []>} : vector<48x32xbf16>, vector<32x32xbf16>, vector<48x32xf32> -> vector<48x32xf32>
    %c0_12 = arith.constant 0 : index
    %c0_13 = arith.constant 0 : index
    %c0_14 = arith.constant 0 : index
    %18 = vector.load %arg5[%c0_12, %c0_13, %c0_14] : memref<2x1x32xf32, #tpu.memory_space<vmem>>, vector<1x1x32xf32>
    %19 = vector.shape_cast %18 : vector<1x1x32xf32> to vector<1x32xf32>
    %20 = vector.broadcast %19 : vector<1x32xf32> to vector<48x32xf32>
    %21 = arith.addf %17, %20 : vector<48x32xf32>
    %cst_15 = arith.constant 0.000000e+00 : f32
    %22 = vector.broadcast %cst_15 : f32 to vector<48x32xf32>
    %23 = arith.maximumf %21, %22 : vector<48x32xf32>
    %24 = arith.addf %23, %13 : vector<48x32xf32>
    %25 = vector.shape_cast %11 : vector<48x32xf32> to vector<6x8x32xf32>
    %26 = vector.shape_cast %12 : vector<48x32xf32> to vector<6x8x32xf32>
    %27 = vector.shape_cast %24 : vector<48x32xf32> to vector<6x8x32xf32>
    %28 = arith.truncf %25 : vector<6x8x32xf32> to vector<6x8x32xbf16>
    %29 = arith.truncf %26 : vector<6x8x32xf32> to vector<6x8x32xbf16>
    "tpu.trace_start"() <{level = 10 : i32, message = "blm,bln->bmn"}> : () -> ()
    %cst_16 = arith.constant dense<0.000000e+00> : vector<6x32x32xf32>
    %30 = tpu.matmul %28, %29, %cst_16 {dimension_numbers = #tpu.dot_dimension_numbers<[1], [1], [2], [2], [0, 0, 0, 2, 1, 2], [0], [0]>} : vector<6x8x32xbf16>, vector<6x8x32xbf16>, vector<6x32x32xf32> -> vector<6x32x32xf32>
    "tpu.trace_stop"() : () -> ()
    %cst_17 = arith.constant dense<0xFF800000> : vector<6x32xf32>
    %31 = vector.multi_reduction <maximumf>, %30, %cst_17 [2] : vector<6x32x32xf32> to vector<6x32xf32>
    %32 = vector.shape_cast %31 : vector<6x32xf32> to vector<6x32x1xf32>
    %33 = vector.broadcast %32 : vector<6x32x1xf32> to vector<6x32x32xf32>
    %34 = arith.subf %30, %33 : vector<6x32x32xf32>
    %35 = math.exp %34 : vector<6x32x32xf32>
    %cst_18 = arith.constant dense<0.000000e+00> : vector<6x32xf32>
    %36 = vector.multi_reduction <add>, %35, %cst_18 [2] : vector<6x32x32xf32> to vector<6x32xf32>
    %37 = vector.shape_cast %36 : vector<6x32xf32> to vector<6x32x1xf32>
    %38 = tpu.reciprocal %37 {approx = true} : vector<6x32x1xf32> -> vector<6x32x1xf32>
    %39 = vector.broadcast %38 : vector<6x32x1xf32> to vector<6x32x32xf32>
    %40 = arith.mulf %35, %39 : vector<6x32x32xf32>
    %41 = arith.truncf %27 : vector<6x8x32xf32> to vector<6x8x32xbf16>
    %42 = arith.truncf %40 : vector<6x32x32xf32> to vector<6x32x32xbf16>
    "tpu.trace_start"() <{level = 10 : i32, message = "bpm,bms->bps"}> : () -> ()
    %cst_19 = arith.constant dense<0.000000e+00> : vector<6x8x32xf32>
    %43 = tpu.matmul %41, %42, %cst_19 {dimension_numbers = #tpu.dot_dimension_numbers<[2], [1], [1], [2], [0, 0, 0, 1, 1, 2], [0], [0]>} : vector<6x8x32xbf16>, vector<6x32x32xbf16>, vector<6x8x32xf32> -> vector<6x8x32xf32>
    "tpu.trace_stop"() : () -> ()
    %44 = vector.shape_cast %43 : vector<6x8x32xf32> to vector<48x32xf32>
    %45 = arith.truncf %44 : vector<48x32xf32> to vector<48x32xbf16>
    %c0_20 = arith.constant 0 : index
    %c0_21 = arith.constant 0 : index
    %c0_22 = arith.constant 0 : index
    %46 = vector.load %arg6[%c0_20, %c0_21, %c0_22] : memref<2x32x16xbf16, #tpu.memory_space<vmem>>, vector<1x32x16xbf16>
    %47 = vector.shape_cast %46 : vector<1x32x16xbf16> to vector<32x16xbf16>
    %cst_23 = arith.constant dense<0.000000e+00> : vector<48x16xf32>
    %48 = tpu.matmul %45, %47, %cst_23 {dimension_numbers = #tpu.dot_dimension_numbers<[1], [0], [0], [1], [0, 0, 1, 1], [], []>} : vector<48x32xbf16>, vector<32x16xbf16>, vector<48x16xf32> -> vector<48x16xf32>
    %c0_24 = arith.constant 0 : index
    %c0_25 = arith.constant 0 : index
    %c0_26 = arith.constant 0 : index
    %49 = vector.load %arg7[%c0_24, %c0_25, %c0_26] : memref<2x1x16xf32, #tpu.memory_space<vmem>>, vector<1x1x16xf32>
    %50 = vector.shape_cast %49 : vector<1x1x16xf32> to vector<1x16xf32>
    %51 = vector.broadcast %50 : vector<1x16xf32> to vector<48x16xf32>
    %52 = arith.addf %48, %51 : vector<48x16xf32>
    %53 = arith.truncf %52 : vector<48x16xf32> to vector<48x16xbf16>
    %c1 = arith.constant 1 : index
    %c0_27 = arith.constant 0 : index
    %c0_28 = arith.constant 0 : index
    %54 = vector.load %arg2[%c1, %c0_27, %c0_28] : memref<2x16x96xbf16, #tpu.memory_space<vmem>>, vector<1x16x96xbf16>
    %55 = vector.shape_cast %54 : vector<1x16x96xbf16> to vector<16x96xbf16>
    %cst_29 = arith.constant dense<0.000000e+00> : vector<48x96xf32>
    %56 = tpu.matmul %53, %55, %cst_29 {dimension_numbers = #tpu.dot_dimension_numbers<[1], [0], [0], [1], [0, 0, 1, 1], [], []>} : vector<48x16xbf16>, vector<16x96xbf16>, vector<48x96xf32> -> vector<48x96xf32>
    %c1_30 = arith.constant 1 : index
    %c0_31 = arith.constant 0 : index
    %c0_32 = arith.constant 0 : index
    %57 = vector.load %arg3[%c1_30, %c0_31, %c0_32] : memref<2x1x96xf32, #tpu.memory_space<vmem>>, vector<1x1x96xf32>
    %58 = vector.shape_cast %57 : vector<1x1x96xf32> to vector<1x96xf32>
    %59 = vector.broadcast %58 : vector<1x96xf32> to vector<48x96xf32>
    %60 = arith.addf %56, %59 : vector<48x96xf32>
    %cst_33 = arith.constant 0.000000e+00 : f32
    %61 = vector.broadcast %cst_33 : f32 to vector<48x96xf32>
    %62 = arith.maximumf %60, %61 : vector<48x96xf32>
    %63 = vector.extract_strided_slice %62 {offsets = [0, 0], sizes = [48, 32], strides = [1, 1]} : vector<48x96xf32> to vector<48x32xf32>
    %64 = vector.extract_strided_slice %62 {offsets = [0, 32], sizes = [48, 32], strides = [1, 1]} : vector<48x96xf32> to vector<48x32xf32>
    %65 = vector.extract_strided_slice %62 {offsets = [0, 64], sizes = [48, 32], strides = [1, 1]} : vector<48x96xf32> to vector<48x32xf32>
    %66 = arith.truncf %65 : vector<48x32xf32> to vector<48x32xbf16>
    %c1_34 = arith.constant 1 : index
    %c0_35 = arith.constant 0 : index
    %c0_36 = arith.constant 0 : index
    %67 = vector.load %arg4[%c1_34, %c0_35, %c0_36] : memref<2x32x32xbf16, #tpu.memory_space<vmem>>, vector<1x32x32xbf16>
    %68 = vector.shape_cast %67 : vector<1x32x32xbf16> to vector<32x32xbf16>
    %cst_37 = arith.constant dense<0.000000e+00> : vector<48x32xf32>
    %69 = tpu.matmul %66, %68, %cst_37 {dimension_numbers = #tpu.dot_dimension_numbers<[1], [0], [0], [1], [0, 0, 1, 1], [], []>} : vector<48x32xbf16>, vector<32x32xbf16>, vector<48x32xf32> -> vector<48x32xf32>
    %c1_38 = arith.constant 1 : index
    %c0_39 = arith.constant 0 : index
    %c0_40 = arith.constant 0 : index
    %70 = vector.load %arg5[%c1_38, %c0_39, %c0_40] : memref<2x1x32xf32, #tpu.memory_space<vmem>>, vector<1x1x32xf32>
    %71 = vector.shape_cast %70 : vector<1x1x32xf32> to vector<1x32xf32>
    %72 = vector.broadcast %71 : vector<1x32xf32> to vector<48x32xf32>
    %73 = arith.addf %69, %72 : vector<48x32xf32>
    %cst_41 = arith.constant 0.000000e+00 : f32
    %74 = vector.broadcast %cst_41 : f32 to vector<48x32xf32>
    %75 = arith.maximumf %73, %74 : vector<48x32xf32>
    %76 = arith.addf %75, %65 : vector<48x32xf32>
    %77 = vector.shape_cast %63 : vector<48x32xf32> to vector<6x8x32xf32>
    %78 = vector.shape_cast %64 : vector<48x32xf32> to vector<6x8x32xf32>
    %79 = vector.shape_cast %76 : vector<48x32xf32> to vector<6x8x32xf32>
    %80 = arith.truncf %77 : vector<6x8x32xf32> to vector<6x8x32xbf16>
    %81 = arith.truncf %78 : vector<6x8x32xf32> to vector<6x8x32xbf16>
    "tpu.trace_start"() <{level = 10 : i32, message = "blm,bln->bmn"}> : () -> ()
    %cst_42 = arith.constant dense<0.000000e+00> : vector<6x32x32xf32>
    %82 = tpu.matmul %80, %81, %cst_42 {dimension_numbers = #tpu.dot_dimension_numbers<[1], [1], [2], [2], [0, 0, 0, 2, 1, 2], [0], [0]>} : vector<6x8x32xbf16>, vector<6x8x32xbf16>, vector<6x32x32xf32> -> vector<6x32x32xf32>
    "tpu.trace_stop"() : () -> ()
    %cst_43 = arith.constant dense<0xFF800000> : vector<6x32xf32>
    %83 = vector.multi_reduction <maximumf>, %82, %cst_43 [2] : vector<6x32x32xf32> to vector<6x32xf32>
    %84 = vector.shape_cast %83 : vector<6x32xf32> to vector<6x32x1xf32>
    %85 = vector.broadcast %84 : vector<6x32x1xf32> to vector<6x32x32xf32>
    %86 = arith.subf %82, %85 : vector<6x32x32xf32>
    %87 = math.exp %86 : vector<6x32x32xf32>
    %cst_44 = arith.constant dense<0.000000e+00> : vector<6x32xf32>
    %88 = vector.multi_reduction <add>, %87, %cst_44 [2] : vector<6x32x32xf32> to vector<6x32xf32>
    %89 = vector.shape_cast %88 : vector<6x32xf32> to vector<6x32x1xf32>
    %90 = tpu.reciprocal %89 {approx = true} : vector<6x32x1xf32> -> vector<6x32x1xf32>
    %91 = vector.broadcast %90 : vector<6x32x1xf32> to vector<6x32x32xf32>
    %92 = arith.mulf %87, %91 : vector<6x32x32xf32>
    %93 = arith.truncf %79 : vector<6x8x32xf32> to vector<6x8x32xbf16>
    %94 = arith.truncf %92 : vector<6x32x32xf32> to vector<6x32x32xbf16>
    "tpu.trace_start"() <{level = 10 : i32, message = "bpm,bms->bps"}> : () -> ()
    %cst_45 = arith.constant dense<0.000000e+00> : vector<6x8x32xf32>
    %95 = tpu.matmul %93, %94, %cst_45 {dimension_numbers = #tpu.dot_dimension_numbers<[2], [1], [1], [2], [0, 0, 0, 1, 1, 2], [0], [0]>} : vector<6x8x32xbf16>, vector<6x32x32xbf16>, vector<6x8x32xf32> -> vector<6x8x32xf32>
    "tpu.trace_stop"() : () -> ()
    %96 = vector.shape_cast %95 : vector<6x8x32xf32> to vector<48x32xf32>
    %97 = arith.truncf %96 : vector<48x32xf32> to vector<48x32xbf16>
    %c1_46 = arith.constant 1 : index
    %c0_47 = arith.constant 0 : index
    %c0_48 = arith.constant 0 : index
    %98 = vector.load %arg6[%c1_46, %c0_47, %c0_48] : memref<2x32x16xbf16, #tpu.memory_space<vmem>>, vector<1x32x16xbf16>
    %99 = vector.shape_cast %98 : vector<1x32x16xbf16> to vector<32x16xbf16>
    %cst_49 = arith.constant dense<0.000000e+00> : vector<48x16xf32>
    %100 = tpu.matmul %97, %99, %cst_49 {dimension_numbers = #tpu.dot_dimension_numbers<[1], [0], [0], [1], [0, 0, 1, 1], [], []>} : vector<48x32xbf16>, vector<32x16xbf16>, vector<48x16xf32> -> vector<48x16xf32>
    %c1_50 = arith.constant 1 : index
    %c0_51 = arith.constant 0 : index
    %c0_52 = arith.constant 0 : index
    %101 = vector.load %arg7[%c1_50, %c0_51, %c0_52] : memref<2x1x16xf32, #tpu.memory_space<vmem>>, vector<1x1x16xf32>
    %102 = vector.shape_cast %101 : vector<1x1x16xf32> to vector<1x16xf32>
    %103 = vector.broadcast %102 : vector<1x16xf32> to vector<48x16xf32>
    %104 = arith.addf %100, %103 : vector<48x16xf32>
    %c0_53 = arith.constant 0 : index
    %c0_54 = arith.constant 0 : index
    %105 = vector.load %arg8[%c0_53, %c0_54] : memref<48x16xf32, #tpu.memory_space<vmem>>, vector<48x16xf32>
    tpu.vector_store %arg8[%c0_53, %c0_54], %104 {strides = array<i32>} : memref<48x16xf32, #tpu.memory_space<vmem>>, vector<48x16xf32>,
    return
  }
  func.func @transform_0(%arg0: i32) -> (i32, i32) {
    %c0_i32 = arith.constant 0 : i32
    %c0_i32_0 = arith.constant 0 : i32
    return %arg0, %c0_i32 : i32, i32
  }
  func.func @transform_1(%arg0: i32) -> (i32, i32, i32) {
    %c0_i32 = arith.constant 0 : i32
    %c0_i32_0 = arith.constant 0 : i32
    %c0_i32_1 = arith.constant 0 : i32
    %c0_i32_2 = arith.constant 0 : i32
    return %c0_i32, %c0_i32_0, %c0_i32_1 : i32, i32, i32
  }
  func.func @transform_2(%arg0: i32) -> (i32, i32, i32) {
    %c0_i32 = arith.constant 0 : i32
    %c0_i32_0 = arith.constant 0 : i32
    %c0_i32_1 = arith.constant 0 : i32
    %c0_i32_2 = arith.constant 0 : i32
    return %c0_i32, %c0_i32_0, %c0_i32_1 : i32, i32, i32
  }
  func.func @transform_3(%arg0: i32) -> (i32, i32, i32) {
    %c0_i32 = arith.constant 0 : i32
    %c0_i32_0 = arith.constant 0 : i32
    %c0_i32_1 = arith.constant 0 : i32
    %c0_i32_2 = arith.constant 0 : i32
    return %c0_i32, %c0_i32_0, %c0_i32_1 : i32, i32, i32
  }
  func.func @transform_4(%arg0: i32) -> (i32, i32, i32) {
    %c0_i32 = arith.constant 0 : i32
    %c0_i32_0 = arith.constant 0 : i32
    %c0_i32_1 = arith.constant 0 : i32
    %c0_i32_2 = arith.constant 0 : i32
    return %c0_i32, %c0_i32_0, %c0_i32_1 : i32, i32, i32
  }
  func.func @transform_5(%arg0: i32) -> (i32, i32, i32) {
    %c0_i32 = arith.constant 0 : i32
    %c0_i32_0 = arith.constant 0 : i32
    %c0_i32_1 = arith.constant 0 : i32
    %c0_i32_2 = arith.constant 0 : i32
    return %c0_i32, %c0_i32_0, %c0_i32_1 : i32, i32, i32
  }
  func.func @transform_6(%arg0: i32) -> (i32, i32, i32) {
    %c0_i32 = arith.constant 0 : i32
    %c0_i32_0 = arith.constant 0 : i32
    %c0_i32_1 = arith.constant 0 : i32
    %c0_i32_2 = arith.constant 0 : i32
    return %c0_i32, %c0_i32_0, %c0_i32_1 : i32, i32, i32
  }
  func.func @transform_7(%arg0: i32) -> (i32, i32) {
    %c0_i32 = arith.constant 0 : i32
    %c0_i32_0 = arith.constant 0 : i32
    return %arg0, %c0_i32 : i32, i32
  }
}

module attributes {stable_mosaic.version = 11 : i64} {
  func.func @_encoder_kernel_safe(%arg0: i32, %arg1: memref<48x16xf32, #tpu.memory_space<vmem>>, %arg2: memref<2x16x32xbf16, #tpu.memory_space<vmem>>, %arg3: memref<2x1x32xf32, #tpu.memory_space<vmem>>, %arg4: memref<2x16x32xbf16, #tpu.memory_space<vmem>>, %arg5: memref<2x1x32xf32, #tpu.memory_space<vmem>>, %arg6: memref<2x16x32xbf16, #tpu.memory_space<vmem>>, %arg7: memref<2x1x32xf32, #tpu.memory_space<vmem>>, %arg8: memref<2x32x32xbf16, #tpu.memory_space<vmem>>, %arg9: memref<2x1x32xf32, #tpu.memory_space<vmem>>, %arg10: memref<2x32x16xbf16, #tpu.memory_space<vmem>>, %arg11: memref<2x1x16xf32, #tpu.memory_space<vmem>>, %arg12: memref<48x16xf32, #tpu.memory_space<vmem>>) attributes {dimension_semantics = [#tpu.dimension_semantics<parallel>], iteration_bounds = array<i64: 1>, scalar_prefetch = 0 : i64, scratch_operands = 0 : i64, tpu.core_type = #tpu.core_type<tc>, window_params = [{transform_indices = @transform_0, window_bounds = array<i64: 48, 16>}, {pipeline_mode = #tpu.pipeline_mode<synchronous>, transform_indices = @transform_1, window_bounds = array<i64: 2, 16, 32>}, {pipeline_mode = #tpu.pipeline_mode<synchronous>, transform_indices = @transform_2, window_bounds = array<i64: 2, 1, 32>}, {pipeline_mode = #tpu.pipeline_mode<synchronous>, transform_indices = @transform_3, window_bounds = array<i64: 2, 16, 32>}, {pipeline_mode = #tpu.pipeline_mode<synchronous>, transform_indices = @transform_4, window_bounds = array<i64: 2, 1, 32>}, {pipeline_mode = #tpu.pipeline_mode<synchronous>, transform_indices = @transform_5, window_bounds = array<i64: 2, 16, 32>}, {pipeline_mode = #tpu.pipeline_mode<synchronous>, transform_indices = @transform_6, window_bounds = array<i64: 2, 1, 32>}, {pipeline_mode = #tpu.pipeline_mode<synchronous>, transform_indices = @transform_7, window_bounds = array<i64: 2, 32, 32>}, {pipeline_mode = #tpu.pipeline_mode<synchronous>, transform_indices = @transform_8, window_bounds = array<i64: 2, 1, 32>}, {pipeline_mode = #tpu.pipeline_mode<synchronous>, transform_indices = @transform_9, window_bounds = array<i64: 2, 32, 16>}, {pipeline_mode = #tpu.pipeline_mode<synchronous>, transform_indices = @transform_10, window_bounds = array<i64: 2, 1, 16>}, {transform_indices = @transform_11, window_bounds = array<i64: 48, 16>}]} {
    %c0 = arith.constant 0 : index
    %c0_0 = arith.constant 0 : index
    %0 = vector.load %arg1[%c0, %c0_0] : memref<48x16xf32, #tpu.memory_space<vmem>>, vector<48x16xf32>
    %1 = arith.truncf %0 : vector<48x16xf32> to vector<48x16xbf16>
    %c0_1 = arith.constant 0 : index
    %c0_2 = arith.constant 0 : index
    %c0_3 = arith.constant 0 : index
    %2 = vector.load %arg2[%c0_1, %c0_2, %c0_3] : memref<2x16x32xbf16, #tpu.memory_space<vmem>>, vector<1x16x32xbf16>
    %3 = vector.shape_cast %2 : vector<1x16x32xbf16> to vector<16x32xbf16>
    %cst = arith.constant dense<0.000000e+00> : vector<48x32xf32>
    %4 = tpu.matmul %1, %3, %cst {dimension_numbers = #tpu.dot_dimension_numbers<[1], [0], [0], [1], [0, 0, 1, 1], [], []>} : vector<48x16xbf16>, vector<16x32xbf16>, vector<48x32xf32> -> vector<48x32xf32>
    %c0_4 = arith.constant 0 : index
    %c0_5 = arith.constant 0 : index
    %c0_6 = arith.constant 0 : index
    %5 = vector.load %arg3[%c0_4, %c0_5, %c0_6] : memref<2x1x32xf32, #tpu.memory_space<vmem>>, vector<1x1x32xf32>
    %6 = vector.shape_cast %5 : vector<1x1x32xf32> to vector<1x32xf32>
    %7 = vector.broadcast %6 : vector<1x32xf32> to vector<48x32xf32>
    %8 = arith.addf %4, %7 : vector<48x32xf32>
    %cst_7 = arith.constant 0.000000e+00 : f32
    %9 = vector.broadcast %cst_7 : f32 to vector<48x32xf32>
    %10 = arith.maximumf %8, %9 : vector<48x32xf32>
    %11 = arith.truncf %0 : vector<48x16xf32> to vector<48x16xbf16>
    %c0_8 = arith.constant 0 : index
    %c0_9 = arith.constant 0 : index
    %c0_10 = arith.constant 0 : index
    %12 = vector.load %arg4[%c0_8, %c0_9, %c0_10] : memref<2x16x32xbf16, #tpu.memory_space<vmem>>, vector<1x16x32xbf16>
    %13 = vector.shape_cast %12 : vector<1x16x32xbf16> to vector<16x32xbf16>
    %cst_11 = arith.constant dense<0.000000e+00> : vector<48x32xf32>
    %14 = tpu.matmul %11, %13, %cst_11 {dimension_numbers = #tpu.dot_dimension_numbers<[1], [0], [0], [1], [0, 0, 1, 1], [], []>} : vector<48x16xbf16>, vector<16x32xbf16>, vector<48x32xf32> -> vector<48x32xf32>
    %c0_12 = arith.constant 0 : index
    %c0_13 = arith.constant 0 : index
    %c0_14 = arith.constant 0 : index
    %15 = vector.load %arg5[%c0_12, %c0_13, %c0_14] : memref<2x1x32xf32, #tpu.memory_space<vmem>>, vector<1x1x32xf32>
    %16 = vector.shape_cast %15 : vector<1x1x32xf32> to vector<1x32xf32>
    %17 = vector.broadcast %16 : vector<1x32xf32> to vector<48x32xf32>
    %18 = arith.addf %14, %17 : vector<48x32xf32>
    %cst_15 = arith.constant 0.000000e+00 : f32
    %19 = vector.broadcast %cst_15 : f32 to vector<48x32xf32>
    %20 = arith.maximumf %18, %19 : vector<48x32xf32>
    %21 = arith.truncf %0 : vector<48x16xf32> to vector<48x16xbf16>
    %c0_16 = arith.constant 0 : index
    %c0_17 = arith.constant 0 : index
    %c0_18 = arith.constant 0 : index
    %22 = vector.load %arg6[%c0_16, %c0_17, %c0_18] : memref<2x16x32xbf16, #tpu.memory_space<vmem>>, vector<1x16x32xbf16>
    %23 = vector.shape_cast %22 : vector<1x16x32xbf16> to vector<16x32xbf16>
    %cst_19 = arith.constant dense<0.000000e+00> : vector<48x32xf32>
    %24 = tpu.matmul %21, %23, %cst_19 {dimension_numbers = #tpu.dot_dimension_numbers<[1], [0], [0], [1], [0, 0, 1, 1], [], []>} : vector<48x16xbf16>, vector<16x32xbf16>, vector<48x32xf32> -> vector<48x32xf32>
    %c0_20 = arith.constant 0 : index
    %c0_21 = arith.constant 0 : index
    %c0_22 = arith.constant 0 : index
    %25 = vector.load %arg7[%c0_20, %c0_21, %c0_22] : memref<2x1x32xf32, #tpu.memory_space<vmem>>, vector<1x1x32xf32>
    %26 = vector.shape_cast %25 : vector<1x1x32xf32> to vector<1x32xf32>
    %27 = vector.broadcast %26 : vector<1x32xf32> to vector<48x32xf32>
    %28 = arith.addf %24, %27 : vector<48x32xf32>
    %cst_23 = arith.constant 0.000000e+00 : f32
    %29 = vector.broadcast %cst_23 : f32 to vector<48x32xf32>
    %30 = arith.maximumf %28, %29 : vector<48x32xf32>
    %31 = arith.truncf %30 : vector<48x32xf32> to vector<48x32xbf16>
    %c0_24 = arith.constant 0 : index
    %c0_25 = arith.constant 0 : index
    %c0_26 = arith.constant 0 : index
    %32 = vector.load %arg8[%c0_24, %c0_25, %c0_26] : memref<2x32x32xbf16, #tpu.memory_space<vmem>>, vector<1x32x32xbf16>
    %33 = vector.shape_cast %32 : vector<1x32x32xbf16> to vector<32x32xbf16>
    %cst_27 = arith.constant dense<0.000000e+00> : vector<48x32xf32>
    %34 = tpu.matmul %31, %33, %cst_27 {dimension_numbers = #tpu.dot_dimension_numbers<[1], [0], [0], [1], [0, 0, 1, 1], [], []>} : vector<48x32xbf16>, vector<32x32xbf16>, vector<48x32xf32> -> vector<48x32xf32>
    %c0_28 = arith.constant 0 : index
    %c0_29 = arith.constant 0 : index
    %c0_30 = arith.constant 0 : index
    %35 = vector.load %arg9[%c0_28, %c0_29, %c0_30] : memref<2x1x32xf32, #tpu.memory_space<vmem>>, vector<1x1x32xf32>
    %36 = vector.shape_cast %35 : vector<1x1x32xf32> to vector<1x32xf32>
    %37 = vector.broadcast %36 : vector<1x32xf32> to vector<48x32xf32>
    %38 = arith.addf %34, %37 : vector<48x32xf32>
    %cst_31 = arith.constant 0.000000e+00 : f32
    %39 = vector.broadcast %cst_31 : f32 to vector<48x32xf32>
    %40 = arith.maximumf %38, %39 : vector<48x32xf32>
    %41 = arith.addf %40, %30 : vector<48x32xf32>
    %42 = vector.extract_strided_slice %10 {offsets = [0, 0], sizes = [8, 32], strides = [1, 1]} : vector<48x32xf32> to vector<8x32xf32>
    %43 = vector.extract_strided_slice %20 {offsets = [0, 0], sizes = [8, 32], strides = [1, 1]} : vector<48x32xf32> to vector<8x32xf32>
    %44 = vector.extract_strided_slice %41 {offsets = [0, 0], sizes = [8, 32], strides = [1, 1]} : vector<48x32xf32> to vector<8x32xf32>
    %45 = arith.truncf %42 : vector<8x32xf32> to vector<8x32xbf16>
    %46 = arith.truncf %43 : vector<8x32xf32> to vector<8x32xbf16>
    %cst_32 = arith.constant dense<0.000000e+00> : vector<32x32xf32>
    %47 = tpu.matmul %45, %46, %cst_32 {dimension_numbers = #tpu.dot_dimension_numbers<[0], [0], [1], [1], [0, 1, 1, 1], [], []>} : vector<8x32xbf16>, vector<8x32xbf16>, vector<32x32xf32> -> vector<32x32xf32>
    %cst_33 = arith.constant dense<0xFF800000> : vector<32xf32>
    %48 = vector.multi_reduction <maximumf>, %47, %cst_33 [1] : vector<32x32xf32> to vector<32xf32>
    %49 = vector.shape_cast %48 : vector<32xf32> to vector<32x1xf32>
    %50 = vector.broadcast %49 : vector<32x1xf32> to vector<32x32xf32>
    %51 = arith.subf %47, %50 : vector<32x32xf32>
    %52 = math.exp %51 : vector<32x32xf32>
    %cst_34 = arith.constant dense<0.000000e+00> : vector<32xf32>
    %53 = vector.multi_reduction <add>, %52, %cst_34 [1] : vector<32x32xf32> to vector<32xf32>
    %54 = vector.shape_cast %53 : vector<32xf32> to vector<32x1xf32>
    %55 = tpu.reciprocal %54 {approx = true} : vector<32x1xf32> -> vector<32x1xf32>
    %56 = vector.broadcast %55 : vector<32x1xf32> to vector<32x32xf32>
    %57 = arith.mulf %52, %56 : vector<32x32xf32>
    %58 = arith.truncf %44 : vector<8x32xf32> to vector<8x32xbf16>
    %59 = arith.truncf %57 : vector<32x32xf32> to vector<32x32xbf16>
    %cst_35 = arith.constant dense<0.000000e+00> : vector<8x32xf32>
    %60 = tpu.matmul %58, %59, %cst_35 {dimension_numbers = #tpu.dot_dimension_numbers<[1], [0], [0], [1], [0, 0, 1, 1], [], []>} : vector<8x32xbf16>, vector<32x32xbf16>, vector<8x32xf32> -> vector<8x32xf32>
    %61 = vector.extract_strided_slice %10 {offsets = [8, 0], sizes = [8, 32], strides = [1, 1]} : vector<48x32xf32> to vector<8x32xf32>
    %62 = vector.extract_strided_slice %20 {offsets = [8, 0], sizes = [8, 32], strides = [1, 1]} : vector<48x32xf32> to vector<8x32xf32>
    %63 = vector.extract_strided_slice %41 {offsets = [8, 0], sizes = [8, 32], strides = [1, 1]} : vector<48x32xf32> to vector<8x32xf32>
    %64 = arith.truncf %61 : vector<8x32xf32> to vector<8x32xbf16>
    %65 = arith.truncf %62 : vector<8x32xf32> to vector<8x32xbf16>
    %cst_36 = arith.constant dense<0.000000e+00> : vector<32x32xf32>
    %66 = tpu.matmul %64, %65, %cst_36 {dimension_numbers = #tpu.dot_dimension_numbers<[0], [0], [1], [1], [0, 1, 1, 1], [], []>} : vector<8x32xbf16>, vector<8x32xbf16>, vector<32x32xf32> -> vector<32x32xf32>
    %cst_37 = arith.constant dense<0xFF800000> : vector<32xf32>
    %67 = vector.multi_reduction <maximumf>, %66, %cst_37 [1] : vector<32x32xf32> to vector<32xf32>
    %68 = vector.shape_cast %67 : vector<32xf32> to vector<32x1xf32>
    %69 = vector.broadcast %68 : vector<32x1xf32> to vector<32x32xf32>
    %70 = arith.subf %66, %69 : vector<32x32xf32>
    %71 = math.exp %70 : vector<32x32xf32>
    %cst_38 = arith.constant dense<0.000000e+00> : vector<32xf32>
    %72 = vector.multi_reduction <add>, %71, %cst_38 [1] : vector<32x32xf32> to vector<32xf32>
    %73 = vector.shape_cast %72 : vector<32xf32> to vector<32x1xf32>
    %74 = tpu.reciprocal %73 {approx = true} : vector<32x1xf32> -> vector<32x1xf32>
    %75 = vector.broadcast %74 : vector<32x1xf32> to vector<32x32xf32>
    %76 = arith.mulf %71, %75 : vector<32x32xf32>
    %77 = arith.truncf %63 : vector<8x32xf32> to vector<8x32xbf16>
    %78 = arith.truncf %76 : vector<32x32xf32> to vector<32x32xbf16>
    %cst_39 = arith.constant dense<0.000000e+00> : vector<8x32xf32>
    %79 = tpu.matmul %77, %78, %cst_39 {dimension_numbers = #tpu.dot_dimension_numbers<[1], [0], [0], [1], [0, 0, 1, 1], [], []>} : vector<8x32xbf16>, vector<32x32xbf16>, vector<8x32xf32> -> vector<8x32xf32>
    %80 = vector.extract_strided_slice %10 {offsets = [16, 0], sizes = [8, 32], strides = [1, 1]} : vector<48x32xf32> to vector<8x32xf32>
    %81 = vector.extract_strided_slice %20 {offsets = [16, 0], sizes = [8, 32], strides = [1, 1]} : vector<48x32xf32> to vector<8x32xf32>
    %82 = vector.extract_strided_slice %41 {offsets = [16, 0], sizes = [8, 32], strides = [1, 1]} : vector<48x32xf32> to vector<8x32xf32>
    %83 = arith.truncf %80 : vector<8x32xf32> to vector<8x32xbf16>
    %84 = arith.truncf %81 : vector<8x32xf32> to vector<8x32xbf16>
    %cst_40 = arith.constant dense<0.000000e+00> : vector<32x32xf32>
    %85 = tpu.matmul %83, %84, %cst_40 {dimension_numbers = #tpu.dot_dimension_numbers<[0], [0], [1], [1], [0, 1, 1, 1], [], []>} : vector<8x32xbf16>, vector<8x32xbf16>, vector<32x32xf32> -> vector<32x32xf32>
    %cst_41 = arith.constant dense<0xFF800000> : vector<32xf32>
    %86 = vector.multi_reduction <maximumf>, %85, %cst_41 [1] : vector<32x32xf32> to vector<32xf32>
    %87 = vector.shape_cast %86 : vector<32xf32> to vector<32x1xf32>
    %88 = vector.broadcast %87 : vector<32x1xf32> to vector<32x32xf32>
    %89 = arith.subf %85, %88 : vector<32x32xf32>
    %90 = math.exp %89 : vector<32x32xf32>
    %cst_42 = arith.constant dense<0.000000e+00> : vector<32xf32>
    %91 = vector.multi_reduction <add>, %90, %cst_42 [1] : vector<32x32xf32> to vector<32xf32>
    %92 = vector.shape_cast %91 : vector<32xf32> to vector<32x1xf32>
    %93 = tpu.reciprocal %92 {approx = true} : vector<32x1xf32> -> vector<32x1xf32>
    %94 = vector.broadcast %93 : vector<32x1xf32> to vector<32x32xf32>
    %95 = arith.mulf %90, %94 : vector<32x32xf32>
    %96 = arith.truncf %82 : vector<8x32xf32> to vector<8x32xbf16>
    %97 = arith.truncf %95 : vector<32x32xf32> to vector<32x32xbf16>
    %cst_43 = arith.constant dense<0.000000e+00> : vector<8x32xf32>
    %98 = tpu.matmul %96, %97, %cst_43 {dimension_numbers = #tpu.dot_dimension_numbers<[1], [0], [0], [1], [0, 0, 1, 1], [], []>} : vector<8x32xbf16>, vector<32x32xbf16>, vector<8x32xf32> -> vector<8x32xf32>
    %99 = vector.extract_strided_slice %10 {offsets = [24, 0], sizes = [8, 32], strides = [1, 1]} : vector<48x32xf32> to vector<8x32xf32>
    %100 = vector.extract_strided_slice %20 {offsets = [24, 0], sizes = [8, 32], strides = [1, 1]} : vector<48x32xf32> to vector<8x32xf32>
    %101 = vector.extract_strided_slice %41 {offsets = [24, 0], sizes = [8, 32], strides = [1, 1]} : vector<48x32xf32> to vector<8x32xf32>
    %102 = arith.truncf %99 : vector<8x32xf32> to vector<8x32xbf16>
    %103 = arith.truncf %100 : vector<8x32xf32> to vector<8x32xbf16>
    %cst_44 = arith.constant dense<0.000000e+00> : vector<32x32xf32>
    %104 = tpu.matmul %102, %103, %cst_44 {dimension_numbers = #tpu.dot_dimension_numbers<[0], [0], [1], [1], [0, 1, 1, 1], [], []>} : vector<8x32xbf16>, vector<8x32xbf16>, vector<32x32xf32> -> vector<32x32xf32>
    %cst_45 = arith.constant dense<0xFF800000> : vector<32xf32>
    %105 = vector.multi_reduction <maximumf>, %104, %cst_45 [1] : vector<32x32xf32> to vector<32xf32>
    %106 = vector.shape_cast %105 : vector<32xf32> to vector<32x1xf32>
    %107 = vector.broadcast %106 : vector<32x1xf32> to vector<32x32xf32>
    %108 = arith.subf %104, %107 : vector<32x32xf32>
    %109 = math.exp %108 : vector<32x32xf32>
    %cst_46 = arith.constant dense<0.000000e+00> : vector<32xf32>
    %110 = vector.multi_reduction <add>, %109, %cst_46 [1] : vector<32x32xf32> to vector<32xf32>
    %111 = vector.shape_cast %110 : vector<32xf32> to vector<32x1xf32>
    %112 = tpu.reciprocal %111 {approx = true} : vector<32x1xf32> -> vector<32x1xf32>
    %113 = vector.broadcast %112 : vector<32x1xf32> to vector<32x32xf32>
    %114 = arith.mulf %109, %113 : vector<32x32xf32>
    %115 = arith.truncf %101 : vector<8x32xf32> to vector<8x32xbf16>
    %116 = arith.truncf %114 : vector<32x32xf32> to vector<32x32xbf16>
    %cst_47 = arith.constant dense<0.000000e+00> : vector<8x32xf32>
    %117 = tpu.matmul %115, %116, %cst_47 {dimension_numbers = #tpu.dot_dimension_numbers<[1], [0], [0], [1], [0, 0, 1, 1], [], []>} : vector<8x32xbf16>, vector<32x32xbf16>, vector<8x32xf32> -> vector<8x32xf32>
    %118 = vector.extract_strided_slice %10 {offsets = [32, 0], sizes = [8, 32], strides = [1, 1]} : vector<48x32xf32> to vector<8x32xf32>
    %119 = vector.extract_strided_slice %20 {offsets = [32, 0], sizes = [8, 32], strides = [1, 1]} : vector<48x32xf32> to vector<8x32xf32>
    %120 = vector.extract_strided_slice %41 {offsets = [32, 0], sizes = [8, 32], strides = [1, 1]} : vector<48x32xf32> to vector<8x32xf32>
    %121 = arith.truncf %118 : vector<8x32xf32> to vector<8x32xbf16>
    %122 = arith.truncf %119 : vector<8x32xf32> to vector<8x32xbf16>
    %cst_48 = arith.constant dense<0.000000e+00> : vector<32x32xf32>
    %123 = tpu.matmul %121, %122, %cst_48 {dimension_numbers = #tpu.dot_dimension_numbers<[0], [0], [1], [1], [0, 1, 1, 1], [], []>} : vector<8x32xbf16>, vector<8x32xbf16>, vector<32x32xf32> -> vector<32x32xf32>
    %cst_49 = arith.constant dense<0xFF800000> : vector<32xf32>
    %124 = vector.multi_reduction <maximumf>, %123, %cst_49 [1] : vector<32x32xf32> to vector<32xf32>
    %125 = vector.shape_cast %124 : vector<32xf32> to vector<32x1xf32>
    %126 = vector.broadcast %125 : vector<32x1xf32> to vector<32x32xf32>
    %127 = arith.subf %123, %126 : vector<32x32xf32>
    %128 = math.exp %127 : vector<32x32xf32>
    %cst_50 = arith.constant dense<0.000000e+00> : vector<32xf32>
    %129 = vector.multi_reduction <add>, %128, %cst_50 [1] : vector<32x32xf32> to vector<32xf32>
    %130 = vector.shape_cast %129 : vector<32xf32> to vector<32x1xf32>
    %131 = tpu.reciprocal %130 {approx = true} : vector<32x1xf32> -> vector<32x1xf32>
    %132 = vector.broadcast %131 : vector<32x1xf32> to vector<32x32xf32>
    %133 = arith.mulf %128, %132 : vector<32x32xf32>
    %134 = arith.truncf %120 : vector<8x32xf32> to vector<8x32xbf16>
    %135 = arith.truncf %133 : vector<32x32xf32> to vector<32x32xbf16>
    %cst_51 = arith.constant dense<0.000000e+00> : vector<8x32xf32>
    %136 = tpu.matmul %134, %135, %cst_51 {dimension_numbers = #tpu.dot_dimension_numbers<[1], [0], [0], [1], [0, 0, 1, 1], [], []>} : vector<8x32xbf16>, vector<32x32xbf16>, vector<8x32xf32> -> vector<8x32xf32>
    %137 = vector.extract_strided_slice %10 {offsets = [40, 0], sizes = [8, 32], strides = [1, 1]} : vector<48x32xf32> to vector<8x32xf32>
    %138 = vector.extract_strided_slice %20 {offsets = [40, 0], sizes = [8, 32], strides = [1, 1]} : vector<48x32xf32> to vector<8x32xf32>
    %139 = vector.extract_strided_slice %41 {offsets = [40, 0], sizes = [8, 32], strides = [1, 1]} : vector<48x32xf32> to vector<8x32xf32>
    %140 = arith.truncf %137 : vector<8x32xf32> to vector<8x32xbf16>
    %141 = arith.truncf %138 : vector<8x32xf32> to vector<8x32xbf16>
    %cst_52 = arith.constant dense<0.000000e+00> : vector<32x32xf32>
    %142 = tpu.matmul %140, %141, %cst_52 {dimension_numbers = #tpu.dot_dimension_numbers<[0], [0], [1], [1], [0, 1, 1, 1], [], []>} : vector<8x32xbf16>, vector<8x32xbf16>, vector<32x32xf32> -> vector<32x32xf32>
    %cst_53 = arith.constant dense<0xFF800000> : vector<32xf32>
    %143 = vector.multi_reduction <maximumf>, %142, %cst_53 [1] : vector<32x32xf32> to vector<32xf32>
    %144 = vector.shape_cast %143 : vector<32xf32> to vector<32x1xf32>
    %145 = vector.broadcast %144 : vector<32x1xf32> to vector<32x32xf32>
    %146 = arith.subf %142, %145 : vector<32x32xf32>
    %147 = math.exp %146 : vector<32x32xf32>
    %cst_54 = arith.constant dense<0.000000e+00> : vector<32xf32>
    %148 = vector.multi_reduction <add>, %147, %cst_54 [1] : vector<32x32xf32> to vector<32xf32>
    %149 = vector.shape_cast %148 : vector<32xf32> to vector<32x1xf32>
    %150 = tpu.reciprocal %149 {approx = true} : vector<32x1xf32> -> vector<32x1xf32>
    %151 = vector.broadcast %150 : vector<32x1xf32> to vector<32x32xf32>
    %152 = arith.mulf %147, %151 : vector<32x32xf32>
    %153 = arith.truncf %139 : vector<8x32xf32> to vector<8x32xbf16>
    %154 = arith.truncf %152 : vector<32x32xf32> to vector<32x32xbf16>
    %cst_55 = arith.constant dense<0.000000e+00> : vector<8x32xf32>
    %155 = tpu.matmul %153, %154, %cst_55 {dimension_numbers = #tpu.dot_dimension_numbers<[1], [0], [0], [1], [0, 0, 1, 1], [], []>} : vector<8x32xbf16>, vector<32x32xbf16>, vector<8x32xf32> -> vector<8x32xf32>
    %156 = tpu.concatenate %60, %79, %98, %117, %136, %155 in 0 : vector<8x32xf32>, vector<8x32xf32>, vector<8x32xf32>, vector<8x32xf32>, vector<8x32xf32>, vector<8x32xf32> -> vector<48x32xf32>
    %157 = arith.truncf %156 : vector<48x32xf32> to vector<48x32xbf16>
    %c0_56 = arith.constant 0 : index
    %c0_57 = arith.constant 0 : index
    %c0_58 = arith.constant 0 : index
    %158 = vector.load %arg10[%c0_56, %c0_57, %c0_58] : memref<2x32x16xbf16, #tpu.memory_space<vmem>>, vector<1x32x16xbf16>
    %159 = vector.shape_cast %158 : vector<1x32x16xbf16> to vector<32x16xbf16>
    %cst_59 = arith.constant dense<0.000000e+00> : vector<48x16xf32>
    %160 = tpu.matmul %157, %159, %cst_59 {dimension_numbers = #tpu.dot_dimension_numbers<[1], [0], [0], [1], [0, 0, 1, 1], [], []>} : vector<48x32xbf16>, vector<32x16xbf16>, vector<48x16xf32> -> vector<48x16xf32>
    %c0_60 = arith.constant 0 : index
    %c0_61 = arith.constant 0 : index
    %c0_62 = arith.constant 0 : index
    %161 = vector.load %arg11[%c0_60, %c0_61, %c0_62] : memref<2x1x16xf32, #tpu.memory_space<vmem>>, vector<1x1x16xf32>
    %162 = vector.shape_cast %161 : vector<1x1x16xf32> to vector<1x16xf32>
    %163 = vector.broadcast %162 : vector<1x16xf32> to vector<48x16xf32>
    %164 = arith.addf %160, %163 : vector<48x16xf32>
    %165 = arith.truncf %164 : vector<48x16xf32> to vector<48x16xbf16>
    %c1 = arith.constant 1 : index
    %c0_63 = arith.constant 0 : index
    %c0_64 = arith.constant 0 : index
    %166 = vector.load %arg2[%c1, %c0_63, %c0_64] : memref<2x16x32xbf16, #tpu.memory_space<vmem>>, vector<1x16x32xbf16>
    %167 = vector.shape_cast %166 : vector<1x16x32xbf16> to vector<16x32xbf16>
    %cst_65 = arith.constant dense<0.000000e+00> : vector<48x32xf32>
    %168 = tpu.matmul %165, %167, %cst_65 {dimension_numbers = #tpu.dot_dimension_numbers<[1], [0], [0], [1], [0, 0, 1, 1], [], []>} : vector<48x16xbf16>, vector<16x32xbf16>, vector<48x32xf32> -> vector<48x32xf32>
    %c1_66 = arith.constant 1 : index
    %c0_67 = arith.constant 0 : index
    %c0_68 = arith.constant 0 : index
    %169 = vector.load %arg3[%c1_66, %c0_67, %c0_68] : memref<2x1x32xf32, #tpu.memory_space<vmem>>, vector<1x1x32xf32>
    %170 = vector.shape_cast %169 : vector<1x1x32xf32> to vector<1x32xf32>
    %171 = vector.broadcast %170 : vector<1x32xf32> to vector<48x32xf32>
    %172 = arith.addf %168, %171 : vector<48x32xf32>
    %cst_69 = arith.constant 0.000000e+00 : f32
    %173 = vector.broadcast %cst_69 : f32 to vector<48x32xf32>
    %174 = arith.maximumf %172, %173 : vector<48x32xf32>
    %175 = arith.truncf %164 : vector<48x16xf32> to vector<48x16xbf16>
    %c1_70 = arith.constant 1 : index
    %c0_71 = arith.constant 0 : index
    %c0_72 = arith.constant 0 : index
    %176 = vector.load %arg4[%c1_70, %c0_71, %c0_72] : memref<2x16x32xbf16, #tpu.memory_space<vmem>>, vector<1x16x32xbf16>
    %177 = vector.shape_cast %176 : vector<1x16x32xbf16> to vector<16x32xbf16>
    %cst_73 = arith.constant dense<0.000000e+00> : vector<48x32xf32>
    %178 = tpu.matmul %175, %177, %cst_73 {dimension_numbers = #tpu.dot_dimension_numbers<[1], [0], [0], [1], [0, 0, 1, 1], [], []>} : vector<48x16xbf16>, vector<16x32xbf16>, vector<48x32xf32> -> vector<48x32xf32>
    %c1_74 = arith.constant 1 : index
    %c0_75 = arith.constant 0 : index
    %c0_76 = arith.constant 0 : index
    %179 = vector.load %arg5[%c1_74, %c0_75, %c0_76] : memref<2x1x32xf32, #tpu.memory_space<vmem>>, vector<1x1x32xf32>
    %180 = vector.shape_cast %179 : vector<1x1x32xf32> to vector<1x32xf32>
    %181 = vector.broadcast %180 : vector<1x32xf32> to vector<48x32xf32>
    %182 = arith.addf %178, %181 : vector<48x32xf32>
    %cst_77 = arith.constant 0.000000e+00 : f32
    %183 = vector.broadcast %cst_77 : f32 to vector<48x32xf32>
    %184 = arith.maximumf %182, %183 : vector<48x32xf32>
    %185 = arith.truncf %164 : vector<48x16xf32> to vector<48x16xbf16>
    %c1_78 = arith.constant 1 : index
    %c0_79 = arith.constant 0 : index
    %c0_80 = arith.constant 0 : index
    %186 = vector.load %arg6[%c1_78, %c0_79, %c0_80] : memref<2x16x32xbf16, #tpu.memory_space<vmem>>, vector<1x16x32xbf16>
    %187 = vector.shape_cast %186 : vector<1x16x32xbf16> to vector<16x32xbf16>
    %cst_81 = arith.constant dense<0.000000e+00> : vector<48x32xf32>
    %188 = tpu.matmul %185, %187, %cst_81 {dimension_numbers = #tpu.dot_dimension_numbers<[1], [0], [0], [1], [0, 0, 1, 1], [], []>} : vector<48x16xbf16>, vector<16x32xbf16>, vector<48x32xf32> -> vector<48x32xf32>
    %c1_82 = arith.constant 1 : index
    %c0_83 = arith.constant 0 : index
    %c0_84 = arith.constant 0 : index
    %189 = vector.load %arg7[%c1_82, %c0_83, %c0_84] : memref<2x1x32xf32, #tpu.memory_space<vmem>>, vector<1x1x32xf32>
    %190 = vector.shape_cast %189 : vector<1x1x32xf32> to vector<1x32xf32>
    %191 = vector.broadcast %190 : vector<1x32xf32> to vector<48x32xf32>
    %192 = arith.addf %188, %191 : vector<48x32xf32>
    %cst_85 = arith.constant 0.000000e+00 : f32
    %193 = vector.broadcast %cst_85 : f32 to vector<48x32xf32>
    %194 = arith.maximumf %192, %193 : vector<48x32xf32>
    %195 = arith.truncf %194 : vector<48x32xf32> to vector<48x32xbf16>
    %c1_86 = arith.constant 1 : index
    %c0_87 = arith.constant 0 : index
    %c0_88 = arith.constant 0 : index
    %196 = vector.load %arg8[%c1_86, %c0_87, %c0_88] : memref<2x32x32xbf16, #tpu.memory_space<vmem>>, vector<1x32x32xbf16>
    %197 = vector.shape_cast %196 : vector<1x32x32xbf16> to vector<32x32xbf16>
    %cst_89 = arith.constant dense<0.000000e+00> : vector<48x32xf32>
    %198 = tpu.matmul %195, %197, %cst_89 {dimension_numbers = #tpu.dot_dimension_numbers<[1], [0], [0], [1], [0, 0, 1, 1], [], []>} : vector<48x32xbf16>, vector<32x32xbf16>, vector<48x32xf32> -> vector<48x32xf32>
    %c1_90 = arith.constant 1 : index
    %c0_91 = arith.constant 0 : index
    %c0_92 = arith.constant 0 : index
    %199 = vector.load %arg9[%c1_90, %c0_91, %c0_92] : memref<2x1x32xf32, #tpu.memory_space<vmem>>, vector<1x1x32xf32>
    %200 = vector.shape_cast %199 : vector<1x1x32xf32> to vector<1x32xf32>
    %201 = vector.broadcast %200 : vector<1x32xf32> to vector<48x32xf32>
    %202 = arith.addf %198, %201 : vector<48x32xf32>
    %cst_93 = arith.constant 0.000000e+00 : f32
    %203 = vector.broadcast %cst_93 : f32 to vector<48x32xf32>
    %204 = arith.maximumf %202, %203 : vector<48x32xf32>
    %205 = arith.addf %204, %194 : vector<48x32xf32>
    %206 = vector.extract_strided_slice %174 {offsets = [0, 0], sizes = [8, 32], strides = [1, 1]} : vector<48x32xf32> to vector<8x32xf32>
    %207 = vector.extract_strided_slice %184 {offsets = [0, 0], sizes = [8, 32], strides = [1, 1]} : vector<48x32xf32> to vector<8x32xf32>
    %208 = vector.extract_strided_slice %205 {offsets = [0, 0], sizes = [8, 32], strides = [1, 1]} : vector<48x32xf32> to vector<8x32xf32>
    %209 = arith.truncf %206 : vector<8x32xf32> to vector<8x32xbf16>
    %210 = arith.truncf %207 : vector<8x32xf32> to vector<8x32xbf16>
    %cst_94 = arith.constant dense<0.000000e+00> : vector<32x32xf32>
    %211 = tpu.matmul %209, %210, %cst_94 {dimension_numbers = #tpu.dot_dimension_numbers<[0], [0], [1], [1], [0, 1, 1, 1], [], []>} : vector<8x32xbf16>, vector<8x32xbf16>, vector<32x32xf32> -> vector<32x32xf32>
    %cst_95 = arith.constant dense<0xFF800000> : vector<32xf32>
    %212 = vector.multi_reduction <maximumf>, %211, %cst_95 [1] : vector<32x32xf32> to vector<32xf32>
    %213 = vector.shape_cast %212 : vector<32xf32> to vector<32x1xf32>
    %214 = vector.broadcast %213 : vector<32x1xf32> to vector<32x32xf32>
    %215 = arith.subf %211, %214 : vector<32x32xf32>
    %216 = math.exp %215 : vector<32x32xf32>
    %cst_96 = arith.constant dense<0.000000e+00> : vector<32xf32>
    %217 = vector.multi_reduction <add>, %216, %cst_96 [1] : vector<32x32xf32> to vector<32xf32>
    %218 = vector.shape_cast %217 : vector<32xf32> to vector<32x1xf32>
    %219 = tpu.reciprocal %218 {approx = true} : vector<32x1xf32> -> vector<32x1xf32>
    %220 = vector.broadcast %219 : vector<32x1xf32> to vector<32x32xf32>
    %221 = arith.mulf %216, %220 : vector<32x32xf32>
    %222 = arith.truncf %208 : vector<8x32xf32> to vector<8x32xbf16>
    %223 = arith.truncf %221 : vector<32x32xf32> to vector<32x32xbf16>
    %cst_97 = arith.constant dense<0.000000e+00> : vector<8x32xf32>
    %224 = tpu.matmul %222, %223, %cst_97 {dimension_numbers = #tpu.dot_dimension_numbers<[1], [0], [0], [1], [0, 0, 1, 1], [], []>} : vector<8x32xbf16>, vector<32x32xbf16>, vector<8x32xf32> -> vector<8x32xf32>
    %225 = vector.extract_strided_slice %174 {offsets = [8, 0], sizes = [8, 32], strides = [1, 1]} : vector<48x32xf32> to vector<8x32xf32>
    %226 = vector.extract_strided_slice %184 {offsets = [8, 0], sizes = [8, 32], strides = [1, 1]} : vector<48x32xf32> to vector<8x32xf32>
    %227 = vector.extract_strided_slice %205 {offsets = [8, 0], sizes = [8, 32], strides = [1, 1]} : vector<48x32xf32> to vector<8x32xf32>
    %228 = arith.truncf %225 : vector<8x32xf32> to vector<8x32xbf16>
    %229 = arith.truncf %226 : vector<8x32xf32> to vector<8x32xbf16>
    %cst_98 = arith.constant dense<0.000000e+00> : vector<32x32xf32>
    %230 = tpu.matmul %228, %229, %cst_98 {dimension_numbers = #tpu.dot_dimension_numbers<[0], [0], [1], [1], [0, 1, 1, 1], [], []>} : vector<8x32xbf16>, vector<8x32xbf16>, vector<32x32xf32> -> vector<32x32xf32>
    %cst_99 = arith.constant dense<0xFF800000> : vector<32xf32>
    %231 = vector.multi_reduction <maximumf>, %230, %cst_99 [1] : vector<32x32xf32> to vector<32xf32>
    %232 = vector.shape_cast %231 : vector<32xf32> to vector<32x1xf32>
    %233 = vector.broadcast %232 : vector<32x1xf32> to vector<32x32xf32>
    %234 = arith.subf %230, %233 : vector<32x32xf32>
    %235 = math.exp %234 : vector<32x32xf32>
    %cst_100 = arith.constant dense<0.000000e+00> : vector<32xf32>
    %236 = vector.multi_reduction <add>, %235, %cst_100 [1] : vector<32x32xf32> to vector<32xf32>
    %237 = vector.shape_cast %236 : vector<32xf32> to vector<32x1xf32>
    %238 = tpu.reciprocal %237 {approx = true} : vector<32x1xf32> -> vector<32x1xf32>
    %239 = vector.broadcast %238 : vector<32x1xf32> to vector<32x32xf32>
    %240 = arith.mulf %235, %239 : vector<32x32xf32>
    %241 = arith.truncf %227 : vector<8x32xf32> to vector<8x32xbf16>
    %242 = arith.truncf %240 : vector<32x32xf32> to vector<32x32xbf16>
    %cst_101 = arith.constant dense<0.000000e+00> : vector<8x32xf32>
    %243 = tpu.matmul %241, %242, %cst_101 {dimension_numbers = #tpu.dot_dimension_numbers<[1], [0], [0], [1], [0, 0, 1, 1], [], []>} : vector<8x32xbf16>, vector<32x32xbf16>, vector<8x32xf32> -> vector<8x32xf32>
    %244 = vector.extract_strided_slice %174 {offsets = [16, 0], sizes = [8, 32], strides = [1, 1]} : vector<48x32xf32> to vector<8x32xf32>
    %245 = vector.extract_strided_slice %184 {offsets = [16, 0], sizes = [8, 32], strides = [1, 1]} : vector<48x32xf32> to vector<8x32xf32>
    %246 = vector.extract_strided_slice %205 {offsets = [16, 0], sizes = [8, 32], strides = [1, 1]} : vector<48x32xf32> to vector<8x32xf32>
    %247 = arith.truncf %244 : vector<8x32xf32> to vector<8x32xbf16>
    %248 = arith.truncf %245 : vector<8x32xf32> to vector<8x32xbf16>
    %cst_102 = arith.constant dense<0.000000e+00> : vector<32x32xf32>
    %249 = tpu.matmul %247, %248, %cst_102 {dimension_numbers = #tpu.dot_dimension_numbers<[0], [0], [1], [1], [0, 1, 1, 1], [], []>} : vector<8x32xbf16>, vector<8x32xbf16>, vector<32x32xf32> -> vector<32x32xf32>
    %cst_103 = arith.constant dense<0xFF800000> : vector<32xf32>
    %250 = vector.multi_reduction <maximumf>, %249, %cst_103 [1] : vector<32x32xf32> to vector<32xf32>
    %251 = vector.shape_cast %250 : vector<32xf32> to vector<32x1xf32>
    %252 = vector.broadcast %251 : vector<32x1xf32> to vector<32x32xf32>
    %253 = arith.subf %249, %252 : vector<32x32xf32>
    %254 = math.exp %253 : vector<32x32xf32>
    %cst_104 = arith.constant dense<0.000000e+00> : vector<32xf32>
    %255 = vector.multi_reduction <add>, %254, %cst_104 [1] : vector<32x32xf32> to vector<32xf32>
    %256 = vector.shape_cast %255 : vector<32xf32> to vector<32x1xf32>
    %257 = tpu.reciprocal %256 {approx = true} : vector<32x1xf32> -> vector<32x1xf32>
    %258 = vector.broadcast %257 : vector<32x1xf32> to vector<32x32xf32>
    %259 = arith.mulf %254, %258 : vector<32x32xf32>
    %260 = arith.truncf %246 : vector<8x32xf32> to vector<8x32xbf16>
    %261 = arith.truncf %259 : vector<32x32xf32> to vector<32x32xbf16>
    %cst_105 = arith.constant dense<0.000000e+00> : vector<8x32xf32>
    %262 = tpu.matmul %260, %261, %cst_105 {dimension_numbers = #tpu.dot_dimension_numbers<[1], [0], [0], [1], [0, 0, 1, 1], [], []>} : vector<8x32xbf16>, vector<32x32xbf16>, vector<8x32xf32> -> vector<8x32xf32>
    %263 = vector.extract_strided_slice %174 {offsets = [24, 0], sizes = [8, 32], strides = [1, 1]} : vector<48x32xf32> to vector<8x32xf32>
    %264 = vector.extract_strided_slice %184 {offsets = [24, 0], sizes = [8, 32], strides = [1, 1]} : vector<48x32xf32> to vector<8x32xf32>
    %265 = vector.extract_strided_slice %205 {offsets = [24, 0], sizes = [8, 32], strides = [1, 1]} : vector<48x32xf32> to vector<8x32xf32>
    %266 = arith.truncf %263 : vector<8x32xf32> to vector<8x32xbf16>
    %267 = arith.truncf %264 : vector<8x32xf32> to vector<8x32xbf16>
    %cst_106 = arith.constant dense<0.000000e+00> : vector<32x32xf32>
    %268 = tpu.matmul %266, %267, %cst_106 {dimension_numbers = #tpu.dot_dimension_numbers<[0], [0], [1], [1], [0, 1, 1, 1], [], []>} : vector<8x32xbf16>, vector<8x32xbf16>, vector<32x32xf32> -> vector<32x32xf32>
    %cst_107 = arith.constant dense<0xFF800000> : vector<32xf32>
    %269 = vector.multi_reduction <maximumf>, %268, %cst_107 [1] : vector<32x32xf32> to vector<32xf32>
    %270 = vector.shape_cast %269 : vector<32xf32> to vector<32x1xf32>
    %271 = vector.broadcast %270 : vector<32x1xf32> to vector<32x32xf32>
    %272 = arith.subf %268, %271 : vector<32x32xf32>
    %273 = math.exp %272 : vector<32x32xf32>
    %cst_108 = arith.constant dense<0.000000e+00> : vector<32xf32>
    %274 = vector.multi_reduction <add>, %273, %cst_108 [1] : vector<32x32xf32> to vector<32xf32>
    %275 = vector.shape_cast %274 : vector<32xf32> to vector<32x1xf32>
    %276 = tpu.reciprocal %275 {approx = true} : vector<32x1xf32> -> vector<32x1xf32>
    %277 = vector.broadcast %276 : vector<32x1xf32> to vector<32x32xf32>
    %278 = arith.mulf %273, %277 : vector<32x32xf32>
    %279 = arith.truncf %265 : vector<8x32xf32> to vector<8x32xbf16>
    %280 = arith.truncf %278 : vector<32x32xf32> to vector<32x32xbf16>
    %cst_109 = arith.constant dense<0.000000e+00> : vector<8x32xf32>
    %281 = tpu.matmul %279, %280, %cst_109 {dimension_numbers = #tpu.dot_dimension_numbers<[1], [0], [0], [1], [0, 0, 1, 1], [], []>} : vector<8x32xbf16>, vector<32x32xbf16>, vector<8x32xf32> -> vector<8x32xf32>
    %282 = vector.extract_strided_slice %174 {offsets = [32, 0], sizes = [8, 32], strides = [1, 1]} : vector<48x32xf32> to vector<8x32xf32>
    %283 = vector.extract_strided_slice %184 {offsets = [32, 0], sizes = [8, 32], strides = [1, 1]} : vector<48x32xf32> to vector<8x32xf32>
    %284 = vector.extract_strided_slice %205 {offsets = [32, 0], sizes = [8, 32], strides = [1, 1]} : vector<48x32xf32> to vector<8x32xf32>
    %285 = arith.truncf %282 : vector<8x32xf32> to vector<8x32xbf16>
    %286 = arith.truncf %283 : vector<8x32xf32> to vector<8x32xbf16>
    %cst_110 = arith.constant dense<0.000000e+00> : vector<32x32xf32>
    %287 = tpu.matmul %285, %286, %cst_110 {dimension_numbers = #tpu.dot_dimension_numbers<[0], [0], [1], [1], [0, 1, 1, 1], [], []>} : vector<8x32xbf16>, vector<8x32xbf16>, vector<32x32xf32> -> vector<32x32xf32>
    %cst_111 = arith.constant dense<0xFF800000> : vector<32xf32>
    %288 = vector.multi_reduction <maximumf>, %287, %cst_111 [1] : vector<32x32xf32> to vector<32xf32>
    %289 = vector.shape_cast %288 : vector<32xf32> to vector<32x1xf32>
    %290 = vector.broadcast %289 : vector<32x1xf32> to vector<32x32xf32>
    %291 = arith.subf %287, %290 : vector<32x32xf32>
    %292 = math.exp %291 : vector<32x32xf32>
    %cst_112 = arith.constant dense<0.000000e+00> : vector<32xf32>
    %293 = vector.multi_reduction <add>, %292, %cst_112 [1] : vector<32x32xf32> to vector<32xf32>
    %294 = vector.shape_cast %293 : vector<32xf32> to vector<32x1xf32>
    %295 = tpu.reciprocal %294 {approx = true} : vector<32x1xf32> -> vector<32x1xf32>
    %296 = vector.broadcast %295 : vector<32x1xf32> to vector<32x32xf32>
    %297 = arith.mulf %292, %296 : vector<32x32xf32>
    %298 = arith.truncf %284 : vector<8x32xf32> to vector<8x32xbf16>
    %299 = arith.truncf %297 : vector<32x32xf32> to vector<32x32xbf16>
    %cst_113 = arith.constant dense<0.000000e+00> : vector<8x32xf32>
    %300 = tpu.matmul %298, %299, %cst_113 {dimension_numbers = #tpu.dot_dimension_numbers<[1], [0], [0], [1], [0, 0, 1, 1], [], []>} : vector<8x32xbf16>, vector<32x32xbf16>, vector<8x32xf32> -> vector<8x32xf32>
    %301 = vector.extract_strided_slice %174 {offsets = [40, 0], sizes = [8, 32], strides = [1, 1]} : vector<48x32xf32> to vector<8x32xf32>
    %302 = vector.extract_strided_slice %184 {offsets = [40, 0], sizes = [8, 32], strides = [1, 1]} : vector<48x32xf32> to vector<8x32xf32>
    %303 = vector.extract_strided_slice %205 {offsets = [40, 0], sizes = [8, 32], strides = [1, 1]} : vector<48x32xf32> to vector<8x32xf32>
    %304 = arith.truncf %301 : vector<8x32xf32> to vector<8x32xbf16>
    %305 = arith.truncf %302 : vector<8x32xf32> to vector<8x32xbf16>
    %cst_114 = arith.constant dense<0.000000e+00> : vector<32x32xf32>
    %306 = tpu.matmul %304, %305, %cst_114 {dimension_numbers = #tpu.dot_dimension_numbers<[0], [0], [1], [1], [0, 1, 1, 1], [], []>} : vector<8x32xbf16>, vector<8x32xbf16>, vector<32x32xf32> -> vector<32x32xf32>
    %cst_115 = arith.constant dense<0xFF800000> : vector<32xf32>
    %307 = vector.multi_reduction <maximumf>, %306, %cst_115 [1] : vector<32x32xf32> to vector<32xf32>
    %308 = vector.shape_cast %307 : vector<32xf32> to vector<32x1xf32>
    %309 = vector.broadcast %308 : vector<32x1xf32> to vector<32x32xf32>
    %310 = arith.subf %306, %309 : vector<32x32xf32>
    %311 = math.exp %310 : vector<32x32xf32>
    %cst_116 = arith.constant dense<0.000000e+00> : vector<32xf32>
    %312 = vector.multi_reduction <add>, %311, %cst_116 [1] : vector<32x32xf32> to vector<32xf32>
    %313 = vector.shape_cast %312 : vector<32xf32> to vector<32x1xf32>
    %314 = tpu.reciprocal %313 {approx = true} : vector<32x1xf32> -> vector<32x1xf32>
    %315 = vector.broadcast %314 : vector<32x1xf32> to vector<32x32xf32>
    %316 = arith.mulf %311, %315 : vector<32x32xf32>
    %317 = arith.truncf %303 : vector<8x32xf32> to vector<8x32xbf16>
    %318 = arith.truncf %316 : vector<32x32xf32> to vector<32x32xbf16>
    %cst_117 = arith.constant dense<0.000000e+00> : vector<8x32xf32>
    %319 = tpu.matmul %317, %318, %cst_117 {dimension_numbers = #tpu.dot_dimension_numbers<[1], [0], [0], [1], [0, 0, 1, 1], [], []>} : vector<8x32xbf16>, vector<32x32xbf16>, vector<8x32xf32> -> vector<8x32xf32>
    %320 = tpu.concatenate %224, %243, %262, %281, %300, %319 in 0 : vector<8x32xf32>, vector<8x32xf32>, vector<8x32xf32>, vector<8x32xf32>, vector<8x32xf32>, vector<8x32xf32> -> vector<48x32xf32>
    %321 = arith.truncf %320 : vector<48x32xf32> to vector<48x32xbf16>
    %c1_118 = arith.constant 1 : index
    %c0_119 = arith.constant 0 : index
    %c0_120 = arith.constant 0 : index
    %322 = vector.load %arg10[%c1_118, %c0_119, %c0_120] : memref<2x32x16xbf16, #tpu.memory_space<vmem>>, vector<1x32x16xbf16>
    %323 = vector.shape_cast %322 : vector<1x32x16xbf16> to vector<32x16xbf16>
    %cst_121 = arith.constant dense<0.000000e+00> : vector<48x16xf32>
    %324 = tpu.matmul %321, %323, %cst_121 {dimension_numbers = #tpu.dot_dimension_numbers<[1], [0], [0], [1], [0, 0, 1, 1], [], []>} : vector<48x32xbf16>, vector<32x16xbf16>, vector<48x16xf32> -> vector<48x16xf32>
    %c1_122 = arith.constant 1 : index
    %c0_123 = arith.constant 0 : index
    %c0_124 = arith.constant 0 : index
    %325 = vector.load %arg11[%c1_122, %c0_123, %c0_124] : memref<2x1x16xf32, #tpu.memory_space<vmem>>, vector<1x1x16xf32>
    %326 = vector.shape_cast %325 : vector<1x1x16xf32> to vector<1x16xf32>
    %327 = vector.broadcast %326 : vector<1x16xf32> to vector<48x16xf32>
    %328 = arith.addf %324, %327 : vector<48x16xf32>
    %c0_125 = arith.constant 0 : index
    %c0_126 = arith.constant 0 : index
    %329 = vector.load %arg12[%c0_125, %c0_126] : memref<48x16xf32, #tpu.memory_space<vmem>>, vector<48x16xf32>
    tpu.vector_store %arg12[%c0_125, %c0_126], %328 {strides = array<i32>} : memref<48x16xf32, #tpu.memory_space<vmem>>, vector<48x16xf32>,
    return
  }
  func.func @transform_0(%arg0: i32) -> (i32, i32) {
    %c0_i32 = arith.constant 0 : i32
    %c0_i32_0 = arith.constant 0 : i32
    return %arg0, %c0_i32 : i32, i32
  }
  func.func @transform_1(%arg0: i32) -> (i32, i32, i32) {
    %c0_i32 = arith.constant 0 : i32
    %c0_i32_0 = arith.constant 0 : i32
    %c0_i32_1 = arith.constant 0 : i32
    %c0_i32_2 = arith.constant 0 : i32
    return %c0_i32, %c0_i32_0, %c0_i32_1 : i32, i32, i32
  }
  func.func @transform_2(%arg0: i32) -> (i32, i32, i32) {
    %c0_i32 = arith.constant 0 : i32
    %c0_i32_0 = arith.constant 0 : i32
    %c0_i32_1 = arith.constant 0 : i32
    %c0_i32_2 = arith.constant 0 : i32
    return %c0_i32, %c0_i32_0, %c0_i32_1 : i32, i32, i32
  }
  func.func @transform_3(%arg0: i32) -> (i32, i32, i32) {
    %c0_i32 = arith.constant 0 : i32
    %c0_i32_0 = arith.constant 0 : i32
    %c0_i32_1 = arith.constant 0 : i32
    %c0_i32_2 = arith.constant 0 : i32
    return %c0_i32, %c0_i32_0, %c0_i32_1 : i32, i32, i32
  }
  func.func @transform_4(%arg0: i32) -> (i32, i32, i32) {
    %c0_i32 = arith.constant 0 : i32
    %c0_i32_0 = arith.constant 0 : i32
    %c0_i32_1 = arith.constant 0 : i32
    %c0_i32_2 = arith.constant 0 : i32
    return %c0_i32, %c0_i32_0, %c0_i32_1 : i32, i32, i32
  }
  func.func @transform_5(%arg0: i32) -> (i32, i32, i32) {
    %c0_i32 = arith.constant 0 : i32
    %c0_i32_0 = arith.constant 0 : i32
    %c0_i32_1 = arith.constant 0 : i32
    %c0_i32_2 = arith.constant 0 : i32
    return %c0_i32, %c0_i32_0, %c0_i32_1 : i32, i32, i32
  }
  func.func @transform_6(%arg0: i32) -> (i32, i32, i32) {
    %c0_i32 = arith.constant 0 : i32
    %c0_i32_0 = arith.constant 0 : i32
    %c0_i32_1 = arith.constant 0 : i32
    %c0_i32_2 = arith.constant 0 : i32
    return %c0_i32, %c0_i32_0, %c0_i32_1 : i32, i32, i32
  }
  func.func @transform_7(%arg0: i32) -> (i32, i32, i32) {
    %c0_i32 = arith.constant 0 : i32
    %c0_i32_0 = arith.constant 0 : i32
    %c0_i32_1 = arith.constant 0 : i32
    %c0_i32_2 = arith.constant 0 : i32
    return %c0_i32, %c0_i32_0, %c0_i32_1 : i32, i32, i32
  }
  func.func @transform_8(%arg0: i32) -> (i32, i32, i32) {
    %c0_i32 = arith.constant 0 : i32
    %c0_i32_0 = arith.constant 0 : i32
    %c0_i32_1 = arith.constant 0 : i32
    %c0_i32_2 = arith.constant 0 : i32
    return %c0_i32, %c0_i32_0, %c0_i32_1 : i32, i32, i32
  }
  func.func @transform_9(%arg0: i32) -> (i32, i32, i32) {
    %c0_i32 = arith.constant 0 : i32
    %c0_i32_0 = arith.constant 0 : i32
    %c0_i32_1 = arith.constant 0 : i32
    %c0_i32_2 = arith.constant 0 : i32
    return %c0_i32, %c0_i32_0, %c0_i32_1 : i32, i32, i32
  }
  func.func @transform_10(%arg0: i32) -> (i32, i32, i32) {
    %c0_i32 = arith.constant 0 : i32
    %c0_i32_0 = arith.constant 0 : i32
    %c0_i32_1 = arith.constant 0 : i32
    %c0_i32_2 = arith.constant 0 : i32
    return %c0_i32, %c0_i32_0, %c0_i32_1 : i32, i32, i32
  }
  func.func @transform_11(%arg0: i32) -> (i32, i32) {
    %c0_i32 = arith.constant 0 : i32
    %c0_i32_0 = arith.constant 0 : i32
    return %arg0, %c0_i32 : i32, i32
  }
}

</mosaic_0001>

<llo_original>
// kernel: tpu_custom_call.1
$region0: #{tpu_custom_call.1}
  #allocation0 [shape = 'u32[]', space=smem, size = 0x4, offset = 0x4, fixed_abs, tag = 'smem constant byte address 0x4 - core index']
  #allocation1 [shape = 'u32[144,128]{1,0:T(1,128)}', space=vmem, size = 0x12000, scoped, tag = 'internal scratch']
  %s0 = inlined_call_operand.vmem [shape: f32[48,16], index: 0, kind: input, shape index: {}]
  %s1 = inlined_call_operand.vmem [shape: bf16[2,16,96], index: 1, kind: input, shape index: {}]
  %s2 = inlined_call_operand.vmem [shape: f32[2,1,96], index: 2, kind: input, shape index: {}]
  %s3 = inlined_call_operand.vmem [shape: bf16[2,32,32], index: 3, kind: input, shape index: {}]
  %s4 = inlined_call_operand.vmem [shape: f32[2,1,32], index: 4, kind: input, shape index: {}]
  %s5 = inlined_call_operand.vmem [shape: bf16[2,32,16], index: 5, kind: input, shape index: {}]
  %s6 = inlined_call_operand.vmem [shape: f32[2,1,16], index: 6, kind: input, shape index: {}]
  %s7 = inlined_call_operand.vmem [shape: f32[48,16], index: 7, kind: output, shape index: {}]
  %s8 = sld [smem:[#allocation0]]
  $region38: #{tpu_custom_call.1} parent=0
    _
  %s10 = ssub.s32 1, %s8
  %s11 = scalar_select 0, %s10, %s8
  // Predicated region
  $region2: #{tpu_custom_call.1} parent=0 // pred_check
    _
  $region3: #{tpu_custom_call.1} parent=0 // pred_check_branch
    %13 = sbr.rel (0) target = $region5
  $region4: #{tpu_custom_call.1} parent=0 // pred_region
    _
  $region5: #{tpu_custom_call.1} parent=0 // pred_fallthru
    _
  // Predicated region
  $region6: #{tpu_custom_call.1} parent=0 // pred_check
    _
  $region7: #{tpu_custom_call.1} parent=0 // pred_check_branch
    %15 = sbr.rel (0) target = $region9
  $region8: #{tpu_custom_call.1} parent=0 // pred_region
    _
  $region9: #{tpu_custom_call.1} parent=0 // pred_fallthru
    _
  // Predicated region
  $region10: #{tpu_custom_call.1} parent=0 // pred_check
    _
  $region11: #{tpu_custom_call.1} parent=0 // pred_check_branch
    %17 = sbr.rel (0) target = $region13
  $region12: #{tpu_custom_call.1} parent=0 // pred_region
    _
  $region13: #{tpu_custom_call.1} parent=0 // pred_fallthru
    _
  // Predicated region
  $region14: #{tpu_custom_call.1} parent=0 // pred_check
    _
  $region15: #{tpu_custom_call.1} parent=0 // pred_check_branch
    %19 = sbr.rel (0) target = $region17
  $region16: #{tpu_custom_call.1} parent=0 // pred_region
    _
  $region17: #{tpu_custom_call.1} parent=0 // pred_fallthru
    _
  // Predicated region
  $region18: #{tpu_custom_call.1} parent=0 // pred_check
    _
  $region19: #{tpu_custom_call.1} parent=0 // pred_check_branch
    %21 = sbr.rel (0) target = $region21
  $region20: #{tpu_custom_call.1} parent=0 // pred_region
    _
  $region21: #{tpu_custom_call.1} parent=0 // pred_fallthru
    _
  // Predicated region
  $region22: #{tpu_custom_call.1} parent=0 // pred_check
    _
  $region23: #{tpu_custom_call.1} parent=0 // pred_check_branch
    %23 = sbr.rel (0) target = $region25
  $region24: #{tpu_custom_call.1} parent=0 // pred_region
    _
  $region25: #{tpu_custom_call.1} parent=0 // pred_fallthru
    _
  // Predicated region
  $region26: #{tpu_custom_call.1} parent=0 // pred_check
    _
  $region27: #{tpu_custom_call.1} parent=0 // pred_check_branch
    %25 = sbr.rel (0) target = $region29
  $region28: #{tpu_custom_call.1} parent=0 // pred_region
    _
  $region29: #{tpu_custom_call.1} parent=0 // pred_fallthru
    _
  %v27 = vld [vmem:[%s0] sm:$0xff]
  %v28 = vld [vmem:[%s0 + $0x8] sm:$0xff]
  %v29 = vld [vmem:[%s0 + $0x10] sm:$0xff]
  %v30 = vld [vmem:[%s0 + $0x18] sm:$0xff]
  %v31 = vld [vmem:[%s0 + $0x20] sm:$0xff]
  %v32 = vld [vmem:[%s0 + $0x28] sm:$0xff]
  %v33 = vpack.c.bf16 %v28, %v27
  %v34 = vpack.c.bf16 %v30, %v29
  %v35 = vpack.c.bf16 %v32, %v31
  %v36 = vld [vmem:[%s1] sm:$0xf]
  %v37 = vld [vmem:[%s1 + $0x4] sm:$0xf]
  %v38 = vld [vmem:[%s2] sm:$0x1]
  %v40 = vlaneseq
  %v41 = vshrl.u32 %v40, 7
  %v42 = vsub.s32 0, %v41
  %v43 = vrot.slane %v38, %v42
  %v47 = vunpack.c.l.b16 %v36
  %v48 = vunpack.c.l.b16 %v37
  %v49 = vpack.c.b16 %v48, %v47
  %vm51 = vcmask 130048
  %v53 = vsel %vm51, %v33, 0
  %v56 = vsel %vm51, %v34, 0
  %v59 = vsel %vm51, %v35, 0
  %61 = vmatprep.subr.bf16.mxu0 0
  %62 = vmatpush1.bf16.msra.mxu0 %v49
  %63 = vmatprep.subr.bf16.mxu0 0
  %64 = vmatpush1.bf16.msra.mxu0 0
  %65 = vmatprep.subr.bf16.mxu0 0
  %66 = vmatpush1.bf16.msra.mxu0 0
  %67 = vmatprep.subr.bf16.mxu0 0
  %68 = vmatpush1.bf16.msra.mxu0 0
  %69 = vmatprep.subr.bf16.mxu0 0
  %70 = vmatpush1.bf16.msra.mxu0 0
  %71 = vmatprep.subr.bf16.mxu0 0
  %72 = vmatpush1.bf16.msra.mxu0 0
  %73 = vmatprep.subr.bf16.mxu0 0
  %74 = vmatpush1.bf16.msra.mxu0 0
  %75 = vmatprep.subr.bf16.mxu0 0
  %76 = vmatpush1.bf16.msra.mxu0 0
  %77 = vmatprep.subr.bf16.mxu0 0
  %78 = vmatpush1.bf16.msra.mxu0 0
  %79 = vmatprep.subr.bf16.mxu0 0
  %80 = vmatpush1.bf16.msra.mxu0 0
  %81 = vmatprep.subr.bf16.mxu0 0
  %82 = vmatpush1.bf16.msra.mxu0 0
  %83 = vmatprep.subr.bf16.mxu0 0
  %84 = vmatpush1.bf16.msra.mxu0 0
  %85 = vmatprep.subr.bf16.mxu0 0
  %86 = vmatpush1.bf16.msra.mxu0 0
  %87 = vmatprep.subr.bf16.mxu0 0
  %88 = vmatpush1.bf16.msra.mxu0 0
  %89 = vmatprep.subr.bf16.mxu0 0
  %90 = vmatpush1.bf16.msra.mxu0 0
  %91 = vmatprep.subr.bf16.mxu0 0
  %92 = vmatpush1.bf16.msra.mxu0 0
  %93 = vmatprep.mubr.bf16.mxu0 0
  %94 = vmatmul.mubr.bf16.gmra.mrb[0].mxu0 %v53
  %v95 = vpop.f32.mrb[0].mxu0
  %v96 = vadd.f32 %v43, %v95
  %v97 = vpop.f32.mrb[0].mxu0
  %v98 = vpop.f32.mrb[0].mxu0
  %v99 = vadd.f32 %v43, %v98
  %v100 = vpop.f32.mrb[0].mxu0
  %101 = vmatprep.mubr.bf16.mxu0 0
  %102 = vmatmul.mubr.bf16.gmra.mrb[0].mxu0 %v56
  %v103 = vpop.f32.mrb[0].mxu0
  %v104 = vadd.f32 %v43, %v103
  %v105 = vpop.f32.mrb[0].mxu0
  %v106 = vpop.f32.mrb[0].mxu0
  %v107 = vadd.f32 %v43, %v106
  %v108 = vpop.f32.mrb[0].mxu0
  %109 = vmatprep.mubr.bf16.mxu0 0
  %110 = vmatmul.mubr.bf16.gmra.mrb[0].mxu0 %v59
  %v111 = vpop.f32.mrb[0].mxu0
  %v112 = vadd.f32 %v43, %v111
  %v113 = vpop.f32.mrb[0].mxu0
  %v114 = vpop.f32.mrb[0].mxu0
  %v115 = vadd.f32 %v43, %v114
  %v116 = vpop.f32.mrb[0].mxu0
  %117 = vdwg.mxu0
  %v118 = vmax.f32 %v96, 0.0
  %v119 = vmax.f32 %v99, 0.0
  %v120 = vmax.f32 %v104, 0.0
  %v121 = vmax.f32 %v107, 0.0
  %v122 = vmax.f32 %v112, 0.0
  %v123 = vmax.f32 %v115, 0.0
  %v124 = vpack.c.bf16 %v119, %v118
  %v125 = vpack.c.bf16 %v121, %v120
  %v126 = vpack.c.bf16 %v123, %v122
  %v127 = vld [vmem:[%s3] sm:$0xf]
  %v128 = vld [vmem:[%s3 + $0x4] sm:$0xf]
  %v129 = vld [vmem:[%s3 + $0x8] sm:$0xf]
  %v130 = vld [vmem:[%s3 + $0xc] sm:$0xf]
  %v131 = vld [vmem:[%s4] sm:$0x1]
  %v133 = vlaneseq
  %v134 = vshrl.u32 %v133, 7
  %v135 = vsub.s32 0, %v134
  %v136 = vrot.slane %v131, %v135
  %141 = vrot.lane.b32.xlu0 %v124, 64
  %v142 = vpop.permute.xlu0 %141
  %143 = vrot.lane.b32.xlu0 %v125, 64
  %v144 = vpop.permute.xlu0 %143
  %145 = vrot.lane.b32.xlu0 %v126, 64
  %v146 = vpop.permute.xlu0 %145
  %v151 = vunpack.c.l.b16 %v127
  %v152 = vunpack.c.l.b16 %v128
  %v153 = vunpack.c.l.b16 %v129
  %v154 = vunpack.c.l.b16 %v130
  %v155 = vpack.c.b16 %v152, %v151
  %v156 = vpack.c.b16 %v154, %v153
  %vm159 = vcmask 261120
  %v161 = vsel %vm159, %v142, 0
  %v164 = vsel %vm159, %v144, 0
  %v167 = vsel %vm159, %v146, 0
  %169 = vmatprep.subr.bf16.mxu0 0
  %170 = vmatpush1.bf16.msra.mxu0 %v155
  %171 = vmatprep.subr.bf16.mxu0 0
  %172 = vmatpush1.bf16.msra.mxu0 %v156
  %173 = vmatprep.subr.bf16.mxu0 0
  %174 = vmatpush1.bf16.msra.mxu0 0
  %175 = vmatprep.subr.bf16.mxu0 0
  %176 = vmatpush1.bf16.msra.mxu0 0
  %177 = vmatprep.subr.bf16.mxu0 0
  %178 = vmatpush1.bf16.msra.mxu0 0
  %179 = vmatprep.subr.bf16.mxu0 0
  %180 = vmatpush1.bf16.msra.mxu0 0
  %181 = vmatprep.subr.bf16.mxu0 0
  %182 = vmatpush1.bf16.msra.mxu0 0
  %183 = vmatprep.subr.bf16.mxu0 0
  %184 = vmatpush1.bf16.msra.mxu0 0
  %185 = vmatprep.subr.bf16.mxu0 0
  %186 = vmatpush1.bf16.msra.mxu0 0
  %187 = vmatprep.subr.bf16.mxu0 0
  %188 = vmatpush1.bf16.msra.mxu0 0
  %189 = vmatprep.subr.bf16.mxu0 0
  %190 = vmatpush1.bf16.msra.mxu0 0
  %191 = vmatprep.subr.bf16.mxu0 0
  %192 = vmatpush1.bf16.msra.mxu0 0
  %193 = vmatprep.subr.bf16.mxu0 0
  %194 = vmatpush1.bf16.msra.mxu0 0
  %195 = vmatprep.subr.bf16.mxu0 0
  %196 = vmatpush1.bf16.msra.mxu0 0
  %197 = vmatprep.subr.bf16.mxu0 0
  %198 = vmatpush1.bf16.msra.mxu0 0
  %199 = vmatprep.subr.bf16.mxu0 0
  %200 = vmatpush1.bf16.msra.mxu0 0
  %201 = vmatprep.mubr.bf16.mxu0 0
  %202 = vmatmul.mubr.bf16.gmra.mrb[0].mxu0 %v161
  %v203 = vpop.f32.mrb[0].mxu0
  %v204 = vadd.f32 %v136, %v203
  %v205 = vpop.f32.mrb[0].mxu0
  %v206 = vpop.f32.mrb[0].mxu0
  %v207 = vadd.f32 %v136, %v206
  %v208 = vpop.f32.mrb[0].mxu0
  %209 = vmatprep.mubr.bf16.mxu0 0
  %210 = vmatmul.mubr.bf16.gmra.mrb[0].mxu0 %v164
  %v211 = vpop.f32.mrb[0].mxu0
  %v212 = vadd.f32 %v136, %v211
  %v213 = vpop.f32.mrb[0].mxu0
  %v214 = vpop.f32.mrb[0].mxu0
  %v215 = vadd.f32 %v136, %v214
  %v216 = vpop.f32.mrb[0].mxu0
  %217 = vmatprep.mubr.bf16.mxu0 0
  %218 = vmatmul.mubr.bf16.gmra.mrb[0].mxu0 %v167
  %v219 = vpop.f32.mrb[0].mxu0
  %v220 = vadd.f32 %v136, %v219
  %v221 = vpop.f32.mrb[0].mxu0
  %v222 = vpop.f32.mrb[0].mxu0
  %v223 = vadd.f32 %v136, %v222
  %v224 = vpop.f32.mrb[0].mxu0
  %225 = vdwg.mxu0
  %v226 = vmax.f32 %v204, 0.0
  %v227 = vmax.f32 %v207, 0.0
  %v228 = vmax.f32 %v212, 0.0
  %v229 = vmax.f32 %v215, 0.0
  %v230 = vmax.f32 %v220, 0.0
  %v231 = vmax.f32 %v223, 0.0
  %238 = vrot.lane.b32.xlu0 %v118, 64
  %v239 = vpop.permute.xlu0 %238
  %240 = vrot.lane.b32.xlu0 %v119, 64
  %v241 = vpop.permute.xlu0 %240
  %242 = vrot.lane.b32.xlu0 %v120, 64
  %v243 = vpop.permute.xlu0 %242
  %244 = vrot.lane.b32.xlu0 %v121, 64
  %v245 = vpop.permute.xlu0 %244
  %246 = vrot.lane.b32.xlu0 %v122, 64
  %v247 = vpop.permute.xlu0 %246
  %248 = vrot.lane.b32.xlu0 %v123, 64
  %v249 = vpop.permute.xlu0 %248
  %v256 = vadd.f32 %v226, %v239
  %v257 = vadd.f32 %v227, %v241
  %v258 = vadd.f32 %v228, %v243
  %v259 = vadd.f32 %v229, %v245
  %v260 = vadd.f32 %v230, %v247
  %v261 = vadd.f32 %v231, %v249
  %v262 = vpack.c.bf16 %v118, %v118
  %v263 = vpack.c.bf16 %v119, %v119
  %v264 = vpack.c.bf16 %v120, %v120
  %v265 = vpack.c.bf16 %v121, %v121
  %v266 = vpack.c.bf16 %v122, %v122
  %v267 = vpack.c.bf16 %v123, %v123
  %268 = vxpose.xlu0.c.b16.start [1/8] %v262, 128
  %269 = vxpose.xlu0.c.b16.cont [2/8] 0, 128
  %270 = vxpose.xlu0.c.b16.cont [3/8] 0, 128
  %271 = vxpose.xlu0.c.b16.cont [4/8] 0, 128
  %272 = vxpose.xlu0.c.b16.cont [5/8] 0, 128
  %273 = vxpose.xlu0.c.b16.cont [6/8] 0, 128
  %274 = vxpose.xlu0.c.b16.cont [7/8] 0, 128
  %275 = vxpose.xlu0.c.b16.end [8/8] 0, 128
  %v276 = vpop.trf.xlu0
  %v277 = vpop.trf.xlu0
  %v278 = vpop.trf.xlu0
  %v279 = vpop.trf.xlu0
  %v280 = vpop.trf.xlu0
  %v281 = vpop.trf.xlu0
  %v282 = vpop.trf.xlu0
  %v283 = vpop.trf.xlu0
  %285 = vrot.lane.b32.xlu0 %v262, 96
  %v286 = vpop.permute.xlu0 %285
  %vm287 = vcmask 64512
  %v289 = vsel %vm287, %v276, 0
  %v292 = vsel %vm287, %v277, 0
  %vm294 = vcmask 1043456
  %v296 = vsel %vm294, %v286, 0
  %298 = vmatprep.subr.bf16.mxu0 0
  %299 = vmatpush1.bf16.msra.mxu0 %v296
  %300 = vmatprep.subr.bf16.mxu0 0
  %301 = vmatpush1.bf16.msra.mxu0 0
  %302 = vmatprep.subr.bf16.mxu0 0
  %303 = vmatpush1.bf16.msra.mxu0 0
  %304 = vmatprep.subr.bf16.mxu0 0
  %305 = vmatpush1.bf16.msra.mxu0 0
  %306 = vmatprep.subr.bf16.mxu0 0
  %307 = vmatpush1.bf16.msra.mxu0 0
  %308 = vmatprep.subr.bf16.mxu0 0
  %309 = vmatpush1.bf16.msra.mxu0 0
  %310 = vmatprep.subr.bf16.mxu0 0
  %311 = vmatpush1.bf16.msra.mxu0 0
  %312 = vmatprep.subr.bf16.mxu0 0
  %313 = vmatpush1.bf16.msra.mxu0 0
  %314 = vmatprep.subr.bf16.mxu0 0
  %315 = vmatpush1.bf16.msra.mxu0 0
  %316 = vmatprep.subr.bf16.mxu0 0
  %317 = vmatpush1.bf16.msra.mxu0 0
  %318 = vmatprep.subr.bf16.mxu0 0
  %319 = vmatpush1.bf16.msra.mxu0 0
  %320 = vmatprep.subr.bf16.mxu0 0
  %321 = vmatpush1.bf16.msra.mxu0 0
  %322 = vmatprep.subr.bf16.mxu0 0
  %323 = vmatpush1.bf16.msra.mxu0 0
  %324 = vmatprep.subr.bf16.mxu0 0
  %325 = vmatpush1.bf16.msra.mxu0 0
  %326 = vmatprep.subr.bf16.mxu0 0
  %327 = vmatpush1.bf16.msra.mxu0 0
  %328 = vmatprep.subr.bf16.mxu0 0
  %329 = vmatpush1.bf16.msra.mxu0 0
  %330 = vmatprep.mubr.bf16.mxu0 0
  %331 = vmatmul.mubr.bf16.gmra.mrb[0].mxu0 %v289
  %v332 = vpop.f32.mrb[0].mxu0
  %v333 = vadd.f32 0.0, %v332
  %v334 = vpop.f32.mrb[0].mxu0
  %v335 = vpop.f32.mrb[0].mxu0
  %v336 = vadd.f32 0.0, %v335
  %v337 = vpop.f32.mrb[0].mxu0
  %338 = vmatprep.mubr.bf16.mxu0 0
  %339 = vmatmul.mubr.bf16.gmra.mrb[0].mxu0 %v292
  %v340 = vpop.f32.mrb[0].mxu0
  %v341 = vadd.f32 0.0, %v340
  %v342 = vpop.f32.mrb[0].mxu0
  %v343 = vpop.f32.mrb[0].mxu0
  %v344 = vadd.f32 0.0, %v343
  %v345 = vpop.f32.mrb[0].mxu0
  %346 = vdwg.mxu0
  %347 = vxpose.xlu0.c.b16.start [1/8] %v263, 128
  %348 = vxpose.xlu0.c.b16.cont [2/8] 0, 128
  %349 = vxpose.xlu0.c.b16.cont [3/8] 0, 128
  %350 = vxpose.xlu0.c.b16.cont [4/8] 0, 128
  %351 = vxpose.xlu0.c.b16.cont [5/8] 0, 128
  %352 = vxpose.xlu0.c.b16.cont [6/8] 0, 128
  %353 = vxpose.xlu0.c.b16.cont [7/8] 0, 128
  %354 = vxpose.xlu0.c.b16.end [8/8] 0, 128
  %v355 = vpop.trf.xlu0
  %v356 = vpop.trf.xlu0
  %v357 = vpop.trf.xlu0
  %v358 = vpop.trf.xlu0
  %v359 = vpop.trf.xlu0
  %v360 = vpop.trf.xlu0
  %v361 = vpop.trf.xlu0
  %v362 = vpop.trf.xlu0
  %364 = vrot.lane.b32.xlu0 %v263, 96
  %v365 = vpop.permute.xlu0 %364
  %v367 = vsel %vm287, %v355, 0
  %v370 = vsel %vm287, %v356, 0
  %v373 = vsel %vm294, %v365, 0
  %375 = vmatprep.subr.bf16.mxu0 0
  %376 = vmatpush1.bf16.msra.mxu0 %v373
  %377 = vmatprep.subr.bf16.mxu0 0
  %378 = vmatpush1.bf16.msra.mxu0 0
  %379 = vmatprep.subr.bf16.mxu0 0
  %380 = vmatpush1.bf16.msra.mxu0 0
  %381 = vmatprep.subr.bf16.mxu0 0
  %382 = vmatpush1.bf16.msra.mxu0 0
  %383 = vmatprep.subr.bf16.mxu0 0
  %384 = vmatpush1.bf16.msra.mxu0 0
  %385 = vmatprep.subr.bf16.mxu0 0
  %386 = vmatpush1.bf16.msra.mxu0 0
  %387 = vmatprep.subr.bf16.mxu0 0
  %388 = vmatpush1.bf16.msra.mxu0 0
  %389 = vmatprep.subr.bf16.mxu0 0
  %390 = vmatpush1.bf16.msra.mxu0 0
  %391 = vmatprep.subr.bf16.mxu0 0
  %392 = vmatpush1.bf16.msra.mxu0 0
  %393 = vmatprep.subr.bf16.mxu0 0
  %394 = vmatpush1.bf16.msra.mxu0 0
  %395 = vmatprep.subr.bf16.mxu0 0
  %396 = vmatpush1.bf16.msra.mxu0 0
  %397 = vmatprep.subr.bf16.mxu0 0
  %398 = vmatpush1.bf16.msra.mxu0 0
  %399 = vmatprep.subr.bf16.mxu0 0
  %400 = vmatpush1.bf16.msra.mxu0 0
  %401 = vmatprep.subr.bf16.mxu0 0
  %402 = vmatpush1.bf16.msra.mxu0 0
  %403 = vmatprep.subr.bf16.mxu0 0
  %404 = vmatpush1.bf16.msra.mxu0 0
  %405 = vmatprep.subr.bf16.mxu0 0
  %406 = vmatpush1.bf16.msra.mxu0 0
  %407 = vmatprep.mubr.bf16.mxu0 0
  %408 = vmatmul.mubr.bf16.gmra.mrb[0].mxu0 %v367
  %v409 = vpop.f32.mrb[0].mxu0
  %v410 = vadd.f32 0.0, %v409
  %v411 = vpop.f32.mrb[0].mxu0
  %v412 = vpop.f32.mrb[0].mxu0
  %v413 = vadd.f32 0.0, %v412
  %v414 = vpop.f32.mrb[0].mxu0
  %415 = vmatprep.mubr.bf16.mxu0 0
  %416 = vmatmul.mubr.bf16.gmra.mrb[0].mxu0 %v370
  %v417 = vpop.f32.mrb[0].mxu0
  %v418 = vadd.f32 0.0, %v417
  %v419 = vpop.f32.mrb[0].mxu0
  %v420 = vpop.f32.mrb[0].mxu0
  %v421 = vadd.f32 0.0, %v420
  %v422 = vpop.f32.mrb[0].mxu0
  %423 = vdwg.mxu0
  %424 = vxpose.xlu0.c.b16.start [1/8] %v264, 128
  %425 = vxpose.xlu0.c.b16.cont [2/8] 0, 128
  %426 = vxpose.xlu0.c.b16.cont [3/8] 0, 128
  %427 = vxpose.xlu0.c.b16.cont [4/8] 0, 128
  %428 = vxpose.xlu0.c.b16.cont [5/8] 0, 128
  %429 = vxpose.xlu0.c.b16.cont [6/8] 0, 128
  %430 = vxpose.xlu0.c.b16.cont [7/8] 0, 128
  %431 = vxpose.xlu0.c.b16.end [8/8] 0, 128
  %v432 = vpop.trf.xlu0
  %v433 = vpop.trf.xlu0
  %v434 = vpop.trf.xlu0
  %v435 = vpop.trf.xlu0
  %v436 = vpop.trf.xlu0
  %v437 = vpop.trf.xlu0
  %v438 = vpop.trf.xlu0
  %v439 = vpop.trf.xlu0
  %441 = vrot.lane.b32.xlu0 %v264, 96
  %v442 = vpop.permute.xlu0 %441
  %v444 = vsel %vm287, %v432, 0
  %v447 = vsel %vm287, %v433, 0
  %v450 = vsel %vm294, %v442, 0
  %452 = vmatprep.subr.bf16.mxu0 0
  %453 = vmatpush1.bf16.msra.mxu0 %v450
  %454 = vmatprep.subr.bf16.mxu0 0
  %455 = vmatpush1.bf16.msra.mxu0 0
  %456 = vmatprep.subr.bf16.mxu0 0
  %457 = vmatpush1.bf16.msra.mxu0 0
  %458 = vmatprep.subr.bf16.mxu0 0
  %459 = vmatpush1.bf16.msra.mxu0 0
  %460 = vmatprep.subr.bf16.mxu0 0
  %461 = vmatpush1.bf16.msra.mxu0 0
  %462 = vmatprep.subr.bf16.mxu0 0
  %463 = vmatpush1.bf16.msra.mxu0 0
  %464 = vmatprep.subr.bf16.mxu0 0
  %465 = vmatpush1.bf16.msra.mxu0 0
  %466 = vmatprep.subr.bf16.mxu0 0
  %467 = vmatpush1.bf16.msra.mxu0 0
  %468 = vmatprep.subr.bf16.mxu0 0
  %469 = vmatpush1.bf16.msra.mxu0 0
  %470 = vmatprep.subr.bf16.mxu0 0
  %471 = vmatpush1.bf16.msra.mxu0 0
  %472 = vmatprep.subr.bf16.mxu0 0
  %473 = vmatpush1.bf16.msra.mxu0 0
  %474 = vmatprep.subr.bf16.mxu0 0
  %475 = vmatpush1.bf16.msra.mxu0 0
  %476 = vmatprep.subr.bf16.mxu0 0
  %477 = vmatpush1.bf16.msra.mxu0 0
  %478 = vmatprep.subr.bf16.mxu0 0
  %479 = vmatpush1.bf16.msra.mxu0 0
  %480 = vmatprep.subr.bf16.mxu0 0
  %481 = vmatpush1.bf16.msra.mxu0 0
  %482 = vmatprep.subr.bf16.mxu0 0
  %483 = vmatpush1.bf16.msra.mxu0 0
  %484 = vmatprep.mubr.bf16.mxu0 0
  %485 = vmatmul.mubr.bf16.gmra.mrb[0].mxu0 %v444
  %v486 = vpop.f32.mrb[0].mxu0
  %v487 = vadd.f32 0.0, %v486
  %v488 = vpop.f32.mrb[0].mxu0
  %v489 = vpop.f32.mrb[0].mxu0
  %v490 = vadd.f32 0.0, %v489
  %v491 = vpop.f32.mrb[0].mxu0
  %492 = vmatprep.mubr.bf16.mxu0 0
  %493 = vmatmul.mubr.bf16.gmra.mrb[0].mxu0 %v447
  %v494 = vpop.f32.mrb[0].mxu0
  %v495 = vadd.f32 0.0, %v494
  %v496 = vpop.f32.mrb[0].mxu0
  %v497 = vpop.f32.mrb[0].mxu0
  %v498 = vadd.f32 0.0, %v497
  %v499 = vpop.f32.mrb[0].mxu0
  %500 = vdwg.mxu0
  %501 = vxpose.xlu0.c.b16.start [1/8] %v265, 128
  %502 = vxpose.xlu0.c.b16.cont [2/8] 0, 128
  %503 = vxpose.xlu0.c.b16.cont [3/8] 0, 128
  %504 = vxpose.xlu0.c.b16.cont [4/8] 0, 128
  %505 = vxpose.xlu0.c.b16.cont [5/8] 0, 128
  %506 = vxpose.xlu0.c.b16.cont [6/8] 0, 128
  %507 = vxpose.xlu0.c.b16.cont [7/8] 0, 128
  %508 = vxpose.xlu0.c.b16.end [8/8] 0, 128
  %v509 = vpop.trf.xlu0
  %v510 = vpop.trf.xlu0
  %v511 = vpop.trf.xlu0
  %v512 = vpop.trf.xlu0
  %v513 = vpop.trf.xlu0
  %v514 = vpop.trf.xlu0
  %v515 = vpop.trf.xlu0
  %v516 = vpop.trf.xlu0
  %518 = vrot.lane.b32.xlu0 %v265, 96
  %v519 = vpop.permute.xlu0 %518
  %v521 = vsel %vm287, %v509, 0
  %v524 = vsel %vm287, %v510, 0
  %v527 = vsel %vm294, %v519, 0
  %529 = vmatprep.subr.bf16.mxu0 0
  %530 = vmatpush1.bf16.msra.mxu0 %v527
  %531 = vmatprep.subr.bf16.mxu0 0
  %532 = vmatpush1.bf16.msra.mxu0 0
  %533 = vmatprep.subr.bf16.mxu0 0
  %534 = vmatpush1.bf16.msra.mxu0 0
  %535 = vmatprep.subr.bf16.mxu0 0
  %536 = vmatpush1.bf16.msra.mxu0 0
  %537 = vmatprep.subr.bf16.mxu0 0
  %538 = vmatpush1.bf16.msra.mxu0 0
  %539 = vmatprep.subr.bf16.mxu0 0
  %540 = vmatpush1.bf16.msra.mxu0 0
  %541 = vmatprep.subr.bf16.mxu0 0
  %542 = vmatpush1.bf16.msra.mxu0 0
  %543 = vmatprep.subr.bf16.mxu0 0
  %544 = vmatpush1.bf16.msra.mxu0 0
  %545 = vmatprep.subr.bf16.mxu0 0
  %546 = vmatpush1.bf16.msra.mxu0 0
  %547 = vmatprep.subr.bf16.mxu0 0
  %548 = vmatpush1.bf16.msra.mxu0 0
  %549 = vmatprep.subr.bf16.mxu0 0
  %550 = vmatpush1.bf16.msra.mxu0 0
  %551 = vmatprep.subr.bf16.mxu0 0
  %552 = vmatpush1.bf16.msra.mxu0 0
  %553 = vmatprep.subr.bf16.mxu0 0
  %554 = vmatpush1.bf16.msra.mxu0 0
  %555 = vmatprep.subr.bf16.mxu0 0
  %556 = vmatpush1.bf16.msra.mxu0 0
  %557 = vmatprep.subr.bf16.mxu0 0
  %558 = vmatpush1.bf16.msra.mxu0 0
  %559 = vmatprep.subr.bf16.mxu0 0
  %560 = vmatpush1.bf16.msra.mxu0 0
  %561 = vmatprep.mubr.bf16.mxu0 0
  %562 = vmatmul.mubr.bf16.gmra.mrb[0].mxu0 %v521
  %v563 = vpop.f32.mrb[0].mxu0
  %v564 = vadd.f32 0.0, %v563
  %v565 = vpop.f32.mrb[0].mxu0
  %v566 = vpop.f32.mrb[0].mxu0
  %v567 = vadd.f32 0.0, %v566
  %v568 = vpop.f32.mrb[0].mxu0
  %569 = vmatprep.mubr.bf16.mxu0 0
  %570 = vmatmul.mubr.bf16.gmra.mrb[0].mxu0 %v524
  %v571 = vpop.f32.mrb[0].mxu0
  %v572 = vadd.f32 0.0, %v571
  %v573 = vpop.f32.mrb[0].mxu0
  %v574 = vpop.f32.mrb[0].mxu0
  %v575 = vadd.f32 0.0, %v574
  %v576 = vpop.f32.mrb[0].mxu0
  %577 = vdwg.mxu0
  %578 = vxpose.xlu0.c.b16.start [1/8] %v266, 128
  %579 = vxpose.xlu0.c.b16.cont [2/8] 0, 128
  %580 = vxpose.xlu0.c.b16.cont [3/8] 0, 128
  %581 = vxpose.xlu0.c.b16.cont [4/8] 0, 128
  %582 = vxpose.xlu0.c.b16.cont [5/8] 0, 128
  %583 = vxpose.xlu0.c.b16.cont [6/8] 0, 128
  %584 = vxpose.xlu0.c.b16.cont [7/8] 0, 128
  %585 = vxpose.xlu0.c.b16.end [8/8] 0, 128
  %v586 = vpop.trf.xlu0
  %v587 = vpop.trf.xlu0
  %v588 = vpop.trf.xlu0
  %v589 = vpop.trf.xlu0
  %v590 = vpop.trf.xlu0
  %v591 = vpop.trf.xlu0
  %v592 = vpop.trf.xlu0
  %v593 = vpop.trf.xlu0
  %595 = vrot.lane.b32.xlu0 %v266, 96
  %v596 = vpop.permute.xlu0 %595
  %v598 = vsel %vm287, %v586, 0
  %v601 = vsel %vm287, %v587, 0
  %v604 = vsel %vm294, %v596, 0
  %606 = vmatprep.subr.bf16.mxu0 0
  %607 = vmatpush1.bf16.msra.mxu0 %v604
  %608 = vmatprep.subr.bf16.mxu0 0
  %609 = vmatpush1.bf16.msra.mxu0 0
  %610 = vmatprep.subr.bf16.mxu0 0
  %611 = vmatpush1.bf16.msra.mxu0 0
  %612 = vmatprep.subr.bf16.mxu0 0
  %613 = vmatpush1.bf16.msra.mxu0 0
  %614 = vmatprep.subr.bf16.mxu0 0
  %615 = vmatpush1.bf16.msra.mxu0 0
  %616 = vmatprep.subr.bf16.mxu0 0
  %617 = vmatpush1.bf16.msra.mxu0 0
  %618 = vmatprep.subr.bf16.mxu0 0
  %619 = vmatpush1.bf16.msra.mxu0 0
  %620 = vmatprep.subr.bf16.mxu0 0
  %621 = vmatpush1.bf16.msra.mxu0 0
  %622 = vmatprep.subr.bf16.mxu0 0
  %623 = vmatpush1.bf16.msra.mxu0 0
  %624 = vmatprep.subr.bf16.mxu0 0
  %625 = vmatpush1.bf16.msra.mxu0 0
  %626 = vmatprep.subr.bf16.mxu0 0
  %627 = vmatpush1.bf16.msra.mxu0 0
  %628 = vmatprep.subr.bf16.mxu0 0
  %629 = vmatpush1.bf16.msra.mxu0 0
  %630 = vmatprep.subr.bf16.mxu0 0
  %631 = vmatpush1.bf16.msra.mxu0 0
  %632 = vmatprep.subr.bf16.mxu0 0
  %633 = vmatpush1.bf16.msra.mxu0 0
  %634 = vmatprep.subr.bf16.mxu0 0
  %635 = vmatpush1.bf16.msra.mxu0 0
  %636 = vmatprep.subr.bf16.mxu0 0
  %637 = vmatpush1.bf16.msra.mxu0 0
  %638 = vmatprep.mubr.bf16.mxu0 0
  %639 = vmatmul.mubr.bf16.gmra.mrb[0].mxu0 %v598
  %v640 = vpop.f32.mrb[0].mxu0
  %v641 = vadd.f32 0.0, %v640
  %v642 = vpop.f32.mrb[0].mxu0
  %v643 = vpop.f32.mrb[0].mxu0
  %v644 = vadd.f32 0.0, %v643
  %v645 = vpop.f32.mrb[0].mxu0
  %646 = vmatprep.mubr.bf16.mxu0 0
  %647 = vmatmul.mubr.bf16.gmra.mrb[0].mxu0 %v601
  %v648 = vpop.f32.mrb[0].mxu0
  %v649 = vadd.f32 0.0, %v648
  %v650 = vpop.f32.mrb[0].mxu0
  %v651 = vpop.f32.mrb[0].mxu0
  %v652 = vadd.f32 0.0, %v651
  %v653 = vpop.f32.mrb[0].mxu0
  %654 = vdwg.mxu0
  %655 = vxpose.xlu0.c.b16.start [1/8] %v267, 128
  %656 = vxpose.xlu0.c.b16.cont [2/8] 0, 128
  %657 = vxpose.xlu0.c.b16.cont [3/8] 0, 128
  %658 = vxpose.xlu0.c.b16.cont [4/8] 0, 128
  %659 = vxpose.xlu0.c.b16.cont [5/8] 0, 128
  %660 = vxpose.xlu0.c.b16.cont [6/8] 0, 128
  %661 = vxpose.xlu0.c.b16.cont [7/8] 0, 128
  %662 = vxpose.xlu0.c.b16.end [8/8] 0, 128
  %v663 = vpop.trf.xlu0
  %v664 = vpop.trf.xlu0
  %v665 = vpop.trf.xlu0
  %v666 = vpop.trf.xlu0
  %v667 = vpop.trf.xlu0
  %v668 = vpop.trf.xlu0
  %v669 = vpop.trf.xlu0
  %v670 = vpop.trf.xlu0
  %672 = vrot.lane.b32.xlu0 %v267, 96
  %v673 = vpop.permute.xlu0 %672
  %v675 = vsel %vm287, %v663, 0
  %v678 = vsel %vm287, %v664, 0
  %v681 = vsel %vm294, %v673, 0
  %683 = vmatprep.subr.bf16.mxu0 0
  %684 = vmatpush1.bf16.msra.mxu0 %v681
  %685 = vmatprep.subr.bf16.mxu0 0
  %686 = vmatpush1.bf16.msra.mxu0 0
  %687 = vmatprep.subr.bf16.mxu0 0
  %688 = vmatpush1.bf16.msra.mxu0 0
  %689 = vmatprep.subr.bf16.mxu0 0
  %690 = vmatpush1.bf16.msra.mxu0 0
  %691 = vmatprep.subr.bf16.mxu0 0
  %692 = vmatpush1.bf16.msra.mxu0 0
  %693 = vmatprep.subr.bf16.mxu0 0
  %694 = vmatpush1.bf16.msra.mxu0 0
  %695 = vmatprep.subr.bf16.mxu0 0
  %696 = vmatpush1.bf16.msra.mxu0 0
  %697 = vmatprep.subr.bf16.mxu0 0
  %698 = vmatpush1.bf16.msra.mxu0 0
  %699 = vmatprep.subr.bf16.mxu0 0
  %700 = vmatpush1.bf16.msra.mxu0 0
  %701 = vmatprep.subr.bf16.mxu0 0
  %702 = vmatpush1.bf16.msra.mxu0 0
  %703 = vmatprep.subr.bf16.mxu0 0
  %704 = vmatpush1.bf16.msra.mxu0 0
  %705 = vmatprep.subr.bf16.mxu0 0
  %706 = vmatpush1.bf16.msra.mxu0 0
  %707 = vmatprep.subr.bf16.mxu0 0
  %708 = vmatpush1.bf16.msra.mxu0 0
  %709 = vmatprep.subr.bf16.mxu0 0
  %710 = vmatpush1.bf16.msra.mxu0 0
  %711 = vmatprep.subr.bf16.mxu0 0
  %712 = vmatpush1.bf16.msra.mxu0 0
  %713 = vmatprep.subr.bf16.mxu0 0
  %714 = vmatpush1.bf16.msra.mxu0 0
  %715 = vmatprep.mubr.bf16.mxu0 0
  %716 = vmatmul.mubr.bf16.gmra.mrb[0].mxu0 %v675
  %v717 = vpop.f32.mrb[0].mxu0
  %v718 = vadd.f32 0.0, %v717
  %v719 = vpop.f32.mrb[0].mxu0
  %v720 = vpop.f32.mrb[0].mxu0
  %v721 = vadd.f32 0.0, %v720
  %v722 = vpop.f32.mrb[0].mxu0
  %723 = vmatprep.mubr.bf16.mxu0 0
  %724 = vmatmul.mubr.bf16.gmra.mrb[0].mxu0 %v678
  %v725 = vpop.f32.mrb[0].mxu0
  %v726 = vadd.f32 0.0, %v725
  %v727 = vpop.f32.mrb[0].mxu0
  %v728 = vpop.f32.mrb[0].mxu0
  %v729 = vadd.f32 0.0, %v728
  %v730 = vpop.f32.mrb[0].mxu0
  %731 = vdwg.mxu0
  %v732 = vsel %vm159, %v333, -inf
  %733 = vmax.xlane.f32.xlu0 %v732
  %v734 = vpop.xlane.xlu0 %733
  %v735 = vsel %vm159, %v336, -inf
  %736 = vmax.xlane.f32.xlu0 %v735
  %v737 = vpop.xlane.xlu0 %736
  %v738 = vsel %vm159, %v341, -inf
  %739 = vmax.xlane.f32.xlu0 %v738
  %v740 = vpop.xlane.xlu0 %739
  %v741 = vsel %vm159, %v344, -inf
  %742 = vmax.xlane.f32.xlu0 %v741
  %v743 = vpop.xlane.xlu0 %742
  %v744 = vsel %vm159, %v410, -inf
  %745 = vmax.xlane.f32.xlu0 %v744
  %v746 = vpop.xlane.xlu0 %745
  %v747 = vsel %vm159, %v413, -inf
  %748 = vmax.xlane.f32.xlu0 %v747
  %v749 = vpop.xlane.xlu0 %748
  %v750 = vsel %vm159, %v418, -inf
  %751 = vmax.xlane.f32.xlu0 %v750
  %v752 = vpop.xlane.xlu0 %751
  %v753 = vsel %vm159, %v421, -inf
  %754 = vmax.xlane.f32.xlu0 %v753
  %v755 = vpop.xlane.xlu0 %754
  %v756 = vsel %vm159, %v487, -inf
  %757 = vmax.xlane.f32.xlu0 %v756
  %v758 = vpop.xlane.xlu0 %757
  %v759 = vsel %vm159, %v490, -inf
  %760 = vmax.xlane.f32.xlu0 %v759
  %v761 = vpop.xlane.xlu0 %760
  %v762 = vsel %vm159, %v495, -inf
  %763 = vmax.xlane.f32.xlu0 %v762
  %v764 = vpop.xlane.xlu0 %763
  %v765 = vsel %vm159, %v498, -inf
  %766 = vmax.xlane.f32.xlu0 %v765
  %v767 = vpop.xlane.xlu0 %766
  %v768 = vsel %vm159, %v564, -inf
  %769 = vmax.xlane.f32.xlu0 %v768
  %v770 = vpop.xlane.xlu0 %769
  %v771 = vsel %vm159, %v567, -inf
  %772 = vmax.xlane.f32.xlu0 %v771
  %v773 = vpop.xlane.xlu0 %772
  %v774 = vsel %vm159, %v572, -inf
  %775 = vmax.xlane.f32.xlu0 %v774
  %v776 = vpop.xlane.xlu0 %775
  %v777 = vsel %vm159, %v575, -inf
  %778 = vmax.xlane.f32.xlu0 %v777
  %v779 = vpop.xlane.xlu0 %778
  %v780 = vsel %vm159, %v641, -inf
  %781 = vmax.xlane.f32.xlu0 %v780
  %v782 = vpop.xlane.xlu0 %781
  %v783 = vsel %vm159, %v644, -inf
  %784 = vmax.xlane.f32.xlu0 %v783
  %v785 = vpop.xlane.xlu0 %784
  %v786 = vsel %vm159, %v649, -inf
  %787 = vmax.xlane.f32.xlu0 %v786
  %v788 = vpop.xlane.xlu0 %787
  %v789 = vsel %vm159, %v652, -inf
  %790 = vmax.xlane.f32.xlu0 %v789
  %v791 = vpop.xlane.xlu0 %790
  %v792 = vsel %vm159, %v718, -inf
  %793 = vmax.xlane.f32.xlu0 %v792
  %v794 = vpop.xlane.xlu0 %793
  %v795 = vsel %vm159, %v721, -inf
  %796 = vmax.xlane.f32.xlu0 %v795
  %v797 = vpop.xlane.xlu0 %796
  %v798 = vsel %vm159, %v726, -inf
  %799 = vmax.xlane.f32.xlu0 %v798
  %v800 = vpop.xlane.xlu0 %799
  %v801 = vsel %vm159, %v729, -inf
  %802 = vmax.xlane.f32.xlu0 %v801
  %v803 = vpop.xlane.xlu0 %802
  %v804 = vsub.f32 %v333, %v734
  %v805 = vsub.f32 %v336, %v737
  %v806 = vsub.f32 %v341, %v740
  %v807 = vsub.f32 %v344, %v743
  %v808 = vsub.f32 %v410, %v746
  %v809 = vsub.f32 %v413, %v749
  %v810 = vsub.f32 %v418, %v752
  %v811 = vsub.f32 %v421, %v755
  %v812 = vsub.f32 %v487, %v758
  %v813 = vsub.f32 %v490, %v761
  %v814 = vsub.f32 %v495, %v764
  %v815 = vsub.f32 %v498, %v767
  %v816 = vsub.f32 %v564, %v770
  %v817 = vsub.f32 %v567, %v773
  %v818 = vsub.f32 %v572, %v776
  %v819 = vsub.f32 %v575, %v779
  %v820 = vsub.f32 %v641, %v782
  %v821 = vsub.f32 %v644, %v785
  %v822 = vsub.f32 %v649, %v788
  %v823 = vsub.f32 %v652, %v791
  %v824 = vsub.f32 %v718, %v794
  %v825 = vsub.f32 %v721, %v797
  %v826 = vsub.f32 %v726, %v800
  %v827 = vsub.f32 %v729, %v803
  %v828 = vmul.f32 %v804, 1.442695
  %v829 = vpow.pop %v828
  %v830 = vmul.f32 %v805, 1.442695
  %v831 = vpow.pop %v830
  %v832 = vmul.f32 %v806, 1.442695
  %v833 = vpow.pop %v832
  %v834 = vmul.f32 %v807, 1.442695
  %v835 = vpow.pop %v834
  %v836 = vmul.f32 %v808, 1.442695
  %v837 = vpow.pop %v836
  %v838 = vmul.f32 %v809, 1.442695
  %v839 = vpow.pop %v838
  %v840 = vmul.f32 %v810, 1.442695
  %v841 = vpow.pop %v840
  %v842 = vmul.f32 %v811, 1.442695
  %v843 = vpow.pop %v842
  %v844 = vmul.f32 %v812, 1.442695
  %v845 = vpow.pop %v844
  %v846 = vmul.f32 %v813, 1.442695
  %v847 = vpow.pop %v846
  %v848 = vmul.f32 %v814, 1.442695
  %v849 = vpow.pop %v848
  %v850 = vmul.f32 %v815, 1.442695
  %v851 = vpow.pop %v850
  %v852 = vmul.f32 %v816, 1.442695
  %v853 = vpow.pop %v852
  %v854 = vmul.f32 %v817, 1.442695
  %v855 = vpow.pop %v854
  %v856 = vmul.f32 %v818, 1.442695
  %v857 = vpow.pop %v856
  %v858 = vmul.f32 %v819, 1.442695
  %v859 = vpow.pop %v858
  %v860 = vmul.f32 %v820, 1.442695
  %v861 = vpow.pop %v860
  %v862 = vmul.f32 %v821, 1.442695
  %v863 = vpow.pop %v862
  %v864 = vmul.f32 %v822, 1.442695
  %v865 = vpow.pop %v864
  %v866 = vmul.f32 %v823, 1.442695
  %v867 = vpow.pop %v866
  %v868 = vmul.f32 %v824, 1.442695
  %v869 = vpow.pop %v868
  %v870 = vmul.f32 %v825, 1.442695
  %v871 = vpow.pop %v870
  %v872 = vmul.f32 %v826, 1.442695
  %v873 = vpow.pop %v872
  %v874 = vmul.f32 %v827, 1.442695
  %v875 = vpow.pop %v874
  %v876 = vsel %vm159, %v829, 0.0
  %877 = vadd.xlane.f32.xlu0 %v876
  %v878 = vpop.xlane.xlu0 %877
  %v879 = vsel %vm159, %v831, 0.0
  %880 = vadd.xlane.f32.xlu0 %v879
  %v881 = vpop.xlane.xlu0 %880
  %v882 = vsel %vm159, %v833, 0.0
  %883 = vadd.xlane.f32.xlu0 %v882
  %v884 = vpop.xlane.xlu0 %883
  %v885 = vsel %vm159, %v835, 0.0
  %886 = vadd.xlane.f32.xlu0 %v885
  %v887 = vpop.xlane.xlu0 %886
  %v888 = vsel %vm159, %v837, 0.0
  %889 = vadd.xlane.f32.xlu0 %v888
  %v890 = vpop.xlane.xlu0 %889
  %v891 = vsel %vm159, %v839, 0.0
  %892 = vadd.xlane.f32.xlu0 %v891
  %v893 = vpop.xlane.xlu0 %892
  %v894 = vsel %vm159, %v841, 0.0
  %895 = vadd.xlane.f32.xlu0 %v894
  %v896 = vpop.xlane.xlu0 %895
  %v897 = vsel %vm159, %v843, 0.0
  %898 = vadd.xlane.f32.xlu0 %v897
  %v899 = vpop.xlane.xlu0 %898
  %v900 = vsel %vm159, %v845, 0.0
  %901 = vadd.xlane.f32.xlu0 %v900
  %v902 = vpop.xlane.xlu0 %901
  %v903 = vsel %vm159, %v847, 0.0
  %904 = vadd.xlane.f32.xlu0 %v903
  %v905 = vpop.xlane.xlu0 %904
  %v906 = vsel %vm159, %v849, 0.0
  %907 = vadd.xlane.f32.xlu0 %v906
  %v908 = vpop.xlane.xlu0 %907
  %v909 = vsel %vm159, %v851, 0.0
  %910 = vadd.xlane.f32.xlu0 %v909
  %v911 = vpop.xlane.xlu0 %910
  %v912 = vsel %vm159, %v853, 0.0
  %913 = vadd.xlane.f32.xlu0 %v912
  %v914 = vpop.xlane.xlu0 %913
  %v915 = vsel %vm159, %v855, 0.0
  %916 = vadd.xlane.f32.xlu0 %v915
  %v917 = vpop.xlane.xlu0 %916
  %v918 = vsel %vm159, %v857, 0.0
  %919 = vadd.xlane.f32.xlu0 %v918
  %v920 = vpop.xlane.xlu0 %919
  %v921 = vsel %vm159, %v859, 0.0
  %922 = vadd.xlane.f32.xlu0 %v921
  %v923 = vpop.xlane.xlu0 %922
  %v924 = vsel %vm159, %v861, 0.0
  %925 = vadd.xlane.f32.xlu0 %v924
  %v926 = vpop.xlane.xlu0 %925
  %v927 = vsel %vm159, %v863, 0.0
  %928 = vadd.xlane.f32.xlu0 %v927
  %v929 = vpop.xlane.xlu0 %928
  %v930 = vsel %vm159, %v865, 0.0
  %931 = vadd.xlane.f32.xlu0 %v930
  %v932 = vpop.xlane.xlu0 %931
  %v933 = vsel %vm159, %v867, 0.0
  %934 = vadd.xlane.f32.xlu0 %v933
  %v935 = vpop.xlane.xlu0 %934
  %v936 = vsel %vm159, %v869, 0.0
  %937 = vadd.xlane.f32.xlu0 %v936
  %v938 = vpop.xlane.xlu0 %937
  %v939 = vsel %vm159, %v871, 0.0
  %940 = vadd.xlane.f32.xlu0 %v939
  %v941 = vpop.xlane.xlu0 %940
  %v942 = vsel %vm159, %v873, 0.0
  %943 = vadd.xlane.f32.xlu0 %v942
  %v944 = vpop.xlane.xlu0 %943
  %v945 = vsel %vm159, %v875, 0.0
  %946 = vadd.xlane.f32.xlu0 %v945
  %v947 = vpop.xlane.xlu0 %946
  %v948 = vrcp.pop %v878
  %v949 = vrcp.pop %v881
  %v950 = vrcp.pop %v884
  %v951 = vrcp.pop %v887
  %v952 = vrcp.pop %v890
  %v953 = vrcp.pop %v893
  %v954 = vrcp.pop %v896
  %v955 = vrcp.pop %v899
  %v956 = vrcp.pop %v902
  %v957 = vrcp.pop %v905
  %v958 = vrcp.pop %v908
  %v959 = vrcp.pop %v911
  %v960 = vrcp.pop %v914
  %v961 = vrcp.pop %v917
  %v962 = vrcp.pop %v920
  %v963 = vrcp.pop %v923
  %v964 = vrcp.pop %v926
  %v965 = vrcp.pop %v929
  %v966 = vrcp.pop %v932
  %v967 = vrcp.pop %v935
  %v968 = vrcp.pop %v938
  %v969 = vrcp.pop %v941
  %v970 = vrcp.pop %v944
  %v971 = vrcp.pop %v947
  %v972 = vmul.f32 %v829, %v948
  %v973 = vmul.f32 %v831, %v949
  %v974 = vmul.f32 %v833, %v950
  %v975 = vmul.f32 %v835, %v951
  %v976 = vmul.f32 %v837, %v952
  %v977 = vmul.f32 %v839, %v953
  %v978 = vmul.f32 %v841, %v954
  %v979 = vmul.f32 %v843, %v955
  %v980 = vmul.f32 %v845, %v956
  %v981 = vmul.f32 %v847, %v957
  %v982 = vmul.f32 %v849, %v958
  %v983 = vmul.f32 %v851, %v959
  %v984 = vmul.f32 %v853, %v960
  %v985 = vmul.f32 %v855, %v961
  %v986 = vmul.f32 %v857, %v962
  %v987 = vmul.f32 %v859, %v963
  %v988 = vmul.f32 %v861, %v964
  %v989 = vmul.f32 %v863, %v965
  %v990 = vmul.f32 %v865, %v966
  %v991 = vmul.f32 %v867, %v967
  %v992 = vmul.f32 %v869, %v968
  %v993 = vmul.f32 %v871, %v969
  %v994 = vmul.f32 %v873, %v970
  %v995 = vmul.f32 %v875, %v971
  %v996 = vpack.c.bf16 %v256, %v256
  %v997 = vpack.c.bf16 %v257, %v257
  %v998 = vpack.c.bf16 %v258, %v258
  %v999 = vpack.c.bf16 %v259, %v259
  %v1000 = vpack.c.bf16 %v260, %v260
  %v1001 = vpack.c.bf16 %v261, %v261
  %v1002 = vpack.c.bf16 %v973, %v972
  %v1003 = vpack.c.bf16 %v975, %v974
  %v1004 = vpack.c.bf16 %v977, %v976
  %v1005 = vpack.c.bf16 %v979, %v978
  %v1006 = vpack.c.bf16 %v981, %v980
  %v1007 = vpack.c.bf16 %v983, %v982
  %v1008 = vpack.c.bf16 %v985, %v984
  %v1009 = vpack.c.bf16 %v987, %v986
  %v1010 = vpack.c.bf16 %v989, %v988
  %v1011 = vpack.c.bf16 %v991, %v990
  %v1012 = vpack.c.bf16 %v993, %v992
  %v1013 = vpack.c.bf16 %v995, %v994
  %v1015 = vsel %vm159, %v996, 0
  %1017 = vmatprep.subr.bf16.mxu0 0
  %1018 = vmatpush1.bf16.msra.mxu0 %v1002
  %1019 = vmatprep.subr.bf16.mxu0 0
  %1020 = vmatpush1.bf16.msra.mxu0 %v1003
  %1021 = vmatprep.subr.bf16.mxu0 0
  %1022 = vmatpush1.bf16.msra.mxu0 0
  %1023 = vmatprep.subr.bf16.mxu0 0
  %1024 = vmatpush1.bf16.msra.mxu0 0
  %1025 = vmatprep.subr.bf16.mxu0 0
  %1026 = vmatpush1.bf16.msra.mxu0 0
  %1027 = vmatprep.subr.bf16.mxu0 0
  %1028 = vmatpush1.bf16.msra.mxu0 0
  %1029 = vmatprep.subr.bf16.mxu0 0
  %1030 = vmatpush1.bf16.msra.mxu0 0
  %1031 = vmatprep.subr.bf16.mxu0 0
  %1032 = vmatpush1.bf16.msra.mxu0 0
  %1033 = vmatprep.subr.bf16.mxu0 0
  %1034 = vmatpush1.bf16.msra.mxu0 0
  %1035 = vmatprep.subr.bf16.mxu0 0
  %1036 = vmatpush1.bf16.msra.mxu0 0
  %1037 = vmatprep.subr.bf16.mxu0 0
  %1038 = vmatpush1.bf16.msra.mxu0 0
  %1039 = vmatprep.subr.bf16.mxu0 0
  %1040 = vmatpush1.bf16.msra.mxu0 0
  %1041 = vmatprep.subr.bf16.mxu0 0
  %1042 = vmatpush1.bf16.msra.mxu0 0
  %1043 = vmatprep.subr.bf16.mxu0 0
  %1044 = vmatpush1.bf16.msra.mxu0 0
  %1045 = vmatprep.subr.bf16.mxu0 0
  %1046 = vmatpush1.bf16.msra.mxu0 0
  %1047 = vmatprep.subr.bf16.mxu0 0
  %1048 = vmatpush1.bf16.msra.mxu0 0
  %1049 = vmatprep.mubr.bf16.mxu0 0
  %1050 = vmatmul.mubr.bf16.gmra.mrb[0].mxu0 %v1015
  %v1051 = vpop.f32.mrb[0].mxu0
  %v1052 = vadd.f32 0.0, %v1051
  %v1053 = vpop.f32.mrb[0].mxu0
  %v1054 = vpop.f32.mrb[0].mxu0
  %v1055 = vpop.f32.mrb[0].mxu0
  %1056 = vdwg.mxu0
  %v1058 = vsel %vm159, %v997, 0
  %1060 = vmatprep.subr.bf16.mxu0 0
  %1061 = vmatpush1.bf16.msra.mxu0 %v1004
  %1062 = vmatprep.subr.bf16.mxu0 0
  %1063 = vmatpush1.bf16.msra.mxu0 %v1005
  %1064 = vmatprep.subr.bf16.mxu0 0
  %1065 = vmatpush1.bf16.msra.mxu0 0
  %1066 = vmatprep.subr.bf16.mxu0 0
  %1067 = vmatpush1.bf16.msra.mxu0 0
  %1068 = vmatprep.subr.bf16.mxu0 0
  %1069 = vmatpush1.bf16.msra.mxu0 0
  %1070 = vmatprep.subr.bf16.mxu0 0
  %1071 = vmatpush1.bf16.msra.mxu0 0
  %1072 = vmatprep.subr.bf16.mxu0 0
  %1073 = vmatpush1.bf16.msra.mxu0 0
  %1074 = vmatprep.subr.bf16.mxu0 0
  %1075 = vmatpush1.bf16.msra.mxu0 0
  %1076 = vmatprep.subr.bf16.mxu0 0
  %1077 = vmatpush1.bf16.msra.mxu0 0
  %1078 = vmatprep.subr.bf16.mxu0 0
  %1079 = vmatpush1.bf16.msra.mxu0 0
  %1080 = vmatprep.subr.bf16.mxu0 0
  %1081 = vmatpush1.bf16.msra.mxu0 0
  %1082 = vmatprep.subr.bf16.mxu0 0
  %1083 = vmatpush1.bf16.msra.mxu0 0
  %1084 = vmatprep.subr.bf16.mxu0 0
  %1085 = vmatpush1.bf16.msra.mxu0 0
  %1086 = vmatprep.subr.bf16.mxu0 0
  %1087 = vmatpush1.bf16.msra.mxu0 0
  %1088 = vmatprep.subr.bf16.mxu0 0
  %1089 = vmatpush1.bf16.msra.mxu0 0
  %1090 = vmatprep.subr.bf16.mxu0 0
  %1091 = vmatpush1.bf16.msra.mxu0 0
  %1092 = vmatprep.mubr.bf16.mxu0 0
  %1093 = vmatmul.mubr.bf16.gmra.mrb[0].mxu0 %v1058
  %v1094 = vpop.f32.mrb[0].mxu0
  %v1095 = vadd.f32 0.0, %v1094
  %v1096 = vpop.f32.mrb[0].mxu0
  %v1097 = vpop.f32.mrb[0].mxu0
  %v1098 = vpop.f32.mrb[0].mxu0
  %1099 = vdwg.mxu0
  %v1101 = vsel %vm159, %v998, 0
  %1103 = vmatprep.subr.bf16.mxu0 0
  %1104 = vmatpush1.bf16.msra.mxu0 %v1006
  %1105 = vmatprep.subr.bf16.mxu0 0
  %1106 = vmatpush1.bf16.msra.mxu0 %v1007
  %1107 = vmatprep.subr.bf16.mxu0 0
  %1108 = vmatpush1.bf16.msra.mxu0 0
  %1109 = vmatprep.subr.bf16.mxu0 0
  %1110 = vmatpush1.bf16.msra.mxu0 0
  %1111 = vmatprep.subr.bf16.mxu0 0
  %1112 = vmatpush1.bf16.msra.mxu0 0
  %1113 = vmatprep.subr.bf16.mxu0 0
  %1114 = vmatpush1.bf16.msra.mxu0 0
  %1115 = vmatprep.subr.bf16.mxu0 0
  %1116 = vmatpush1.bf16.msra.mxu0 0
  %1117 = vmatprep.subr.bf16.mxu0 0
  %1118 = vmatpush1.bf16.msra.mxu0 0
  %1119 = vmatprep.subr.bf16.mxu0 0
  %1120 = vmatpush1.bf16.msra.mxu0 0
  %1121 = vmatprep.subr.bf16.mxu0 0
  %1122 = vmatpush1.bf16.msra.mxu0 0
  %1123 = vmatprep.subr.bf16.mxu0 0
  %1124 = vmatpush1.bf16.msra.mxu0 0
  %1125 = vmatprep.subr.bf16.mxu0 0
  %1126 = vmatpush1.bf16.msra.mxu0 0
  %1127 = vmatprep.subr.bf16.mxu0 0
  %1128 = vmatpush1.bf16.msra.mxu0 0
  %1129 = vmatprep.subr.bf16.mxu0 0
  %1130 = vmatpush1.bf16.msra.mxu0 0
  %1131 = vmatprep.subr.bf16.mxu0 0
  %1132 = vmatpush1.bf16.msra.mxu0 0
  %1133 = vmatprep.subr.bf16.mxu0 0
  %1134 = vmatpush1.bf16.msra.mxu0 0
  %1135 = vmatprep.mubr.bf16.mxu0 0
  %1136 = vmatmul.mubr.bf16.gmra.mrb[0].mxu0 %v1101
  %v1137 = vpop.f32.mrb[0].mxu0
  %v1138 = vadd.f32 0.0, %v1137
  %v1139 = vpop.f32.mrb[0].mxu0
  %v1140 = vpop.f32.mrb[0].mxu0
  %v1141 = vpop.f32.mrb[0].mxu0
  %1142 = vdwg.mxu0
  %v1144 = vsel %vm159, %v999, 0
  %1146 = vmatprep.subr.bf16.mxu0 0
  %1147 = vmatpush1.bf16.msra.mxu0 %v1008
  %1148 = vmatprep.subr.bf16.mxu0 0
  %1149 = vmatpush1.bf16.msra.mxu0 %v1009
  %1150 = vmatprep.subr.bf16.mxu0 0
  %1151 = vmatpush1.bf16.msra.mxu0 0
  %1152 = vmatprep.subr.bf16.mxu0 0
  %1153 = vmatpush1.bf16.msra.mxu0 0
  %1154 = vmatprep.subr.bf16.mxu0 0
  %1155 = vmatpush1.bf16.msra.mxu0 0
  %1156 = vmatprep.subr.bf16.mxu0 0
  %1157 = vmatpush1.bf16.msra.mxu0 0
  %1158 = vmatprep.subr.bf16.mxu0 0
  %1159 = vmatpush1.bf16.msra.mxu0 0
  %1160 = vmatprep.subr.bf16.mxu0 0
  %1161 = vmatpush1.bf16.msra.mxu0 0
  %1162 = vmatprep.subr.bf16.mxu0 0
  %1163 = vmatpush1.bf16.msra.mxu0 0
  %1164 = vmatprep.subr.bf16.mxu0 0
  %1165 = vmatpush1.bf16.msra.mxu0 0
  %1166 = vmatprep.subr.bf16.mxu0 0
  %1167 = vmatpush1.bf16.msra.mxu0 0
  %1168 = vmatprep.subr.bf16.mxu0 0
  %1169 = vmatpush1.bf16.msra.mxu0 0
  %1170 = vmatprep.subr.bf16.mxu0 0
  %1171 = vmatpush1.bf16.msra.mxu0 0
  %1172 = vmatprep.subr.bf16.mxu0 0
  %1173 = vmatpush1.bf16.msra.mxu0 0
  %1174 = vmatprep.subr.bf16.mxu0 0
  %1175 = vmatpush1.bf16.msra.mxu0 0
  %1176 = vmatprep.subr.bf16.mxu0 0
  %1177 = vmatpush1.bf16.msra.mxu0 0
  %1178 = vmatprep.mubr.bf16.mxu0 0
  %1179 = vmatmul.mubr.bf16.gmra.mrb[0].mxu0 %v1144
  %v1180 = vpop.f32.mrb[0].mxu0
  %v1181 = vadd.f32 0.0, %v1180
  %v1182 = vpop.f32.mrb[0].mxu0
  %v1183 = vpop.f32.mrb[0].mxu0
  %v1184 = vpop.f32.mrb[0].mxu0
  %1185 = vdwg.mxu0
  %v1187 = vsel %vm159, %v1000, 0
  %1189 = vmatprep.subr.bf16.mxu0 0
  %1190 = vmatpush1.bf16.msra.mxu0 %v1010
  %1191 = vmatprep.subr.bf16.mxu0 0
  %1192 = vmatpush1.bf16.msra.mxu0 %v1011
  %1193 = vmatprep.subr.bf16.mxu0 0
  %1194 = vmatpush1.bf16.msra.mxu0 0
  %1195 = vmatprep.subr.bf16.mxu0 0
  %1196 = vmatpush1.bf16.msra.mxu0 0
  %1197 = vmatprep.subr.bf16.mxu0 0
  %1198 = vmatpush1.bf16.msra.mxu0 0
  %1199 = vmatprep.subr.bf16.mxu0 0
  %1200 = vmatpush1.bf16.msra.mxu0 0
  %1201 = vmatprep.subr.bf16.mxu0 0
  %1202 = vmatpush1.bf16.msra.mxu0 0
  %1203 = vmatprep.subr.bf16.mxu0 0
  %1204 = vmatpush1.bf16.msra.mxu0 0
  %1205 = vmatprep.subr.bf16.mxu0 0
  %1206 = vmatpush1.bf16.msra.mxu0 0
  %1207 = vmatprep.subr.bf16.mxu0 0
  %1208 = vmatpush1.bf16.msra.mxu0 0
  %1209 = vmatprep.subr.bf16.mxu0 0
  %1210 = vmatpush1.bf16.msra.mxu0 0
  %1211 = vmatprep.subr.bf16.mxu0 0
  %1212 = vmatpush1.bf16.msra.mxu0 0
  %1213 = vmatprep.subr.bf16.mxu0 0
  %1214 = vmatpush1.bf16.msra.mxu0 0
  %1215 = vmatprep.subr.bf16.mxu0 0
  %1216 = vmatpush1.bf16.msra.mxu0 0
  %1217 = vmatprep.subr.bf16.mxu0 0
  %1218 = vmatpush1.bf16.msra.mxu0 0
  %1219 = vmatprep.subr.bf16.mxu0 0
  %1220 = vmatpush1.bf16.msra.mxu0 0
  %1221 = vmatprep.mubr.bf16.mxu0 0
  %1222 = vmatmul.mubr.bf16.gmra.mrb[0].mxu0 %v1187
  %v1223 = vpop.f32.mrb[0].mxu0
  %v1224 = vadd.f32 0.0, %v1223
  %v1225 = vpop.f32.mrb[0].mxu0
  %v1226 = vpop.f32.mrb[0].mxu0
  %v1227 = vpop.f32.mrb[0].mxu0
  %1228 = vdwg.mxu0
  %v1230 = vsel %vm159, %v1001, 0
  %1232 = vmatprep.subr.bf16.mxu0 0
  %1233 = vmatpush1.bf16.msra.mxu0 %v1012
  %1234 = vmatprep.subr.bf16.mxu0 0
  %1235 = vmatpush1.bf16.msra.mxu0 %v1013
  %1236 = vmatprep.subr.bf16.mxu0 0
  %1237 = vmatpush1.bf16.msra.mxu0 0
  %1238 = vmatprep.subr.bf16.mxu0 0
  %1239 = vmatpush1.bf16.msra.mxu0 0
  %1240 = vmatprep.subr.bf16.mxu0 0
  %1241 = vmatpush1.bf16.msra.mxu0 0
  %1242 = vmatprep.subr.bf16.mxu0 0
  %1243 = vmatpush1.bf16.msra.mxu0 0
  %1244 = vmatprep.subr.bf16.mxu0 0
  %1245 = vmatpush1.bf16.msra.mxu0 0
  %1246 = vmatprep.subr.bf16.mxu0 0
  %1247 = vmatpush1.bf16.msra.mxu0 0
  %1248 = vmatprep.subr.bf16.mxu0 0
  %1249 = vmatpush1.bf16.msra.mxu0 0
  %1250 = vmatprep.subr.bf16.mxu0 0
  %1251 = vmatpush1.bf16.msra.mxu0 0
  %1252 = vmatprep.subr.bf16.mxu0 0
  %1253 = vmatpush1.bf16.msra.mxu0 0
  %1254 = vmatprep.subr.bf16.mxu0 0
  %1255 = vmatpush1.bf16.msra.mxu0 0
  %1256 = vmatprep.subr.bf16.mxu0 0
  %1257 = vmatpush1.bf16.msra.mxu0 0
  %1258 = vmatprep.subr.bf16.mxu0 0
  %1259 = vmatpush1.bf16.msra.mxu0 0
  %1260 = vmatprep.subr.bf16.mxu0 0
  %1261 = vmatpush1.bf16.msra.mxu0 0
  %1262 = vmatprep.subr.bf16.mxu0 0
  %1263 = vmatpush1.bf16.msra.mxu0 0
  %1264 = vmatprep.mubr.bf16.mxu0 0
  %1265 = vmatmul.mubr.bf16.gmra.mrb[0].mxu0 %v1230
  %v1266 = vpop.f32.mrb[0].mxu0
  %v1267 = vadd.f32 0.0, %v1266
  %v1268 = vpop.f32.mrb[0].mxu0
  %v1269 = vpop.f32.mrb[0].mxu0
  %v1270 = vpop.f32.mrb[0].mxu0
  %1271 = vdwg.mxu0
  %v1272 = vpack.c.bf16 %v1095, %v1052
  %v1273 = vpack.c.bf16 %v1181, %v1138
  %v1274 = vpack.c.bf16 %v1267, %v1224
  %v1275 = vld [vmem:[%s5] sm:$0xf]
  %v1276 = vld [vmem:[%s5 + $0x4] sm:$0xf]
  %v1277 = vld [vmem:[%s5 + $0x8] sm:$0xf]
  %v1278 = vld [vmem:[%s5 + $0xc] sm:$0xf]
  %v1279 = vld [vmem:[%s6] sm:$0x1]
  %v1281 = vlaneseq
  %v1282 = vshrl.u32 %v1281, 7
  %v1283 = vsub.s32 0, %v1282
  %v1284 = vrot.slane %v1279, %v1283
  %v1290 = vunpack.c.l.b16 %v1275
  %v1291 = vunpack.c.l.b16 %v1276
  %v1292 = vunpack.c.l.b16 %v1277
  %v1293 = vunpack.c.l.b16 %v1278
  %v1294 = vpack.c.b16 %v1291, %v1290
  %v1295 = vpack.c.b16 %v1293, %v1292
  %v1299 = vsel %vm159, %v1272, 0
  %v1302 = vsel %vm159, %v1273, 0
  %v1305 = vsel %vm159, %v1274, 0
  %1307 = vmatprep.subr.bf16.mxu0 0
  %1308 = vmatpush1.bf16.msra.mxu0 %v1294
  %1309 = vmatprep.subr.bf16.mxu0 0
  %1310 = vmatpush1.bf16.msra.mxu0 %v1295
  %1311 = vmatprep.subr.bf16.mxu0 0
  %1312 = vmatpush1.bf16.msra.mxu0 0
  %1313 = vmatprep.subr.bf16.mxu0 0
  %1314 = vmatpush1.bf16.msra.mxu0 0
  %1315 = vmatprep.subr.bf16.mxu0 0
  %1316 = vmatpush1.bf16.msra.mxu0 0
  %1317 = vmatprep.subr.bf16.mxu0 0
  %1318 = vmatpush1.bf16.msra.mxu0 0
  %1319 = vmatprep.subr.bf16.mxu0 0
  %1320 = vmatpush1.bf16.msra.mxu0 0
  %1321 = vmatprep.subr.bf16.mxu0 0
  %1322 = vmatpush1.bf16.msra.mxu0 0
  %1323 = vmatprep.subr.bf16.mxu0 0
  %1324 = vmatpush1.bf16.msra.mxu0 0
  %1325 = vmatprep.subr.bf16.mxu0 0
  %1326 = vmatpush1.bf16.msra.mxu0 0
  %1327 = vmatprep.subr.bf16.mxu0 0
  %1328 = vmatpush1.bf16.msra.mxu0 0
  %1329 = vmatprep.subr.bf16.mxu0 0
  %1330 = vmatpush1.bf16.msra.mxu0 0
  %1331 = vmatprep.subr.bf16.mxu0 0
  %1332 = vmatpush1.bf16.msra.mxu0 0
  %1333 = vmatprep.subr.bf16.mxu0 0
  %1334 = vmatpush1.bf16.msra.mxu0 0
  %1335 = vmatprep.subr.bf16.mxu0 0
  %1336 = vmatpush1.bf16.msra.mxu0 0
  %1337 = vmatprep.subr.bf16.mxu0 0
  %1338 = vmatpush1.bf16.msra.mxu0 0
  %1339 = vmatprep.mubr.bf16.mxu0 0
  %1340 = vmatmul.mubr.bf16.gmra.mrb[0].mxu0 %v1299
  %v1341 = vpop.f32.mrb[0].mxu0
  %v1342 = vadd.f32 %v1284, %v1341
  %v1343 = vpop.f32.mrb[0].mxu0
  %v1344 = vpop.f32.mrb[0].mxu0
  %v1345 = vadd.f32 %v1284, %v1344
  %v1346 = vpop.f32.mrb[0].mxu0
  %1347 = vmatprep.mubr.bf16.mxu0 0
  %1348 = vmatmul.mubr.bf16.gmra.mrb[0].mxu0 %v1302
  %v1349 = vpop.f32.mrb[0].mxu0
  %v1350 = vadd.f32 %v1284, %v1349
  %v1351 = vpop.f32.mrb[0].mxu0
  %v1352 = vpop.f32.mrb[0].mxu0
  %v1353 = vadd.f32 %v1284, %v1352
  %v1354 = vpop.f32.mrb[0].mxu0
  %1355 = vmatprep.mubr.bf16.mxu0 0
  %1356 = vmatmul.mubr.bf16.gmra.mrb[0].mxu0 %v1305
  %v1357 = vpop.f32.mrb[0].mxu0
  %v1358 = vadd.f32 %v1284, %v1357
  %v1359 = vpop.f32.mrb[0].mxu0
  %v1360 = vpop.f32.mrb[0].mxu0
  %v1361 = vadd.f32 %v1284, %v1360
  %v1362 = vpop.f32.mrb[0].mxu0
  %1363 = vdwg.mxu0
  %v1364 = vpack.c.bf16 %v1345, %v1342
  %v1365 = vpack.c.bf16 %v1353, %v1350
  %v1366 = vpack.c.bf16 %v1361, %v1358
  %s1367 = scalar_lea.vmem %s1, 8
  %v1368 = vld [vmem:[%s1367] sm:$0xf]
  %v1369 = vld [vmem:[%s1367 + $0x4] sm:$0xf]
  %s1370 = scalar_lea.vmem %s2, 1
  %v1371 = vld [vmem:[%s1370] sm:$0x1]
  %v1373 = vlaneseq
  %v1374 = vshrl.u32 %v1373, 7
  %v1375 = vsub.s32 0, %v1374
  %v1376 = vrot.slane %v1371, %v1375
  %v1380 = vunpack.c.l.b16 %v1368
  %v1381 = vunpack.c.l.b16 %v1369
  %v1382 = vpack.c.b16 %v1381, %v1380
  %v1385 = vsel %vm51, %v1364, 0
  %v1388 = vsel %vm51, %v1365, 0
  %v1391 = vsel %vm51, %v1366, 0
  %1393 = vmatprep.subr.bf16.mxu0 0
  %1394 = vmatpush1.bf16.msra.mxu0 %v1382
  %1395 = vmatprep.subr.bf16.mxu0 0
  %1396 = vmatpush1.bf16.msra.mxu0 0
  %1397 = vmatprep.subr.bf16.mxu0 0
  %1398 = vmatpush1.bf16.msra.mxu0 0
  %1399 = vmatprep.subr.bf16.mxu0 0
  %1400 = vmatpush1.bf16.msra.mxu0 0
  %1401 = vmatprep.subr.bf16.mxu0 0
  %1402 = vmatpush1.bf16.msra.mxu0 0
  %1403 = vmatprep.subr.bf16.mxu0 0
  %1404 = vmatpush1.bf16.msra.mxu0 0
  %1405 = vmatprep.subr.bf16.mxu0 0
  %1406 = vmatpush1.bf16.msra.mxu0 0
  %1407 = vmatprep.subr.bf16.mxu0 0
  %1408 = vmatpush1.bf16.msra.mxu0 0
  %1409 = vmatprep.subr.bf16.mxu0 0
  %1410 = vmatpush1.bf16.msra.mxu0 0
  %1411 = vmatprep.subr.bf16.mxu0 0
  %1412 = vmatpush1.bf16.msra.mxu0 0
  %1413 = vmatprep.subr.bf16.mxu0 0
  %1414 = vmatpush1.bf16.msra.mxu0 0
  %1415 = vmatprep.subr.bf16.mxu0 0
  %1416 = vmatpush1.bf16.msra.mxu0 0
  %1417 = vmatprep.subr.bf16.mxu0 0
  %1418 = vmatpush1.bf16.msra.mxu0 0
  %1419 = vmatprep.subr.bf16.mxu0 0
  %1420 = vmatpush1.bf16.msra.mxu0 0
  %1421 = vmatprep.subr.bf16.mxu0 0
  %1422 = vmatpush1.bf16.msra.mxu0 0
  %1423 = vmatprep.subr.bf16.mxu0 0
  %1424 = vmatpush1.bf16.msra.mxu0 0
  %1425 = vmatprep.mubr.bf16.mxu0 0
  %1426 = vmatmul.mubr.bf16.gmra.mrb[0].mxu0 %v1385
  %v1427 = vpop.f32.mrb[0].mxu0
  %v1428 = vadd.f32 %v1376, %v1427
  %v1429 = vpop.f32.mrb[0].mxu0
  %v1430 = vpop.f32.mrb[0].mxu0
  %v1431 = vadd.f32 %v1376, %v1430
  %v1432 = vpop.f32.mrb[0].mxu0
  %1433 = vmatprep.mubr.bf16.mxu0 0
  %1434 = vmatmul.mubr.bf16.gmra.mrb[0].mxu0 %v1388
  %v1435 = vpop.f32.mrb[0].mxu0
  %v1436 = vadd.f32 %v1376, %v1435
  %v1437 = vpop.f32.mrb[0].mxu0
  %v1438 = vpop.f32.mrb[0].mxu0
  %v1439 = vadd.f32 %v1376, %v1438
  %v1440 = vpop.f32.mrb[0].mxu0
  %1441 = vmatprep.mubr.bf16.mxu0 0
  %1442 = vmatmul.mubr.bf16.gmra.mrb[0].mxu0 %v1391
  %v1443 = vpop.f32.mrb[0].mxu0
  %v1444 = vadd.f32 %v1376, %v1443
  %v1445 = vpop.f32.mrb[0].mxu0
  %v1446 = vpop.f32.mrb[0].mxu0
  %v1447 = vadd.f32 %v1376, %v1446
  %v1448 = vpop.f32.mrb[0].mxu0
  %1449 = vdwg.mxu0
  %v1450 = vmax.f32 %v1428, 0.0
  %v1451 = vmax.f32 %v1431, 0.0
  %v1452 = vmax.f32 %v1436, 0.0
  %v1453 = vmax.f32 %v1439, 0.0
  %v1454 = vmax.f32 %v1444, 0.0
  %v1455 = vmax.f32 %v1447, 0.0
  %v1456 = vpack.c.bf16 %v1451, %v1450
  %v1457 = vpack.c.bf16 %v1453, %v1452
  %v1458 = vpack.c.bf16 %v1455, %v1454
  %s1459 = scalar_lea.vmem %s3, 16
  %v1460 = vld [vmem:[%s1459] sm:$0xf]
  %v1461 = vld [vmem:[%s1459 + $0x4] sm:$0xf]
  %v1462 = vld [vmem:[%s1459 + $0x8] sm:$0xf]
  %v1463 = vld [vmem:[%s1459 + $0xc] sm:$0xf]
  %s1464 = scalar_lea.vmem %s4, 1
  %v1465 = vld [vmem:[%s1464] sm:$0x1]
  %v1467 = vlaneseq
  %v1468 = vshrl.u32 %v1467, 7
  %v1469 = vsub.s32 0, %v1468
  %v1470 = vrot.slane %v1465, %v1469
  %1475 = vrot.lane.b32.xlu0 %v1456, 64
  %v1476 = vpop.permute.xlu0 %1475
  %1477 = vrot.lane.b32.xlu0 %v1457, 64
  %v1478 = vpop.permute.xlu0 %1477
  %1479 = vrot.lane.b32.xlu0 %v1458, 64
  %v1480 = vpop.permute.xlu0 %1479
  %v1485 = vunpack.c.l.b16 %v1460
  %v1486 = vunpack.c.l.b16 %v1461
  %v1487 = vunpack.c.l.b16 %v1462
  %v1488 = vunpack.c.l.b16 %v1463
  %v1489 = vpack.c.b16 %v1486, %v1485
  %v1490 = vpack.c.b16 %v1488, %v1487
  %v1494 = vsel %vm159, %v1476, 0
  %v1497 = vsel %vm159, %v1478, 0
  %v1500 = vsel %vm159, %v1480, 0
  %1502 = vmatprep.subr.bf16.mxu0 0
  %1503 = vmatpush1.bf16.msra.mxu0 %v1489
  %1504 = vmatprep.subr.bf16.mxu0 0
  %1505 = vmatpush1.bf16.msra.mxu0 %v1490
  %1506 = vmatprep.subr.bf16.mxu0 0
  %1507 = vmatpush1.bf16.msra.mxu0 0
  %1508 = vmatprep.subr.bf16.mxu0 0
  %1509 = vmatpush1.bf16.msra.mxu0 0
  %1510 = vmatprep.subr.bf16.mxu0 0
  %1511 = vmatpush1.bf16.msra.mxu0 0
  %1512 = vmatprep.subr.bf16.mxu0 0
  %1513 = vmatpush1.bf16.msra.mxu0 0
  %1514 = vmatprep.subr.bf16.mxu0 0
  %1515 = vmatpush1.bf16.msra.mxu0 0
  %1516 = vmatprep.subr.bf16.mxu0 0
  %1517 = vmatpush1.bf16.msra.mxu0 0
  %1518 = vmatprep.subr.bf16.mxu0 0
  %1519 = vmatpush1.bf16.msra.mxu0 0
  %1520 = vmatprep.subr.bf16.mxu0 0
  %1521 = vmatpush1.bf16.msra.mxu0 0
  %1522 = vmatprep.subr.bf16.mxu0 0
  %1523 = vmatpush1.bf16.msra.mxu0 0
  %1524 = vmatprep.subr.bf16.mxu0 0
  %1525 = vmatpush1.bf16.msra.mxu0 0
  %1526 = vmatprep.subr.bf16.mxu0 0
  %1527 = vmatpush1.bf16.msra.mxu0 0
  %1528 = vmatprep.subr.bf16.mxu0 0
  %1529 = vmatpush1.bf16.msra.mxu0 0
  %1530 = vmatprep.subr.bf16.mxu0 0
  %1531 = vmatpush1.bf16.msra.mxu0 0
  %1532 = vmatprep.subr.bf16.mxu0 0
  %1533 = vmatpush1.bf16.msra.mxu0 0
  %1534 = vmatprep.mubr.bf16.mxu0 0
  %1535 = vmatmul.mubr.bf16.gmra.mrb[0].mxu0 %v1494
  %v1536 = vpop.f32.mrb[0].mxu0
  %v1537 = vadd.f32 %v1470, %v1536
  %v1538 = vpop.f32.mrb[0].mxu0
  %v1539 = vpop.f32.mrb[0].mxu0
  %v1540 = vadd.f32 %v1470, %v1539
  %v1541 = vpop.f32.mrb[0].mxu0
  %1542 = vmatprep.mubr.bf16.mxu0 0
  %1543 = vmatmul.mubr.bf16.gmra.mrb[0].mxu0 %v1497
  %v1544 = vpop.f32.mrb[0].mxu0
  %v1545 = vadd.f32 %v1470, %v1544
  %v1546 = vpop.f32.mrb[0].mxu0
  %v1547 = vpop.f32.mrb[0].mxu0
  %v1548 = vadd.f32 %v1470, %v1547
  %v1549 = vpop.f32.mrb[0].mxu0
  %1550 = vmatprep.mubr.bf16.mxu0 0
  %1551 = vmatmul.mubr.bf16.gmra.mrb[0].mxu0 %v1500
  %v1552 = vpop.f32.mrb[0].mxu0
  %v1553 = vadd.f32 %v1470, %v1552
  %v1554 = vpop.f32.mrb[0].mxu0
  %v1555 = vpop.f32.mrb[0].mxu0
  %v1556 = vadd.f32 %v1470, %v1555
  %v1557 = vpop.f32.mrb[0].mxu0
  %1558 = vdwg.mxu0
  %v1559 = vmax.f32 %v1537, 0.0
  %v1560 = vmax.f32 %v1540, 0.0
  %v1561 = vmax.f32 %v1545, 0.0
  %v1562 = vmax.f32 %v1548, 0.0
  %v1563 = vmax.f32 %v1553, 0.0
  %v1564 = vmax.f32 %v1556, 0.0
  %1571 = vrot.lane.b32.xlu0 %v1450, 64
  %v1572 = vpop.permute.xlu0 %1571
  %1573 = vrot.lane.b32.xlu0 %v1451, 64
  %v1574 = vpop.permute.xlu0 %1573
  %1575 = vrot.lane.b32.xlu0 %v1452, 64
  %v1576 = vpop.permute.xlu0 %1575
  %1577 = vrot.lane.b32.xlu0 %v1453, 64
  %v1578 = vpop.permute.xlu0 %1577
  %1579 = vrot.lane.b32.xlu0 %v1454, 64
  %v1580 = vpop.permute.xlu0 %1579
  %1581 = vrot.lane.b32.xlu0 %v1455, 64
  %v1582 = vpop.permute.xlu0 %1581
  %v1589 = vadd.f32 %v1559, %v1572
  %v1590 = vadd.f32 %v1560, %v1574
  %v1591 = vadd.f32 %v1561, %v1576
  %v1592 = vadd.f32 %v1562, %v1578
  %v1593 = vadd.f32 %v1563, %v1580
  %v1594 = vadd.f32 %v1564, %v1582
  %v1595 = vpack.c.bf16 %v1450, %v1450
  %v1596 = vpack.c.bf16 %v1451, %v1451
  %v1597 = vpack.c.bf16 %v1452, %v1452
  %v1598 = vpack.c.bf16 %v1453, %v1453
  %v1599 = vpack.c.bf16 %v1454, %v1454
  %v1600 = vpack.c.bf16 %v1455, %v1455
  %1601 = vxpose.xlu0.c.b16.start [1/8] %v1595, 128
  %1602 = vxpose.xlu0.c.b16.cont [2/8] 0, 128
  %1603 = vxpose.xlu0.c.b16.cont [3/8] 0, 128
  %1604 = vxpose.xlu0.c.b16.cont [4/8] 0, 128
  %1605 = vxpose.xlu0.c.b16.cont [5/8] 0, 128
  %1606 = vxpose.xlu0.c.b16.cont [6/8] 0, 128
  %1607 = vxpose.xlu0.c.b16.cont [7/8] 0, 128
  %1608 = vxpose.xlu0.c.b16.end [8/8] 0, 128
  %v1609 = vpop.trf.xlu0
  %v1610 = vpop.trf.xlu0
  %v1611 = vpop.trf.xlu0
  %v1612 = vpop.trf.xlu0
  %v1613 = vpop.trf.xlu0
  %v1614 = vpop.trf.xlu0
  %v1615 = vpop.trf.xlu0
  %v1616 = vpop.trf.xlu0
  %1618 = vrot.lane.b32.xlu0 %v1595, 96
  %v1619 = vpop.permute.xlu0 %1618
  %v1621 = vsel %vm287, %v1609, 0
  %v1624 = vsel %vm287, %v1610, 0
  %v1627 = vsel %vm294, %v1619, 0
  %1629 = vmatprep.subr.bf16.mxu0 0
  %1630 = vmatpush1.bf16.msra.mxu0 %v1627
  %1631 = vmatprep.subr.bf16.mxu0 0
  %1632 = vmatpush1.bf16.msra.mxu0 0
  %1633 = vmatprep.subr.bf16.mxu0 0
  %1634 = vmatpush1.bf16.msra.mxu0 0
  %1635 = vmatprep.subr.bf16.mxu0 0
  %1636 = vmatpush1.bf16.msra.mxu0 0
  %1637 = vmatprep.subr.bf16.mxu0 0
  %1638 = vmatpush1.bf16.msra.mxu0 0
  %1639 = vmatprep.subr.bf16.mxu0 0
  %1640 = vmatpush1.bf16.msra.mxu0 0
  %1641 = vmatprep.subr.bf16.mxu0 0
  %1642 = vmatpush1.bf16.msra.mxu0 0
  %1643 = vmatprep.subr.bf16.mxu0 0
  %1644 = vmatpush1.bf16.msra.mxu0 0
  %1645 = vmatprep.subr.bf16.mxu0 0
  %1646 = vmatpush1.bf16.msra.mxu0 0
  %1647 = vmatprep.subr.bf16.mxu0 0
  %1648 = vmatpush1.bf16.msra.mxu0 0
  %1649 = vmatprep.subr.bf16.mxu0 0
  %1650 = vmatpush1.bf16.msra.mxu0 0
  %1651 = vmatprep.subr.bf16.mxu0 0
  %1652 = vmatpush1.bf16.msra.mxu0 0
  %1653 = vmatprep.subr.bf16.mxu0 0
  %1654 = vmatpush1.bf16.msra.mxu0 0
  %1655 = vmatprep.subr.bf16.mxu0 0
  %1656 = vmatpush1.bf16.msra.mxu0 0
  %1657 = vmatprep.subr.bf16.mxu0 0
  %1658 = vmatpush1.bf16.msra.mxu0 0
  %1659 = vmatprep.subr.bf16.mxu0 0
  %1660 = vmatpush1.bf16.msra.mxu0 0
  %1661 = vmatprep.mubr.bf16.mxu0 0
  %1662 = vmatmul.mubr.bf16.gmra.mrb[0].mxu0 %v1621
  %v1663 = vpop.f32.mrb[0].mxu0
  %v1664 = vadd.f32 0.0, %v1663
  %v1665 = vpop.f32.mrb[0].mxu0
  %v1666 = vpop.f32.mrb[0].mxu0
  %v1667 = vadd.f32 0.0, %v1666
  %v1668 = vpop.f32.mrb[0].mxu0
  %1669 = vmatprep.mubr.bf16.mxu0 0
  %1670 = vmatmul.mubr.bf16.gmra.mrb[0].mxu0 %v1624
  %v1671 = vpop.f32.mrb[0].mxu0
  %v1672 = vadd.f32 0.0, %v1671
  %v1673 = vpop.f32.mrb[0].mxu0
  %v1674 = vpop.f32.mrb[0].mxu0
  %v1675 = vadd.f32 0.0, %v1674
  %v1676 = vpop.f32.mrb[0].mxu0
  %1677 = vdwg.mxu0
  %1678 = vxpose.xlu0.c.b16.start [1/8] %v1596, 128
  %1679 = vxpose.xlu0.c.b16.cont [2/8] 0, 128
  %1680 = vxpose.xlu0.c.b16.cont [3/8] 0, 128
  %1681 = vxpose.xlu0.c.b16.cont [4/8] 0, 128
  %1682 = vxpose.xlu0.c.b16.cont [5/8] 0, 128
  %1683 = vxpose.xlu0.c.b16.cont [6/8] 0, 128
  %1684 = vxpose.xlu0.c.b16.cont [7/8] 0, 128
  %1685 = vxpose.xlu0.c.b16.end [8/8] 0, 128
  %v1686 = vpop.trf.xlu0
  %v1687 = vpop.trf.xlu0
  %v1688 = vpop.trf.xlu0
  %v1689 = vpop.trf.xlu0
  %v1690 = vpop.trf.xlu0
  %v1691 = vpop.trf.xlu0
  %v1692 = vpop.trf.xlu0
  %v1693 = vpop.trf.xlu0
  %1695 = vrot.lane.b32.xlu0 %v1596, 96
  %v1696 = vpop.permute.xlu0 %1695
  %v1698 = vsel %vm287, %v1686, 0
  %v1701 = vsel %vm287, %v1687, 0
  %v1704 = vsel %vm294, %v1696, 0
  %1706 = vmatprep.subr.bf16.mxu0 0
  %1707 = vmatpush1.bf16.msra.mxu0 %v1704
  %1708 = vmatprep.subr.bf16.mxu0 0
  %1709 = vmatpush1.bf16.msra.mxu0 0
  %1710 = vmatprep.subr.bf16.mxu0 0
  %1711 = vmatpush1.bf16.msra.mxu0 0
  %1712 = vmatprep.subr.bf16.mxu0 0
  %1713 = vmatpush1.bf16.msra.mxu0 0
  %1714 = vmatprep.subr.bf16.mxu0 0
  %1715 = vmatpush1.bf16.msra.mxu0 0
  %1716 = vmatprep.subr.bf16.mxu0 0
  %1717 = vmatpush1.bf16.msra.mxu0 0
  %1718 = vmatprep.subr.bf16.mxu0 0
  %1719 = vmatpush1.bf16.msra.mxu0 0
  %1720 = vmatprep.subr.bf16.mxu0 0
  %1721 = vmatpush1.bf16.msra.mxu0 0
  %1722 = vmatprep.subr.bf16.mxu0 0
  %1723 = vmatpush1.bf16.msra.mxu0 0
  %1724 = vmatprep.subr.bf16.mxu0 0
  %1725 = vmatpush1.bf16.msra.mxu0 0
  %1726 = vmatprep.subr.bf16.mxu0 0
  %1727 = vmatpush1.bf16.msra.mxu0 0
  %1728 = vmatprep.subr.bf16.mxu0 0
  %1729 = vmatpush1.bf16.msra.mxu0 0
  %1730 = vmatprep.subr.bf16.mxu0 0
  %1731 = vmatpush1.bf16.msra.mxu0 0
  %1732 = vmatprep.subr.bf16.mxu0 0
  %1733 = vmatpush1.bf16.msra.mxu0 0
  %1734 = vmatprep.subr.bf16.mxu0 0
  %1735 = vmatpush1.bf16.msra.mxu0 0
  %1736 = vmatprep.subr.bf16.mxu0 0
  %1737 = vmatpush1.bf16.msra.mxu0 0
  %1738 = vmatprep.mubr.bf16.mxu0 0
  %1739 = vmatmul.mubr.bf16.gmra.mrb[0].mxu0 %v1698
  %v1740 = vpop.f32.mrb[0].mxu0
  %v1741 = vadd.f32 0.0, %v1740
  %v1742 = vpop.f32.mrb[0].mxu0
  %v1743 = vpop.f32.mrb[0].mxu0
  %v1744 = vadd.f32 0.0, %v1743
  %v1745 = vpop.f32.mrb[0].mxu0
  %1746 = vmatprep.mubr.bf16.mxu0 0
  %1747 = vmatmul.mubr.bf16.gmra.mrb[0].mxu0 %v1701
  %v1748 = vpop.f32.mrb[0].mxu0
  %v1749 = vadd.f32 0.0, %v1748
  %v1750 = vpop.f32.mrb[0].mxu0
  %v1751 = vpop.f32.mrb[0].mxu0
  %v1752 = vadd.f32 0.0, %v1751
  %v1753 = vpop.f32.mrb[0].mxu0
  %1754 = vdwg.mxu0
  %1755 = vxpose.xlu0.c.b16.start [1/8] %v1597, 128
  %1756 = vxpose.xlu0.c.b16.cont [2/8] 0, 128
  %1757 = vxpose.xlu0.c.b16.cont [3/8] 0, 128
  %1758 = vxpose.xlu0.c.b16.cont [4/8] 0, 128
  %1759 = vxpose.xlu0.c.b16.cont [5/8] 0, 128
  %1760 = vxpose.xlu0.c.b16.cont [6/8] 0, 128
  %1761 = vxpose.xlu0.c.b16.cont [7/8] 0, 128
  %1762 = vxpose.xlu0.c.b16.end [8/8] 0, 128
  %v1763 = vpop.trf.xlu0
  %v1764 = vpop.trf.xlu0
  %v1765 = vpop.trf.xlu0
  %v1766 = vpop.trf.xlu0
  %v1767 = vpop.trf.xlu0
  %v1768 = vpop.trf.xlu0
  %v1769 = vpop.trf.xlu0
  %v1770 = vpop.trf.xlu0
  %1772 = vrot.lane.b32.xlu0 %v1597, 96
  %v1773 = vpop.permute.xlu0 %1772
  %v1775 = vsel %vm287, %v1763, 0
  %v1778 = vsel %vm287, %v1764, 0
  %v1781 = vsel %vm294, %v1773, 0
  %1783 = vmatprep.subr.bf16.mxu0 0
  %1784 = vmatpush1.bf16.msra.mxu0 %v1781
  %1785 = vmatprep.subr.bf16.mxu0 0
  %1786 = vmatpush1.bf16.msra.mxu0 0
  %1787 = vmatprep.subr.bf16.mxu0 0
  %1788 = vmatpush1.bf16.msra.mxu0 0
  %1789 = vmatprep.subr.bf16.mxu0 0
  %1790 = vmatpush1.bf16.msra.mxu0 0
  %1791 = vmatprep.subr.bf16.mxu0 0
  %1792 = vmatpush1.bf16.msra.mxu0 0
  %1793 = vmatprep.subr.bf16.mxu0 0
  %1794 = vmatpush1.bf16.msra.mxu0 0
  %1795 = vmatprep.subr.bf16.mxu0 0
  %1796 = vmatpush1.bf16.msra.mxu0 0
  %1797 = vmatprep.subr.bf16.mxu0 0
  %1798 = vmatpush1.bf16.msra.mxu0 0
  %1799 = vmatprep.subr.bf16.mxu0 0
  %1800 = vmatpush1.bf16.msra.mxu0 0
  %1801 = vmatprep.subr.bf16.mxu0 0
  %1802 = vmatpush1.bf16.msra.mxu0 0
  %1803 = vmatprep.subr.bf16.mxu0 0
  %1804 = vmatpush1.bf16.msra.mxu0 0
  %1805 = vmatprep.subr.bf16.mxu0 0
  %1806 = vmatpush1.bf16.msra.mxu0 0
  %1807 = vmatprep.subr.bf16.mxu0 0
  %1808 = vmatpush1.bf16.msra.mxu0 0
  %1809 = vmatprep.subr.bf16.mxu0 0
  %1810 = vmatpush1.bf16.msra.mxu0 0
  %1811 = vmatprep.subr.bf16.mxu0 0
  %1812 = vmatpush1.bf16.msra.mxu0 0
  %1813 = vmatprep.subr.bf16.mxu0 0
  %1814 = vmatpush1.bf16.msra.mxu0 0
  %1815 = vmatprep.mubr.bf16.mxu0 0
  %1816 = vmatmul.mubr.bf16.gmra.mrb[0].mxu0 %v1775
  %v1817 = vpop.f32.mrb[0].mxu0
  %v1818 = vadd.f32 0.0, %v1817
  %v1819 = vpop.f32.mrb[0].mxu0
  %v1820 = vpop.f32.mrb[0].mxu0
  %v1821 = vadd.f32 0.0, %v1820
  %v1822 = vpop.f32.mrb[0].mxu0
  %1823 = vmatprep.mubr.bf16.mxu0 0
  %1824 = vmatmul.mubr.bf16.gmra.mrb[0].mxu0 %v1778
  %v1825 = vpop.f32.mrb[0].mxu0
  %v1826 = vadd.f32 0.0, %v1825
  %v1827 = vpop.f32.mrb[0].mxu0
  %v1828 = vpop.f32.mrb[0].mxu0
  %v1829 = vadd.f32 0.0, %v1828
  %v1830 = vpop.f32.mrb[0].mxu0
  %1831 = vdwg.mxu0
  %1832 = vxpose.xlu0.c.b16.start [1/8] %v1598, 128
  %1833 = vxpose.xlu0.c.b16.cont [2/8] 0, 128
  %1834 = vxpose.xlu0.c.b16.cont [3/8] 0, 128
  %1835 = vxpose.xlu0.c.b16.cont [4/8] 0, 128
  %1836 = vxpose.xlu0.c.b16.cont [5/8] 0, 128
  %1837 = vxpose.xlu0.c.b16.cont [6/8] 0, 128
  %1838 = vxpose.xlu0.c.b16.cont [7/8] 0, 128
  %1839 = vxpose.xlu0.c.b16.end [8/8] 0, 128
  %v1840 = vpop.trf.xlu0
  %v1841 = vpop.trf.xlu0
  %v1842 = vpop.trf.xlu0
  %v1843 = vpop.trf.xlu0
  %v1844 = vpop.trf.xlu0
  %v1845 = vpop.trf.xlu0
  %v1846 = vpop.trf.xlu0
  %v1847 = vpop.trf.xlu0
  %1849 = vrot.lane.b32.xlu0 %v1598, 96
  %v1850 = vpop.permute.xlu0 %1849
  %v1852 = vsel %vm287, %v1840, 0
  %v1855 = vsel %vm287, %v1841, 0
  %v1858 = vsel %vm294, %v1850, 0
  %1860 = vmatprep.subr.bf16.mxu0 0
  %1861 = vmatpush1.bf16.msra.mxu0 %v1858
  %1862 = vmatprep.subr.bf16.mxu0 0
  %1863 = vmatpush1.bf16.msra.mxu0 0
  %1864 = vmatprep.subr.bf16.mxu0 0
  %1865 = vmatpush1.bf16.msra.mxu0 0
  %1866 = vmatprep.subr.bf16.mxu0 0
  %1867 = vmatpush1.bf16.msra.mxu0 0
  %1868 = vmatprep.subr.bf16.mxu0 0
  %1869 = vmatpush1.bf16.msra.mxu0 0
  %1870 = vmatprep.subr.bf16.mxu0 0
  %1871 = vmatpush1.bf16.msra.mxu0 0
  %1872 = vmatprep.subr.bf16.mxu0 0
  %1873 = vmatpush1.bf16.msra.mxu0 0
  %1874 = vmatprep.subr.bf16.mxu0 0
  %1875 = vmatpush1.bf16.msra.mxu0 0
  %1876 = vmatprep.subr.bf16.mxu0 0
  %1877 = vmatpush1.bf16.msra.mxu0 0
  %1878 = vmatprep.subr.bf16.mxu0 0
  %1879 = vmatpush1.bf16.msra.mxu0 0
  %1880 = vmatprep.subr.bf16.mxu0 0
  %1881 = vmatpush1.bf16.msra.mxu0 0
  %1882 = vmatprep.subr.bf16.mxu0 0
  %1883 = vmatpush1.bf16.msra.mxu0 0
  %1884 = vmatprep.subr.bf16.mxu0 0
  %1885 = vmatpush1.bf16.msra.mxu0 0
  %1886 = vmatprep.subr.bf16.mxu0 0
  %1887 = vmatpush1.bf16.msra.mxu0 0
  %1888 = vmatprep.subr.bf16.mxu0 0
  %1889 = vmatpush1.bf16.msra.mxu0 0
  %1890 = vmatprep.subr.bf16.mxu0 0
  %1891 = vmatpush1.bf16.msra.mxu0 0
  %1892 = vmatprep.mubr.bf16.mxu0 0
  %1893 = vmatmul.mubr.bf16.gmra.mrb[0].mxu0 %v1852
  %v1894 = vpop.f32.mrb[0].mxu0
  %v1895 = vadd.f32 0.0, %v1894
  %v1896 = vpop.f32.mrb[0].mxu0
  %v1897 = vpop.f32.mrb[0].mxu0
  %v1898 = vadd.f32 0.0, %v1897
  %v1899 = vpop.f32.mrb[0].mxu0
  %1900 = vmatprep.mubr.bf16.mxu0 0
  %1901 = vmatmul.mubr.bf16.gmra.mrb[0].mxu0 %v1855
  %v1902 = vpop.f32.mrb[0].mxu0
  %v1903 = vadd.f32 0.0, %v1902
  %v1904 = vpop.f32.mrb[0].mxu0
  %v1905 = vpop.f32.mrb[0].mxu0
  %v1906 = vadd.f32 0.0, %v1905
  %v1907 = vpop.f32.mrb[0].mxu0
  %1908 = vdwg.mxu0
  %1909 = vxpose.xlu0.c.b16.start [1/8] %v1599, 128
  %1910 = vxpose.xlu0.c.b16.cont [2/8] 0, 128
  %1911 = vxpose.xlu0.c.b16.cont [3/8] 0, 128
  %1912 = vxpose.xlu0.c.b16.cont [4/8] 0, 128
  %1913 = vxpose.xlu0.c.b16.cont [5/8] 0, 128
  %1914 = vxpose.xlu0.c.b16.cont [6/8] 0, 128
  %1915 = vxpose.xlu0.c.b16.cont [7/8] 0, 128
  %1916 = vxpose.xlu0.c.b16.end [8/8] 0, 128
  %v1917 = vpop.trf.xlu0
  %v1918 = vpop.trf.xlu0
  %v1919 = vpop.trf.xlu0
  %v1920 = vpop.trf.xlu0
  %v1921 = vpop.trf.xlu0
  %v1922 = vpop.trf.xlu0
  %v1923 = vpop.trf.xlu0
  %v1924 = vpop.trf.xlu0
  %1926 = vrot.lane.b32.xlu0 %v1599, 96
  %v1927 = vpop.permute.xlu0 %1926
  %v1929 = vsel %vm287, %v1917, 0
  %v1932 = vsel %vm287, %v1918, 0
  %v1935 = vsel %vm294, %v1927, 0
  %1937 = vmatprep.subr.bf16.mxu0 0
  %1938 = vmatpush1.bf16.msra.mxu0 %v1935
  %1939 = vmatprep.subr.bf16.mxu0 0
  %1940 = vmatpush1.bf16.msra.mxu0 0
  %1941 = vmatprep.subr.bf16.mxu0 0
  %1942 = vmatpush1.bf16.msra.mxu0 0
  %1943 = vmatprep.subr.bf16.mxu0 0
  %1944 = vmatpush1.bf16.msra.mxu0 0
  %1945 = vmatprep.subr.bf16.mxu0 0
  %1946 = vmatpush1.bf16.msra.mxu0 0
  %1947 = vmatprep.subr.bf16.mxu0 0
  %1948 = vmatpush1.bf16.msra.mxu0 0
  %1949 = vmatprep.subr.bf16.mxu0 0
  %1950 = vmatpush1.bf16.msra.mxu0 0
  %1951 = vmatprep.subr.bf16.mxu0 0
  %1952 = vmatpush1.bf16.msra.mxu0 0
  %1953 = vmatprep.subr.bf16.mxu0 0
  %1954 = vmatpush1.bf16.msra.mxu0 0
  %1955 = vmatprep.subr.bf16.mxu0 0
  %1956 = vmatpush1.bf16.msra.mxu0 0
  %1957 = vmatprep.subr.bf16.mxu0 0
  %1958 = vmatpush1.bf16.msra.mxu0 0
  %1959 = vmatprep.subr.bf16.mxu0 0
  %1960 = vmatpush1.bf16.msra.mxu0 0
  %1961 = vmatprep.subr.bf16.mxu0 0
  %1962 = vmatpush1.bf16.msra.mxu0 0
  %1963 = vmatprep.subr.bf16.mxu0 0
  %1964 = vmatpush1.bf16.msra.mxu0 0
  %1965 = vmatprep.subr.bf16.mxu0 0
  %1966 = vmatpush1.bf16.msra.mxu0 0
  %1967 = vmatprep.subr.bf16.mxu0 0
  %1968 = vmatpush1.bf16.msra.mxu0 0
  %1969 = vmatprep.mubr.bf16.mxu0 0
  %1970 = vmatmul.mubr.bf16.gmra.mrb[0].mxu0 %v1929
  %v1971 = vpop.f32.mrb[0].mxu0
  %v1972 = vadd.f32 0.0, %v1971
  %v1973 = vpop.f32.mrb[0].mxu0
  %v1974 = vpop.f32.mrb[0].mxu0
  %v1975 = vadd.f32 0.0, %v1974
  %v1976 = vpop.f32.mrb[0].mxu0
  %1977 = vmatprep.mubr.bf16.mxu0 0
  %1978 = vmatmul.mubr.bf16.gmra.mrb[0].mxu0 %v1932
  %v1979 = vpop.f32.mrb[0].mxu0
  %v1980 = vadd.f32 0.0, %v1979
  %v1981 = vpop.f32.mrb[0].mxu0
  %v1982 = vpop.f32.mrb[0].mxu0
  %v1983 = vadd.f32 0.0, %v1982
  %v1984 = vpop.f32.mrb[0].mxu0
  %1985 = vdwg.mxu0
  %1986 = vxpose.xlu0.c.b16.start [1/8] %v1600, 128
  %1987 = vxpose.xlu0.c.b16.cont [2/8] 0, 128
  %1988 = vxpose.xlu0.c.b16.cont [3/8] 0, 128
  %1989 = vxpose.xlu0.c.b16.cont [4/8] 0, 128
  %1990 = vxpose.xlu0.c.b16.cont [5/8] 0, 128
  %1991 = vxpose.xlu0.c.b16.cont [6/8] 0, 128
  %1992 = vxpose.xlu0.c.b16.cont [7/8] 0, 128
  %1993 = vxpose.xlu0.c.b16.end [8/8] 0, 128
  %v1994 = vpop.trf.xlu0
  %v1995 = vpop.trf.xlu0
  %v1996 = vpop.trf.xlu0
  %v1997 = vpop.trf.xlu0
  %v1998 = vpop.trf.xlu0
  %v1999 = vpop.trf.xlu0
  %v2000 = vpop.trf.xlu0
  %v2001 = vpop.trf.xlu0
  %2003 = vrot.lane.b32.xlu0 %v1600, 96
  %v2004 = vpop.permute.xlu0 %2003
  %v2006 = vsel %vm287, %v1994, 0
  %v2009 = vsel %vm287, %v1995, 0
  %v2012 = vsel %vm294, %v2004, 0
  %2014 = vmatprep.subr.bf16.mxu0 0
  %2015 = vmatpush1.bf16.msra.mxu0 %v2012
  %2016 = vmatprep.subr.bf16.mxu0 0
  %2017 = vmatpush1.bf16.msra.mxu0 0
  %2018 = vmatprep.subr.bf16.mxu0 0
  %2019 = vmatpush1.bf16.msra.mxu0 0
  %2020 = vmatprep.subr.bf16.mxu0 0
  %2021 = vmatpush1.bf16.msra.mxu0 0
  %2022 = vmatprep.subr.bf16.mxu0 0
  %2023 = vmatpush1.bf16.msra.mxu0 0
  %2024 = vmatprep.subr.bf16.mxu0 0
  %2025 = vmatpush1.bf16.msra.mxu0 0
  %2026 = vmatprep.subr.bf16.mxu0 0
  %2027 = vmatpush1.bf16.msra.mxu0 0
  %2028 = vmatprep.subr.bf16.mxu0 0
  %2029 = vmatpush1.bf16.msra.mxu0 0
  %2030 = vmatprep.subr.bf16.mxu0 0
  %2031 = vmatpush1.bf16.msra.mxu0 0
  %2032 = vmatprep.subr.bf16.mxu0 0
  %2033 = vmatpush1.bf16.msra.mxu0 0
  %2034 = vmatprep.subr.bf16.mxu0 0
  %2035 = vmatpush1.bf16.msra.mxu0 0
  %2036 = vmatprep.subr.bf16.mxu0 0
  %2037 = vmatpush1.bf16.msra.mxu0 0
  %2038 = vmatprep.subr.bf16.mxu0 0
  %2039 = vmatpush1.bf16.msra.mxu0 0
  %2040 = vmatprep.subr.bf16.mxu0 0
  %2041 = vmatpush1.bf16.msra.mxu0 0
  %2042 = vmatprep.subr.bf16.mxu0 0
  %2043 = vmatpush1.bf16.msra.mxu0 0
  %2044 = vmatprep.subr.bf16.mxu0 0
  %2045 = vmatpush1.bf16.msra.mxu0 0
  %2046 = vmatprep.mubr.bf16.mxu0 0
  %2047 = vmatmul.mubr.bf16.gmra.mrb[0].mxu0 %v2006
  %v2048 = vpop.f32.mrb[0].mxu0
  %v2049 = vadd.f32 0.0, %v2048
  %v2050 = vpop.f32.mrb[0].mxu0
  %v2051 = vpop.f32.mrb[0].mxu0
  %v2052 = vadd.f32 0.0, %v2051
  %v2053 = vpop.f32.mrb[0].mxu0
  %2054 = vmatprep.mubr.bf16.mxu0 0
  %2055 = vmatmul.mubr.bf16.gmra.mrb[0].mxu0 %v2009
  %v2056 = vpop.f32.mrb[0].mxu0
  %v2057 = vadd.f32 0.0, %v2056
  %v2058 = vpop.f32.mrb[0].mxu0
  %v2059 = vpop.f32.mrb[0].mxu0
  %v2060 = vadd.f32 0.0, %v2059
  %v2061 = vpop.f32.mrb[0].mxu0
  %2062 = vdwg.mxu0
  %v2063 = vsel %vm159, %v1664, -inf
  %2064 = vmax.xlane.f32.xlu0 %v2063
  %v2065 = vpop.xlane.xlu0 %2064
  %v2066 = vsel %vm159, %v1667, -inf
  %2067 = vmax.xlane.f32.xlu0 %v2066
  %v2068 = vpop.xlane.xlu0 %2067
  %v2069 = vsel %vm159, %v1672, -inf
  %2070 = vmax.xlane.f32.xlu0 %v2069
  %v2071 = vpop.xlane.xlu0 %2070
  %v2072 = vsel %vm159, %v1675, -inf
  %2073 = vmax.xlane.f32.xlu0 %v2072
  %v2074 = vpop.xlane.xlu0 %2073
  %v2075 = vsel %vm159, %v1741, -inf
  %2076 = vmax.xlane.f32.xlu0 %v2075
  %v2077 = vpop.xlane.xlu0 %2076
  %v2078 = vsel %vm159, %v1744, -inf
  %2079 = vmax.xlane.f32.xlu0 %v2078
  %v2080 = vpop.xlane.xlu0 %2079
  %v2081 = vsel %vm159, %v1749, -inf
  %2082 = vmax.xlane.f32.xlu0 %v2081
  %v2083 = vpop.xlane.xlu0 %2082
  %v2084 = vsel %vm159, %v1752, -inf
  %2085 = vmax.xlane.f32.xlu0 %v2084
  %v2086 = vpop.xlane.xlu0 %2085
  %v2087 = vsel %vm159, %v1818, -inf
  %2088 = vmax.xlane.f32.xlu0 %v2087
  %v2089 = vpop.xlane.xlu0 %2088
  %v2090 = vsel %vm159, %v1821, -inf
  %2091 = vmax.xlane.f32.xlu0 %v2090
  %v2092 = vpop.xlane.xlu0 %2091
  %v2093 = vsel %vm159, %v1826, -inf
  %2094 = vmax.xlane.f32.xlu0 %v2093
  %v2095 = vpop.xlane.xlu0 %2094
  %v2096 = vsel %vm159, %v1829, -inf
  %2097 = vmax.xlane.f32.xlu0 %v2096
  %v2098 = vpop.xlane.xlu0 %2097
  %v2099 = vsel %vm159, %v1895, -inf
  %2100 = vmax.xlane.f32.xlu0 %v2099
  %v2101 = vpop.xlane.xlu0 %2100
  %v2102 = vsel %vm159, %v1898, -inf
  %2103 = vmax.xlane.f32.xlu0 %v2102
  %v2104 = vpop.xlane.xlu0 %2103
  %v2105 = vsel %vm159, %v1903, -inf
  %2106 = vmax.xlane.f32.xlu0 %v2105
  %v2107 = vpop.xlane.xlu0 %2106
  %v2108 = vsel %vm159, %v1906, -inf
  %2109 = vmax.xlane.f32.xlu0 %v2108
  %v2110 = vpop.xlane.xlu0 %2109
  %v2111 = vsel %vm159, %v1972, -inf
  %2112 = vmax.xlane.f32.xlu0 %v2111
  %v2113 = vpop.xlane.xlu0 %2112
  %v2114 = vsel %vm159, %v1975, -inf
  %2115 = vmax.xlane.f32.xlu0 %v2114
  %v2116 = vpop.xlane.xlu0 %2115
  %v2117 = vsel %vm159, %v1980, -inf
  %2118 = vmax.xlane.f32.xlu0 %v2117
  %v2119 = vpop.xlane.xlu0 %2118
  %v2120 = vsel %vm159, %v1983, -inf
  %2121 = vmax.xlane.f32.xlu0 %v2120
  %v2122 = vpop.xlane.xlu0 %2121
  %v2123 = vsel %vm159, %v2049, -inf
  %2124 = vmax.xlane.f32.xlu0 %v2123
  %v2125 = vpop.xlane.xlu0 %2124
  %v2126 = vsel %vm159, %v2052, -inf
  %2127 = vmax.xlane.f32.xlu0 %v2126
  %v2128 = vpop.xlane.xlu0 %2127
  %v2129 = vsel %vm159, %v2057, -inf
  %2130 = vmax.xlane.f32.xlu0 %v2129
  %v2131 = vpop.xlane.xlu0 %2130
  %v2132 = vsel %vm159, %v2060, -inf
  %2133 = vmax.xlane.f32.xlu0 %v2132
  %v2134 = vpop.xlane.xlu0 %2133
  %v2135 = vsub.f32 %v1664, %v2065
  %v2136 = vsub.f32 %v1667, %v2068
  %v2137 = vsub.f32 %v1672, %v2071
  %v2138 = vsub.f32 %v1675, %v2074
  %v2139 = vsub.f32 %v1741, %v2077
  %v2140 = vsub.f32 %v1744, %v2080
  %v2141 = vsub.f32 %v1749, %v2083
  %v2142 = vsub.f32 %v1752, %v2086
  %v2143 = vsub.f32 %v1818, %v2089
  %v2144 = vsub.f32 %v1821, %v2092
  %v2145 = vsub.f32 %v1826, %v2095
  %v2146 = vsub.f32 %v1829, %v2098
  %v2147 = vsub.f32 %v1895, %v2101
  %v2148 = vsub.f32 %v1898, %v2104
  %v2149 = vsub.f32 %v1903, %v2107
  %v2150 = vsub.f32 %v1906, %v2110
  %v2151 = vsub.f32 %v1972, %v2113
  %v2152 = vsub.f32 %v1975, %v2116
  %v2153 = vsub.f32 %v1980, %v2119
  %v2154 = vsub.f32 %v1983, %v2122
  %v2155 = vsub.f32 %v2049, %v2125
  %v2156 = vsub.f32 %v2052, %v2128
  %v2157 = vsub.f32 %v2057, %v2131
  %v2158 = vsub.f32 %v2060, %v2134
  %v2159 = vmul.f32 %v2135, 1.442695
  %v2160 = vpow.pop %v2159
  %v2161 = vmul.f32 %v2136, 1.442695
  %v2162 = vpow.pop %v2161
  %v2163 = vmul.f32 %v2137, 1.442695
  %v2164 = vpow.pop %v2163
  %v2165 = vmul.f32 %v2138, 1.442695
  %v2166 = vpow.pop %v2165
  %v2167 = vmul.f32 %v2139, 1.442695
  %v2168 = vpow.pop %v2167
  %v2169 = vmul.f32 %v2140, 1.442695
  %v2170 = vpow.pop %v2169
  %v2171 = vmul.f32 %v2141, 1.442695
  %v2172 = vpow.pop %v2171
  %v2173 = vmul.f32 %v2142, 1.442695
  %v2174 = vpow.pop %v2173
  %v2175 = vmul.f32 %v2143, 1.442695
  %v2176 = vpow.pop %v2175
  %v2177 = vmul.f32 %v2144, 1.442695
  %v2178 = vpow.pop %v2177
  %v2179 = vmul.f32 %v2145, 1.442695
  %v2180 = vpow.pop %v2179
  %v2181 = vmul.f32 %v2146, 1.442695
  %v2182 = vpow.pop %v2181
  %v2183 = vmul.f32 %v2147, 1.442695
  %v2184 = vpow.pop %v2183
  %v2185 = vmul.f32 %v2148, 1.442695
  %v2186 = vpow.pop %v2185
  %v2187 = vmul.f32 %v2149, 1.442695
  %v2188 = vpow.pop %v2187
  %v2189 = vmul.f32 %v2150, 1.442695
  %v2190 = vpow.pop %v2189
  %v2191 = vmul.f32 %v2151, 1.442695
  %v2192 = vpow.pop %v2191
  %v2193 = vmul.f32 %v2152, 1.442695
  %v2194 = vpow.pop %v2193
  %v2195 = vmul.f32 %v2153, 1.442695
  %v2196 = vpow.pop %v2195
  %v2197 = vmul.f32 %v2154, 1.442695
  %v2198 = vpow.pop %v2197
  %v2199 = vmul.f32 %v2155, 1.442695
  %v2200 = vpow.pop %v2199
  %v2201 = vmul.f32 %v2156, 1.442695
  %v2202 = vpow.pop %v2201
  %v2203 = vmul.f32 %v2157, 1.442695
  %v2204 = vpow.pop %v2203
  %v2205 = vmul.f32 %v2158, 1.442695
  %v2206 = vpow.pop %v2205
  %v2207 = vsel %vm159, %v2160, 0.0
  %2208 = vadd.xlane.f32.xlu0 %v2207
  %v2209 = vpop.xlane.xlu0 %2208
  %v2210 = vsel %vm159, %v2162, 0.0
  %2211 = vadd.xlane.f32.xlu0 %v2210
  %v2212 = vpop.xlane.xlu0 %2211
  %v2213 = vsel %vm159, %v2164, 0.0
  %2214 = vadd.xlane.f32.xlu0 %v2213
  %v2215 = vpop.xlane.xlu0 %2214
  %v2216 = vsel %vm159, %v2166, 0.0
  %2217 = vadd.xlane.f32.xlu0 %v2216
  %v2218 = vpop.xlane.xlu0 %2217
  %v2219 = vsel %vm159, %v2168, 0.0
  %2220 = vadd.xlane.f32.xlu0 %v2219
  %v2221 = vpop.xlane.xlu0 %2220
  %v2222 = vsel %vm159, %v2170, 0.0
  %2223 = vadd.xlane.f32.xlu0 %v2222
  %v2224 = vpop.xlane.xlu0 %2223
  %v2225 = vsel %vm159, %v2172, 0.0
  %2226 = vadd.xlane.f32.xlu0 %v2225
  %v2227 = vpop.xlane.xlu0 %2226
  %v2228 = vsel %vm159, %v2174, 0.0
  %2229 = vadd.xlane.f32.xlu0 %v2228
  %v2230 = vpop.xlane.xlu0 %2229
  %v2231 = vsel %vm159, %v2176, 0.0
  %2232 = vadd.xlane.f32.xlu0 %v2231
  %v2233 = vpop.xlane.xlu0 %2232
  %v2234 = vsel %vm159, %v2178, 0.0
  %2235 = vadd.xlane.f32.xlu0 %v2234
  %v2236 = vpop.xlane.xlu0 %2235
  %v2237 = vsel %vm159, %v2180, 0.0
  %2238 = vadd.xlane.f32.xlu0 %v2237
  %v2239 = vpop.xlane.xlu0 %2238
  %v2240 = vsel %vm159, %v2182, 0.0
  %2241 = vadd.xlane.f32.xlu0 %v2240
  %v2242 = vpop.xlane.xlu0 %2241
  %v2243 = vsel %vm159, %v2184, 0.0
  %2244 = vadd.xlane.f32.xlu0 %v2243
  %v2245 = vpop.xlane.xlu0 %2244
  %v2246 = vsel %vm159, %v2186, 0.0
  %2247 = vadd.xlane.f32.xlu0 %v2246
  %v2248 = vpop.xlane.xlu0 %2247
  %v2249 = vsel %vm159, %v2188, 0.0
  %2250 = vadd.xlane.f32.xlu0 %v2249
  %v2251 = vpop.xlane.xlu0 %2250
  %v2252 = vsel %vm159, %v2190, 0.0
  %2253 = vadd.xlane.f32.xlu0 %v2252
  %v2254 = vpop.xlane.xlu0 %2253
  %v2255 = vsel %vm159, %v2192, 0.0
  %2256 = vadd.xlane.f32.xlu0 %v2255
  %v2257 = vpop.xlane.xlu0 %2256
  %v2258 = vsel %vm159, %v2194, 0.0
  %2259 = vadd.xlane.f32.xlu0 %v2258
  %v2260 = vpop.xlane.xlu0 %2259
  %v2261 = vsel %vm159, %v2196, 0.0
  %2262 = vadd.xlane.f32.xlu0 %v2261
  %v2263 = vpop.xlane.xlu0 %2262
  %v2264 = vsel %vm159, %v2198, 0.0
  %2265 = vadd.xlane.f32.xlu0 %v2264
  %v2266 = vpop.xlane.xlu0 %2265
  %v2267 = vsel %vm159, %v2200, 0.0
  %2268 = vadd.xlane.f32.xlu0 %v2267
  %v2269 = vpop.xlane.xlu0 %2268
  %v2270 = vsel %vm159, %v2202, 0.0
  %2271 = vadd.xlane.f32.xlu0 %v2270
  %v2272 = vpop.xlane.xlu0 %2271
  %v2273 = vsel %vm159, %v2204, 0.0
  %2274 = vadd.xlane.f32.xlu0 %v2273
  %v2275 = vpop.xlane.xlu0 %2274
  %v2276 = vsel %vm159, %v2206, 0.0
  %2277 = vadd.xlane.f32.xlu0 %v2276
  %v2278 = vpop.xlane.xlu0 %2277
  %v2279 = vrcp.pop %v2209
  %v2280 = vrcp.pop %v2212
  %v2281 = vrcp.pop %v2215
  %v2282 = vrcp.pop %v2218
  %v2283 = vrcp.pop %v2221
  %v2284 = vrcp.pop %v2224
  %v2285 = vrcp.pop %v2227
  %v2286 = vrcp.pop %v2230
  %v2287 = vrcp.pop %v2233
  %v2288 = vrcp.pop %v2236
  %v2289 = vrcp.pop %v2239
  %v2290 = vrcp.pop %v2242
  %v2291 = vrcp.pop %v2245
  %v2292 = vrcp.pop %v2248
  %v2293 = vrcp.pop %v2251
  %v2294 = vrcp.pop %v2254
  %v2295 = vrcp.pop %v2257
  %v2296 = vrcp.pop %v2260
  %v2297 = vrcp.pop %v2263
  %v2298 = vrcp.pop %v2266
  %v2299 = vrcp.pop %v2269
  %v2300 = vrcp.pop %v2272
  %v2301 = vrcp.pop %v2275
  %v2302 = vrcp.pop %v2278
  %v2303 = vmul.f32 %v2160, %v2279
  %v2304 = vmul.f32 %v2162, %v2280
  %v2305 = vmul.f32 %v2164, %v2281
  %v2306 = vmul.f32 %v2166, %v2282
  %v2307 = vmul.f32 %v2168, %v2283
  %v2308 = vmul.f32 %v2170, %v2284
  %v2309 = vmul.f32 %v2172, %v2285
  %v2310 = vmul.f32 %v2174, %v2286
  %v2311 = vmul.f32 %v2176, %v2287
  %v2312 = vmul.f32 %v2178, %v2288
  %v2313 = vmul.f32 %v2180, %v2289
  %v2314 = vmul.f32 %v2182, %v2290
  %v2315 = vmul.f32 %v2184, %v2291
  %v2316 = vmul.f32 %v2186, %v2292
  %v2317 = vmul.f32 %v2188, %v2293
  %v2318 = vmul.f32 %v2190, %v2294
  %v2319 = vmul.f32 %v2192, %v2295
  %v2320 = vmul.f32 %v2194, %v2296
  %v2321 = vmul.f32 %v2196, %v2297
  %v2322 = vmul.f32 %v2198, %v2298
  %v2323 = vmul.f32 %v2200, %v2299
  %v2324 = vmul.f32 %v2202, %v2300
  %v2325 = vmul.f32 %v2204, %v2301
  %v2326 = vmul.f32 %v2206, %v2302
  %v2327 = vpack.c.bf16 %v1589, %v1589
  %v2328 = vpack.c.bf16 %v1590, %v1590
  %v2329 = vpack.c.bf16 %v1591, %v1591
  %v2330 = vpack.c.bf16 %v1592, %v1592
  %v2331 = vpack.c.bf16 %v1593, %v1593
  %v2332 = vpack.c.bf16 %v1594, %v1594
  %v2333 = vpack.c.bf16 %v2304, %v2303
  %v2334 = vpack.c.bf16 %v2306, %v2305
  %v2335 = vpack.c.bf16 %v2308, %v2307
  %v2336 = vpack.c.bf16 %v2310, %v2309
  %v2337 = vpack.c.bf16 %v2312, %v2311
  %v2338 = vpack.c.bf16 %v2314, %v2313
  %v2339 = vpack.c.bf16 %v2316, %v2315
  %v2340 = vpack.c.bf16 %v2318, %v2317
  %v2341 = vpack.c.bf16 %v2320, %v2319
  %v2342 = vpack.c.bf16 %v2322, %v2321
  %v2343 = vpack.c.bf16 %v2324, %v2323
  %v2344 = vpack.c.bf16 %v2326, %v2325
  %v2346 = vsel %vm159, %v2327, 0
  %2348 = vmatprep.subr.bf16.mxu0 0
  %2349 = vmatpush1.bf16.msra.mxu0 %v2333
  %2350 = vmatprep.subr.bf16.mxu0 0
  %2351 = vmatpush1.bf16.msra.mxu0 %v2334
  %2352 = vmatprep.subr.bf16.mxu0 0
  %2353 = vmatpush1.bf16.msra.mxu0 0
  %2354 = vmatprep.subr.bf16.mxu0 0
  %2355 = vmatpush1.bf16.msra.mxu0 0
  %2356 = vmatprep.subr.bf16.mxu0 0
  %2357 = vmatpush1.bf16.msra.mxu0 0
  %2358 = vmatprep.subr.bf16.mxu0 0
  %2359 = vmatpush1.bf16.msra.mxu0 0
  %2360 = vmatprep.subr.bf16.mxu0 0
  %2361 = vmatpush1.bf16.msra.mxu0 0
  %2362 = vmatprep.subr.bf16.mxu0 0
  %2363 = vmatpush1.bf16.msra.mxu0 0
  %2364 = vmatprep.subr.bf16.mxu0 0
  %2365 = vmatpush1.bf16.msra.mxu0 0
  %2366 = vmatprep.subr.bf16.mxu0 0
  %2367 = vmatpush1.bf16.msra.mxu0 0
  %2368 = vmatprep.subr.bf16.mxu0 0
  %2369 = vmatpush1.bf16.msra.mxu0 0
  %2370 = vmatprep.subr.bf16.mxu0 0
  %2371 = vmatpush1.bf16.msra.mxu0 0
  %2372 = vmatprep.subr.bf16.mxu0 0
  %2373 = vmatpush1.bf16.msra.mxu0 0
  %2374 = vmatprep.subr.bf16.mxu0 0
  %2375 = vmatpush1.bf16.msra.mxu0 0
  %2376 = vmatprep.subr.bf16.mxu0 0
  %2377 = vmatpush1.bf16.msra.mxu0 0
  %2378 = vmatprep.subr.bf16.mxu0 0
  %2379 = vmatpush1.bf16.msra.mxu0 0
  %2380 = vmatprep.mubr.bf16.mxu0 0
  %2381 = vmatmul.mubr.bf16.gmra.mrb[0].mxu0 %v2346
  %v2382 = vpop.f32.mrb[0].mxu0
  %v2383 = vadd.f32 0.0, %v2382
  %v2384 = vpop.f32.mrb[0].mxu0
  %v2385 = vpop.f32.mrb[0].mxu0
  %v2386 = vpop.f32.mrb[0].mxu0
  %2387 = vdwg.mxu0
  %v2389 = vsel %vm159, %v2328, 0
  %2391 = vmatprep.subr.bf16.mxu0 0
  %2392 = vmatpush1.bf16.msra.mxu0 %v2335
  %2393 = vmatprep.subr.bf16.mxu0 0
  %2394 = vmatpush1.bf16.msra.mxu0 %v2336
  %2395 = vmatprep.subr.bf16.mxu0 0
  %2396 = vmatpush1.bf16.msra.mxu0 0
  %2397 = vmatprep.subr.bf16.mxu0 0
  %2398 = vmatpush1.bf16.msra.mxu0 0
  %2399 = vmatprep.subr.bf16.mxu0 0
  %2400 = vmatpush1.bf16.msra.mxu0 0
  %2401 = vmatprep.subr.bf16.mxu0 0
  %2402 = vmatpush1.bf16.msra.mxu0 0
  %2403 = vmatprep.subr.bf16.mxu0 0
  %2404 = vmatpush1.bf16.msra.mxu0 0
  %2405 = vmatprep.subr.bf16.mxu0 0
  %2406 = vmatpush1.bf16.msra.mxu0 0
  %2407 = vmatprep.subr.bf16.mxu0 0
  %2408 = vmatpush1.bf16.msra.mxu0 0
  %2409 = vmatprep.subr.bf16.mxu0 0
  %2410 = vmatpush1.bf16.msra.mxu0 0
  %2411 = vmatprep.subr.bf16.mxu0 0
  %2412 = vmatpush1.bf16.msra.mxu0 0
  %2413 = vmatprep.subr.bf16.mxu0 0
  %2414 = vmatpush1.bf16.msra.mxu0 0
  %2415 = vmatprep.subr.bf16.mxu0 0
  %2416 = vmatpush1.bf16.msra.mxu0 0
  %2417 = vmatprep.subr.bf16.mxu0 0
  %2418 = vmatpush1.bf16.msra.mxu0 0
  %2419 = vmatprep.subr.bf16.mxu0 0
  %2420 = vmatpush1.bf16.msra.mxu0 0
  %2421 = vmatprep.subr.bf16.mxu0 0
  %2422 = vmatpush1.bf16.msra.mxu0 0
  %2423 = vmatprep.mubr.bf16.mxu0 0
  %2424 = vmatmul.mubr.bf16.gmra.mrb[0].mxu0 %v2389
  %v2425 = vpop.f32.mrb[0].mxu0
  %v2426 = vadd.f32 0.0, %v2425
  %v2427 = vpop.f32.mrb[0].mxu0
  %v2428 = vpop.f32.mrb[0].mxu0
  %v2429 = vpop.f32.mrb[0].mxu0
  %2430 = vdwg.mxu0
  %v2432 = vsel %vm159, %v2329, 0
  %2434 = vmatprep.subr.bf16.mxu0 0
  %2435 = vmatpush1.bf16.msra.mxu0 %v2337
  %2436 = vmatprep.subr.bf16.mxu0 0
  %2437 = vmatpush1.bf16.msra.mxu0 %v2338
  %2438 = vmatprep.subr.bf16.mxu0 0
  %2439 = vmatpush1.bf16.msra.mxu0 0
  %2440 = vmatprep.subr.bf16.mxu0 0
  %2441 = vmatpush1.bf16.msra.mxu0 0
  %2442 = vmatprep.subr.bf16.mxu0 0
  %2443 = vmatpush1.bf16.msra.mxu0 0
  %2444 = vmatprep.subr.bf16.mxu0 0
  %2445 = vmatpush1.bf16.msra.mxu0 0
  %2446 = vmatprep.subr.bf16.mxu0 0
  %2447 = vmatpush1.bf16.msra.mxu0 0
  %2448 = vmatprep.subr.bf16.mxu0 0
  %2449 = vmatpush1.bf16.msra.mxu0 0
  %2450 = vmatprep.subr.bf16.mxu0 0
  %2451 = vmatpush1.bf16.msra.mxu0 0
  %2452 = vmatprep.subr.bf16.mxu0 0
  %2453 = vmatpush1.bf16.msra.mxu0 0
  %2454 = vmatprep.subr.bf16.mxu0 0
  %2455 = vmatpush1.bf16.msra.mxu0 0
  %2456 = vmatprep.subr.bf16.mxu0 0
  %2457 = vmatpush1.bf16.msra.mxu0 0
  %2458 = vmatprep.subr.bf16.mxu0 0
  %2459 = vmatpush1.bf16.msra.mxu0 0
  %2460 = vmatprep.subr.bf16.mxu0 0
  %2461 = vmatpush1.bf16.msra.mxu0 0
  %2462 = vmatprep.subr.bf16.mxu0 0
  %2463 = vmatpush1.bf16.msra.mxu0 0
  %2464 = vmatprep.subr.bf16.mxu0 0
  %2465 = vmatpush1.bf16.msra.mxu0 0
  %2466 = vmatprep.mubr.bf16.mxu0 0
  %2467 = vmatmul.mubr.bf16.gmra.mrb[0].mxu0 %v2432
  %v2468 = vpop.f32.mrb[0].mxu0
  %v2469 = vadd.f32 0.0, %v2468
  %v2470 = vpop.f32.mrb[0].mxu0
  %v2471 = vpop.f32.mrb[0].mxu0
  %v2472 = vpop.f32.mrb[0].mxu0
  %2473 = vdwg.mxu0
  %v2475 = vsel %vm159, %v2330, 0
  %2477 = vmatprep.subr.bf16.mxu0 0
  %2478 = vmatpush1.bf16.msra.mxu0 %v2339
  %2479 = vmatprep.subr.bf16.mxu0 0
  %2480 = vmatpush1.bf16.msra.mxu0 %v2340
  %2481 = vmatprep.subr.bf16.mxu0 0
  %2482 = vmatpush1.bf16.msra.mxu0 0
  %2483 = vmatprep.subr.bf16.mxu0 0
  %2484 = vmatpush1.bf16.msra.mxu0 0
  %2485 = vmatprep.subr.bf16.mxu0 0
  %2486 = vmatpush1.bf16.msra.mxu0 0
  %2487 = vmatprep.subr.bf16.mxu0 0
  %2488 = vmatpush1.bf16.msra.mxu0 0
  %2489 = vmatprep.subr.bf16.mxu0 0
  %2490 = vmatpush1.bf16.msra.mxu0 0
  %2491 = vmatprep.subr.bf16.mxu0 0
  %2492 = vmatpush1.bf16.msra.mxu0 0
  %2493 = vmatprep.subr.bf16.mxu0 0
  %2494 = vmatpush1.bf16.msra.mxu0 0
  %2495 = vmatprep.subr.bf16.mxu0 0
  %2496 = vmatpush1.bf16.msra.mxu0 0
  %2497 = vmatprep.subr.bf16.mxu0 0
  %2498 = vmatpush1.bf16.msra.mxu0 0
  %2499 = vmatprep.subr.bf16.mxu0 0
  %2500 = vmatpush1.bf16.msra.mxu0 0
  %2501 = vmatprep.subr.bf16.mxu0 0
  %2502 = vmatpush1.bf16.msra.mxu0 0
  %2503 = vmatprep.subr.bf16.mxu0 0
  %2504 = vmatpush1.bf16.msra.mxu0 0
  %2505 = vmatprep.subr.bf16.mxu0 0
  %2506 = vmatpush1.bf16.msra.mxu0 0
  %2507 = vmatprep.subr.bf16.mxu0 0
  %2508 = vmatpush1.bf16.msra.mxu0 0
  %2509 = vmatprep.mubr.bf16.mxu0 0
  %2510 = vmatmul.mubr.bf16.gmra.mrb[0].mxu0 %v2475
  %v2511 = vpop.f32.mrb[0].mxu0
  %v2512 = vadd.f32 0.0, %v2511
  %v2513 = vpop.f32.mrb[0].mxu0
  %v2514 = vpop.f32.mrb[0].mxu0
  %v2515 = vpop.f32.mrb[0].mxu0
  %2516 = vdwg.mxu0
  %v2518 = vsel %vm159, %v2331, 0
  %2520 = vmatprep.subr.bf16.mxu0 0
  %2521 = vmatpush1.bf16.msra.mxu0 %v2341
  %2522 = vmatprep.subr.bf16.mxu0 0
  %2523 = vmatpush1.bf16.msra.mxu0 %v2342
  %2524 = vmatprep.subr.bf16.mxu0 0
  %2525 = vmatpush1.bf16.msra.mxu0 0
  %2526 = vmatprep.subr.bf16.mxu0 0
  %2527 = vmatpush1.bf16.msra.mxu0 0
  %2528 = vmatprep.subr.bf16.mxu0 0
  %2529 = vmatpush1.bf16.msra.mxu0 0
  %2530 = vmatprep.subr.bf16.mxu0 0
  %2531 = vmatpush1.bf16.msra.mxu0 0
  %2532 = vmatprep.subr.bf16.mxu0 0
  %2533 = vmatpush1.bf16.msra.mxu0 0
  %2534 = vmatprep.subr.bf16.mxu0 0
  %2535 = vmatpush1.bf16.msra.mxu0 0
  %2536 = vmatprep.subr.bf16.mxu0 0
  %2537 = vmatpush1.bf16.msra.mxu0 0
  %2538 = vmatprep.subr.bf16.mxu0 0
  %2539 = vmatpush1.bf16.msra.mxu0 0
  %2540 = vmatprep.subr.bf16.mxu0 0
  %2541 = vmatpush1.bf16.msra.mxu0 0
  %2542 = vmatprep.subr.bf16.mxu0 0
  %2543 = vmatpush1.bf16.msra.mxu0 0
  %2544 = vmatprep.subr.bf16.mxu0 0
  %2545 = vmatpush1.bf16.msra.mxu0 0
  %2546 = vmatprep.subr.bf16.mxu0 0
  %2547 = vmatpush1.bf16.msra.mxu0 0
  %2548 = vmatprep.subr.bf16.mxu0 0
  %2549 = vmatpush1.bf16.msra.mxu0 0
  %2550 = vmatprep.subr.bf16.mxu0 0
  %2551 = vmatpush1.bf16.msra.mxu0 0
  %2552 = vmatprep.mubr.bf16.mxu0 0
  %2553 = vmatmul.mubr.bf16.gmra.mrb[0].mxu0 %v2518
  %v2554 = vpop.f32.mrb[0].mxu0
  %v2555 = vadd.f32 0.0, %v2554
  %v2556 = vpop.f32.mrb[0].mxu0
  %v2557 = vpop.f32.mrb[0].mxu0
  %v2558 = vpop.f32.mrb[0].mxu0
  %2559 = vdwg.mxu0
  %v2561 = vsel %vm159, %v2332, 0
  %2563 = vmatprep.subr.bf16.mxu0 0
  %2564 = vmatpush1.bf16.msra.mxu0 %v2343
  %2565 = vmatprep.subr.bf16.mxu0 0
  %2566 = vmatpush1.bf16.msra.mxu0 %v2344
  %2567 = vmatprep.subr.bf16.mxu0 0
  %2568 = vmatpush1.bf16.msra.mxu0 0
  %2569 = vmatprep.subr.bf16.mxu0 0
  %2570 = vmatpush1.bf16.msra.mxu0 0
  %2571 = vmatprep.subr.bf16.mxu0 0
  %2572 = vmatpush1.bf16.msra.mxu0 0
  %2573 = vmatprep.subr.bf16.mxu0 0
  %2574 = vmatpush1.bf16.msra.mxu0 0
  %2575 = vmatprep.subr.bf16.mxu0 0
  %2576 = vmatpush1.bf16.msra.mxu0 0
  %2577 = vmatprep.subr.bf16.mxu0 0
  %2578 = vmatpush1.bf16.msra.mxu0 0
  %2579 = vmatprep.subr.bf16.mxu0 0
  %2580 = vmatpush1.bf16.msra.mxu0 0
  %2581 = vmatprep.subr.bf16.mxu0 0
  %2582 = vmatpush1.bf16.msra.mxu0 0
  %2583 = vmatprep.subr.bf16.mxu0 0
  %2584 = vmatpush1.bf16.msra.mxu0 0
  %2585 = vmatprep.subr.bf16.mxu0 0
  %2586 = vmatpush1.bf16.msra.mxu0 0
  %2587 = vmatprep.subr.bf16.mxu0 0
  %2588 = vmatpush1.bf16.msra.mxu0 0
  %2589 = vmatprep.subr.bf16.mxu0 0
  %2590 = vmatpush1.bf16.msra.mxu0 0
  %2591 = vmatprep.subr.bf16.mxu0 0
  %2592 = vmatpush1.bf16.msra.mxu0 0
  %2593 = vmatprep.subr.bf16.mxu0 0
  %2594 = vmatpush1.bf16.msra.mxu0 0
  %2595 = vmatprep.mubr.bf16.mxu0 0
  %2596 = vmatmul.mubr.bf16.gmra.mrb[0].mxu0 %v2561
  %v2597 = vpop.f32.mrb[0].mxu0
  %v2598 = vadd.f32 0.0, %v2597
  %v2599 = vpop.f32.mrb[0].mxu0
  %v2600 = vpop.f32.mrb[0].mxu0
  %v2601 = vpop.f32.mrb[0].mxu0
  %2602 = vdwg.mxu0
  %v2603 = vpack.c.bf16 %v2426, %v2383
  %v2604 = vpack.c.bf16 %v2512, %v2469
  %v2605 = vpack.c.bf16 %v2598, %v2555
  %s2606 = scalar_lea.vmem %s5, 16
  %v2607 = vld [vmem:[%s2606] sm:$0xf]
  %v2608 = vld [vmem:[%s2606 + $0x4] sm:$0xf]
  %v2609 = vld [vmem:[%s2606 + $0x8] sm:$0xf]
  %v2610 = vld [vmem:[%s2606 + $0xc] sm:$0xf]
  %s2611 = scalar_lea.vmem %s6, 1
  %v2612 = vld [vmem:[%s2611] sm:$0x1]
  %v2614 = vlaneseq
  %v2615 = vshrl.u32 %v2614, 7
  %v2616 = vsub.s32 0, %v2615
  %v2617 = vrot.slane %v2612, %v2616
  %v2623 = vunpack.c.l.b16 %v2607
  %v2624 = vunpack.c.l.b16 %v2608
  %v2625 = vunpack.c.l.b16 %v2609
  %v2626 = vunpack.c.l.b16 %v2610
  %v2627 = vpack.c.b16 %v2624, %v2623
  %v2628 = vpack.c.b16 %v2626, %v2625
  %v2632 = vsel %vm159, %v2603, 0
  %v2635 = vsel %vm159, %v2604, 0
  %v2638 = vsel %vm159, %v2605, 0
  %2640 = vmatprep.subr.bf16.mxu0 0
  %2641 = vmatpush1.bf16.msra.mxu0 %v2627
  %2642 = vmatprep.subr.bf16.mxu0 0
  %2643 = vmatpush1.bf16.msra.mxu0 %v2628
  %2644 = vmatprep.subr.bf16.mxu0 0
  %2645 = vmatpush1.bf16.msra.mxu0 0
  %2646 = vmatprep.subr.bf16.mxu0 0
  %2647 = vmatpush1.bf16.msra.mxu0 0
  %2648 = vmatprep.subr.bf16.mxu0 0
  %2649 = vmatpush1.bf16.msra.mxu0 0
  %2650 = vmatprep.subr.bf16.mxu0 0
  %2651 = vmatpush1.bf16.msra.mxu0 0
  %2652 = vmatprep.subr.bf16.mxu0 0
  %2653 = vmatpush1.bf16.msra.mxu0 0
  %2654 = vmatprep.subr.bf16.mxu0 0
  %2655 = vmatpush1.bf16.msra.mxu0 0
  %2656 = vmatprep.subr.bf16.mxu0 0
  %2657 = vmatpush1.bf16.msra.mxu0 0
  %2658 = vmatprep.subr.bf16.mxu0 0
  %2659 = vmatpush1.bf16.msra.mxu0 0
  %2660 = vmatprep.subr.bf16.mxu0 0
  %2661 = vmatpush1.bf16.msra.mxu0 0
  %2662 = vmatprep.subr.bf16.mxu0 0
  %2663 = vmatpush1.bf16.msra.mxu0 0
  %2664 = vmatprep.subr.bf16.mxu0 0
  %2665 = vmatpush1.bf16.msra.mxu0 0
  %2666 = vmatprep.subr.bf16.mxu0 0
  %2667 = vmatpush1.bf16.msra.mxu0 0
  %2668 = vmatprep.subr.bf16.mxu0 0
  %2669 = vmatpush1.bf16.msra.mxu0 0
  %2670 = vmatprep.subr.bf16.mxu0 0
  %2671 = vmatpush1.bf16.msra.mxu0 0
  %2672 = vmatprep.mubr.bf16.mxu0 0
  %2673 = vmatmul.mubr.bf16.gmra.mrb[0].mxu0 %v2632
  %v2674 = vpop.f32.mrb[0].mxu0
  %v2675 = vadd.f32 %v2617, %v2674
  %v2676 = vpop.f32.mrb[0].mxu0
  %v2677 = vpop.f32.mrb[0].mxu0
  %v2678 = vadd.f32 %v2617, %v2677
  %v2679 = vpop.f32.mrb[0].mxu0
  %2680 = vmatprep.mubr.bf16.mxu0 0
  %2681 = vmatmul.mubr.bf16.gmra.mrb[0].mxu0 %v2635
  %v2682 = vpop.f32.mrb[0].mxu0
  %v2683 = vadd.f32 %v2617, %v2682
  %v2684 = vpop.f32.mrb[0].mxu0
  %v2685 = vpop.f32.mrb[0].mxu0
  %v2686 = vadd.f32 %v2617, %v2685
  %v2687 = vpop.f32.mrb[0].mxu0
  %2688 = vmatprep.mubr.bf16.mxu0 0
  %2689 = vmatmul.mubr.bf16.gmra.mrb[0].mxu0 %v2638
  %v2690 = vpop.f32.mrb[0].mxu0
  %v2691 = vadd.f32 %v2617, %v2690
  %v2692 = vpop.f32.mrb[0].mxu0
  %v2693 = vpop.f32.mrb[0].mxu0
  %v2694 = vadd.f32 %v2617, %v2693
  %v2695 = vpop.f32.mrb[0].mxu0
  %2696 = vdwg.mxu0
  %2697 = vst.msk [vmem:[%s7] sm:$0xff] %vm51, %v2675
  %2698 = vst.msk [vmem:[%s7 + $0x8] sm:$0xff] %vm51, %v2678
  %2699 = vst.msk [vmem:[%s7 + $0x10] sm:$0xff] %vm51, %v2683
  %2700 = vst.msk [vmem:[%s7 + $0x18] sm:$0xff] %vm51, %v2686
  %2701 = vst.msk [vmem:[%s7 + $0x20] sm:$0xff] %vm51, %v2691
  %2702 = vst.msk [vmem:[%s7 + $0x28] sm:$0xff] %vm51, %v2694
  // Predicated region
  $region30: #{tpu_custom_call.1} parent=0 // pred_check
    _
  $region31: #{tpu_custom_call.1} parent=0 // pred_check_branch
    %2704 = sbr.rel (0) target = $region33
  $region32: #{tpu_custom_call.1} parent=0 // pred_region
    _
  $region33: #{tpu_custom_call.1} parent=0 // pred_fallthru
    _
  // Predicated region
  $region34: #{tpu_custom_call.1} parent=0 // pred_check
    _
  $region35: #{tpu_custom_call.1} parent=0 // pred_check_branch
    %2706 = sbr.rel (0) target = $region37
  $region36: #{tpu_custom_call.1} parent=0 // pred_region
    _
  $region37: #{tpu_custom_call.1} parent=0 // pred_fallthru
    _

// kernel: tpu_custom_call.1
$region0: #{tpu_custom_call.1}
  #allocation0 [shape = 'u32[]', space=smem, size = 0x4, offset = 0x4, fixed_abs, tag = 'smem constant byte address 0x4 - core index']
  #allocation1 [shape = 'u32[144,128]{1,0:T(1,128)}', space=vmem, size = 0x12000, scoped, tag = 'internal scratch']
  %s0 = inlined_call_operand.vmem [shape: f32[48,16], index: 0, kind: input, shape index: {}]
  %s1 = inlined_call_operand.vmem [shape: bf16[2,16,32], index: 1, kind: input, shape index: {}]
  %s2 = inlined_call_operand.vmem [shape: f32[2,1,32], index: 2, kind: input, shape index: {}]
  %s3 = inlined_call_operand.vmem [shape: bf16[2,16,32], index: 3, kind: input, shape index: {}]
  %s4 = inlined_call_operand.vmem [shape: f32[2,1,32], index: 4, kind: input, shape index: {}]
  %s5 = inlined_call_operand.vmem [shape: bf16[2,16,32], index: 5, kind: input, shape index: {}]
  %s6 = inlined_call_operand.vmem [shape: f32[2,1,32], index: 6, kind: input, shape index: {}]
  %s7 = inlined_call_operand.vmem [shape: bf16[2,32,32], index: 7, kind: input, shape index: {}]
  %s8 = inlined_call_operand.vmem [shape: f32[2,1,32], index: 8, kind: input, shape index: {}]
  %s9 = inlined_call_operand.vmem [shape: bf16[2,32,16], index: 9, kind: input, shape index: {}]
  %s10 = inlined_call_operand.vmem [shape: f32[2,1,16], index: 10, kind: input, shape index: {}]
  %s11 = inlined_call_operand.vmem [shape: f32[48,16], index: 11, kind: output, shape index: {}]
  %s12 = sld [smem:[#allocation0]]
  $region54: #{tpu_custom_call.1} parent=0
    _
  %s14 = ssub.s32 1, %s12
  %s15 = scalar_select 0, %s14, %s12
  // Predicated region
  $region2: #{tpu_custom_call.1} parent=0 // pred_check
    _
  $region3: #{tpu_custom_call.1} parent=0 // pred_check_branch
    %17 = sbr.rel (0) target = $region5
  $region4: #{tpu_custom_call.1} parent=0 // pred_region
    _
  $region5: #{tpu_custom_call.1} parent=0 // pred_fallthru
    _
  // Predicated region
  $region6: #{tpu_custom_call.1} parent=0 // pred_check
    _
  $region7: #{tpu_custom_call.1} parent=0 // pred_check_branch
    %19 = sbr.rel (0) target = $region9
  $region8: #{tpu_custom_call.1} parent=0 // pred_region
    _
  $region9: #{tpu_custom_call.1} parent=0 // pred_fallthru
    _
  // Predicated region
  $region10: #{tpu_custom_call.1} parent=0 // pred_check
    _
  $region11: #{tpu_custom_call.1} parent=0 // pred_check_branch
    %21 = sbr.rel (0) target = $region13
  $region12: #{tpu_custom_call.1} parent=0 // pred_region
    _
  $region13: #{tpu_custom_call.1} parent=0 // pred_fallthru
    _
  // Predicated region
  $region14: #{tpu_custom_call.1} parent=0 // pred_check
    _
  $region15: #{tpu_custom_call.1} parent=0 // pred_check_branch
    %23 = sbr.rel (0) target = $region17
  $region16: #{tpu_custom_call.1} parent=0 // pred_region
    _
  $region17: #{tpu_custom_call.1} parent=0 // pred_fallthru
    _
  // Predicated region
  $region18: #{tpu_custom_call.1} parent=0 // pred_check
    _
  $region19: #{tpu_custom_call.1} parent=0 // pred_check_branch
    %25 = sbr.rel (0) target = $region21
  $region20: #{tpu_custom_call.1} parent=0 // pred_region
    _
  $region21: #{tpu_custom_call.1} parent=0 // pred_fallthru
    _
  // Predicated region
  $region22: #{tpu_custom_call.1} parent=0 // pred_check
    _
  $region23: #{tpu_custom_call.1} parent=0 // pred_check_branch
    %27 = sbr.rel (0) target = $region25
  $region24: #{tpu_custom_call.1} parent=0 // pred_region
    _
  $region25: #{tpu_custom_call.1} parent=0 // pred_fallthru
    _
  // Predicated region
  $region26: #{tpu_custom_call.1} parent=0 // pred_check
    _
  $region27: #{tpu_custom_call.1} parent=0 // pred_check_branch
    %29 = sbr.rel (0) target = $region29
  $region28: #{tpu_custom_call.1} parent=0 // pred_region
    _
  $region29: #{tpu_custom_call.1} parent=0 // pred_fallthru
    _
  // Predicated region
  $region30: #{tpu_custom_call.1} parent=0 // pred_check
    _
  $region31: #{tpu_custom_call.1} parent=0 // pred_check_branch
    %31 = sbr.rel (0) target = $region33
  $region32: #{tpu_custom_call.1} parent=0 // pred_region
    _
  $region33: #{tpu_custom_call.1} parent=0 // pred_fallthru
    _
  // Predicated region
  $region34: #{tpu_custom_call.1} parent=0 // pred_check
    _
  $region35: #{tpu_custom_call.1} parent=0 // pred_check_branch
    %33 = sbr.rel (0) target = $region37
  $region36: #{tpu_custom_call.1} parent=0 // pred_region
    _
  $region37: #{tpu_custom_call.1} parent=0 // pred_fallthru
    _
  // Predicated region
  $region38: #{tpu_custom_call.1} parent=0 // pred_check
    _
  $region39: #{tpu_custom_call.1} parent=0 // pred_check_branch
    %35 = sbr.rel (0) target = $region41
  $region40: #{tpu_custom_call.1} parent=0 // pred_region
    _
  $region41: #{tpu_custom_call.1} parent=0 // pred_fallthru
    _
  // Predicated region
  $region42: #{tpu_custom_call.1} parent=0 // pred_check
    _
  $region43: #{tpu_custom_call.1} parent=0 // pred_check_branch
    %37 = sbr.rel (0) target = $region45
  $region44: #{tpu_custom_call.1} parent=0 // pred_region
    _
  $region45: #{tpu_custom_call.1} parent=0 // pred_fallthru
    _
  %v39 = vld [vmem:[%s0] sm:$0xff]
  %v40 = vld [vmem:[%s0 + $0x8] sm:$0xff]
  %v41 = vld [vmem:[%s0 + $0x10] sm:$0xff]
  %v42 = vld [vmem:[%s0 + $0x18] sm:$0xff]
  %v43 = vld [vmem:[%s0 + $0x20] sm:$0xff]
  %v44 = vld [vmem:[%s0 + $0x28] sm:$0xff]
  %v45 = vpack.c.bf16 %v40, %v39
  %v46 = vpack.c.bf16 %v42, %v41
  %v47 = vpack.c.bf16 %v44, %v43
  %v48 = vld [vmem:[%s1] sm:$0xf]
  %v49 = vld [vmem:[%s1 + $0x4] sm:$0xf]
  %v50 = vld [vmem:[%s2] sm:$0x1]
  %v52 = vlaneseq
  %v53 = vshrl.u32 %v52, 7
  %v54 = vsub.s32 0, %v53
  %v55 = vrot.slane %v50, %v54
  %v59 = vunpack.c.l.b16 %v48
  %v60 = vunpack.c.l.b16 %v49
  %v61 = vpack.c.b16 %v60, %v59
  %vm63 = vcmask 130048
  %v65 = vsel %vm63, %v45, 0
  %v68 = vsel %vm63, %v46, 0
  %v71 = vsel %vm63, %v47, 0
  %73 = vmatprep.subr.bf16.mxu0 0
  %74 = vmatpush1.bf16.msra.mxu0 %v61
  %75 = vmatprep.subr.bf16.mxu0 0
  %76 = vmatpush1.bf16.msra.mxu0 0
  %77 = vmatprep.subr.bf16.mxu0 0
  %78 = vmatpush1.bf16.msra.mxu0 0
  %79 = vmatprep.subr.bf16.mxu0 0
  %80 = vmatpush1.bf16.msra.mxu0 0
  %81 = vmatprep.subr.bf16.mxu0 0
  %82 = vmatpush1.bf16.msra.mxu0 0
  %83 = vmatprep.subr.bf16.mxu0 0
  %84 = vmatpush1.bf16.msra.mxu0 0
  %85 = vmatprep.subr.bf16.mxu0 0
  %86 = vmatpush1.bf16.msra.mxu0 0
  %87 = vmatprep.subr.bf16.mxu0 0
  %88 = vmatpush1.bf16.msra.mxu0 0
  %89 = vmatprep.subr.bf16.mxu0 0
  %90 = vmatpush1.bf16.msra.mxu0 0
  %91 = vmatprep.subr.bf16.mxu0 0
  %92 = vmatpush1.bf16.msra.mxu0 0
  %93 = vmatprep.subr.bf16.mxu0 0
  %94 = vmatpush1.bf16.msra.mxu0 0
  %95 = vmatprep.subr.bf16.mxu0 0
  %96 = vmatpush1.bf16.msra.mxu0 0
  %97 = vmatprep.subr.bf16.mxu0 0
  %98 = vmatpush1.bf16.msra.mxu0 0
  %99 = vmatprep.subr.bf16.mxu0 0
  %100 = vmatpush1.bf16.msra.mxu0 0
  %101 = vmatprep.subr.bf16.mxu0 0
  %102 = vmatpush1.bf16.msra.mxu0 0
  %103 = vmatprep.subr.bf16.mxu0 0
  %104 = vmatpush1.bf16.msra.mxu0 0
  %105 = vmatprep.mubr.bf16.mxu0 0
  %106 = vmatmul.mubr.bf16.gmra.mrb[0].mxu0 %v65
  %v107 = vpop.f32.mrb[0].mxu0
  %v108 = vadd.f32 %v55, %v107
  %v109 = vpop.f32.mrb[0].mxu0
  %v110 = vpop.f32.mrb[0].mxu0
  %v111 = vadd.f32 %v55, %v110
  %v112 = vpop.f32.mrb[0].mxu0
  %113 = vmatprep.mubr.bf16.mxu0 0
  %114 = vmatmul.mubr.bf16.gmra.mrb[0].mxu0 %v68
  %v115 = vpop.f32.mrb[0].mxu0
  %v116 = vadd.f32 %v55, %v115
  %v117 = vpop.f32.mrb[0].mxu0
  %v118 = vpop.f32.mrb[0].mxu0
  %v119 = vadd.f32 %v55, %v118
  %v120 = vpop.f32.mrb[0].mxu0
  %121 = vmatprep.mubr.bf16.mxu0 0
  %122 = vmatmul.mubr.bf16.gmra.mrb[0].mxu0 %v71
  %v123 = vpop.f32.mrb[0].mxu0
  %v124 = vadd.f32 %v55, %v123
  %v125 = vpop.f32.mrb[0].mxu0
  %v126 = vpop.f32.mrb[0].mxu0
  %v127 = vadd.f32 %v55, %v126
  %v128 = vpop.f32.mrb[0].mxu0
  %129 = vdwg.mxu0
  %v130 = vmax.f32 %v108, 0.0
  %v131 = vmax.f32 %v111, 0.0
  %v132 = vmax.f32 %v116, 0.0
  %v133 = vmax.f32 %v119, 0.0
  %v134 = vmax.f32 %v124, 0.0
  %v135 = vmax.f32 %v127, 0.0
  %v136 = vld [vmem:[%s3] sm:$0xf]
  %v137 = vld [vmem:[%s3 + $0x4] sm:$0xf]
  %v138 = vld [vmem:[%s4] sm:$0x1]
  %v140 = vlaneseq
  %v141 = vshrl.u32 %v140, 7
  %v142 = vsub.s32 0, %v141
  %v143 = vrot.slane %v138, %v142
  %v147 = vunpack.c.l.b16 %v136
  %v148 = vunpack.c.l.b16 %v137
  %v149 = vpack.c.b16 %v148, %v147
  %151 = vmatprep.subr.bf16.mxu0 0
  %152 = vmatpush1.bf16.msra.mxu0 %v149
  %153 = vmatprep.subr.bf16.mxu0 0
  %154 = vmatpush1.bf16.msra.mxu0 0
  %155 = vmatprep.subr.bf16.mxu0 0
  %156 = vmatpush1.bf16.msra.mxu0 0
  %157 = vmatprep.subr.bf16.mxu0 0
  %158 = vmatpush1.bf16.msra.mxu0 0
  %159 = vmatprep.subr.bf16.mxu0 0
  %160 = vmatpush1.bf16.msra.mxu0 0
  %161 = vmatprep.subr.bf16.mxu0 0
  %162 = vmatpush1.bf16.msra.mxu0 0
  %163 = vmatprep.subr.bf16.mxu0 0
  %164 = vmatpush1.bf16.msra.mxu0 0
  %165 = vmatprep.subr.bf16.mxu0 0
  %166 = vmatpush1.bf16.msra.mxu0 0
  %167 = vmatprep.subr.bf16.mxu0 0
  %168 = vmatpush1.bf16.msra.mxu0 0
  %169 = vmatprep.subr.bf16.mxu0 0
  %170 = vmatpush1.bf16.msra.mxu0 0
  %171 = vmatprep.subr.bf16.mxu0 0
  %172 = vmatpush1.bf16.msra.mxu0 0
  %173 = vmatprep.subr.bf16.mxu0 0
  %174 = vmatpush1.bf16.msra.mxu0 0
  %175 = vmatprep.subr.bf16.mxu0 0
  %176 = vmatpush1.bf16.msra.mxu0 0
  %177 = vmatprep.subr.bf16.mxu0 0
  %178 = vmatpush1.bf16.msra.mxu0 0
  %179 = vmatprep.subr.bf16.mxu0 0
  %180 = vmatpush1.bf16.msra.mxu0 0
  %181 = vmatprep.subr.bf16.mxu0 0
  %182 = vmatpush1.bf16.msra.mxu0 0
  %183 = vmatprep.mubr.bf16.mxu0 0
  %184 = vmatmul.mubr.bf16.gmra.mrb[0].mxu0 %v65
  %v185 = vpop.f32.mrb[0].mxu0
  %v186 = vadd.f32 %v143, %v185
  %v187 = vpop.f32.mrb[0].mxu0
  %v188 = vpop.f32.mrb[0].mxu0
  %v189 = vadd.f32 %v143, %v188
  %v190 = vpop.f32.mrb[0].mxu0
  %191 = vmatprep.mubr.bf16.mxu0 0
  %192 = vmatmul.mubr.bf16.gmra.mrb[0].mxu0 %v68
  %v193 = vpop.f32.mrb[0].mxu0
  %v194 = vadd.f32 %v143, %v193
  %v195 = vpop.f32.mrb[0].mxu0
  %v196 = vpop.f32.mrb[0].mxu0
  %v197 = vadd.f32 %v143, %v196
  %v198 = vpop.f32.mrb[0].mxu0
  %199 = vmatprep.mubr.bf16.mxu0 0
  %200 = vmatmul.mubr.bf16.gmra.mrb[0].mxu0 %v71
  %v201 = vpop.f32.mrb[0].mxu0
  %v202 = vadd.f32 %v143, %v201
  %v203 = vpop.f32.mrb[0].mxu0
  %v204 = vpop.f32.mrb[0].mxu0
  %v205 = vadd.f32 %v143, %v204
  %v206 = vpop.f32.mrb[0].mxu0
  %207 = vdwg.mxu0
  %v208 = vmax.f32 %v186, 0.0
  %v209 = vmax.f32 %v189, 0.0
  %v210 = vmax.f32 %v194, 0.0
  %v211 = vmax.f32 %v197, 0.0
  %v212 = vmax.f32 %v202, 0.0
  %v213 = vmax.f32 %v205, 0.0
  %v214 = vld [vmem:[%s5] sm:$0xf]
  %v215 = vld [vmem:[%s5 + $0x4] sm:$0xf]
  %v216 = vld [vmem:[%s6] sm:$0x1]
  %v218 = vlaneseq
  %v219 = vshrl.u32 %v218, 7
  %v220 = vsub.s32 0, %v219
  %v221 = vrot.slane %v216, %v220
  %v225 = vunpack.c.l.b16 %v214
  %v226 = vunpack.c.l.b16 %v215
  %v227 = vpack.c.b16 %v226, %v225
  %229 = vmatprep.subr.bf16.mxu0 0
  %230 = vmatpush1.bf16.msra.mxu0 %v227
  %231 = vmatprep.subr.bf16.mxu0 0
  %232 = vmatpush1.bf16.msra.mxu0 0
  %233 = vmatprep.subr.bf16.mxu0 0
  %234 = vmatpush1.bf16.msra.mxu0 0
  %235 = vmatprep.subr.bf16.mxu0 0
  %236 = vmatpush1.bf16.msra.mxu0 0
  %237 = vmatprep.subr.bf16.mxu0 0
  %238 = vmatpush1.bf16.msra.mxu0 0
  %239 = vmatprep.subr.bf16.mxu0 0
  %240 = vmatpush1.bf16.msra.mxu0 0
  %241 = vmatprep.subr.bf16.mxu0 0
  %242 = vmatpush1.bf16.msra.mxu0 0
  %243 = vmatprep.subr.bf16.mxu0 0
  %244 = vmatpush1.bf16.msra.mxu0 0
  %245 = vmatprep.subr.bf16.mxu0 0
  %246 = vmatpush1.bf16.msra.mxu0 0
  %247 = vmatprep.subr.bf16.mxu0 0
  %248 = vmatpush1.bf16.msra.mxu0 0
  %249 = vmatprep.subr.bf16.mxu0 0
  %250 = vmatpush1.bf16.msra.mxu0 0
  %251 = vmatprep.subr.bf16.mxu0 0
  %252 = vmatpush1.bf16.msra.mxu0 0
  %253 = vmatprep.subr.bf16.mxu0 0
  %254 = vmatpush1.bf16.msra.mxu0 0
  %255 = vmatprep.subr.bf16.mxu0 0
  %256 = vmatpush1.bf16.msra.mxu0 0
  %257 = vmatprep.subr.bf16.mxu0 0
  %258 = vmatpush1.bf16.msra.mxu0 0
  %259 = vmatprep.subr.bf16.mxu0 0
  %260 = vmatpush1.bf16.msra.mxu0 0
  %261 = vmatprep.mubr.bf16.mxu0 0
  %262 = vmatmul.mubr.bf16.gmra.mrb[0].mxu0 %v65
  %v263 = vpop.f32.mrb[0].mxu0
  %v264 = vadd.f32 %v221, %v263
  %v265 = vpop.f32.mrb[0].mxu0
  %v266 = vpop.f32.mrb[0].mxu0
  %v267 = vadd.f32 %v221, %v266
  %v268 = vpop.f32.mrb[0].mxu0
  %269 = vmatprep.mubr.bf16.mxu0 0
  %270 = vmatmul.mubr.bf16.gmra.mrb[0].mxu0 %v68
  %v271 = vpop.f32.mrb[0].mxu0
  %v272 = vadd.f32 %v221, %v271
  %v273 = vpop.f32.mrb[0].mxu0
  %v274 = vpop.f32.mrb[0].mxu0
  %v275 = vadd.f32 %v221, %v274
  %v276 = vpop.f32.mrb[0].mxu0
  %277 = vmatprep.mubr.bf16.mxu0 0
  %278 = vmatmul.mubr.bf16.gmra.mrb[0].mxu0 %v71
  %v279 = vpop.f32.mrb[0].mxu0
  %v280 = vadd.f32 %v221, %v279
  %v281 = vpop.f32.mrb[0].mxu0
  %v282 = vpop.f32.mrb[0].mxu0
  %v283 = vadd.f32 %v221, %v282
  %v284 = vpop.f32.mrb[0].mxu0
  %285 = vdwg.mxu0
  %v286 = vmax.f32 %v264, 0.0
  %v287 = vmax.f32 %v267, 0.0
  %v288 = vmax.f32 %v272, 0.0
  %v289 = vmax.f32 %v275, 0.0
  %v290 = vmax.f32 %v280, 0.0
  %v291 = vmax.f32 %v283, 0.0
  %v292 = vpack.c.bf16 %v287, %v286
  %v293 = vpack.c.bf16 %v289, %v288
  %v294 = vpack.c.bf16 %v291, %v290
  %v295 = vld [vmem:[%s7] sm:$0xf]
  %v296 = vld [vmem:[%s7 + $0x4] sm:$0xf]
  %v297 = vld [vmem:[%s7 + $0x8] sm:$0xf]
  %v298 = vld [vmem:[%s7 + $0xc] sm:$0xf]
  %v299 = vld [vmem:[%s8] sm:$0x1]
  %v301 = vlaneseq
  %v302 = vshrl.u32 %v301, 7
  %v303 = vsub.s32 0, %v302
  %v304 = vrot.slane %v299, %v303
  %v310 = vunpack.c.l.b16 %v295
  %v311 = vunpack.c.l.b16 %v296
  %v312 = vunpack.c.l.b16 %v297
  %v313 = vunpack.c.l.b16 %v298
  %v314 = vpack.c.b16 %v311, %v310
  %v315 = vpack.c.b16 %v313, %v312
  %vm318 = vcmask 261120
  %v320 = vsel %vm318, %v292, 0
  %v323 = vsel %vm318, %v293, 0
  %v326 = vsel %vm318, %v294, 0
  %328 = vmatprep.subr.bf16.mxu0 0
  %329 = vmatpush1.bf16.msra.mxu0 %v314
  %330 = vmatprep.subr.bf16.mxu0 0
  %331 = vmatpush1.bf16.msra.mxu0 %v315
  %332 = vmatprep.subr.bf16.mxu0 0
  %333 = vmatpush1.bf16.msra.mxu0 0
  %334 = vmatprep.subr.bf16.mxu0 0
  %335 = vmatpush1.bf16.msra.mxu0 0
  %336 = vmatprep.subr.bf16.mxu0 0
  %337 = vmatpush1.bf16.msra.mxu0 0
  %338 = vmatprep.subr.bf16.mxu0 0
  %339 = vmatpush1.bf16.msra.mxu0 0
  %340 = vmatprep.subr.bf16.mxu0 0
  %341 = vmatpush1.bf16.msra.mxu0 0
  %342 = vmatprep.subr.bf16.mxu0 0
  %343 = vmatpush1.bf16.msra.mxu0 0
  %344 = vmatprep.subr.bf16.mxu0 0
  %345 = vmatpush1.bf16.msra.mxu0 0
  %346 = vmatprep.subr.bf16.mxu0 0
  %347 = vmatpush1.bf16.msra.mxu0 0
  %348 = vmatprep.subr.bf16.mxu0 0
  %349 = vmatpush1.bf16.msra.mxu0 0
  %350 = vmatprep.subr.bf16.mxu0 0
  %351 = vmatpush1.bf16.msra.mxu0 0
  %352 = vmatprep.subr.bf16.mxu0 0
  %353 = vmatpush1.bf16.msra.mxu0 0
  %354 = vmatprep.subr.bf16.mxu0 0
  %355 = vmatpush1.bf16.msra.mxu0 0
  %356 = vmatprep.subr.bf16.mxu0 0
  %357 = vmatpush1.bf16.msra.mxu0 0
  %358 = vmatprep.subr.bf16.mxu0 0
  %359 = vmatpush1.bf16.msra.mxu0 0
  %360 = vmatprep.mubr.bf16.mxu0 0
  %361 = vmatmul.mubr.bf16.gmra.mrb[0].mxu0 %v320
  %v362 = vpop.f32.mrb[0].mxu0
  %v363 = vadd.f32 %v304, %v362
  %v364 = vpop.f32.mrb[0].mxu0
  %v365 = vpop.f32.mrb[0].mxu0
  %v366 = vadd.f32 %v304, %v365
  %v367 = vpop.f32.mrb[0].mxu0
  %368 = vmatprep.mubr.bf16.mxu0 0
  %369 = vmatmul.mubr.bf16.gmra.mrb[0].mxu0 %v323
  %v370 = vpop.f32.mrb[0].mxu0
  %v371 = vadd.f32 %v304, %v370
  %v372 = vpop.f32.mrb[0].mxu0
  %v373 = vpop.f32.mrb[0].mxu0
  %v374 = vadd.f32 %v304, %v373
  %v375 = vpop.f32.mrb[0].mxu0
  %376 = vmatprep.mubr.bf16.mxu0 0
  %377 = vmatmul.mubr.bf16.gmra.mrb[0].mxu0 %v326
  %v378 = vpop.f32.mrb[0].mxu0
  %v379 = vadd.f32 %v304, %v378
  %v380 = vpop.f32.mrb[0].mxu0
  %v381 = vpop.f32.mrb[0].mxu0
  %v382 = vadd.f32 %v304, %v381
  %v383 = vpop.f32.mrb[0].mxu0
  %384 = vdwg.mxu0
  %v385 = vmax.f32 %v363, 0.0
  %v386 = vmax.f32 %v366, 0.0
  %v387 = vmax.f32 %v371, 0.0
  %v388 = vmax.f32 %v374, 0.0
  %v389 = vmax.f32 %v379, 0.0
  %v390 = vmax.f32 %v382, 0.0
  %v391 = vadd.f32 %v385, %v286
  %v392 = vadd.f32 %v386, %v287
  %v393 = vadd.f32 %v387, %v288
  %v394 = vadd.f32 %v388, %v289
  %v395 = vadd.f32 %v389, %v290
  %v396 = vadd.f32 %v390, %v291
  %v397 = vpack.c.bf16 %v130, %v130
  %v398 = vpack.c.bf16 %v208, %v208
  %399 = vxpose.xlu0.c.b16.start [1/8] %v397, 128
  %400 = vxpose.xlu0.c.b16.cont [2/8] 0, 128
  %401 = vxpose.xlu0.c.b16.cont [3/8] 0, 128
  %402 = vxpose.xlu0.c.b16.cont [4/8] 0, 128
  %403 = vxpose.xlu0.c.b16.cont [5/8] 0, 128
  %404 = vxpose.xlu0.c.b16.cont [6/8] 0, 128
  %405 = vxpose.xlu0.c.b16.cont [7/8] 0, 128
  %406 = vxpose.xlu0.c.b16.end [8/8] 0, 128
  %v407 = vpop.trf.xlu0
  %v408 = vpop.trf.xlu0
  %v409 = vpop.trf.xlu0
  %v410 = vpop.trf.xlu0
  %v411 = vpop.trf.xlu0
  %v412 = vpop.trf.xlu0
  %v413 = vpop.trf.xlu0
  %v414 = vpop.trf.xlu0
  %vm415 = vcmask 64512
  %v417 = vsel %vm415, %v407, 0
  %v420 = vsel %vm415, %v408, 0
  %vm422 = vcmask 1043456
  %v424 = vsel %vm422, %v398, 0
  %426 = vmatprep.subr.bf16.mxu0 0
  %427 = vmatpush1.bf16.msra.mxu0 %v424
  %428 = vmatprep.subr.bf16.mxu0 0
  %429 = vmatpush1.bf16.msra.mxu0 0
  %430 = vmatprep.subr.bf16.mxu0 0
  %431 = vmatpush1.bf16.msra.mxu0 0
  %432 = vmatprep.subr.bf16.mxu0 0
  %433 = vmatpush1.bf16.msra.mxu0 0
  %434 = vmatprep.subr.bf16.mxu0 0
  %435 = vmatpush1.bf16.msra.mxu0 0
  %436 = vmatprep.subr.bf16.mxu0 0
  %437 = vmatpush1.bf16.msra.mxu0 0
  %438 = vmatprep.subr.bf16.mxu0 0
  %439 = vmatpush1.bf16.msra.mxu0 0
  %440 = vmatprep.subr.bf16.mxu0 0
  %441 = vmatpush1.bf16.msra.mxu0 0
  %442 = vmatprep.subr.bf16.mxu0 0
  %443 = vmatpush1.bf16.msra.mxu0 0
  %444 = vmatprep.subr.bf16.mxu0 0
  %445 = vmatpush1.bf16.msra.mxu0 0
  %446 = vmatprep.subr.bf16.mxu0 0
  %447 = vmatpush1.bf16.msra.mxu0 0
  %448 = vmatprep.subr.bf16.mxu0 0
  %449 = vmatpush1.bf16.msra.mxu0 0
  %450 = vmatprep.subr.bf16.mxu0 0
  %451 = vmatpush1.bf16.msra.mxu0 0
  %452 = vmatprep.subr.bf16.mxu0 0
  %453 = vmatpush1.bf16.msra.mxu0 0
  %454 = vmatprep.subr.bf16.mxu0 0
  %455 = vmatpush1.bf16.msra.mxu0 0
  %456 = vmatprep.subr.bf16.mxu0 0
  %457 = vmatpush1.bf16.msra.mxu0 0
  %458 = vmatprep.mubr.bf16.mxu0 0
  %459 = vmatmul.mubr.bf16.gmra.mrb[0].mxu0 %v417
  %v460 = vpop.f32.mrb[0].mxu0
  %v461 = vadd.f32 0.0, %v460
  %v462 = vpop.f32.mrb[0].mxu0
  %v463 = vpop.f32.mrb[0].mxu0
  %v464 = vadd.f32 0.0, %v463
  %v465 = vpop.f32.mrb[0].mxu0
  %466 = vmatprep.mubr.bf16.mxu0 0
  %467 = vmatmul.mubr.bf16.gmra.mrb[0].mxu0 %v420
  %v468 = vpop.f32.mrb[0].mxu0
  %v469 = vadd.f32 0.0, %v468
  %v470 = vpop.f32.mrb[0].mxu0
  %v471 = vpop.f32.mrb[0].mxu0
  %v472 = vadd.f32 0.0, %v471
  %v473 = vpop.f32.mrb[0].mxu0
  %474 = vdwg.mxu0
  %v475 = vsel %vm318, %v461, -inf
  %476 = vmax.xlane.f32.xlu0 %v475
  %v477 = vpop.xlane.xlu0 %476
  %v478 = vsel %vm318, %v464, -inf
  %479 = vmax.xlane.f32.xlu0 %v478
  %v480 = vpop.xlane.xlu0 %479
  %v481 = vsel %vm318, %v469, -inf
  %482 = vmax.xlane.f32.xlu0 %v481
  %v483 = vpop.xlane.xlu0 %482
  %v484 = vsel %vm318, %v472, -inf
  %485 = vmax.xlane.f32.xlu0 %v484
  %v486 = vpop.xlane.xlu0 %485
  %v487 = vsub.f32 %v461, %v477
  %v488 = vsub.f32 %v464, %v480
  %v489 = vsub.f32 %v469, %v483
  %v490 = vsub.f32 %v472, %v486
  %v491 = vmul.f32 %v487, 1.442695
  %v492 = vpow.pop %v491
  %v493 = vmul.f32 %v488, 1.442695
  %v494 = vpow.pop %v493
  %v495 = vmul.f32 %v489, 1.442695
  %v496 = vpow.pop %v495
  %v497 = vmul.f32 %v490, 1.442695
  %v498 = vpow.pop %v497
  %v499 = vsel %vm318, %v492, 0.0
  %500 = vadd.xlane.f32.xlu0 %v499
  %v501 = vpop.xlane.xlu0 %500
  %v502 = vsel %vm318, %v494, 0.0
  %503 = vadd.xlane.f32.xlu0 %v502
  %v504 = vpop.xlane.xlu0 %503
  %v505 = vsel %vm318, %v496, 0.0
  %506 = vadd.xlane.f32.xlu0 %v505
  %v507 = vpop.xlane.xlu0 %506
  %v508 = vsel %vm318, %v498, 0.0
  %509 = vadd.xlane.f32.xlu0 %v508
  %v510 = vpop.xlane.xlu0 %509
  %v511 = vrcp.pop %v501
  %v512 = vrcp.pop %v504
  %v513 = vrcp.pop %v507
  %v514 = vrcp.pop %v510
  %v515 = vmul.f32 %v492, %v511
  %v516 = vmul.f32 %v494, %v512
  %v517 = vmul.f32 %v496, %v513
  %v518 = vmul.f32 %v498, %v514
  %v519 = vpack.c.bf16 %v391, %v391
  %v520 = vpack.c.bf16 %v516, %v515
  %v521 = vpack.c.bf16 %v518, %v517
  %v523 = vsel %vm318, %v519, 0
  %525 = vmatprep.subr.bf16.mxu0 0
  %526 = vmatpush1.bf16.msra.mxu0 %v520
  %527 = vmatprep.subr.bf16.mxu0 0
  %528 = vmatpush1.bf16.msra.mxu0 %v521
  %529 = vmatprep.subr.bf16.mxu0 0
  %530 = vmatpush1.bf16.msra.mxu0 0
  %531 = vmatprep.subr.bf16.mxu0 0
  %532 = vmatpush1.bf16.msra.mxu0 0
  %533 = vmatprep.subr.bf16.mxu0 0
  %534 = vmatpush1.bf16.msra.mxu0 0
  %535 = vmatprep.subr.bf16.mxu0 0
  %536 = vmatpush1.bf16.msra.mxu0 0
  %537 = vmatprep.subr.bf16.mxu0 0
  %538 = vmatpush1.bf16.msra.mxu0 0
  %539 = vmatprep.subr.bf16.mxu0 0
  %540 = vmatpush1.bf16.msra.mxu0 0
  %541 = vmatprep.subr.bf16.mxu0 0
  %542 = vmatpush1.bf16.msra.mxu0 0
  %543 = vmatprep.subr.bf16.mxu0 0
  %544 = vmatpush1.bf16.msra.mxu0 0
  %545 = vmatprep.subr.bf16.mxu0 0
  %546 = vmatpush1.bf16.msra.mxu0 0
  %547 = vmatprep.subr.bf16.mxu0 0
  %548 = vmatpush1.bf16.msra.mxu0 0
  %549 = vmatprep.subr.bf16.mxu0 0
  %550 = vmatpush1.bf16.msra.mxu0 0
  %551 = vmatprep.subr.bf16.mxu0 0
  %552 = vmatpush1.bf16.msra.mxu0 0
  %553 = vmatprep.subr.bf16.mxu0 0
  %554 = vmatpush1.bf16.msra.mxu0 0
  %555 = vmatprep.subr.bf16.mxu0 0
  %556 = vmatpush1.bf16.msra.mxu0 0
  %557 = vmatprep.mubr.bf16.mxu0 0
  %558 = vmatmul.mubr.bf16.gmra.mrb[0].mxu0 %v523
  %v559 = vpop.f32.mrb[0].mxu0
  %v560 = vadd.f32 0.0, %v559
  %v561 = vpop.f32.mrb[0].mxu0
  %v562 = vpop.f32.mrb[0].mxu0
  %v563 = vpop.f32.mrb[0].mxu0
  %564 = vdwg.mxu0
  %v565 = vpack.c.bf16 %v131, %v131
  %v566 = vpack.c.bf16 %v209, %v209
  %567 = vxpose.xlu0.c.b16.start [1/8] %v565, 128
  %568 = vxpose.xlu0.c.b16.cont [2/8] 0, 128
  %569 = vxpose.xlu0.c.b16.cont [3/8] 0, 128
  %570 = vxpose.xlu0.c.b16.cont [4/8] 0, 128
  %571 = vxpose.xlu0.c.b16.cont [5/8] 0, 128
  %572 = vxpose.xlu0.c.b16.cont [6/8] 0, 128
  %573 = vxpose.xlu0.c.b16.cont [7/8] 0, 128
  %574 = vxpose.xlu0.c.b16.end [8/8] 0, 128
  %v575 = vpop.trf.xlu0
  %v576 = vpop.trf.xlu0
  %v577 = vpop.trf.xlu0
  %v578 = vpop.trf.xlu0
  %v579 = vpop.trf.xlu0
  %v580 = vpop.trf.xlu0
  %v581 = vpop.trf.xlu0
  %v582 = vpop.trf.xlu0
  %v584 = vsel %vm415, %v575, 0
  %v587 = vsel %vm415, %v576, 0
  %v590 = vsel %vm422, %v566, 0
  %592 = vmatprep.subr.bf16.mxu0 0
  %593 = vmatpush1.bf16.msra.mxu0 %v590
  %594 = vmatprep.subr.bf16.mxu0 0
  %595 = vmatpush1.bf16.msra.mxu0 0
  %596 = vmatprep.subr.bf16.mxu0 0
  %597 = vmatpush1.bf16.msra.mxu0 0
  %598 = vmatprep.subr.bf16.mxu0 0
  %599 = vmatpush1.bf16.msra.mxu0 0
  %600 = vmatprep.subr.bf16.mxu0 0
  %601 = vmatpush1.bf16.msra.mxu0 0
  %602 = vmatprep.subr.bf16.mxu0 0
  %603 = vmatpush1.bf16.msra.mxu0 0
  %604 = vmatprep.subr.bf16.mxu0 0
  %605 = vmatpush1.bf16.msra.mxu0 0
  %606 = vmatprep.subr.bf16.mxu0 0
  %607 = vmatpush1.bf16.msra.mxu0 0
  %608 = vmatprep.subr.bf16.mxu0 0
  %609 = vmatpush1.bf16.msra.mxu0 0
  %610 = vmatprep.subr.bf16.mxu0 0
  %611 = vmatpush1.bf16.msra.mxu0 0
  %612 = vmatprep.subr.bf16.mxu0 0
  %613 = vmatpush1.bf16.msra.mxu0 0
  %614 = vmatprep.subr.bf16.mxu0 0
  %615 = vmatpush1.bf16.msra.mxu0 0
  %616 = vmatprep.subr.bf16.mxu0 0
  %617 = vmatpush1.bf16.msra.mxu0 0
  %618 = vmatprep.subr.bf16.mxu0 0
  %619 = vmatpush1.bf16.msra.mxu0 0
  %620 = vmatprep.subr.bf16.mxu0 0
  %621 = vmatpush1.bf16.msra.mxu0 0
  %622 = vmatprep.subr.bf16.mxu0 0
  %623 = vmatpush1.bf16.msra.mxu0 0
  %624 = vmatprep.mubr.bf16.mxu0 0
  %625 = vmatmul.mubr.bf16.gmra.mrb[0].mxu0 %v584
  %v626 = vpop.f32.mrb[0].mxu0
  %v627 = vadd.f32 0.0, %v626
  %v628 = vpop.f32.mrb[0].mxu0
  %v629 = vpop.f32.mrb[0].mxu0
  %v630 = vadd.f32 0.0, %v629
  %v631 = vpop.f32.mrb[0].mxu0
  %632 = vmatprep.mubr.bf16.mxu0 0
  %633 = vmatmul.mubr.bf16.gmra.mrb[0].mxu0 %v587
  %v634 = vpop.f32.mrb[0].mxu0
  %v635 = vadd.f32 0.0, %v634
  %v636 = vpop.f32.mrb[0].mxu0
  %v637 = vpop.f32.mrb[0].mxu0
  %v638 = vadd.f32 0.0, %v637
  %v639 = vpop.f32.mrb[0].mxu0
  %640 = vdwg.mxu0
  %v641 = vsel %vm318, %v627, -inf
  %642 = vmax.xlane.f32.xlu0 %v641
  %v643 = vpop.xlane.xlu0 %642
  %v644 = vsel %vm318, %v630, -inf
  %645 = vmax.xlane.f32.xlu0 %v644
  %v646 = vpop.xlane.xlu0 %645
  %v647 = vsel %vm318, %v635, -inf
  %648 = vmax.xlane.f32.xlu0 %v647
  %v649 = vpop.xlane.xlu0 %648
  %v650 = vsel %vm318, %v638, -inf
  %651 = vmax.xlane.f32.xlu0 %v650
  %v652 = vpop.xlane.xlu0 %651
  %v653 = vsub.f32 %v627, %v643
  %v654 = vsub.f32 %v630, %v646
  %v655 = vsub.f32 %v635, %v649
  %v656 = vsub.f32 %v638, %v652
  %v657 = vmul.f32 %v653, 1.442695
  %v658 = vpow.pop %v657
  %v659 = vmul.f32 %v654, 1.442695
  %v660 = vpow.pop %v659
  %v661 = vmul.f32 %v655, 1.442695
  %v662 = vpow.pop %v661
  %v663 = vmul.f32 %v656, 1.442695
  %v664 = vpow.pop %v663
  %v665 = vsel %vm318, %v658, 0.0
  %666 = vadd.xlane.f32.xlu0 %v665
  %v667 = vpop.xlane.xlu0 %666
  %v668 = vsel %vm318, %v660, 0.0
  %669 = vadd.xlane.f32.xlu0 %v668
  %v670 = vpop.xlane.xlu0 %669
  %v671 = vsel %vm318, %v662, 0.0
  %672 = vadd.xlane.f32.xlu0 %v671
  %v673 = vpop.xlane.xlu0 %672
  %v674 = vsel %vm318, %v664, 0.0
  %675 = vadd.xlane.f32.xlu0 %v674
  %v676 = vpop.xlane.xlu0 %675
  %v677 = vrcp.pop %v667
  %v678 = vrcp.pop %v670
  %v679 = vrcp.pop %v673
  %v680 = vrcp.pop %v676
  %v681 = vmul.f32 %v658, %v677
  %v682 = vmul.f32 %v660, %v678
  %v683 = vmul.f32 %v662, %v679
  %v684 = vmul.f32 %v664, %v680
  %v685 = vpack.c.bf16 %v392, %v392
  %v686 = vpack.c.bf16 %v682, %v681
  %v687 = vpack.c.bf16 %v684, %v683
  %v689 = vsel %vm318, %v685, 0
  %691 = vmatprep.subr.bf16.mxu0 0
  %692 = vmatpush1.bf16.msra.mxu0 %v686
  %693 = vmatprep.subr.bf16.mxu0 0
  %694 = vmatpush1.bf16.msra.mxu0 %v687
  %695 = vmatprep.subr.bf16.mxu0 0
  %696 = vmatpush1.bf16.msra.mxu0 0
  %697 = vmatprep.subr.bf16.mxu0 0
  %698 = vmatpush1.bf16.msra.mxu0 0
  %699 = vmatprep.subr.bf16.mxu0 0
  %700 = vmatpush1.bf16.msra.mxu0 0
  %701 = vmatprep.subr.bf16.mxu0 0
  %702 = vmatpush1.bf16.msra.mxu0 0
  %703 = vmatprep.subr.bf16.mxu0 0
  %704 = vmatpush1.bf16.msra.mxu0 0
  %705 = vmatprep.subr.bf16.mxu0 0
  %706 = vmatpush1.bf16.msra.mxu0 0
  %707 = vmatprep.subr.bf16.mxu0 0
  %708 = vmatpush1.bf16.msra.mxu0 0
  %709 = vmatprep.subr.bf16.mxu0 0
  %710 = vmatpush1.bf16.msra.mxu0 0
  %711 = vmatprep.subr.bf16.mxu0 0
  %712 = vmatpush1.bf16.msra.mxu0 0
  %713 = vmatprep.subr.bf16.mxu0 0
  %714 = vmatpush1.bf16.msra.mxu0 0
  %715 = vmatprep.subr.bf16.mxu0 0
  %716 = vmatpush1.bf16.msra.mxu0 0
  %717 = vmatprep.subr.bf16.mxu0 0
  %718 = vmatpush1.bf16.msra.mxu0 0
  %719 = vmatprep.subr.bf16.mxu0 0
  %720 = vmatpush1.bf16.msra.mxu0 0
  %721 = vmatprep.subr.bf16.mxu0 0
  %722 = vmatpush1.bf16.msra.mxu0 0
  %723 = vmatprep.mubr.bf16.mxu0 0
  %724 = vmatmul.mubr.bf16.gmra.mrb[0].mxu0 %v689
  %v725 = vpop.f32.mrb[0].mxu0
  %v726 = vadd.f32 0.0, %v725
  %v727 = vpop.f32.mrb[0].mxu0
  %v728 = vpop.f32.mrb[0].mxu0
  %v729 = vpop.f32.mrb[0].mxu0
  %730 = vdwg.mxu0
  %v731 = vpack.c.bf16 %v132, %v132
  %v732 = vpack.c.bf16 %v210, %v210
  %733 = vxpose.xlu0.c.b16.start [1/8] %v731, 128
  %734 = vxpose.xlu0.c.b16.cont [2/8] 0, 128
  %735 = vxpose.xlu0.c.b16.cont [3/8] 0, 128
  %736 = vxpose.xlu0.c.b16.cont [4/8] 0, 128
  %737 = vxpose.xlu0.c.b16.cont [5/8] 0, 128
  %738 = vxpose.xlu0.c.b16.cont [6/8] 0, 128
  %739 = vxpose.xlu0.c.b16.cont [7/8] 0, 128
  %740 = vxpose.xlu0.c.b16.end [8/8] 0, 128
  %v741 = vpop.trf.xlu0
  %v742 = vpop.trf.xlu0
  %v743 = vpop.trf.xlu0
  %v744 = vpop.trf.xlu0
  %v745 = vpop.trf.xlu0
  %v746 = vpop.trf.xlu0
  %v747 = vpop.trf.xlu0
  %v748 = vpop.trf.xlu0
  %v750 = vsel %vm415, %v741, 0
  %v753 = vsel %vm415, %v742, 0
  %v756 = vsel %vm422, %v732, 0
  %758 = vmatprep.subr.bf16.mxu0 0
  %759 = vmatpush1.bf16.msra.mxu0 %v756
  %760 = vmatprep.subr.bf16.mxu0 0
  %761 = vmatpush1.bf16.msra.mxu0 0
  %762 = vmatprep.subr.bf16.mxu0 0
  %763 = vmatpush1.bf16.msra.mxu0 0
  %764 = vmatprep.subr.bf16.mxu0 0
  %765 = vmatpush1.bf16.msra.mxu0 0
  %766 = vmatprep.subr.bf16.mxu0 0
  %767 = vmatpush1.bf16.msra.mxu0 0
  %768 = vmatprep.subr.bf16.mxu0 0
  %769 = vmatpush1.bf16.msra.mxu0 0
  %770 = vmatprep.subr.bf16.mxu0 0
  %771 = vmatpush1.bf16.msra.mxu0 0
  %772 = vmatprep.subr.bf16.mxu0 0
  %773 = vmatpush1.bf16.msra.mxu0 0
  %774 = vmatprep.subr.bf16.mxu0 0
  %775 = vmatpush1.bf16.msra.mxu0 0
  %776 = vmatprep.subr.bf16.mxu0 0
  %777 = vmatpush1.bf16.msra.mxu0 0
  %778 = vmatprep.subr.bf16.mxu0 0
  %779 = vmatpush1.bf16.msra.mxu0 0
  %780 = vmatprep.subr.bf16.mxu0 0
  %781 = vmatpush1.bf16.msra.mxu0 0
  %782 = vmatprep.subr.bf16.mxu0 0
  %783 = vmatpush1.bf16.msra.mxu0 0
  %784 = vmatprep.subr.bf16.mxu0 0
  %785 = vmatpush1.bf16.msra.mxu0 0
  %786 = vmatprep.subr.bf16.mxu0 0
  %787 = vmatpush1.bf16.msra.mxu0 0
  %788 = vmatprep.subr.bf16.mxu0 0
  %789 = vmatpush1.bf16.msra.mxu0 0
  %790 = vmatprep.mubr.bf16.mxu0 0
  %791 = vmatmul.mubr.bf16.gmra.mrb[0].mxu0 %v750
  %v792 = vpop.f32.mrb[0].mxu0
  %v793 = vadd.f32 0.0, %v792
  %v794 = vpop.f32.mrb[0].mxu0
  %v795 = vpop.f32.mrb[0].mxu0
  %v796 = vadd.f32 0.0, %v795
  %v797 = vpop.f32.mrb[0].mxu0
  %798 = vmatprep.mubr.bf16.mxu0 0
  %799 = vmatmul.mubr.bf16.gmra.mrb[0].mxu0 %v753
  %v800 = vpop.f32.mrb[0].mxu0
  %v801 = vadd.f32 0.0, %v800
  %v802 = vpop.f32.mrb[0].mxu0
  %v803 = vpop.f32.mrb[0].mxu0
  %v804 = vadd.f32 0.0, %v803
  %v805 = vpop.f32.mrb[0].mxu0
  %806 = vdwg.mxu0
  %v807 = vsel %vm318, %v793, -inf
  %808 = vmax.xlane.f32.xlu0 %v807
  %v809 = vpop.xlane.xlu0 %808
  %v810 = vsel %vm318, %v796, -inf
  %811 = vmax.xlane.f32.xlu0 %v810
  %v812 = vpop.xlane.xlu0 %811
  %v813 = vsel %vm318, %v801, -inf
  %814 = vmax.xlane.f32.xlu0 %v813
  %v815 = vpop.xlane.xlu0 %814
  %v816 = vsel %vm318, %v804, -inf
  %817 = vmax.xlane.f32.xlu0 %v816
  %v818 = vpop.xlane.xlu0 %817
  %v819 = vsub.f32 %v793, %v809
  %v820 = vsub.f32 %v796, %v812
  %v821 = vsub.f32 %v801, %v815
  %v822 = vsub.f32 %v804, %v818
  %v823 = vmul.f32 %v819, 1.442695
  %v824 = vpow.pop %v823
  %v825 = vmul.f32 %v820, 1.442695
  %v826 = vpow.pop %v825
  %v827 = vmul.f32 %v821, 1.442695
  %v828 = vpow.pop %v827
  %v829 = vmul.f32 %v822, 1.442695
  %v830 = vpow.pop %v829
  %v831 = vsel %vm318, %v824, 0.0
  %832 = vadd.xlane.f32.xlu0 %v831
  %v833 = vpop.xlane.xlu0 %832
  %v834 = vsel %vm318, %v826, 0.0
  %835 = vadd.xlane.f32.xlu0 %v834
  %v836 = vpop.xlane.xlu0 %835
  %v837 = vsel %vm318, %v828, 0.0
  %838 = vadd.xlane.f32.xlu0 %v837
  %v839 = vpop.xlane.xlu0 %838
  %v840 = vsel %vm318, %v830, 0.0
  %841 = vadd.xlane.f32.xlu0 %v840
  %v842 = vpop.xlane.xlu0 %841
  %v843 = vrcp.pop %v833
  %v844 = vrcp.pop %v836
  %v845 = vrcp.pop %v839
  %v846 = vrcp.pop %v842
  %v847 = vmul.f32 %v824, %v843
  %v848 = vmul.f32 %v826, %v844
  %v849 = vmul.f32 %v828, %v845
  %v850 = vmul.f32 %v830, %v846
  %v851 = vpack.c.bf16 %v393, %v393
  %v852 = vpack.c.bf16 %v848, %v847
  %v853 = vpack.c.bf16 %v850, %v849
  %v855 = vsel %vm318, %v851, 0
  %857 = vmatprep.subr.bf16.mxu0 0
  %858 = vmatpush1.bf16.msra.mxu0 %v852
  %859 = vmatprep.subr.bf16.mxu0 0
  %860 = vmatpush1.bf16.msra.mxu0 %v853
  %861 = vmatprep.subr.bf16.mxu0 0
  %862 = vmatpush1.bf16.msra.mxu0 0
  %863 = vmatprep.subr.bf16.mxu0 0
  %864 = vmatpush1.bf16.msra.mxu0 0
  %865 = vmatprep.subr.bf16.mxu0 0
  %866 = vmatpush1.bf16.msra.mxu0 0
  %867 = vmatprep.subr.bf16.mxu0 0
  %868 = vmatpush1.bf16.msra.mxu0 0
  %869 = vmatprep.subr.bf16.mxu0 0
  %870 = vmatpush1.bf16.msra.mxu0 0
  %871 = vmatprep.subr.bf16.mxu0 0
  %872 = vmatpush1.bf16.msra.mxu0 0
  %873 = vmatprep.subr.bf16.mxu0 0
  %874 = vmatpush1.bf16.msra.mxu0 0
  %875 = vmatprep.subr.bf16.mxu0 0
  %876 = vmatpush1.bf16.msra.mxu0 0
  %877 = vmatprep.subr.bf16.mxu0 0
  %878 = vmatpush1.bf16.msra.mxu0 0
  %879 = vmatprep.subr.bf16.mxu0 0
  %880 = vmatpush1.bf16.msra.mxu0 0
  %881 = vmatprep.subr.bf16.mxu0 0
  %882 = vmatpush1.bf16.msra.mxu0 0
  %883 = vmatprep.subr.bf16.mxu0 0
  %884 = vmatpush1.bf16.msra.mxu0 0
  %885 = vmatprep.subr.bf16.mxu0 0
  %886 = vmatpush1.bf16.msra.mxu0 0
  %887 = vmatprep.subr.bf16.mxu0 0
  %888 = vmatpush1.bf16.msra.mxu0 0
  %889 = vmatprep.mubr.bf16.mxu0 0
  %890 = vmatmul.mubr.bf16.gmra.mrb[0].mxu0 %v855
  %v891 = vpop.f32.mrb[0].mxu0
  %v892 = vadd.f32 0.0, %v891
  %v893 = vpop.f32.mrb[0].mxu0
  %v894 = vpop.f32.mrb[0].mxu0
  %v895 = vpop.f32.mrb[0].mxu0
  %896 = vdwg.mxu0
  %v897 = vpack.c.bf16 %v133, %v133
  %v898 = vpack.c.bf16 %v211, %v211
  %899 = vxpose.xlu0.c.b16.start [1/8] %v897, 128
  %900 = vxpose.xlu0.c.b16.cont [2/8] 0, 128
  %901 = vxpose.xlu0.c.b16.cont [3/8] 0, 128
  %902 = vxpose.xlu0.c.b16.cont [4/8] 0, 128
  %903 = vxpose.xlu0.c.b16.cont [5/8] 0, 128
  %904 = vxpose.xlu0.c.b16.cont [6/8] 0, 128
  %905 = vxpose.xlu0.c.b16.cont [7/8] 0, 128
  %906 = vxpose.xlu0.c.b16.end [8/8] 0, 128
  %v907 = vpop.trf.xlu0
  %v908 = vpop.trf.xlu0
  %v909 = vpop.trf.xlu0
  %v910 = vpop.trf.xlu0
  %v911 = vpop.trf.xlu0
  %v912 = vpop.trf.xlu0
  %v913 = vpop.trf.xlu0
  %v914 = vpop.trf.xlu0
  %v916 = vsel %vm415, %v907, 0
  %v919 = vsel %vm415, %v908, 0
  %v922 = vsel %vm422, %v898, 0
  %924 = vmatprep.subr.bf16.mxu0 0
  %925 = vmatpush1.bf16.msra.mxu0 %v922
  %926 = vmatprep.subr.bf16.mxu0 0
  %927 = vmatpush1.bf16.msra.mxu0 0
  %928 = vmatprep.subr.bf16.mxu0 0
  %929 = vmatpush1.bf16.msra.mxu0 0
  %930 = vmatprep.subr.bf16.mxu0 0
  %931 = vmatpush1.bf16.msra.mxu0 0
  %932 = vmatprep.subr.bf16.mxu0 0
  %933 = vmatpush1.bf16.msra.mxu0 0
  %934 = vmatprep.subr.bf16.mxu0 0
  %935 = vmatpush1.bf16.msra.mxu0 0
  %936 = vmatprep.subr.bf16.mxu0 0
  %937 = vmatpush1.bf16.msra.mxu0 0
  %938 = vmatprep.subr.bf16.mxu0 0
  %939 = vmatpush1.bf16.msra.mxu0 0
  %940 = vmatprep.subr.bf16.mxu0 0
  %941 = vmatpush1.bf16.msra.mxu0 0
  %942 = vmatprep.subr.bf16.mxu0 0
  %943 = vmatpush1.bf16.msra.mxu0 0
  %944 = vmatprep.subr.bf16.mxu0 0
  %945 = vmatpush1.bf16.msra.mxu0 0
  %946 = vmatprep.subr.bf16.mxu0 0
  %947 = vmatpush1.bf16.msra.mxu0 0
  %948 = vmatprep.subr.bf16.mxu0 0
  %949 = vmatpush1.bf16.msra.mxu0 0
  %950 = vmatprep.subr.bf16.mxu0 0
  %951 = vmatpush1.bf16.msra.mxu0 0
  %952 = vmatprep.subr.bf16.mxu0 0
  %953 = vmatpush1.bf16.msra.mxu0 0
  %954 = vmatprep.subr.bf16.mxu0 0
  %955 = vmatpush1.bf16.msra.mxu0 0
  %956 = vmatprep.mubr.bf16.mxu0 0
  %957 = vmatmul.mubr.bf16.gmra.mrb[0].mxu0 %v916
  %v958 = vpop.f32.mrb[0].mxu0
  %v959 = vadd.f32 0.0, %v958
  %v960 = vpop.f32.mrb[0].mxu0
  %v961 = vpop.f32.mrb[0].mxu0
  %v962 = vadd.f32 0.0, %v961
  %v963 = vpop.f32.mrb[0].mxu0
  %964 = vmatprep.mubr.bf16.mxu0 0
  %965 = vmatmul.mubr.bf16.gmra.mrb[0].mxu0 %v919
  %v966 = vpop.f32.mrb[0].mxu0
  %v967 = vadd.f32 0.0, %v966
  %v968 = vpop.f32.mrb[0].mxu0
  %v969 = vpop.f32.mrb[0].mxu0
  %v970 = vadd.f32 0.0, %v969
  %v971 = vpop.f32.mrb[0].mxu0
  %972 = vdwg.mxu0
  %v973 = vsel %vm318, %v959, -inf
  %974 = vmax.xlane.f32.xlu0 %v973
  %v975 = vpop.xlane.xlu0 %974
  %v976 = vsel %vm318, %v962, -inf
  %977 = vmax.xlane.f32.xlu0 %v976
  %v978 = vpop.xlane.xlu0 %977
  %v979 = vsel %vm318, %v967, -inf
  %980 = vmax.xlane.f32.xlu0 %v979
  %v981 = vpop.xlane.xlu0 %980
  %v982 = vsel %vm318, %v970, -inf
  %983 = vmax.xlane.f32.xlu0 %v982
  %v984 = vpop.xlane.xlu0 %983
  %v985 = vsub.f32 %v959, %v975
  %v986 = vsub.f32 %v962, %v978
  %v987 = vsub.f32 %v967, %v981
  %v988 = vsub.f32 %v970, %v984
  %v989 = vmul.f32 %v985, 1.442695
  %v990 = vpow.pop %v989
  %v991 = vmul.f32 %v986, 1.442695
  %v992 = vpow.pop %v991
  %v993 = vmul.f32 %v987, 1.442695
  %v994 = vpow.pop %v993
  %v995 = vmul.f32 %v988, 1.442695
  %v996 = vpow.pop %v995
  %v997 = vsel %vm318, %v990, 0.0
  %998 = vadd.xlane.f32.xlu0 %v997
  %v999 = vpop.xlane.xlu0 %998
  %v1000 = vsel %vm318, %v992, 0.0
  %1001 = vadd.xlane.f32.xlu0 %v1000
  %v1002 = vpop.xlane.xlu0 %1001
  %v1003 = vsel %vm318, %v994, 0.0
  %1004 = vadd.xlane.f32.xlu0 %v1003
  %v1005 = vpop.xlane.xlu0 %1004
  %v1006 = vsel %vm318, %v996, 0.0
  %1007 = vadd.xlane.f32.xlu0 %v1006
  %v1008 = vpop.xlane.xlu0 %1007
  %v1009 = vrcp.pop %v999
  %v1010 = vrcp.pop %v1002
  %v1011 = vrcp.pop %v1005
  %v1012 = vrcp.pop %v1008
  %v1013 = vmul.f32 %v990, %v1009
  %v1014 = vmul.f32 %v992, %v1010
  %v1015 = vmul.f32 %v994, %v1011
  %v1016 = vmul.f32 %v996, %v1012
  %v1017 = vpack.c.bf16 %v394, %v394
  %v1018 = vpack.c.bf16 %v1014, %v1013
  %v1019 = vpack.c.bf16 %v1016, %v1015
  %v1021 = vsel %vm318, %v1017, 0
  %1023 = vmatprep.subr.bf16.mxu0 0
  %1024 = vmatpush1.bf16.msra.mxu0 %v1018
  %1025 = vmatprep.subr.bf16.mxu0 0
  %1026 = vmatpush1.bf16.msra.mxu0 %v1019
  %1027 = vmatprep.subr.bf16.mxu0 0
  %1028 = vmatpush1.bf16.msra.mxu0 0
  %1029 = vmatprep.subr.bf16.mxu0 0
  %1030 = vmatpush1.bf16.msra.mxu0 0
  %1031 = vmatprep.subr.bf16.mxu0 0
  %1032 = vmatpush1.bf16.msra.mxu0 0
  %1033 = vmatprep.subr.bf16.mxu0 0
  %1034 = vmatpush1.bf16.msra.mxu0 0
  %1035 = vmatprep.subr.bf16.mxu0 0
  %1036 = vmatpush1.bf16.msra.mxu0 0
  %1037 = vmatprep.subr.bf16.mxu0 0
  %1038 = vmatpush1.bf16.msra.mxu0 0
  %1039 = vmatprep.subr.bf16.mxu0 0
  %1040 = vmatpush1.bf16.msra.mxu0 0
  %1041 = vmatprep.subr.bf16.mxu0 0
  %1042 = vmatpush1.bf16.msra.mxu0 0
  %1043 = vmatprep.subr.bf16.mxu0 0
  %1044 = vmatpush1.bf16.msra.mxu0 0
  %1045 = vmatprep.subr.bf16.mxu0 0
  %1046 = vmatpush1.bf16.msra.mxu0 0
  %1047 = vmatprep.subr.bf16.mxu0 0
  %1048 = vmatpush1.bf16.msra.mxu0 0
  %1049 = vmatprep.subr.bf16.mxu0 0
  %1050 = vmatpush1.bf16.msra.mxu0 0
  %1051 = vmatprep.subr.bf16.mxu0 0
  %1052 = vmatpush1.bf16.msra.mxu0 0
  %1053 = vmatprep.subr.bf16.mxu0 0
  %1054 = vmatpush1.bf16.msra.mxu0 0
  %1055 = vmatprep.mubr.bf16.mxu0 0
  %1056 = vmatmul.mubr.bf16.gmra.mrb[0].mxu0 %v1021
  %v1057 = vpop.f32.mrb[0].mxu0
  %v1058 = vadd.f32 0.0, %v1057
  %v1059 = vpop.f32.mrb[0].mxu0
  %v1060 = vpop.f32.mrb[0].mxu0
  %v1061 = vpop.f32.mrb[0].mxu0
  %1062 = vdwg.mxu0
  %v1063 = vpack.c.bf16 %v134, %v134
  %v1064 = vpack.c.bf16 %v212, %v212
  %1065 = vxpose.xlu0.c.b16.start [1/8] %v1063, 128
  %1066 = vxpose.xlu0.c.b16.cont [2/8] 0, 128
  %1067 = vxpose.xlu0.c.b16.cont [3/8] 0, 128
  %1068 = vxpose.xlu0.c.b16.cont [4/8] 0, 128
  %1069 = vxpose.xlu0.c.b16.cont [5/8] 0, 128
  %1070 = vxpose.xlu0.c.b16.cont [6/8] 0, 128
  %1071 = vxpose.xlu0.c.b16.cont [7/8] 0, 128
  %1072 = vxpose.xlu0.c.b16.end [8/8] 0, 128
  %v1073 = vpop.trf.xlu0
  %v1074 = vpop.trf.xlu0
  %v1075 = vpop.trf.xlu0
  %v1076 = vpop.trf.xlu0
  %v1077 = vpop.trf.xlu0
  %v1078 = vpop.trf.xlu0
  %v1079 = vpop.trf.xlu0
  %v1080 = vpop.trf.xlu0
  %v1082 = vsel %vm415, %v1073, 0
  %v1085 = vsel %vm415, %v1074, 0
  %v1088 = vsel %vm422, %v1064, 0
  %1090 = vmatprep.subr.bf16.mxu0 0
  %1091 = vmatpush1.bf16.msra.mxu0 %v1088
  %1092 = vmatprep.subr.bf16.mxu0 0
  %1093 = vmatpush1.bf16.msra.mxu0 0
  %1094 = vmatprep.subr.bf16.mxu0 0
  %1095 = vmatpush1.bf16.msra.mxu0 0
  %1096 = vmatprep.subr.bf16.mxu0 0
  %1097 = vmatpush1.bf16.msra.mxu0 0
  %1098 = vmatprep.subr.bf16.mxu0 0
  %1099 = vmatpush1.bf16.msra.mxu0 0
  %1100 = vmatprep.subr.bf16.mxu0 0
  %1101 = vmatpush1.bf16.msra.mxu0 0
  %1102 = vmatprep.subr.bf16.mxu0 0
  %1103 = vmatpush1.bf16.msra.mxu0 0
  %1104 = vmatprep.subr.bf16.mxu0 0
  %1105 = vmatpush1.bf16.msra.mxu0 0
  %1106 = vmatprep.subr.bf16.mxu0 0
  %1107 = vmatpush1.bf16.msra.mxu0 0
  %1108 = vmatprep.subr.bf16.mxu0 0
  %1109 = vmatpush1.bf16.msra.mxu0 0
  %1110 = vmatprep.subr.bf16.mxu0 0
  %1111 = vmatpush1.bf16.msra.mxu0 0
  %1112 = vmatprep.subr.bf16.mxu0 0
  %1113 = vmatpush1.bf16.msra.mxu0 0
  %1114 = vmatprep.subr.bf16.mxu0 0
  %1115 = vmatpush1.bf16.msra.mxu0 0
  %1116 = vmatprep.subr.bf16.mxu0 0
  %1117 = vmatpush1.bf16.msra.mxu0 0
  %1118 = vmatprep.subr.bf16.mxu0 0
  %1119 = vmatpush1.bf16.msra.mxu0 0
  %1120 = vmatprep.subr.bf16.mxu0 0
  %1121 = vmatpush1.bf16.msra.mxu0 0
  %1122 = vmatprep.mubr.bf16.mxu0 0
  %1123 = vmatmul.mubr.bf16.gmra.mrb[0].mxu0 %v1082
  %v1124 = vpop.f32.mrb[0].mxu0
  %v1125 = vadd.f32 0.0, %v1124
  %v1126 = vpop.f32.mrb[0].mxu0
  %v1127 = vpop.f32.mrb[0].mxu0
  %v1128 = vadd.f32 0.0, %v1127
  %v1129 = vpop.f32.mrb[0].mxu0
  %1130 = vmatprep.mubr.bf16.mxu0 0
  %1131 = vmatmul.mubr.bf16.gmra.mrb[0].mxu0 %v1085
  %v1132 = vpop.f32.mrb[0].mxu0
  %v1133 = vadd.f32 0.0, %v1132
  %v1134 = vpop.f32.mrb[0].mxu0
  %v1135 = vpop.f32.mrb[0].mxu0
  %v1136 = vadd.f32 0.0, %v1135
  %v1137 = vpop.f32.mrb[0].mxu0
  %1138 = vdwg.mxu0
  %v1139 = vsel %vm318, %v1125, -inf
  %1140 = vmax.xlane.f32.xlu0 %v1139
  %v1141 = vpop.xlane.xlu0 %1140
  %v1142 = vsel %vm318, %v1128, -inf
  %1143 = vmax.xlane.f32.xlu0 %v1142
  %v1144 = vpop.xlane.xlu0 %1143
  %v1145 = vsel %vm318, %v1133, -inf
  %1146 = vmax.xlane.f32.xlu0 %v1145
  %v1147 = vpop.xlane.xlu0 %1146
  %v1148 = vsel %vm318, %v1136, -inf
  %1149 = vmax.xlane.f32.xlu0 %v1148
  %v1150 = vpop.xlane.xlu0 %1149
  %v1151 = vsub.f32 %v1125, %v1141
  %v1152 = vsub.f32 %v1128, %v1144
  %v1153 = vsub.f32 %v1133, %v1147
  %v1154 = vsub.f32 %v1136, %v1150
  %v1155 = vmul.f32 %v1151, 1.442695
  %v1156 = vpow.pop %v1155
  %v1157 = vmul.f32 %v1152, 1.442695
  %v1158 = vpow.pop %v1157
  %v1159 = vmul.f32 %v1153, 1.442695
  %v1160 = vpow.pop %v1159
  %v1161 = vmul.f32 %v1154, 1.442695
  %v1162 = vpow.pop %v1161
  %v1163 = vsel %vm318, %v1156, 0.0
  %1164 = vadd.xlane.f32.xlu0 %v1163
  %v1165 = vpop.xlane.xlu0 %1164
  %v1166 = vsel %vm318, %v1158, 0.0
  %1167 = vadd.xlane.f32.xlu0 %v1166
  %v1168 = vpop.xlane.xlu0 %1167
  %v1169 = vsel %vm318, %v1160, 0.0
  %1170 = vadd.xlane.f32.xlu0 %v1169
  %v1171 = vpop.xlane.xlu0 %1170
  %v1172 = vsel %vm318, %v1162, 0.0
  %1173 = vadd.xlane.f32.xlu0 %v1172
  %v1174 = vpop.xlane.xlu0 %1173
  %v1175 = vrcp.pop %v1165
  %v1176 = vrcp.pop %v1168
  %v1177 = vrcp.pop %v1171
  %v1178 = vrcp.pop %v1174
  %v1179 = vmul.f32 %v1156, %v1175
  %v1180 = vmul.f32 %v1158, %v1176
  %v1181 = vmul.f32 %v1160, %v1177
  %v1182 = vmul.f32 %v1162, %v1178
  %v1183 = vpack.c.bf16 %v395, %v395
  %v1184 = vpack.c.bf16 %v1180, %v1179
  %v1185 = vpack.c.bf16 %v1182, %v1181
  %v1187 = vsel %vm318, %v1183, 0
  %1189 = vmatprep.subr.bf16.mxu0 0
  %1190 = vmatpush1.bf16.msra.mxu0 %v1184
  %1191 = vmatprep.subr.bf16.mxu0 0
  %1192 = vmatpush1.bf16.msra.mxu0 %v1185
  %1193 = vmatprep.subr.bf16.mxu0 0
  %1194 = vmatpush1.bf16.msra.mxu0 0
  %1195 = vmatprep.subr.bf16.mxu0 0
  %1196 = vmatpush1.bf16.msra.mxu0 0
  %1197 = vmatprep.subr.bf16.mxu0 0
  %1198 = vmatpush1.bf16.msra.mxu0 0
  %1199 = vmatprep.subr.bf16.mxu0 0
  %1200 = vmatpush1.bf16.msra.mxu0 0
  %1201 = vmatprep.subr.bf16.mxu0 0
  %1202 = vmatpush1.bf16.msra.mxu0 0
  %1203 = vmatprep.subr.bf16.mxu0 0
  %1204 = vmatpush1.bf16.msra.mxu0 0
  %1205 = vmatprep.subr.bf16.mxu0 0
  %1206 = vmatpush1.bf16.msra.mxu0 0
  %1207 = vmatprep.subr.bf16.mxu0 0
  %1208 = vmatpush1.bf16.msra.mxu0 0
  %1209 = vmatprep.subr.bf16.mxu0 0
  %1210 = vmatpush1.bf16.msra.mxu0 0
  %1211 = vmatprep.subr.bf16.mxu0 0
  %1212 = vmatpush1.bf16.msra.mxu0 0
  %1213 = vmatprep.subr.bf16.mxu0 0
  %1214 = vmatpush1.bf16.msra.mxu0 0
  %1215 = vmatprep.subr.bf16.mxu0 0
  %1216 = vmatpush1.bf16.msra.mxu0 0
  %1217 = vmatprep.subr.bf16.mxu0 0
  %1218 = vmatpush1.bf16.msra.mxu0 0
  %1219 = vmatprep.subr.bf16.mxu0 0
  %1220 = vmatpush1.bf16.msra.mxu0 0
  %1221 = vmatprep.mubr.bf16.mxu0 0
  %1222 = vmatmul.mubr.bf16.gmra.mrb[0].mxu0 %v1187
  %v1223 = vpop.f32.mrb[0].mxu0
  %v1224 = vadd.f32 0.0, %v1223
  %v1225 = vpop.f32.mrb[0].mxu0
  %v1226 = vpop.f32.mrb[0].mxu0
  %v1227 = vpop.f32.mrb[0].mxu0
  %1228 = vdwg.mxu0
  %v1229 = vpack.c.bf16 %v135, %v135
  %v1230 = vpack.c.bf16 %v213, %v213
  %1231 = vxpose.xlu0.c.b16.start [1/8] %v1229, 128
  %1232 = vxpose.xlu0.c.b16.cont [2/8] 0, 128
  %1233 = vxpose.xlu0.c.b16.cont [3/8] 0, 128
  %1234 = vxpose.xlu0.c.b16.cont [4/8] 0, 128
  %1235 = vxpose.xlu0.c.b16.cont [5/8] 0, 128
  %1236 = vxpose.xlu0.c.b16.cont [6/8] 0, 128
  %1237 = vxpose.xlu0.c.b16.cont [7/8] 0, 128
  %1238 = vxpose.xlu0.c.b16.end [8/8] 0, 128
  %v1239 = vpop.trf.xlu0
  %v1240 = vpop.trf.xlu0
  %v1241 = vpop.trf.xlu0
  %v1242 = vpop.trf.xlu0
  %v1243 = vpop.trf.xlu0
  %v1244 = vpop.trf.xlu0
  %v1245 = vpop.trf.xlu0
  %v1246 = vpop.trf.xlu0
  %v1248 = vsel %vm415, %v1239, 0
  %v1251 = vsel %vm415, %v1240, 0
  %v1254 = vsel %vm422, %v1230, 0
  %1256 = vmatprep.subr.bf16.mxu0 0
  %1257 = vmatpush1.bf16.msra.mxu0 %v1254
  %1258 = vmatprep.subr.bf16.mxu0 0
  %1259 = vmatpush1.bf16.msra.mxu0 0
  %1260 = vmatprep.subr.bf16.mxu0 0
  %1261 = vmatpush1.bf16.msra.mxu0 0
  %1262 = vmatprep.subr.bf16.mxu0 0
  %1263 = vmatpush1.bf16.msra.mxu0 0
  %1264 = vmatprep.subr.bf16.mxu0 0
  %1265 = vmatpush1.bf16.msra.mxu0 0
  %1266 = vmatprep.subr.bf16.mxu0 0
  %1267 = vmatpush1.bf16.msra.mxu0 0
  %1268 = vmatprep.subr.bf16.mxu0 0
  %1269 = vmatpush1.bf16.msra.mxu0 0
  %1270 = vmatprep.subr.bf16.mxu0 0
  %1271 = vmatpush1.bf16.msra.mxu0 0
  %1272 = vmatprep.subr.bf16.mxu0 0
  %1273 = vmatpush1.bf16.msra.mxu0 0
  %1274 = vmatprep.subr.bf16.mxu0 0
  %1275 = vmatpush1.bf16.msra.mxu0 0
  %1276 = vmatprep.subr.bf16.mxu0 0
  %1277 = vmatpush1.bf16.msra.mxu0 0
  %1278 = vmatprep.subr.bf16.mxu0 0
  %1279 = vmatpush1.bf16.msra.mxu0 0
  %1280 = vmatprep.subr.bf16.mxu0 0
  %1281 = vmatpush1.bf16.msra.mxu0 0
  %1282 = vmatprep.subr.bf16.mxu0 0
  %1283 = vmatpush1.bf16.msra.mxu0 0
  %1284 = vmatprep.subr.bf16.mxu0 0
  %1285 = vmatpush1.bf16.msra.mxu0 0
  %1286 = vmatprep.subr.bf16.mxu0 0
  %1287 = vmatpush1.bf16.msra.mxu0 0
  %1288 = vmatprep.mubr.bf16.mxu0 0
  %1289 = vmatmul.mubr.bf16.gmra.mrb[0].mxu0 %v1248
  %v1290 = vpop.f32.mrb[0].mxu0
  %v1291 = vadd.f32 0.0, %v1290
  %v1292 = vpop.f32.mrb[0].mxu0
  %v1293 = vpop.f32.mrb[0].mxu0
  %v1294 = vadd.f32 0.0, %v1293
  %v1295 = vpop.f32.mrb[0].mxu0
  %1296 = vmatprep.mubr.bf16.mxu0 0
  %1297 = vmatmul.mubr.bf16.gmra.mrb[0].mxu0 %v1251
  %v1298 = vpop.f32.mrb[0].mxu0
  %v1299 = vadd.f32 0.0, %v1298
  %v1300 = vpop.f32.mrb[0].mxu0
  %v1301 = vpop.f32.mrb[0].mxu0
  %v1302 = vadd.f32 0.0, %v1301
  %v1303 = vpop.f32.mrb[0].mxu0
  %1304 = vdwg.mxu0
  %v1305 = vsel %vm318, %v1291, -inf
  %1306 = vmax.xlane.f32.xlu0 %v1305
  %v1307 = vpop.xlane.xlu0 %1306
  %v1308 = vsel %vm318, %v1294, -inf
  %1309 = vmax.xlane.f32.xlu0 %v1308
  %v1310 = vpop.xlane.xlu0 %1309
  %v1311 = vsel %vm318, %v1299, -inf
  %1312 = vmax.xlane.f32.xlu0 %v1311
  %v1313 = vpop.xlane.xlu0 %1312
  %v1314 = vsel %vm318, %v1302, -inf
  %1315 = vmax.xlane.f32.xlu0 %v1314
  %v1316 = vpop.xlane.xlu0 %1315
  %v1317 = vsub.f32 %v1291, %v1307
  %v1318 = vsub.f32 %v1294, %v1310
  %v1319 = vsub.f32 %v1299, %v1313
  %v1320 = vsub.f32 %v1302, %v1316
  %v1321 = vmul.f32 %v1317, 1.442695
  %v1322 = vpow.pop %v1321
  %v1323 = vmul.f32 %v1318, 1.442695
  %v1324 = vpow.pop %v1323
  %v1325 = vmul.f32 %v1319, 1.442695
  %v1326 = vpow.pop %v1325
  %v1327 = vmul.f32 %v1320, 1.442695
  %v1328 = vpow.pop %v1327
  %v1329 = vsel %vm318, %v1322, 0.0
  %1330 = vadd.xlane.f32.xlu0 %v1329
  %v1331 = vpop.xlane.xlu0 %1330
  %v1332 = vsel %vm318, %v1324, 0.0
  %1333 = vadd.xlane.f32.xlu0 %v1332
  %v1334 = vpop.xlane.xlu0 %1333
  %v1335 = vsel %vm318, %v1326, 0.0
  %1336 = vadd.xlane.f32.xlu0 %v1335
  %v1337 = vpop.xlane.xlu0 %1336
  %v1338 = vsel %vm318, %v1328, 0.0
  %1339 = vadd.xlane.f32.xlu0 %v1338
  %v1340 = vpop.xlane.xlu0 %1339
  %v1341 = vrcp.pop %v1331
  %v1342 = vrcp.pop %v1334
  %v1343 = vrcp.pop %v1337
  %v1344 = vrcp.pop %v1340
  %v1345 = vmul.f32 %v1322, %v1341
  %v1346 = vmul.f32 %v1324, %v1342
  %v1347 = vmul.f32 %v1326, %v1343
  %v1348 = vmul.f32 %v1328, %v1344
  %v1349 = vpack.c.bf16 %v396, %v396
  %v1350 = vpack.c.bf16 %v1346, %v1345
  %v1351 = vpack.c.bf16 %v1348, %v1347
  %v1353 = vsel %vm318, %v1349, 0
  %1355 = vmatprep.subr.bf16.mxu0 0
  %1356 = vmatpush1.bf16.msra.mxu0 %v1350
  %1357 = vmatprep.subr.bf16.mxu0 0
  %1358 = vmatpush1.bf16.msra.mxu0 %v1351
  %1359 = vmatprep.subr.bf16.mxu0 0
  %1360 = vmatpush1.bf16.msra.mxu0 0
  %1361 = vmatprep.subr.bf16.mxu0 0
  %1362 = vmatpush1.bf16.msra.mxu0 0
  %1363 = vmatprep.subr.bf16.mxu0 0
  %1364 = vmatpush1.bf16.msra.mxu0 0
  %1365 = vmatprep.subr.bf16.mxu0 0
  %1366 = vmatpush1.bf16.msra.mxu0 0
  %1367 = vmatprep.subr.bf16.mxu0 0
  %1368 = vmatpush1.bf16.msra.mxu0 0
  %1369 = vmatprep.subr.bf16.mxu0 0
  %1370 = vmatpush1.bf16.msra.mxu0 0
  %1371 = vmatprep.subr.bf16.mxu0 0
  %1372 = vmatpush1.bf16.msra.mxu0 0
  %1373 = vmatprep.subr.bf16.mxu0 0
  %1374 = vmatpush1.bf16.msra.mxu0 0
  %1375 = vmatprep.subr.bf16.mxu0 0
  %1376 = vmatpush1.bf16.msra.mxu0 0
  %1377 = vmatprep.subr.bf16.mxu0 0
  %1378 = vmatpush1.bf16.msra.mxu0 0
  %1379 = vmatprep.subr.bf16.mxu0 0
  %1380 = vmatpush1.bf16.msra.mxu0 0
  %1381 = vmatprep.subr.bf16.mxu0 0
  %1382 = vmatpush1.bf16.msra.mxu0 0
  %1383 = vmatprep.subr.bf16.mxu0 0
  %1384 = vmatpush1.bf16.msra.mxu0 0
  %1385 = vmatprep.subr.bf16.mxu0 0
  %1386 = vmatpush1.bf16.msra.mxu0 0
  %1387 = vmatprep.mubr.bf16.mxu0 0
  %1388 = vmatmul.mubr.bf16.gmra.mrb[0].mxu0 %v1353
  %v1389 = vpop.f32.mrb[0].mxu0
  %v1390 = vadd.f32 0.0, %v1389
  %v1391 = vpop.f32.mrb[0].mxu0
  %v1392 = vpop.f32.mrb[0].mxu0
  %v1393 = vpop.f32.mrb[0].mxu0
  %1394 = vdwg.mxu0
  %v1395 = vpack.c.bf16 %v726, %v560
  %v1396 = vpack.c.bf16 %v1058, %v892
  %v1397 = vpack.c.bf16 %v1390, %v1224
  %v1398 = vld [vmem:[%s9] sm:$0xf]
  %v1399 = vld [vmem:[%s9 + $0x4] sm:$0xf]
  %v1400 = vld [vmem:[%s9 + $0x8] sm:$0xf]
  %v1401 = vld [vmem:[%s9 + $0xc] sm:$0xf]
  %v1402 = vld [vmem:[%s10] sm:$0x1]
  %v1404 = vlaneseq
  %v1405 = vshrl.u32 %v1404, 7
  %v1406 = vsub.s32 0, %v1405
  %v1407 = vrot.slane %v1402, %v1406
  %v1413 = vunpack.c.l.b16 %v1398
  %v1414 = vunpack.c.l.b16 %v1399
  %v1415 = vunpack.c.l.b16 %v1400
  %v1416 = vunpack.c.l.b16 %v1401
  %v1417 = vpack.c.b16 %v1414, %v1413
  %v1418 = vpack.c.b16 %v1416, %v1415
  %v1422 = vsel %vm318, %v1395, 0
  %v1425 = vsel %vm318, %v1396, 0
  %v1428 = vsel %vm318, %v1397, 0
  %1430 = vmatprep.subr.bf16.mxu0 0
  %1431 = vmatpush1.bf16.msra.mxu0 %v1417
  %1432 = vmatprep.subr.bf16.mxu0 0
  %1433 = vmatpush1.bf16.msra.mxu0 %v1418
  %1434 = vmatprep.subr.bf16.mxu0 0
  %1435 = vmatpush1.bf16.msra.mxu0 0
  %1436 = vmatprep.subr.bf16.mxu0 0
  %1437 = vmatpush1.bf16.msra.mxu0 0
  %1438 = vmatprep.subr.bf16.mxu0 0
  %1439 = vmatpush1.bf16.msra.mxu0 0
  %1440 = vmatprep.subr.bf16.mxu0 0
  %1441 = vmatpush1.bf16.msra.mxu0 0
  %1442 = vmatprep.subr.bf16.mxu0 0
  %1443 = vmatpush1.bf16.msra.mxu0 0
  %1444 = vmatprep.subr.bf16.mxu0 0
  %1445 = vmatpush1.bf16.msra.mxu0 0
  %1446 = vmatprep.subr.bf16.mxu0 0
  %1447 = vmatpush1.bf16.msra.mxu0 0
  %1448 = vmatprep.subr.bf16.mxu0 0
  %1449 = vmatpush1.bf16.msra.mxu0 0
  %1450 = vmatprep.subr.bf16.mxu0 0
  %1451 = vmatpush1.bf16.msra.mxu0 0
  %1452 = vmatprep.subr.bf16.mxu0 0
  %1453 = vmatpush1.bf16.msra.mxu0 0
  %1454 = vmatprep.subr.bf16.mxu0 0
  %1455 = vmatpush1.bf16.msra.mxu0 0
  %1456 = vmatprep.subr.bf16.mxu0 0
  %1457 = vmatpush1.bf16.msra.mxu0 0
  %1458 = vmatprep.subr.bf16.mxu0 0
  %1459 = vmatpush1.bf16.msra.mxu0 0
  %1460 = vmatprep.subr.bf16.mxu0 0
  %1461 = vmatpush1.bf16.msra.mxu0 0
  %1462 = vmatprep.mubr.bf16.mxu0 0
  %1463 = vmatmul.mubr.bf16.gmra.mrb[0].mxu0 %v1422
  %v1464 = vpop.f32.mrb[0].mxu0
  %v1465 = vadd.f32 %v1407, %v1464
  %v1466 = vpop.f32.mrb[0].mxu0
  %v1467 = vpop.f32.mrb[0].mxu0
  %v1468 = vadd.f32 %v1407, %v1467
  %v1469 = vpop.f32.mrb[0].mxu0
  %1470 = vmatprep.mubr.bf16.mxu0 0
  %1471 = vmatmul.mubr.bf16.gmra.mrb[0].mxu0 %v1425
  %v1472 = vpop.f32.mrb[0].mxu0
  %v1473 = vadd.f32 %v1407, %v1472
  %v1474 = vpop.f32.mrb[0].mxu0
  %v1475 = vpop.f32.mrb[0].mxu0
  %v1476 = vadd.f32 %v1407, %v1475
  %v1477 = vpop.f32.mrb[0].mxu0
  %1478 = vmatprep.mubr.bf16.mxu0 0
  %1479 = vmatmul.mubr.bf16.gmra.mrb[0].mxu0 %v1428
  %v1480 = vpop.f32.mrb[0].mxu0
  %v1481 = vadd.f32 %v1407, %v1480
  %v1482 = vpop.f32.mrb[0].mxu0
  %v1483 = vpop.f32.mrb[0].mxu0
  %v1484 = vadd.f32 %v1407, %v1483
  %v1485 = vpop.f32.mrb[0].mxu0
  %1486 = vdwg.mxu0
  %v1487 = vpack.c.bf16 %v1468, %v1465
  %v1488 = vpack.c.bf16 %v1476, %v1473
  %v1489 = vpack.c.bf16 %v1484, %v1481
  %s1490 = scalar_lea.vmem %s1, 8
  %v1491 = vld [vmem:[%s1490] sm:$0xf]
  %v1492 = vld [vmem:[%s1490 + $0x4] sm:$0xf]
  %s1493 = scalar_lea.vmem %s2, 1
  %v1494 = vld [vmem:[%s1493] sm:$0x1]
  %v1496 = vlaneseq
  %v1497 = vshrl.u32 %v1496, 7
  %v1498 = vsub.s32 0, %v1497
  %v1499 = vrot.slane %v1494, %v1498
  %v1503 = vunpack.c.l.b16 %v1491
  %v1504 = vunpack.c.l.b16 %v1492
  %v1505 = vpack.c.b16 %v1504, %v1503
  %v1508 = vsel %vm63, %v1487, 0
  %v1511 = vsel %vm63, %v1488, 0
  %v1514 = vsel %vm63, %v1489, 0
  %1516 = vmatprep.subr.bf16.mxu0 0
  %1517 = vmatpush1.bf16.msra.mxu0 %v1505
  %1518 = vmatprep.subr.bf16.mxu0 0
  %1519 = vmatpush1.bf16.msra.mxu0 0
  %1520 = vmatprep.subr.bf16.mxu0 0
  %1521 = vmatpush1.bf16.msra.mxu0 0
  %1522 = vmatprep.subr.bf16.mxu0 0
  %1523 = vmatpush1.bf16.msra.mxu0 0
  %1524 = vmatprep.subr.bf16.mxu0 0
  %1525 = vmatpush1.bf16.msra.mxu0 0
  %1526 = vmatprep.subr.bf16.mxu0 0
  %1527 = vmatpush1.bf16.msra.mxu0 0
  %1528 = vmatprep.subr.bf16.mxu0 0
  %1529 = vmatpush1.bf16.msra.mxu0 0
  %1530 = vmatprep.subr.bf16.mxu0 0
  %1531 = vmatpush1.bf16.msra.mxu0 0
  %1532 = vmatprep.subr.bf16.mxu0 0
  %1533 = vmatpush1.bf16.msra.mxu0 0
  %1534 = vmatprep.subr.bf16.mxu0 0
  %1535 = vmatpush1.bf16.msra.mxu0 0
  %1536 = vmatprep.subr.bf16.mxu0 0
  %1537 = vmatpush1.bf16.msra.mxu0 0
  %1538 = vmatprep.subr.bf16.mxu0 0
  %1539 = vmatpush1.bf16.msra.mxu0 0
  %1540 = vmatprep.subr.bf16.mxu0 0
  %1541 = vmatpush1.bf16.msra.mxu0 0
  %1542 = vmatprep.subr.bf16.mxu0 0
  %1543 = vmatpush1.bf16.msra.mxu0 0
  %1544 = vmatprep.subr.bf16.mxu0 0
  %1545 = vmatpush1.bf16.msra.mxu0 0
  %1546 = vmatprep.subr.bf16.mxu0 0
  %1547 = vmatpush1.bf16.msra.mxu0 0
  %1548 = vmatprep.mubr.bf16.mxu0 0
  %1549 = vmatmul.mubr.bf16.gmra.mrb[0].mxu0 %v1508
  %v1550 = vpop.f32.mrb[0].mxu0
  %v1551 = vadd.f32 %v1499, %v1550
  %v1552 = vpop.f32.mrb[0].mxu0
  %v1553 = vpop.f32.mrb[0].mxu0
  %v1554 = vadd.f32 %v1499, %v1553
  %v1555 = vpop.f32.mrb[0].mxu0
  %1556 = vmatprep.mubr.bf16.mxu0 0
  %1557 = vmatmul.mubr.bf16.gmra.mrb[0].mxu0 %v1511
  %v1558 = vpop.f32.mrb[0].mxu0
  %v1559 = vadd.f32 %v1499, %v1558
  %v1560 = vpop.f32.mrb[0].mxu0
  %v1561 = vpop.f32.mrb[0].mxu0
  %v1562 = vadd.f32 %v1499, %v1561
  %v1563 = vpop.f32.mrb[0].mxu0
  %1564 = vmatprep.mubr.bf16.mxu0 0
  %1565 = vmatmul.mubr.bf16.gmra.mrb[0].mxu0 %v1514
  %v1566 = vpop.f32.mrb[0].mxu0
  %v1567 = vadd.f32 %v1499, %v1566
  %v1568 = vpop.f32.mrb[0].mxu0
  %v1569 = vpop.f32.mrb[0].mxu0
  %v1570 = vadd.f32 %v1499, %v1569
  %v1571 = vpop.f32.mrb[0].mxu0
  %1572 = vdwg.mxu0
  %v1573 = vmax.f32 %v1551, 0.0
  %v1574 = vmax.f32 %v1554, 0.0
  %v1575 = vmax.f32 %v1559, 0.0
  %v1576 = vmax.f32 %v1562, 0.0
  %v1577 = vmax.f32 %v1567, 0.0
  %v1578 = vmax.f32 %v1570, 0.0
  %s1579 = scalar_lea.vmem %s3, 8
  %v1580 = vld [vmem:[%s1579] sm:$0xf]
  %v1581 = vld [vmem:[%s1579 + $0x4] sm:$0xf]
  %s1582 = scalar_lea.vmem %s4, 1
  %v1583 = vld [vmem:[%s1582] sm:$0x1]
  %v1585 = vlaneseq
  %v1586 = vshrl.u32 %v1585, 7
  %v1587 = vsub.s32 0, %v1586
  %v1588 = vrot.slane %v1583, %v1587
  %v1592 = vunpack.c.l.b16 %v1580
  %v1593 = vunpack.c.l.b16 %v1581
  %v1594 = vpack.c.b16 %v1593, %v1592
  %1596 = vmatprep.subr.bf16.mxu0 0
  %1597 = vmatpush1.bf16.msra.mxu0 %v1594
  %1598 = vmatprep.subr.bf16.mxu0 0
  %1599 = vmatpush1.bf16.msra.mxu0 0
  %1600 = vmatprep.subr.bf16.mxu0 0
  %1601 = vmatpush1.bf16.msra.mxu0 0
  %1602 = vmatprep.subr.bf16.mxu0 0
  %1603 = vmatpush1.bf16.msra.mxu0 0
  %1604 = vmatprep.subr.bf16.mxu0 0
  %1605 = vmatpush1.bf16.msra.mxu0 0
  %1606 = vmatprep.subr.bf16.mxu0 0
  %1607 = vmatpush1.bf16.msra.mxu0 0
  %1608 = vmatprep.subr.bf16.mxu0 0
  %1609 = vmatpush1.bf16.msra.mxu0 0
  %1610 = vmatprep.subr.bf16.mxu0 0
  %1611 = vmatpush1.bf16.msra.mxu0 0
  %1612 = vmatprep.subr.bf16.mxu0 0
  %1613 = vmatpush1.bf16.msra.mxu0 0
  %1614 = vmatprep.subr.bf16.mxu0 0
  %1615 = vmatpush1.bf16.msra.mxu0 0
  %1616 = vmatprep.subr.bf16.mxu0 0
  %1617 = vmatpush1.bf16.msra.mxu0 0
  %1618 = vmatprep.subr.bf16.mxu0 0
  %1619 = vmatpush1.bf16.msra.mxu0 0
  %1620 = vmatprep.subr.bf16.mxu0 0
  %1621 = vmatpush1.bf16.msra.mxu0 0
  %1622 = vmatprep.subr.bf16.mxu0 0
  %1623 = vmatpush1.bf16.msra.mxu0 0
  %1624 = vmatprep.subr.bf16.mxu0 0
  %1625 = vmatpush1.bf16.msra.mxu0 0
  %1626 = vmatprep.subr.bf16.mxu0 0
  %1627 = vmatpush1.bf16.msra.mxu0 0
  %1628 = vmatprep.mubr.bf16.mxu0 0
  %1629 = vmatmul.mubr.bf16.gmra.mrb[0].mxu0 %v1508
  %v1630 = vpop.f32.mrb[0].mxu0
  %v1631 = vadd.f32 %v1588, %v1630
  %v1632 = vpop.f32.mrb[0].mxu0
  %v1633 = vpop.f32.mrb[0].mxu0
  %v1634 = vadd.f32 %v1588, %v1633
  %v1635 = vpop.f32.mrb[0].mxu0
  %1636 = vmatprep.mubr.bf16.mxu0 0
  %1637 = vmatmul.mubr.bf16.gmra.mrb[0].mxu0 %v1511
  %v1638 = vpop.f32.mrb[0].mxu0
  %v1639 = vadd.f32 %v1588, %v1638
  %v1640 = vpop.f32.mrb[0].mxu0
  %v1641 = vpop.f32.mrb[0].mxu0
  %v1642 = vadd.f32 %v1588, %v1641
  %v1643 = vpop.f32.mrb[0].mxu0
  %1644 = vmatprep.mubr.bf16.mxu0 0
  %1645 = vmatmul.mubr.bf16.gmra.mrb[0].mxu0 %v1514
  %v1646 = vpop.f32.mrb[0].mxu0
  %v1647 = vadd.f32 %v1588, %v1646
  %v1648 = vpop.f32.mrb[0].mxu0
  %v1649 = vpop.f32.mrb[0].mxu0
  %v1650 = vadd.f32 %v1588, %v1649
  %v1651 = vpop.f32.mrb[0].mxu0
  %1652 = vdwg.mxu0
  %v1653 = vmax.f32 %v1631, 0.0
  %v1654 = vmax.f32 %v1634, 0.0
  %v1655 = vmax.f32 %v1639, 0.0
  %v1656 = vmax.f32 %v1642, 0.0
  %v1657 = vmax.f32 %v1647, 0.0
  %v1658 = vmax.f32 %v1650, 0.0
  %s1659 = scalar_lea.vmem %s5, 8
  %v1660 = vld [vmem:[%s1659] sm:$0xf]
  %v1661 = vld [vmem:[%s1659 + $0x4] sm:$0xf]
  %s1662 = scalar_lea.vmem %s6, 1
  %v1663 = vld [vmem:[%s1662] sm:$0x1]
  %v1665 = vlaneseq
  %v1666 = vshrl.u32 %v1665, 7
  %v1667 = vsub.s32 0, %v1666
  %v1668 = vrot.slane %v1663, %v1667
  %v1672 = vunpack.c.l.b16 %v1660
  %v1673 = vunpack.c.l.b16 %v1661
  %v1674 = vpack.c.b16 %v1673, %v1672
  %1676 = vmatprep.subr.bf16.mxu0 0
  %1677 = vmatpush1.bf16.msra.mxu0 %v1674
  %1678 = vmatprep.subr.bf16.mxu0 0
  %1679 = vmatpush1.bf16.msra.mxu0 0
  %1680 = vmatprep.subr.bf16.mxu0 0
  %1681 = vmatpush1.bf16.msra.mxu0 0
  %1682 = vmatprep.subr.bf16.mxu0 0
  %1683 = vmatpush1.bf16.msra.mxu0 0
  %1684 = vmatprep.subr.bf16.mxu0 0
  %1685 = vmatpush1.bf16.msra.mxu0 0
  %1686 = vmatprep.subr.bf16.mxu0 0
  %1687 = vmatpush1.bf16.msra.mxu0 0
  %1688 = vmatprep.subr.bf16.mxu0 0
  %1689 = vmatpush1.bf16.msra.mxu0 0
  %1690 = vmatprep.subr.bf16.mxu0 0
  %1691 = vmatpush1.bf16.msra.mxu0 0
  %1692 = vmatprep.subr.bf16.mxu0 0
  %1693 = vmatpush1.bf16.msra.mxu0 0
  %1694 = vmatprep.subr.bf16.mxu0 0
  %1695 = vmatpush1.bf16.msra.mxu0 0
  %1696 = vmatprep.subr.bf16.mxu0 0
  %1697 = vmatpush1.bf16.msra.mxu0 0
  %1698 = vmatprep.subr.bf16.mxu0 0
  %1699 = vmatpush1.bf16.msra.mxu0 0
  %1700 = vmatprep.subr.bf16.mxu0 0
  %1701 = vmatpush1.bf16.msra.mxu0 0
  %1702 = vmatprep.subr.bf16.mxu0 0
  %1703 = vmatpush1.bf16.msra.mxu0 0
  %1704 = vmatprep.subr.bf16.mxu0 0
  %1705 = vmatpush1.bf16.msra.mxu0 0
  %1706 = vmatprep.subr.bf16.mxu0 0
  %1707 = vmatpush1.bf16.msra.mxu0 0
  %1708 = vmatprep.mubr.bf16.mxu0 0
  %1709 = vmatmul.mubr.bf16.gmra.mrb[0].mxu0 %v1508
  %v1710 = vpop.f32.mrb[0].mxu0
  %v1711 = vadd.f32 %v1668, %v1710
  %v1712 = vpop.f32.mrb[0].mxu0
  %v1713 = vpop.f32.mrb[0].mxu0
  %v1714 = vadd.f32 %v1668, %v1713
  %v1715 = vpop.f32.mrb[0].mxu0
  %1716 = vmatprep.mubr.bf16.mxu0 0
  %1717 = vmatmul.mubr.bf16.gmra.mrb[0].mxu0 %v1511
  %v1718 = vpop.f32.mrb[0].mxu0
  %v1719 = vadd.f32 %v1668, %v1718
  %v1720 = vpop.f32.mrb[0].mxu0
  %v1721 = vpop.f32.mrb[0].mxu0
  %v1722 = vadd.f32 %v1668, %v1721
  %v1723 = vpop.f32.mrb[0].mxu0
  %1724 = vmatprep.mubr.bf16.mxu0 0
  %1725 = vmatmul.mubr.bf16.gmra.mrb[0].mxu0 %v1514
  %v1726 = vpop.f32.mrb[0].mxu0
  %v1727 = vadd.f32 %v1668, %v1726
  %v1728 = vpop.f32.mrb[0].mxu0
  %v1729 = vpop.f32.mrb[0].mxu0
  %v1730 = vadd.f32 %v1668, %v1729
  %v1731 = vpop.f32.mrb[0].mxu0
  %1732 = vdwg.mxu0
  %v1733 = vmax.f32 %v1711, 0.0
  %v1734 = vmax.f32 %v1714, 0.0
  %v1735 = vmax.f32 %v1719, 0.0
  %v1736 = vmax.f32 %v1722, 0.0
  %v1737 = vmax.f32 %v1727, 0.0
  %v1738 = vmax.f32 %v1730, 0.0
  %v1739 = vpack.c.bf16 %v1734, %v1733
  %v1740 = vpack.c.bf16 %v1736, %v1735
  %v1741 = vpack.c.bf16 %v1738, %v1737
  %s1742 = scalar_lea.vmem %s7, 16
  %v1743 = vld [vmem:[%s1742] sm:$0xf]
  %v1744 = vld [vmem:[%s1742 + $0x4] sm:$0xf]
  %v1745 = vld [vmem:[%s1742 + $0x8] sm:$0xf]
  %v1746 = vld [vmem:[%s1742 + $0xc] sm:$0xf]
  %s1747 = scalar_lea.vmem %s8, 1
  %v1748 = vld [vmem:[%s1747] sm:$0x1]
  %v1750 = vlaneseq
  %v1751 = vshrl.u32 %v1750, 7
  %v1752 = vsub.s32 0, %v1751
  %v1753 = vrot.slane %v1748, %v1752
  %v1759 = vunpack.c.l.b16 %v1743
  %v1760 = vunpack.c.l.b16 %v1744
  %v1761 = vunpack.c.l.b16 %v1745
  %v1762 = vunpack.c.l.b16 %v1746
  %v1763 = vpack.c.b16 %v1760, %v1759
  %v1764 = vpack.c.b16 %v1762, %v1761
  %v1768 = vsel %vm318, %v1739, 0
  %v1771 = vsel %vm318, %v1740, 0
  %v1774 = vsel %vm318, %v1741, 0
  %1776 = vmatprep.subr.bf16.mxu0 0
  %1777 = vmatpush1.bf16.msra.mxu0 %v1763
  %1778 = vmatprep.subr.bf16.mxu0 0
  %1779 = vmatpush1.bf16.msra.mxu0 %v1764
  %1780 = vmatprep.subr.bf16.mxu0 0
  %1781 = vmatpush1.bf16.msra.mxu0 0
  %1782 = vmatprep.subr.bf16.mxu0 0
  %1783 = vmatpush1.bf16.msra.mxu0 0
  %1784 = vmatprep.subr.bf16.mxu0 0
  %1785 = vmatpush1.bf16.msra.mxu0 0
  %1786 = vmatprep.subr.bf16.mxu0 0
  %1787 = vmatpush1.bf16.msra.mxu0 0
  %1788 = vmatprep.subr.bf16.mxu0 0
  %1789 = vmatpush1.bf16.msra.mxu0 0
  %1790 = vmatprep.subr.bf16.mxu0 0
  %1791 = vmatpush1.bf16.msra.mxu0 0
  %1792 = vmatprep.subr.bf16.mxu0 0
  %1793 = vmatpush1.bf16.msra.mxu0 0
  %1794 = vmatprep.subr.bf16.mxu0 0
  %1795 = vmatpush1.bf16.msra.mxu0 0
  %1796 = vmatprep.subr.bf16.mxu0 0
  %1797 = vmatpush1.bf16.msra.mxu0 0
  %1798 = vmatprep.subr.bf16.mxu0 0
  %1799 = vmatpush1.bf16.msra.mxu0 0
  %1800 = vmatprep.subr.bf16.mxu0 0
  %1801 = vmatpush1.bf16.msra.mxu0 0
  %1802 = vmatprep.subr.bf16.mxu0 0
  %1803 = vmatpush1.bf16.msra.mxu0 0
  %1804 = vmatprep.subr.bf16.mxu0 0
  %1805 = vmatpush1.bf16.msra.mxu0 0
  %1806 = vmatprep.subr.bf16.mxu0 0
  %1807 = vmatpush1.bf16.msra.mxu0 0
  %1808 = vmatprep.mubr.bf16.mxu0 0
  %1809 = vmatmul.mubr.bf16.gmra.mrb[0].mxu0 %v1768
  %v1810 = vpop.f32.mrb[0].mxu0
  %v1811 = vadd.f32 %v1753, %v1810
  %v1812 = vpop.f32.mrb[0].mxu0
  %v1813 = vpop.f32.mrb[0].mxu0
  %v1814 = vadd.f32 %v1753, %v1813
  %v1815 = vpop.f32.mrb[0].mxu0
  %1816 = vmatprep.mubr.bf16.mxu0 0
  %1817 = vmatmul.mubr.bf16.gmra.mrb[0].mxu0 %v1771
  %v1818 = vpop.f32.mrb[0].mxu0
  %v1819 = vadd.f32 %v1753, %v1818
  %v1820 = vpop.f32.mrb[0].mxu0
  %v1821 = vpop.f32.mrb[0].mxu0
  %v1822 = vadd.f32 %v1753, %v1821
  %v1823 = vpop.f32.mrb[0].mxu0
  %1824 = vmatprep.mubr.bf16.mxu0 0
  %1825 = vmatmul.mubr.bf16.gmra.mrb[0].mxu0 %v1774
  %v1826 = vpop.f32.mrb[0].mxu0
  %v1827 = vadd.f32 %v1753, %v1826
  %v1828 = vpop.f32.mrb[0].mxu0
  %v1829 = vpop.f32.mrb[0].mxu0
  %v1830 = vadd.f32 %v1753, %v1829
  %v1831 = vpop.f32.mrb[0].mxu0
  %1832 = vdwg.mxu0
  %v1833 = vmax.f32 %v1811, 0.0
  %v1834 = vmax.f32 %v1814, 0.0
  %v1835 = vmax.f32 %v1819, 0.0
  %v1836 = vmax.f32 %v1822, 0.0
  %v1837 = vmax.f32 %v1827, 0.0
  %v1838 = vmax.f32 %v1830, 0.0
  %v1839 = vadd.f32 %v1833, %v1733
  %v1840 = vadd.f32 %v1834, %v1734
  %v1841 = vadd.f32 %v1835, %v1735
  %v1842 = vadd.f32 %v1836, %v1736
  %v1843 = vadd.f32 %v1837, %v1737
  %v1844 = vadd.f32 %v1838, %v1738
  %v1845 = vpack.c.bf16 %v1573, %v1573
  %v1846 = vpack.c.bf16 %v1653, %v1653
  %1847 = vxpose.xlu0.c.b16.start [1/8] %v1845, 128
  %1848 = vxpose.xlu0.c.b16.cont [2/8] 0, 128
  %1849 = vxpose.xlu0.c.b16.cont [3/8] 0, 128
  %1850 = vxpose.xlu0.c.b16.cont [4/8] 0, 128
  %1851 = vxpose.xlu0.c.b16.cont [5/8] 0, 128
  %1852 = vxpose.xlu0.c.b16.cont [6/8] 0, 128
  %1853 = vxpose.xlu0.c.b16.cont [7/8] 0, 128
  %1854 = vxpose.xlu0.c.b16.end [8/8] 0, 128
  %v1855 = vpop.trf.xlu0
  %v1856 = vpop.trf.xlu0
  %v1857 = vpop.trf.xlu0
  %v1858 = vpop.trf.xlu0
  %v1859 = vpop.trf.xlu0
  %v1860 = vpop.trf.xlu0
  %v1861 = vpop.trf.xlu0
  %v1862 = vpop.trf.xlu0
  %v1864 = vsel %vm415, %v1855, 0
  %v1867 = vsel %vm415, %v1856, 0
  %v1870 = vsel %vm422, %v1846, 0
  %1872 = vmatprep.subr.bf16.mxu0 0
  %1873 = vmatpush1.bf16.msra.mxu0 %v1870
  %1874 = vmatprep.subr.bf16.mxu0 0
  %1875 = vmatpush1.bf16.msra.mxu0 0
  %1876 = vmatprep.subr.bf16.mxu0 0
  %1877 = vmatpush1.bf16.msra.mxu0 0
  %1878 = vmatprep.subr.bf16.mxu0 0
  %1879 = vmatpush1.bf16.msra.mxu0 0
  %1880 = vmatprep.subr.bf16.mxu0 0
  %1881 = vmatpush1.bf16.msra.mxu0 0
  %1882 = vmatprep.subr.bf16.mxu0 0
  %1883 = vmatpush1.bf16.msra.mxu0 0
  %1884 = vmatprep.subr.bf16.mxu0 0
  %1885 = vmatpush1.bf16.msra.mxu0 0
  %1886 = vmatprep.subr.bf16.mxu0 0
  %1887 = vmatpush1.bf16.msra.mxu0 0
  %1888 = vmatprep.subr.bf16.mxu0 0
  %1889 = vmatpush1.bf16.msra.mxu0 0
  %1890 = vmatprep.subr.bf16.mxu0 0
  %1891 = vmatpush1.bf16.msra.mxu0 0
  %1892 = vmatprep.subr.bf16.mxu0 0
  %1893 = vmatpush1.bf16.msra.mxu0 0
  %1894 = vmatprep.subr.bf16.mxu0 0
  %1895 = vmatpush1.bf16.msra.mxu0 0
  %1896 = vmatprep.subr.bf16.mxu0 0
  %1897 = vmatpush1.bf16.msra.mxu0 0
  %1898 = vmatprep.subr.bf16.mxu0 0
  %1899 = vmatpush1.bf16.msra.mxu0 0
  %1900 = vmatprep.subr.bf16.mxu0 0
  %1901 = vmatpush1.bf16.msra.mxu0 0
  %1902 = vmatprep.subr.bf16.mxu0 0
  %1903 = vmatpush1.bf16.msra.mxu0 0
  %1904 = vmatprep.mubr.bf16.mxu0 0
  %1905 = vmatmul.mubr.bf16.gmra.mrb[0].mxu0 %v1864
  %v1906 = vpop.f32.mrb[0].mxu0
  %v1907 = vadd.f32 0.0, %v1906
  %v1908 = vpop.f32.mrb[0].mxu0
  %v1909 = vpop.f32.mrb[0].mxu0
  %v1910 = vadd.f32 0.0, %v1909
  %v1911 = vpop.f32.mrb[0].mxu0
  %1912 = vmatprep.mubr.bf16.mxu0 0
  %1913 = vmatmul.mubr.bf16.gmra.mrb[0].mxu0 %v1867
  %v1914 = vpop.f32.mrb[0].mxu0
  %v1915 = vadd.f32 0.0, %v1914
  %v1916 = vpop.f32.mrb[0].mxu0
  %v1917 = vpop.f32.mrb[0].mxu0
  %v1918 = vadd.f32 0.0, %v1917
  %v1919 = vpop.f32.mrb[0].mxu0
  %1920 = vdwg.mxu0
  %v1921 = vsel %vm318, %v1907, -inf
  %1922 = vmax.xlane.f32.xlu0 %v1921
  %v1923 = vpop.xlane.xlu0 %1922
  %v1924 = vsel %vm318, %v1910, -inf
  %1925 = vmax.xlane.f32.xlu0 %v1924
  %v1926 = vpop.xlane.xlu0 %1925
  %v1927 = vsel %vm318, %v1915, -inf
  %1928 = vmax.xlane.f32.xlu0 %v1927
  %v1929 = vpop.xlane.xlu0 %1928
  %v1930 = vsel %vm318, %v1918, -inf
  %1931 = vmax.xlane.f32.xlu0 %v1930
  %v1932 = vpop.xlane.xlu0 %1931
  %v1933 = vsub.f32 %v1907, %v1923
  %v1934 = vsub.f32 %v1910, %v1926
  %v1935 = vsub.f32 %v1915, %v1929
  %v1936 = vsub.f32 %v1918, %v1932
  %v1937 = vmul.f32 %v1933, 1.442695
  %v1938 = vpow.pop %v1937
  %v1939 = vmul.f32 %v1934, 1.442695
  %v1940 = vpow.pop %v1939
  %v1941 = vmul.f32 %v1935, 1.442695
  %v1942 = vpow.pop %v1941
  %v1943 = vmul.f32 %v1936, 1.442695
  %v1944 = vpow.pop %v1943
  %v1945 = vsel %vm318, %v1938, 0.0
  %1946 = vadd.xlane.f32.xlu0 %v1945
  %v1947 = vpop.xlane.xlu0 %1946
  %v1948 = vsel %vm318, %v1940, 0.0
  %1949 = vadd.xlane.f32.xlu0 %v1948
  %v1950 = vpop.xlane.xlu0 %1949
  %v1951 = vsel %vm318, %v1942, 0.0
  %1952 = vadd.xlane.f32.xlu0 %v1951
  %v1953 = vpop.xlane.xlu0 %1952
  %v1954 = vsel %vm318, %v1944, 0.0
  %1955 = vadd.xlane.f32.xlu0 %v1954
  %v1956 = vpop.xlane.xlu0 %1955
  %v1957 = vrcp.pop %v1947
  %v1958 = vrcp.pop %v1950
  %v1959 = vrcp.pop %v1953
  %v1960 = vrcp.pop %v1956
  %v1961 = vmul.f32 %v1938, %v1957
  %v1962 = vmul.f32 %v1940, %v1958
  %v1963 = vmul.f32 %v1942, %v1959
  %v1964 = vmul.f32 %v1944, %v1960
  %v1965 = vpack.c.bf16 %v1839, %v1839
  %v1966 = vpack.c.bf16 %v1962, %v1961
  %v1967 = vpack.c.bf16 %v1964, %v1963
  %v1969 = vsel %vm318, %v1965, 0
  %1971 = vmatprep.subr.bf16.mxu0 0
  %1972 = vmatpush1.bf16.msra.mxu0 %v1966
  %1973 = vmatprep.subr.bf16.mxu0 0
  %1974 = vmatpush1.bf16.msra.mxu0 %v1967
  %1975 = vmatprep.subr.bf16.mxu0 0
  %1976 = vmatpush1.bf16.msra.mxu0 0
  %1977 = vmatprep.subr.bf16.mxu0 0
  %1978 = vmatpush1.bf16.msra.mxu0 0
  %1979 = vmatprep.subr.bf16.mxu0 0
  %1980 = vmatpush1.bf16.msra.mxu0 0
  %1981 = vmatprep.subr.bf16.mxu0 0
  %1982 = vmatpush1.bf16.msra.mxu0 0
  %1983 = vmatprep.subr.bf16.mxu0 0
  %1984 = vmatpush1.bf16.msra.mxu0 0
  %1985 = vmatprep.subr.bf16.mxu0 0
  %1986 = vmatpush1.bf16.msra.mxu0 0
  %1987 = vmatprep.subr.bf16.mxu0 0
  %1988 = vmatpush1.bf16.msra.mxu0 0
  %1989 = vmatprep.subr.bf16.mxu0 0
  %1990 = vmatpush1.bf16.msra.mxu0 0
  %1991 = vmatprep.subr.bf16.mxu0 0
  %1992 = vmatpush1.bf16.msra.mxu0 0
  %1993 = vmatprep.subr.bf16.mxu0 0
  %1994 = vmatpush1.bf16.msra.mxu0 0
  %1995 = vmatprep.subr.bf16.mxu0 0
  %1996 = vmatpush1.bf16.msra.mxu0 0
  %1997 = vmatprep.subr.bf16.mxu0 0
  %1998 = vmatpush1.bf16.msra.mxu0 0
  %1999 = vmatprep.subr.bf16.mxu0 0
  %2000 = vmatpush1.bf16.msra.mxu0 0
  %2001 = vmatprep.subr.bf16.mxu0 0
  %2002 = vmatpush1.bf16.msra.mxu0 0
  %2003 = vmatprep.mubr.bf16.mxu0 0
  %2004 = vmatmul.mubr.bf16.gmra.mrb[0].mxu0 %v1969
  %v2005 = vpop.f32.mrb[0].mxu0
  %v2006 = vadd.f32 0.0, %v2005
  %v2007 = vpop.f32.mrb[0].mxu0
  %v2008 = vpop.f32.mrb[0].mxu0
  %v2009 = vpop.f32.mrb[0].mxu0
  %2010 = vdwg.mxu0
  %v2011 = vpack.c.bf16 %v1574, %v1574
  %v2012 = vpack.c.bf16 %v1654, %v1654
  %2013 = vxpose.xlu0.c.b16.start [1/8] %v2011, 128
  %2014 = vxpose.xlu0.c.b16.cont [2/8] 0, 128
  %2015 = vxpose.xlu0.c.b16.cont [3/8] 0, 128
  %2016 = vxpose.xlu0.c.b16.cont [4/8] 0, 128
  %2017 = vxpose.xlu0.c.b16.cont [5/8] 0, 128
  %2018 = vxpose.xlu0.c.b16.cont [6/8] 0, 128
  %2019 = vxpose.xlu0.c.b16.cont [7/8] 0, 128
  %2020 = vxpose.xlu0.c.b16.end [8/8] 0, 128
  %v2021 = vpop.trf.xlu0
  %v2022 = vpop.trf.xlu0
  %v2023 = vpop.trf.xlu0
  %v2024 = vpop.trf.xlu0
  %v2025 = vpop.trf.xlu0
  %v2026 = vpop.trf.xlu0
  %v2027 = vpop.trf.xlu0
  %v2028 = vpop.trf.xlu0
  %v2030 = vsel %vm415, %v2021, 0
  %v2033 = vsel %vm415, %v2022, 0
  %v2036 = vsel %vm422, %v2012, 0
  %2038 = vmatprep.subr.bf16.mxu0 0
  %2039 = vmatpush1.bf16.msra.mxu0 %v2036
  %2040 = vmatprep.subr.bf16.mxu0 0
  %2041 = vmatpush1.bf16.msra.mxu0 0
  %2042 = vmatprep.subr.bf16.mxu0 0
  %2043 = vmatpush1.bf16.msra.mxu0 0
  %2044 = vmatprep.subr.bf16.mxu0 0
  %2045 = vmatpush1.bf16.msra.mxu0 0
  %2046 = vmatprep.subr.bf16.mxu0 0
  %2047 = vmatpush1.bf16.msra.mxu0 0
  %2048 = vmatprep.subr.bf16.mxu0 0
  %2049 = vmatpush1.bf16.msra.mxu0 0
  %2050 = vmatprep.subr.bf16.mxu0 0
  %2051 = vmatpush1.bf16.msra.mxu0 0
  %2052 = vmatprep.subr.bf16.mxu0 0
  %2053 = vmatpush1.bf16.msra.mxu0 0
  %2054 = vmatprep.subr.bf16.mxu0 0
  %2055 = vmatpush1.bf16.msra.mxu0 0
  %2056 = vmatprep.subr.bf16.mxu0 0
  %2057 = vmatpush1.bf16.msra.mxu0 0
  %2058 = vmatprep.subr.bf16.mxu0 0
  %2059 = vmatpush1.bf16.msra.mxu0 0
  %2060 = vmatprep.subr.bf16.mxu0 0
  %2061 = vmatpush1.bf16.msra.mxu0 0
  %2062 = vmatprep.subr.bf16.mxu0 0
  %2063 = vmatpush1.bf16.msra.mxu0 0
  %2064 = vmatprep.subr.bf16.mxu0 0
  %2065 = vmatpush1.bf16.msra.mxu0 0
  %2066 = vmatprep.subr.bf16.mxu0 0
  %2067 = vmatpush1.bf16.msra.mxu0 0
  %2068 = vmatprep.subr.bf16.mxu0 0
  %2069 = vmatpush1.bf16.msra.mxu0 0
  %2070 = vmatprep.mubr.bf16.mxu0 0
  %2071 = vmatmul.mubr.bf16.gmra.mrb[0].mxu0 %v2030
  %v2072 = vpop.f32.mrb[0].mxu0
  %v2073 = vadd.f32 0.0, %v2072
  %v2074 = vpop.f32.mrb[0].mxu0
  %v2075 = vpop.f32.mrb[0].mxu0
  %v2076 = vadd.f32 0.0, %v2075
  %v2077 = vpop.f32.mrb[0].mxu0
  %2078 = vmatprep.mubr.bf16.mxu0 0
  %2079 = vmatmul.mubr.bf16.gmra.mrb[0].mxu0 %v2033
  %v2080 = vpop.f32.mrb[0].mxu0
  %v2081 = vadd.f32 0.0, %v2080
  %v2082 = vpop.f32.mrb[0].mxu0
  %v2083 = vpop.f32.mrb[0].mxu0
  %v2084 = vadd.f32 0.0, %v2083
  %v2085 = vpop.f32.mrb[0].mxu0
  %2086 = vdwg.mxu0
  %v2087 = vsel %vm318, %v2073, -inf
  %2088 = vmax.xlane.f32.xlu0 %v2087
  %v2089 = vpop.xlane.xlu0 %2088
  %v2090 = vsel %vm318, %v2076, -inf
  %2091 = vmax.xlane.f32.xlu0 %v2090
  %v2092 = vpop.xlane.xlu0 %2091
  %v2093 = vsel %vm318, %v2081, -inf
  %2094 = vmax.xlane.f32.xlu0 %v2093
  %v2095 = vpop.xlane.xlu0 %2094
  %v2096 = vsel %vm318, %v2084, -inf
  %2097 = vmax.xlane.f32.xlu0 %v2096
  %v2098 = vpop.xlane.xlu0 %2097
  %v2099 = vsub.f32 %v2073, %v2089
  %v2100 = vsub.f32 %v2076, %v2092
  %v2101 = vsub.f32 %v2081, %v2095
  %v2102 = vsub.f32 %v2084, %v2098
  %v2103 = vmul.f32 %v2099, 1.442695
  %v2104 = vpow.pop %v2103
  %v2105 = vmul.f32 %v2100, 1.442695
  %v2106 = vpow.pop %v2105
  %v2107 = vmul.f32 %v2101, 1.442695
  %v2108 = vpow.pop %v2107
  %v2109 = vmul.f32 %v2102, 1.442695
  %v2110 = vpow.pop %v2109
  %v2111 = vsel %vm318, %v2104, 0.0
  %2112 = vadd.xlane.f32.xlu0 %v2111
  %v2113 = vpop.xlane.xlu0 %2112
  %v2114 = vsel %vm318, %v2106, 0.0
  %2115 = vadd.xlane.f32.xlu0 %v2114
  %v2116 = vpop.xlane.xlu0 %2115
  %v2117 = vsel %vm318, %v2108, 0.0
  %2118 = vadd.xlane.f32.xlu0 %v2117
  %v2119 = vpop.xlane.xlu0 %2118
  %v2120 = vsel %vm318, %v2110, 0.0
  %2121 = vadd.xlane.f32.xlu0 %v2120
  %v2122 = vpop.xlane.xlu0 %2121
  %v2123 = vrcp.pop %v2113
  %v2124 = vrcp.pop %v2116
  %v2125 = vrcp.pop %v2119
  %v2126 = vrcp.pop %v2122
  %v2127 = vmul.f32 %v2104, %v2123
  %v2128 = vmul.f32 %v2106, %v2124
  %v2129 = vmul.f32 %v2108, %v2125
  %v2130 = vmul.f32 %v2110, %v2126
  %v2131 = vpack.c.bf16 %v1840, %v1840
  %v2132 = vpack.c.bf16 %v2128, %v2127
  %v2133 = vpack.c.bf16 %v2130, %v2129
  %v2135 = vsel %vm318, %v2131, 0
  %2137 = vmatprep.subr.bf16.mxu0 0
  %2138 = vmatpush1.bf16.msra.mxu0 %v2132
  %2139 = vmatprep.subr.bf16.mxu0 0
  %2140 = vmatpush1.bf16.msra.mxu0 %v2133
  %2141 = vmatprep.subr.bf16.mxu0 0
  %2142 = vmatpush1.bf16.msra.mxu0 0
  %2143 = vmatprep.subr.bf16.mxu0 0
  %2144 = vmatpush1.bf16.msra.mxu0 0
  %2145 = vmatprep.subr.bf16.mxu0 0
  %2146 = vmatpush1.bf16.msra.mxu0 0
  %2147 = vmatprep.subr.bf16.mxu0 0
  %2148 = vmatpush1.bf16.msra.mxu0 0
  %2149 = vmatprep.subr.bf16.mxu0 0
  %2150 = vmatpush1.bf16.msra.mxu0 0
  %2151 = vmatprep.subr.bf16.mxu0 0
  %2152 = vmatpush1.bf16.msra.mxu0 0
  %2153 = vmatprep.subr.bf16.mxu0 0
  %2154 = vmatpush1.bf16.msra.mxu0 0
  %2155 = vmatprep.subr.bf16.mxu0 0
  %2156 = vmatpush1.bf16.msra.mxu0 0
  %2157 = vmatprep.subr.bf16.mxu0 0
  %2158 = vmatpush1.bf16.msra.mxu0 0
  %2159 = vmatprep.subr.bf16.mxu0 0
  %2160 = vmatpush1.bf16.msra.mxu0 0
  %2161 = vmatprep.subr.bf16.mxu0 0
  %2162 = vmatpush1.bf16.msra.mxu0 0
  %2163 = vmatprep.subr.bf16.mxu0 0
  %2164 = vmatpush1.bf16.msra.mxu0 0
  %2165 = vmatprep.subr.bf16.mxu0 0
  %2166 = vmatpush1.bf16.msra.mxu0 0
  %2167 = vmatprep.subr.bf16.mxu0 0
  %2168 = vmatpush1.bf16.msra.mxu0 0
  %2169 = vmatprep.mubr.bf16.mxu0 0
  %2170 = vmatmul.mubr.bf16.gmra.mrb[0].mxu0 %v2135
  %v2171 = vpop.f32.mrb[0].mxu0
  %v2172 = vadd.f32 0.0, %v2171
  %v2173 = vpop.f32.mrb[0].mxu0
  %v2174 = vpop.f32.mrb[0].mxu0
  %v2175 = vpop.f32.mrb[0].mxu0
  %2176 = vdwg.mxu0
  %v2177 = vpack.c.bf16 %v1575, %v1575
  %v2178 = vpack.c.bf16 %v1655, %v1655
  %2179 = vxpose.xlu0.c.b16.start [1/8] %v2177, 128
  %2180 = vxpose.xlu0.c.b16.cont [2/8] 0, 128
  %2181 = vxpose.xlu0.c.b16.cont [3/8] 0, 128
  %2182 = vxpose.xlu0.c.b16.cont [4/8] 0, 128
  %2183 = vxpose.xlu0.c.b16.cont [5/8] 0, 128
  %2184 = vxpose.xlu0.c.b16.cont [6/8] 0, 128
  %2185 = vxpose.xlu0.c.b16.cont [7/8] 0, 128
  %2186 = vxpose.xlu0.c.b16.end [8/8] 0, 128
  %v2187 = vpop.trf.xlu0
  %v2188 = vpop.trf.xlu0
  %v2189 = vpop.trf.xlu0
  %v2190 = vpop.trf.xlu0
  %v2191 = vpop.trf.xlu0
  %v2192 = vpop.trf.xlu0
  %v2193 = vpop.trf.xlu0
  %v2194 = vpop.trf.xlu0
  %v2196 = vsel %vm415, %v2187, 0
  %v2199 = vsel %vm415, %v2188, 0
  %v2202 = vsel %vm422, %v2178, 0
  %2204 = vmatprep.subr.bf16.mxu0 0
  %2205 = vmatpush1.bf16.msra.mxu0 %v2202
  %2206 = vmatprep.subr.bf16.mxu0 0
  %2207 = vmatpush1.bf16.msra.mxu0 0
  %2208 = vmatprep.subr.bf16.mxu0 0
  %2209 = vmatpush1.bf16.msra.mxu0 0
  %2210 = vmatprep.subr.bf16.mxu0 0
  %2211 = vmatpush1.bf16.msra.mxu0 0
  %2212 = vmatprep.subr.bf16.mxu0 0
  %2213 = vmatpush1.bf16.msra.mxu0 0
  %2214 = vmatprep.subr.bf16.mxu0 0
  %2215 = vmatpush1.bf16.msra.mxu0 0
  %2216 = vmatprep.subr.bf16.mxu0 0
  %2217 = vmatpush1.bf16.msra.mxu0 0
  %2218 = vmatprep.subr.bf16.mxu0 0
  %2219 = vmatpush1.bf16.msra.mxu0 0
  %2220 = vmatprep.subr.bf16.mxu0 0
  %2221 = vmatpush1.bf16.msra.mxu0 0
  %2222 = vmatprep.subr.bf16.mxu0 0
  %2223 = vmatpush1.bf16.msra.mxu0 0
  %2224 = vmatprep.subr.bf16.mxu0 0
  %2225 = vmatpush1.bf16.msra.mxu0 0
  %2226 = vmatprep.subr.bf16.mxu0 0
  %2227 = vmatpush1.bf16.msra.mxu0 0
  %2228 = vmatprep.subr.bf16.mxu0 0
  %2229 = vmatpush1.bf16.msra.mxu0 0
  %2230 = vmatprep.subr.bf16.mxu0 0
  %2231 = vmatpush1.bf16.msra.mxu0 0
  %2232 = vmatprep.subr.bf16.mxu0 0
  %2233 = vmatpush1.bf16.msra.mxu0 0
  %2234 = vmatprep.subr.bf16.mxu0 0
  %2235 = vmatpush1.bf16.msra.mxu0 0
  %2236 = vmatprep.mubr.bf16.mxu0 0
  %2237 = vmatmul.mubr.bf16.gmra.mrb[0].mxu0 %v2196
  %v2238 = vpop.f32.mrb[0].mxu0
  %v2239 = vadd.f32 0.0, %v2238
  %v2240 = vpop.f32.mrb[0].mxu0
  %v2241 = vpop.f32.mrb[0].mxu0
  %v2242 = vadd.f32 0.0, %v2241
  %v2243 = vpop.f32.mrb[0].mxu0
  %2244 = vmatprep.mubr.bf16.mxu0 0
  %2245 = vmatmul.mubr.bf16.gmra.mrb[0].mxu0 %v2199
  %v2246 = vpop.f32.mrb[0].mxu0
  %v2247 = vadd.f32 0.0, %v2246
  %v2248 = vpop.f32.mrb[0].mxu0
  %v2249 = vpop.f32.mrb[0].mxu0
  %v2250 = vadd.f32 0.0, %v2249
  %v2251 = vpop.f32.mrb[0].mxu0
  %2252 = vdwg.mxu0
  %v2253 = vsel %vm318, %v2239, -inf
  %2254 = vmax.xlane.f32.xlu0 %v2253
  %v2255 = vpop.xlane.xlu0 %2254
  %v2256 = vsel %vm318, %v2242, -inf
  %2257 = vmax.xlane.f32.xlu0 %v2256
  %v2258 = vpop.xlane.xlu0 %2257
  %v2259 = vsel %vm318, %v2247, -inf
  %2260 = vmax.xlane.f32.xlu0 %v2259
  %v2261 = vpop.xlane.xlu0 %2260
  %v2262 = vsel %vm318, %v2250, -inf
  %2263 = vmax.xlane.f32.xlu0 %v2262
  %v2264 = vpop.xlane.xlu0 %2263
  %v2265 = vsub.f32 %v2239, %v2255
  %v2266 = vsub.f32 %v2242, %v2258
  %v2267 = vsub.f32 %v2247, %v2261
  %v2268 = vsub.f32 %v2250, %v2264
  %v2269 = vmul.f32 %v2265, 1.442695
  %v2270 = vpow.pop %v2269
  %v2271 = vmul.f32 %v2266, 1.442695
  %v2272 = vpow.pop %v2271
  %v2273 = vmul.f32 %v2267, 1.442695
  %v2274 = vpow.pop %v2273
  %v2275 = vmul.f32 %v2268, 1.442695
  %v2276 = vpow.pop %v2275
  %v2277 = vsel %vm318, %v2270, 0.0
  %2278 = vadd.xlane.f32.xlu0 %v2277
  %v2279 = vpop.xlane.xlu0 %2278
  %v2280 = vsel %vm318, %v2272, 0.0
  %2281 = vadd.xlane.f32.xlu0 %v2280
  %v2282 = vpop.xlane.xlu0 %2281
  %v2283 = vsel %vm318, %v2274, 0.0
  %2284 = vadd.xlane.f32.xlu0 %v2283
  %v2285 = vpop.xlane.xlu0 %2284
  %v2286 = vsel %vm318, %v2276, 0.0
  %2287 = vadd.xlane.f32.xlu0 %v2286
  %v2288 = vpop.xlane.xlu0 %2287
  %v2289 = vrcp.pop %v2279
  %v2290 = vrcp.pop %v2282
  %v2291 = vrcp.pop %v2285
  %v2292 = vrcp.pop %v2288
  %v2293 = vmul.f32 %v2270, %v2289
  %v2294 = vmul.f32 %v2272, %v2290
  %v2295 = vmul.f32 %v2274, %v2291
  %v2296 = vmul.f32 %v2276, %v2292
  %v2297 = vpack.c.bf16 %v1841, %v1841
  %v2298 = vpack.c.bf16 %v2294, %v2293
  %v2299 = vpack.c.bf16 %v2296, %v2295
  %v2301 = vsel %vm318, %v2297, 0
  %2303 = vmatprep.subr.bf16.mxu0 0
  %2304 = vmatpush1.bf16.msra.mxu0 %v2298
  %2305 = vmatprep.subr.bf16.mxu0 0
  %2306 = vmatpush1.bf16.msra.mxu0 %v2299
  %2307 = vmatprep.subr.bf16.mxu0 0
  %2308 = vmatpush1.bf16.msra.mxu0 0
  %2309 = vmatprep.subr.bf16.mxu0 0
  %2310 = vmatpush1.bf16.msra.mxu0 0
  %2311 = vmatprep.subr.bf16.mxu0 0
  %2312 = vmatpush1.bf16.msra.mxu0 0
  %2313 = vmatprep.subr.bf16.mxu0 0
  %2314 = vmatpush1.bf16.msra.mxu0 0
  %2315 = vmatprep.subr.bf16.mxu0 0
  %2316 = vmatpush1.bf16.msra.mxu0 0
  %2317 = vmatprep.subr.bf16.mxu0 0
  %2318 = vmatpush1.bf16.msra.mxu0 0
  %2319 = vmatprep.subr.bf16.mxu0 0
  %2320 = vmatpush1.bf16.msra.mxu0 0
  %2321 = vmatprep.subr.bf16.mxu0 0
  %2322 = vmatpush1.bf16.msra.mxu0 0
  %2323 = vmatprep.subr.bf16.mxu0 0
  %2324 = vmatpush1.bf16.msra.mxu0 0
  %2325 = vmatprep.subr.bf16.mxu0 0
  %2326 = vmatpush1.bf16.msra.mxu0 0
  %2327 = vmatprep.subr.bf16.mxu0 0
  %2328 = vmatpush1.bf16.msra.mxu0 0
  %2329 = vmatprep.subr.bf16.mxu0 0
  %2330 = vmatpush1.bf16.msra.mxu0 0
  %2331 = vmatprep.subr.bf16.mxu0 0
  %2332 = vmatpush1.bf16.msra.mxu0 0
  %2333 = vmatprep.subr.bf16.mxu0 0
  %2334 = vmatpush1.bf16.msra.mxu0 0
  %2335 = vmatprep.mubr.bf16.mxu0 0
  %2336 = vmatmul.mubr.bf16.gmra.mrb[0].mxu0 %v2301
  %v2337 = vpop.f32.mrb[0].mxu0
  %v2338 = vadd.f32 0.0, %v2337
  %v2339 = vpop.f32.mrb[0].mxu0
  %v2340 = vpop.f32.mrb[0].mxu0
  %v2341 = vpop.f32.mrb[0].mxu0
  %2342 = vdwg.mxu0
  %v2343 = vpack.c.bf16 %v1576, %v1576
  %v2344 = vpack.c.bf16 %v1656, %v1656
  %2345 = vxpose.xlu0.c.b16.start [1/8] %v2343, 128
  %2346 = vxpose.xlu0.c.b16.cont [2/8] 0, 128
  %2347 = vxpose.xlu0.c.b16.cont [3/8] 0, 128
  %2348 = vxpose.xlu0.c.b16.cont [4/8] 0, 128
  %2349 = vxpose.xlu0.c.b16.cont [5/8] 0, 128
  %2350 = vxpose.xlu0.c.b16.cont [6/8] 0, 128
  %2351 = vxpose.xlu0.c.b16.cont [7/8] 0, 128
  %2352 = vxpose.xlu0.c.b16.end [8/8] 0, 128
  %v2353 = vpop.trf.xlu0
  %v2354 = vpop.trf.xlu0
  %v2355 = vpop.trf.xlu0
  %v2356 = vpop.trf.xlu0
  %v2357 = vpop.trf.xlu0
  %v2358 = vpop.trf.xlu0
  %v2359 = vpop.trf.xlu0
  %v2360 = vpop.trf.xlu0
  %v2362 = vsel %vm415, %v2353, 0
  %v2365 = vsel %vm415, %v2354, 0
  %v2368 = vsel %vm422, %v2344, 0
  %2370 = vmatprep.subr.bf16.mxu0 0
  %2371 = vmatpush1.bf16.msra.mxu0 %v2368
  %2372 = vmatprep.subr.bf16.mxu0 0
  %2373 = vmatpush1.bf16.msra.mxu0 0
  %2374 = vmatprep.subr.bf16.mxu0 0
  %2375 = vmatpush1.bf16.msra.mxu0 0
  %2376 = vmatprep.subr.bf16.mxu0 0
  %2377 = vmatpush1.bf16.msra.mxu0 0
  %2378 = vmatprep.subr.bf16.mxu0 0
  %2379 = vmatpush1.bf16.msra.mxu0 0
  %2380 = vmatprep.subr.bf16.mxu0 0
  %2381 = vmatpush1.bf16.msra.mxu0 0
  %2382 = vmatprep.subr.bf16.mxu0 0
  %2383 = vmatpush1.bf16.msra.mxu0 0
  %2384 = vmatprep.subr.bf16.mxu0 0
  %2385 = vmatpush1.bf16.msra.mxu0 0
  %2386 = vmatprep.subr.bf16.mxu0 0
  %2387 = vmatpush1.bf16.msra.mxu0 0
  %2388 = vmatprep.subr.bf16.mxu0 0
  %2389 = vmatpush1.bf16.msra.mxu0 0
  %2390 = vmatprep.subr.bf16.mxu0 0
  %2391 = vmatpush1.bf16.msra.mxu0 0
  %2392 = vmatprep.subr.bf16.mxu0 0
  %2393 = vmatpush1.bf16.msra.mxu0 0
  %2394 = vmatprep.subr.bf16.mxu0 0
  %2395 = vmatpush1.bf16.msra.mxu0 0
  %2396 = vmatprep.subr.bf16.mxu0 0
  %2397 = vmatpush1.bf16.msra.mxu0 0
  %2398 = vmatprep.subr.bf16.mxu0 0
  %2399 = vmatpush1.bf16.msra.mxu0 0
  %2400 = vmatprep.subr.bf16.mxu0 0
  %2401 = vmatpush1.bf16.msra.mxu0 0
  %2402 = vmatprep.mubr.bf16.mxu0 0
  %2403 = vmatmul.mubr.bf16.gmra.mrb[0].mxu0 %v2362
  %v2404 = vpop.f32.mrb[0].mxu0
  %v2405 = vadd.f32 0.0, %v2404
  %v2406 = vpop.f32.mrb[0].mxu0
  %v2407 = vpop.f32.mrb[0].mxu0
  %v2408 = vadd.f32 0.0, %v2407
  %v2409 = vpop.f32.mrb[0].mxu0
  %2410 = vmatprep.mubr.bf16.mxu0 0
  %2411 = vmatmul.mubr.bf16.gmra.mrb[0].mxu0 %v2365
  %v2412 = vpop.f32.mrb[0].mxu0
  %v2413 = vadd.f32 0.0, %v2412
  %v2414 = vpop.f32.mrb[0].mxu0
  %v2415 = vpop.f32.mrb[0].mxu0
  %v2416 = vadd.f32 0.0, %v2415
  %v2417 = vpop.f32.mrb[0].mxu0
  %2418 = vdwg.mxu0
  %v2419 = vsel %vm318, %v2405, -inf
  %2420 = vmax.xlane.f32.xlu0 %v2419
  %v2421 = vpop.xlane.xlu0 %2420
  %v2422 = vsel %vm318, %v2408, -inf
  %2423 = vmax.xlane.f32.xlu0 %v2422
  %v2424 = vpop.xlane.xlu0 %2423
  %v2425 = vsel %vm318, %v2413, -inf
  %2426 = vmax.xlane.f32.xlu0 %v2425
  %v2427 = vpop.xlane.xlu0 %2426
  %v2428 = vsel %vm318, %v2416, -inf
  %2429 = vmax.xlane.f32.xlu0 %v2428
  %v2430 = vpop.xlane.xlu0 %2429
  %v2431 = vsub.f32 %v2405, %v2421
  %v2432 = vsub.f32 %v2408, %v2424
  %v2433 = vsub.f32 %v2413, %v2427
  %v2434 = vsub.f32 %v2416, %v2430
  %v2435 = vmul.f32 %v2431, 1.442695
  %v2436 = vpow.pop %v2435
  %v2437 = vmul.f32 %v2432, 1.442695
  %v2438 = vpow.pop %v2437
  %v2439 = vmul.f32 %v2433, 1.442695
  %v2440 = vpow.pop %v2439
  %v2441 = vmul.f32 %v2434, 1.442695
  %v2442 = vpow.pop %v2441
  %v2443 = vsel %vm318, %v2436, 0.0
  %2444 = vadd.xlane.f32.xlu0 %v2443
  %v2445 = vpop.xlane.xlu0 %2444
  %v2446 = vsel %vm318, %v2438, 0.0
  %2447 = vadd.xlane.f32.xlu0 %v2446
  %v2448 = vpop.xlane.xlu0 %2447
  %v2449 = vsel %vm318, %v2440, 0.0
  %2450 = vadd.xlane.f32.xlu0 %v2449
  %v2451 = vpop.xlane.xlu0 %2450
  %v2452 = vsel %vm318, %v2442, 0.0
  %2453 = vadd.xlane.f32.xlu0 %v2452
  %v2454 = vpop.xlane.xlu0 %2453
  %v2455 = vrcp.pop %v2445
  %v2456 = vrcp.pop %v2448
  %v2457 = vrcp.pop %v2451
  %v2458 = vrcp.pop %v2454
  %v2459 = vmul.f32 %v2436, %v2455
  %v2460 = vmul.f32 %v2438, %v2456
  %v2461 = vmul.f32 %v2440, %v2457
  %v2462 = vmul.f32 %v2442, %v2458
  %v2463 = vpack.c.bf16 %v1842, %v1842
  %v2464 = vpack.c.bf16 %v2460, %v2459
  %v2465 = vpack.c.bf16 %v2462, %v2461
  %v2467 = vsel %vm318, %v2463, 0
  %2469 = vmatprep.subr.bf16.mxu0 0
  %2470 = vmatpush1.bf16.msra.mxu0 %v2464
  %2471 = vmatprep.subr.bf16.mxu0 0
  %2472 = vmatpush1.bf16.msra.mxu0 %v2465
  %2473 = vmatprep.subr.bf16.mxu0 0
  %2474 = vmatpush1.bf16.msra.mxu0 0
  %2475 = vmatprep.subr.bf16.mxu0 0
  %2476 = vmatpush1.bf16.msra.mxu0 0
  %2477 = vmatprep.subr.bf16.mxu0 0
  %2478 = vmatpush1.bf16.msra.mxu0 0
  %2479 = vmatprep.subr.bf16.mxu0 0
  %2480 = vmatpush1.bf16.msra.mxu0 0
  %2481 = vmatprep.subr.bf16.mxu0 0
  %2482 = vmatpush1.bf16.msra.mxu0 0
  %2483 = vmatprep.subr.bf16.mxu0 0
  %2484 = vmatpush1.bf16.msra.mxu0 0
  %2485 = vmatprep.subr.bf16.mxu0 0
  %2486 = vmatpush1.bf16.msra.mxu0 0
  %2487 = vmatprep.subr.bf16.mxu0 0
  %2488 = vmatpush1.bf16.msra.mxu0 0
  %2489 = vmatprep.subr.bf16.mxu0 0
  %2490 = vmatpush1.bf16.msra.mxu0 0
  %2491 = vmatprep.subr.bf16.mxu0 0
  %2492 = vmatpush1.bf16.msra.mxu0 0
  %2493 = vmatprep.subr.bf16.mxu0 0
  %2494 = vmatpush1.bf16.msra.mxu0 0
  %2495 = vmatprep.subr.bf16.mxu0 0
  %2496 = vmatpush1.bf16.msra.mxu0 0
  %2497 = vmatprep.subr.bf16.mxu0 0
  %2498 = vmatpush1.bf16.msra.mxu0 0
  %2499 = vmatprep.subr.bf16.mxu0 0
  %2500 = vmatpush1.bf16.msra.mxu0 0
  %2501 = vmatprep.mubr.bf16.mxu0 0
  %2502 = vmatmul.mubr.bf16.gmra.mrb[0].mxu0 %v2467
  %v2503 = vpop.f32.mrb[0].mxu0
  %v2504 = vadd.f32 0.0, %v2503
  %v2505 = vpop.f32.mrb[0].mxu0
  %v2506 = vpop.f32.mrb[0].mxu0
  %v2507 = vpop.f32.mrb[0].mxu0
  %2508 = vdwg.mxu0
  %v2509 = vpack.c.bf16 %v1577, %v1577
  %v2510 = vpack.c.bf16 %v1657, %v1657
  %2511 = vxpose.xlu0.c.b16.start [1/8] %v2509, 128
  %2512 = vxpose.xlu0.c.b16.cont [2/8] 0, 128
  %2513 = vxpose.xlu0.c.b16.cont [3/8] 0, 128
  %2514 = vxpose.xlu0.c.b16.cont [4/8] 0, 128
  %2515 = vxpose.xlu0.c.b16.cont [5/8] 0, 128
  %2516 = vxpose.xlu0.c.b16.cont [6/8] 0, 128
  %2517 = vxpose.xlu0.c.b16.cont [7/8] 0, 128
  %2518 = vxpose.xlu0.c.b16.end [8/8] 0, 128
  %v2519 = vpop.trf.xlu0
  %v2520 = vpop.trf.xlu0
  %v2521 = vpop.trf.xlu0
  %v2522 = vpop.trf.xlu0
  %v2523 = vpop.trf.xlu0
  %v2524 = vpop.trf.xlu0
  %v2525 = vpop.trf.xlu0
  %v2526 = vpop.trf.xlu0
  %v2528 = vsel %vm415, %v2519, 0
  %v2531 = vsel %vm415, %v2520, 0
  %v2534 = vsel %vm422, %v2510, 0
  %2536 = vmatprep.subr.bf16.mxu0 0
  %2537 = vmatpush1.bf16.msra.mxu0 %v2534
  %2538 = vmatprep.subr.bf16.mxu0 0
  %2539 = vmatpush1.bf16.msra.mxu0 0
  %2540 = vmatprep.subr.bf16.mxu0 0
  %2541 = vmatpush1.bf16.msra.mxu0 0
  %2542 = vmatprep.subr.bf16.mxu0 0
  %2543 = vmatpush1.bf16.msra.mxu0 0
  %2544 = vmatprep.subr.bf16.mxu0 0
  %2545 = vmatpush1.bf16.msra.mxu0 0
  %2546 = vmatprep.subr.bf16.mxu0 0
  %2547 = vmatpush1.bf16.msra.mxu0 0
  %2548 = vmatprep.subr.bf16.mxu0 0
  %2549 = vmatpush1.bf16.msra.mxu0 0
  %2550 = vmatprep.subr.bf16.mxu0 0
  %2551 = vmatpush1.bf16.msra.mxu0 0
  %2552 = vmatprep.subr.bf16.mxu0 0
  %2553 = vmatpush1.bf16.msra.mxu0 0
  %2554 = vmatprep.subr.bf16.mxu0 0
  %2555 = vmatpush1.bf16.msra.mxu0 0
  %2556 = vmatprep.subr.bf16.mxu0 0
  %2557 = vmatpush1.bf16.msra.mxu0 0
  %2558 = vmatprep.subr.bf16.mxu0 0
  %2559 = vmatpush1.bf16.msra.mxu0 0
  %2560 = vmatprep.subr.bf16.mxu0 0
  %2561 = vmatpush1.bf16.msra.mxu0 0
  %2562 = vmatprep.subr.bf16.mxu0 0
  %2563 = vmatpush1.bf16.msra.mxu0 0
  %2564 = vmatprep.subr.bf16.mxu0 0
  %2565 = vmatpush1.bf16.msra.mxu0 0
  %2566 = vmatprep.subr.bf16.mxu0 0
  %2567 = vmatpush1.bf16.msra.mxu0 0
  %2568 = vmatprep.mubr.bf16.mxu0 0
  %2569 = vmatmul.mubr.bf16.gmra.mrb[0].mxu0 %v2528
  %v2570 = vpop.f32.mrb[0].mxu0
  %v2571 = vadd.f32 0.0, %v2570
  %v2572 = vpop.f32.mrb[0].mxu0
  %v2573 = vpop.f32.mrb[0].mxu0
  %v2574 = vadd.f32 0.0, %v2573
  %v2575 = vpop.f32.mrb[0].mxu0
  %2576 = vmatprep.mubr.bf16.mxu0 0
  %2577 = vmatmul.mubr.bf16.gmra.mrb[0].mxu0 %v2531
  %v2578 = vpop.f32.mrb[0].mxu0
  %v2579 = vadd.f32 0.0, %v2578
  %v2580 = vpop.f32.mrb[0].mxu0
  %v2581 = vpop.f32.mrb[0].mxu0
  %v2582 = vadd.f32 0.0, %v2581
  %v2583 = vpop.f32.mrb[0].mxu0
  %2584 = vdwg.mxu0
  %v2585 = vsel %vm318, %v2571, -inf
  %2586 = vmax.xlane.f32.xlu0 %v2585
  %v2587 = vpop.xlane.xlu0 %2586
  %v2588 = vsel %vm318, %v2574, -inf
  %2589 = vmax.xlane.f32.xlu0 %v2588
  %v2590 = vpop.xlane.xlu0 %2589
  %v2591 = vsel %vm318, %v2579, -inf
  %2592 = vmax.xlane.f32.xlu0 %v2591
  %v2593 = vpop.xlane.xlu0 %2592
  %v2594 = vsel %vm318, %v2582, -inf
  %2595 = vmax.xlane.f32.xlu0 %v2594
  %v2596 = vpop.xlane.xlu0 %2595
  %v2597 = vsub.f32 %v2571, %v2587
  %v2598 = vsub.f32 %v2574, %v2590
  %v2599 = vsub.f32 %v2579, %v2593
  %v2600 = vsub.f32 %v2582, %v2596
  %v2601 = vmul.f32 %v2597, 1.442695
  %v2602 = vpow.pop %v2601
  %v2603 = vmul.f32 %v2598, 1.442695
  %v2604 = vpow.pop %v2603
  %v2605 = vmul.f32 %v2599, 1.442695
  %v2606 = vpow.pop %v2605
  %v2607 = vmul.f32 %v2600, 1.442695
  %v2608 = vpow.pop %v2607
  %v2609 = vsel %vm318, %v2602, 0.0
  %2610 = vadd.xlane.f32.xlu0 %v2609
  %v2611 = vpop.xlane.xlu0 %2610
  %v2612 = vsel %vm318, %v2604, 0.0
  %2613 = vadd.xlane.f32.xlu0 %v2612
  %v2614 = vpop.xlane.xlu0 %2613
  %v2615 = vsel %vm318, %v2606, 0.0
  %2616 = vadd.xlane.f32.xlu0 %v2615
  %v2617 = vpop.xlane.xlu0 %2616
  %v2618 = vsel %vm318, %v2608, 0.0
  %2619 = vadd.xlane.f32.xlu0 %v2618
  %v2620 = vpop.xlane.xlu0 %2619
  %v2621 = vrcp.pop %v2611
  %v2622 = vrcp.pop %v2614
  %v2623 = vrcp.pop %v2617
  %v2624 = vrcp.pop %v2620
  %v2625 = vmul.f32 %v2602, %v2621
  %v2626 = vmul.f32 %v2604, %v2622
  %v2627 = vmul.f32 %v2606, %v2623
  %v2628 = vmul.f32 %v2608, %v2624
  %v2629 = vpack.c.bf16 %v1843, %v1843
  %v2630 = vpack.c.bf16 %v2626, %v2625
  %v2631 = vpack.c.bf16 %v2628, %v2627
  %v2633 = vsel %vm318, %v2629, 0
  %2635 = vmatprep.subr.bf16.mxu0 0
  %2636 = vmatpush1.bf16.msra.mxu0 %v2630
  %2637 = vmatprep.subr.bf16.mxu0 0
  %2638 = vmatpush1.bf16.msra.mxu0 %v2631
  %2639 = vmatprep.subr.bf16.mxu0 0
  %2640 = vmatpush1.bf16.msra.mxu0 0
  %2641 = vmatprep.subr.bf16.mxu0 0
  %2642 = vmatpush1.bf16.msra.mxu0 0
  %2643 = vmatprep.subr.bf16.mxu0 0
  %2644 = vmatpush1.bf16.msra.mxu0 0
  %2645 = vmatprep.subr.bf16.mxu0 0
  %2646 = vmatpush1.bf16.msra.mxu0 0
  %2647 = vmatprep.subr.bf16.mxu0 0
  %2648 = vmatpush1.bf16.msra.mxu0 0
  %2649 = vmatprep.subr.bf16.mxu0 0
  %2650 = vmatpush1.bf16.msra.mxu0 0
  %2651 = vmatprep.subr.bf16.mxu0 0
  %2652 = vmatpush1.bf16.msra.mxu0 0
  %2653 = vmatprep.subr.bf16.mxu0 0
  %2654 = vmatpush1.bf16.msra.mxu0 0
  %2655 = vmatprep.subr.bf16.mxu0 0
  %2656 = vmatpush1.bf16.msra.mxu0 0
  %2657 = vmatprep.subr.bf16.mxu0 0
  %2658 = vmatpush1.bf16.msra.mxu0 0
  %2659 = vmatprep.subr.bf16.mxu0 0
  %2660 = vmatpush1.bf16.msra.mxu0 0
  %2661 = vmatprep.subr.bf16.mxu0 0
  %2662 = vmatpush1.bf16.msra.mxu0 0
  %2663 = vmatprep.subr.bf16.mxu0 0
  %2664 = vmatpush1.bf16.msra.mxu0 0
  %2665 = vmatprep.subr.bf16.mxu0 0
  %2666 = vmatpush1.bf16.msra.mxu0 0
  %2667 = vmatprep.mubr.bf16.mxu0 0
  %2668 = vmatmul.mubr.bf16.gmra.mrb[0].mxu0 %v2633
  %v2669 = vpop.f32.mrb[0].mxu0
  %v2670 = vadd.f32 0.0, %v2669
  %v2671 = vpop.f32.mrb[0].mxu0
  %v2672 = vpop.f32.mrb[0].mxu0
  %v2673 = vpop.f32.mrb[0].mxu0
  %2674 = vdwg.mxu0
  %v2675 = vpack.c.bf16 %v1578, %v1578
  %v2676 = vpack.c.bf16 %v1658, %v1658
  %2677 = vxpose.xlu0.c.b16.start [1/8] %v2675, 128
  %2678 = vxpose.xlu0.c.b16.cont [2/8] 0, 128
  %2679 = vxpose.xlu0.c.b16.cont [3/8] 0, 128
  %2680 = vxpose.xlu0.c.b16.cont [4/8] 0, 128
  %2681 = vxpose.xlu0.c.b16.cont [5/8] 0, 128
  %2682 = vxpose.xlu0.c.b16.cont [6/8] 0, 128
  %2683 = vxpose.xlu0.c.b16.cont [7/8] 0, 128
  %2684 = vxpose.xlu0.c.b16.end [8/8] 0, 128
  %v2685 = vpop.trf.xlu0
  %v2686 = vpop.trf.xlu0
  %v2687 = vpop.trf.xlu0
  %v2688 = vpop.trf.xlu0
  %v2689 = vpop.trf.xlu0
  %v2690 = vpop.trf.xlu0
  %v2691 = vpop.trf.xlu0
  %v2692 = vpop.trf.xlu0
  %v2694 = vsel %vm415, %v2685, 0
  %v2697 = vsel %vm415, %v2686, 0
  %v2700 = vsel %vm422, %v2676, 0
  %2702 = vmatprep.subr.bf16.mxu0 0
  %2703 = vmatpush1.bf16.msra.mxu0 %v2700
  %2704 = vmatprep.subr.bf16.mxu0 0
  %2705 = vmatpush1.bf16.msra.mxu0 0
  %2706 = vmatprep.subr.bf16.mxu0 0
  %2707 = vmatpush1.bf16.msra.mxu0 0
  %2708 = vmatprep.subr.bf16.mxu0 0
  %2709 = vmatpush1.bf16.msra.mxu0 0
  %2710 = vmatprep.subr.bf16.mxu0 0
  %2711 = vmatpush1.bf16.msra.mxu0 0
  %2712 = vmatprep.subr.bf16.mxu0 0
  %2713 = vmatpush1.bf16.msra.mxu0 0
  %2714 = vmatprep.subr.bf16.mxu0 0
  %2715 = vmatpush1.bf16.msra.mxu0 0
  %2716 = vmatprep.subr.bf16.mxu0 0
  %2717 = vmatpush1.bf16.msra.mxu0 0
  %2718 = vmatprep.subr.bf16.mxu0 0
  %2719 = vmatpush1.bf16.msra.mxu0 0
  %2720 = vmatprep.subr.bf16.mxu0 0
  %2721 = vmatpush1.bf16.msra.mxu0 0
  %2722 = vmatprep.subr.bf16.mxu0 0
  %2723 = vmatpush1.bf16.msra.mxu0 0
  %2724 = vmatprep.subr.bf16.mxu0 0
  %2725 = vmatpush1.bf16.msra.mxu0 0
  %2726 = vmatprep.subr.bf16.mxu0 0
  %2727 = vmatpush1.bf16.msra.mxu0 0
  %2728 = vmatprep.subr.bf16.mxu0 0
  %2729 = vmatpush1.bf16.msra.mxu0 0
  %2730 = vmatprep.subr.bf16.mxu0 0
  %2731 = vmatpush1.bf16.msra.mxu0 0
  %2732 = vmatprep.subr.bf16.mxu0 0
  %2733 = vmatpush1.bf16.msra.mxu0 0
  %2734 = vmatprep.mubr.bf16.mxu0 0
  %2735 = vmatmul.mubr.bf16.gmra.mrb[0].mxu0 %v2694
  %v2736 = vpop.f32.mrb[0].mxu0
  %v2737 = vadd.f32 0.0, %v2736
  %v2738 = vpop.f32.mrb[0].mxu0
  %v2739 = vpop.f32.mrb[0].mxu0
  %v2740 = vadd.f32 0.0, %v2739
  %v2741 = vpop.f32.mrb[0].mxu0
  %2742 = vmatprep.mubr.bf16.mxu0 0
  %2743 = vmatmul.mubr.bf16.gmra.mrb[0].mxu0 %v2697
  %v2744 = vpop.f32.mrb[0].mxu0
  %v2745 = vadd.f32 0.0, %v2744
  %v2746 = vpop.f32.mrb[0].mxu0
  %v2747 = vpop.f32.mrb[0].mxu0
  %v2748 = vadd.f32 0.0, %v2747
  %v2749 = vpop.f32.mrb[0].mxu0
  %2750 = vdwg.mxu0
  %v2751 = vsel %vm318, %v2737, -inf
  %2752 = vmax.xlane.f32.xlu0 %v2751
  %v2753 = vpop.xlane.xlu0 %2752
  %v2754 = vsel %vm318, %v2740, -inf
  %2755 = vmax.xlane.f32.xlu0 %v2754
  %v2756 = vpop.xlane.xlu0 %2755
  %v2757 = vsel %vm318, %v2745, -inf
  %2758 = vmax.xlane.f32.xlu0 %v2757
  %v2759 = vpop.xlane.xlu0 %2758
  %v2760 = vsel %vm318, %v2748, -inf
  %2761 = vmax.xlane.f32.xlu0 %v2760
  %v2762 = vpop.xlane.xlu0 %2761
  %v2763 = vsub.f32 %v2737, %v2753
  %v2764 = vsub.f32 %v2740, %v2756
  %v2765 = vsub.f32 %v2745, %v2759
  %v2766 = vsub.f32 %v2748, %v2762
  %v2767 = vmul.f32 %v2763, 1.442695
  %v2768 = vpow.pop %v2767
  %v2769 = vmul.f32 %v2764, 1.442695
  %v2770 = vpow.pop %v2769
  %v2771 = vmul.f32 %v2765, 1.442695
  %v2772 = vpow.pop %v2771
  %v2773 = vmul.f32 %v2766, 1.442695
  %v2774 = vpow.pop %v2773
  %v2775 = vsel %vm318, %v2768, 0.0
  %2776 = vadd.xlane.f32.xlu0 %v2775
  %v2777 = vpop.xlane.xlu0 %2776
  %v2778 = vsel %vm318, %v2770, 0.0
  %2779 = vadd.xlane.f32.xlu0 %v2778
  %v2780 = vpop.xlane.xlu0 %2779
  %v2781 = vsel %vm318, %v2772, 0.0
  %2782 = vadd.xlane.f32.xlu0 %v2781
  %v2783 = vpop.xlane.xlu0 %2782
  %v2784 = vsel %vm318, %v2774, 0.0
  %2785 = vadd.xlane.f32.xlu0 %v2784
  %v2786 = vpop.xlane.xlu0 %2785
  %v2787 = vrcp.pop %v2777
  %v2788 = vrcp.pop %v2780
  %v2789 = vrcp.pop %v2783
  %v2790 = vrcp.pop %v2786
  %v2791 = vmul.f32 %v2768, %v2787
  %v2792 = vmul.f32 %v2770, %v2788
  %v2793 = vmul.f32 %v2772, %v2789
  %v2794 = vmul.f32 %v2774, %v2790
  %v2795 = vpack.c.bf16 %v1844, %v1844
  %v2796 = vpack.c.bf16 %v2792, %v2791
  %v2797 = vpack.c.bf16 %v2794, %v2793
  %v2799 = vsel %vm318, %v2795, 0
  %2801 = vmatprep.subr.bf16.mxu0 0
  %2802 = vmatpush1.bf16.msra.mxu0 %v2796
  %2803 = vmatprep.subr.bf16.mxu0 0
  %2804 = vmatpush1.bf16.msra.mxu0 %v2797
  %2805 = vmatprep.subr.bf16.mxu0 0
  %2806 = vmatpush1.bf16.msra.mxu0 0
  %2807 = vmatprep.subr.bf16.mxu0 0
  %2808 = vmatpush1.bf16.msra.mxu0 0
  %2809 = vmatprep.subr.bf16.mxu0 0
  %2810 = vmatpush1.bf16.msra.mxu0 0
  %2811 = vmatprep.subr.bf16.mxu0 0
  %2812 = vmatpush1.bf16.msra.mxu0 0
  %2813 = vmatprep.subr.bf16.mxu0 0
  %2814 = vmatpush1.bf16.msra.mxu0 0
  %2815 = vmatprep.subr.bf16.mxu0 0
  %2816 = vmatpush1.bf16.msra.mxu0 0
  %2817 = vmatprep.subr.bf16.mxu0 0
  %2818 = vmatpush1.bf16.msra.mxu0 0
  %2819 = vmatprep.subr.bf16.mxu0 0
  %2820 = vmatpush1.bf16.msra.mxu0 0
  %2821 = vmatprep.subr.bf16.mxu0 0
  %2822 = vmatpush1.bf16.msra.mxu0 0
  %2823 = vmatprep.subr.bf16.mxu0 0
  %2824 = vmatpush1.bf16.msra.mxu0 0
  %2825 = vmatprep.subr.bf16.mxu0 0
  %2826 = vmatpush1.bf16.msra.mxu0 0
  %2827 = vmatprep.subr.bf16.mxu0 0
  %2828 = vmatpush1.bf16.msra.mxu0 0
  %2829 = vmatprep.subr.bf16.mxu0 0
  %2830 = vmatpush1.bf16.msra.mxu0 0
  %2831 = vmatprep.subr.bf16.mxu0 0
  %2832 = vmatpush1.bf16.msra.mxu0 0
  %2833 = vmatprep.mubr.bf16.mxu0 0
  %2834 = vmatmul.mubr.bf16.gmra.mrb[0].mxu0 %v2799
  %v2835 = vpop.f32.mrb[0].mxu0
  %v2836 = vadd.f32 0.0, %v2835
  %v2837 = vpop.f32.mrb[0].mxu0
  %v2838 = vpop.f32.mrb[0].mxu0
  %v2839 = vpop.f32.mrb[0].mxu0
  %2840 = vdwg.mxu0
  %v2841 = vpack.c.bf16 %v2172, %v2006
  %v2842 = vpack.c.bf16 %v2504, %v2338
  %v2843 = vpack.c.bf16 %v2836, %v2670
  %s2844 = scalar_lea.vmem %s9, 16
  %v2845 = vld [vmem:[%s2844] sm:$0xf]
  %v2846 = vld [vmem:[%s2844 + $0x4] sm:$0xf]
  %v2847 = vld [vmem:[%s2844 + $0x8] sm:$0xf]
  %v2848 = vld [vmem:[%s2844 + $0xc] sm:$0xf]
  %s2849 = scalar_lea.vmem %s10, 1
  %v2850 = vld [vmem:[%s2849] sm:$0x1]
  %v2852 = vlaneseq
  %v2853 = vshrl.u32 %v2852, 7
  %v2854 = vsub.s32 0, %v2853
  %v2855 = vrot.slane %v2850, %v2854
  %v2861 = vunpack.c.l.b16 %v2845
  %v2862 = vunpack.c.l.b16 %v2846
  %v2863 = vunpack.c.l.b16 %v2847
  %v2864 = vunpack.c.l.b16 %v2848
  %v2865 = vpack.c.b16 %v2862, %v2861
  %v2866 = vpack.c.b16 %v2864, %v2863
  %v2870 = vsel %vm318, %v2841, 0
  %v2873 = vsel %vm318, %v2842, 0
  %v2876 = vsel %vm318, %v2843, 0
  %2878 = vmatprep.subr.bf16.mxu0 0
  %2879 = vmatpush1.bf16.msra.mxu0 %v2865
  %2880 = vmatprep.subr.bf16.mxu0 0
  %2881 = vmatpush1.bf16.msra.mxu0 %v2866
  %2882 = vmatprep.subr.bf16.mxu0 0
  %2883 = vmatpush1.bf16.msra.mxu0 0
  %2884 = vmatprep.subr.bf16.mxu0 0
  %2885 = vmatpush1.bf16.msra.mxu0 0
  %2886 = vmatprep.subr.bf16.mxu0 0
  %2887 = vmatpush1.bf16.msra.mxu0 0
  %2888 = vmatprep.subr.bf16.mxu0 0
  %2889 = vmatpush1.bf16.msra.mxu0 0
  %2890 = vmatprep.subr.bf16.mxu0 0
  %2891 = vmatpush1.bf16.msra.mxu0 0
  %2892 = vmatprep.subr.bf16.mxu0 0
  %2893 = vmatpush1.bf16.msra.mxu0 0
  %2894 = vmatprep.subr.bf16.mxu0 0
  %2895 = vmatpush1.bf16.msra.mxu0 0
  %2896 = vmatprep.subr.bf16.mxu0 0
  %2897 = vmatpush1.bf16.msra.mxu0 0
  %2898 = vmatprep.subr.bf16.mxu0 0
  %2899 = vmatpush1.bf16.msra.mxu0 0
  %2900 = vmatprep.subr.bf16.mxu0 0
  %2901 = vmatpush1.bf16.msra.mxu0 0
  %2902 = vmatprep.subr.bf16.mxu0 0
  %2903 = vmatpush1.bf16.msra.mxu0 0
  %2904 = vmatprep.subr.bf16.mxu0 0
  %2905 = vmatpush1.bf16.msra.mxu0 0
  %2906 = vmatprep.subr.bf16.mxu0 0
  %2907 = vmatpush1.bf16.msra.mxu0 0
  %2908 = vmatprep.subr.bf16.mxu0 0
  %2909 = vmatpush1.bf16.msra.mxu0 0
  %2910 = vmatprep.mubr.bf16.mxu0 0
  %2911 = vmatmul.mubr.bf16.gmra.mrb[0].mxu0 %v2870
  %v2912 = vpop.f32.mrb[0].mxu0
  %v2913 = vadd.f32 %v2855, %v2912
  %v2914 = vpop.f32.mrb[0].mxu0
  %v2915 = vpop.f32.mrb[0].mxu0
  %v2916 = vadd.f32 %v2855, %v2915
  %v2917 = vpop.f32.mrb[0].mxu0
  %2918 = vmatprep.mubr.bf16.mxu0 0
  %2919 = vmatmul.mubr.bf16.gmra.mrb[0].mxu0 %v2873
  %v2920 = vpop.f32.mrb[0].mxu0
  %v2921 = vadd.f32 %v2855, %v2920
  %v2922 = vpop.f32.mrb[0].mxu0
  %v2923 = vpop.f32.mrb[0].mxu0
  %v2924 = vadd.f32 %v2855, %v2923
  %v2925 = vpop.f32.mrb[0].mxu0
  %2926 = vmatprep.mubr.bf16.mxu0 0
  %2927 = vmatmul.mubr.bf16.gmra.mrb[0].mxu0 %v2876
  %v2928 = vpop.f32.mrb[0].mxu0
  %v2929 = vadd.f32 %v2855, %v2928
  %v2930 = vpop.f32.mrb[0].mxu0
  %v2931 = vpop.f32.mrb[0].mxu0
  %v2932 = vadd.f32 %v2855, %v2931
  %v2933 = vpop.f32.mrb[0].mxu0
  %2934 = vdwg.mxu0
  %2935 = vst.msk [vmem:[%s11] sm:$0xff] %vm63, %v2913
  %2936 = vst.msk [vmem:[%s11 + $0x8] sm:$0xff] %vm63, %v2916
  %2937 = vst.msk [vmem:[%s11 + $0x10] sm:$0xff] %vm63, %v2921
  %2938 = vst.msk [vmem:[%s11 + $0x18] sm:$0xff] %vm63, %v2924
  %2939 = vst.msk [vmem:[%s11 + $0x20] sm:$0xff] %vm63, %v2929
  %2940 = vst.msk [vmem:[%s11 + $0x28] sm:$0xff] %vm63, %v2932
  // Predicated region
  $region46: #{tpu_custom_call.1} parent=0 // pred_check
    _
  $region47: #{tpu_custom_call.1} parent=0 // pred_check_branch
    %2942 = sbr.rel (0) target = $region49
  $region48: #{tpu_custom_call.1} parent=0 // pred_region
    _
  $region49: #{tpu_custom_call.1} parent=0 // pred_fallthru
    _
  // Predicated region
  $region50: #{tpu_custom_call.1} parent=0 // pred_check
    _
  $region51: #{tpu_custom_call.1} parent=0 // pred_check_branch
    %2944 = sbr.rel (0) target = $region53
  $region52: #{tpu_custom_call.1} parent=0 // pred_region
    _
  $region53: #{tpu_custom_call.1} parent=0 // pred_fallthru
    _

</llo_original>
